<compile_context>
chip_gen: v7x
topology: tpu7x:2x2x1
jax: 0.10.0
libtpu: 0.0.40
codegen_flags: <defaults>
</compile_context>

<pallas_src>
import jax
import jax.numpy as jnp
from jax.experimental import pallas as pl
from jax.experimental.pallas import tpu as pltpu

IMAGE_DIMS = (3, 3)
D_IN = IMAGE_DIMS[0] * IMAGE_DIMS[1] + 2 + 1 + 2   # 14
D_HID = 2048
D_OUT = 9
N_SPLIT = 2                                        # halves of W2's output dim
N_HALF = D_HID // N_SPLIT                          # 1024


def _policy_kernel(x_ref, w1_ref, b1_ref, w2_ref, b2_ref, w3_ref, b3_ref,
                   out_ref):
    n = pl.program_id(0)

    # Layer 1 (tiny: 14 -> 2048).  Recomputed per half so the two grid steps
    # are fully independent (required for the megacore "parallel" split).
    h1 = jnp.dot(x_ref[...].astype(jnp.bfloat16), w1_ref[...],
                 preferred_element_type=jnp.float32) + b1_ref[...]
    h1 = jnp.maximum(h1, 0.0)

    # Layer 2, this 1024-wide half of the hidden features.
    # bf16 x bf16 on the MXU, f32 accumulation.
    h2 = jnp.dot(h1.astype(jnp.bfloat16), w2_ref[...],
                 preferred_element_type=jnp.float32) + b2_ref[...]
    h2 = jnp.maximum(h2, 0.0)

    # Layer 3 partial: only the rows of W3 that match this half of h2.
    p = jnp.dot(h2.astype(jnp.bfloat16), w3_ref[...],
                preferred_element_type=jnp.float32)
    # Add the output bias exactly once (on the first half).
    b3_scale = jnp.where(n == 0, 1.0, 0.0)
    p = p + b3_ref[...] * b3_scale

    out_ref[0] = p.astype(out_ref.dtype)


def policy_forward(x, w1, b1, w2, b2, w3, b3):
    """x: (B, 14) f32.  w1/w2/w3: bf16 (in, out) layout.  b1/b2/b3: f32 (1, out)."""
    B = x.shape[0]

    grid_spec = pltpu.PrefetchScalarGridSpec(
        num_scalar_prefetch=0,
        grid=(N_SPLIT,),
        in_specs=[
            pl.BlockSpec((B, D_IN),        lambda n: (0, 0)),   # x
            pl.BlockSpec((D_IN, D_HID),    lambda n: (0, 0)),   # W1
            pl.BlockSpec((1, D_HID),       lambda n: (0, 0)),   # b1
            pl.BlockSpec((D_HID, N_HALF),  lambda n: (0, n)),   # W2 (output-split)
            pl.BlockSpec((1, N_HALF),      lambda n: (0, n)),   # b2 half
            pl.BlockSpec((N_HALF, D_OUT),  lambda n: (n, 0)),   # W3 rows of half
            pl.BlockSpec((1, D_OUT),       lambda n: (0, 0)),   # b3
        ],
        out_specs=pl.BlockSpec((1, B, D_OUT), lambda n: (n, 0, 0)),
    )

    flops = 2 * B * (D_IN * D_HID + D_HID * D_HID + D_HID * D_OUT)
    bytes_accessed = (
        x.size * x.dtype.itemsize
        + w1.size * w1.dtype.itemsize + b1.size * b1.dtype.itemsize
        + w2.size * w2.dtype.itemsize + b2.size * b2.dtype.itemsize
        + w3.size * w3.dtype.itemsize + b3.size * b3.dtype.itemsize
        + N_SPLIT * B * D_OUT * 4)

    partials = pl.pallas_call(
        _policy_kernel,
        out_shape=jax.ShapeDtypeStruct((N_SPLIT, B, D_OUT), jnp.float32),
        grid_spec=grid_spec,
        compiler_params=pltpu.CompilerParams(
            dimension_semantics=("parallel",),
            vmem_limit_bytes=32 * 1024 * 1024),
        cost_estimate=pl.CostEstimate(
            flops=flops, transcendentals=0, bytes_accessed=bytes_accessed),
    )(x, w1, b1, w2, b2, w3, b3)

    # Tiny (B, 9) reduction of the two per-core partials.
    return partials[0] + partials[1]


def init_params(key):
    """Deterministic PyTorch-style uniform(-1/sqrt(fan_in), 1/sqrt(fan_in)) in f32."""
    ks = jax.random.split(key, 6)

    def lin(kw, kb, fan_in, fan_out):
        bound = 1.0 / jnp.sqrt(jnp.float32(fan_in))
        w = jax.random.uniform(kw, (fan_in, fan_out), jnp.float32, -bound, bound)
        b = jax.random.uniform(kb, (1, fan_out), jnp.float32, -bound, bound)
        return w, b

    w1, b1 = lin(ks[0], ks[1], D_IN, D_HID)
    w2, b2 = lin(ks[2], ks[3], D_HID, D_HID)
    w3, b3 = lin(ks[4], ks[5], D_HID, D_OUT)
    return w1, b1, w2, b2, w3, b3


def prepare_params(params):
    """Cast weights to bf16 for streaming (biases stay f32 for the accumulate)."""
    w1, b1, w2, b2, w3, b3 = params
    return (w1.astype(jnp.bfloat16), b1,
            w2.astype(jnp.bfloat16), b2,
            w3.astype(jnp.bfloat16), b3)


def policy_ref(x, w1, b1, w2, b2, w3, b3):
    h1 = jnp.maximum(x @ w1 + b1, 0.0)
    h2 = jnp.maximum(h1 @ w2 + b2, 0.0)
    return h2 @ w3 + b3


if __name__ == "__main__":
    key = jax.random.PRNGKey(0)
    k_x, k_p = jax.random.split(key)

    B = 8
    x = jax.random.normal(k_x, (B, D_IN), jnp.float32)
    params_f32 = init_params(k_p)
    params_fast = prepare_params(params_f32)

    out = jax.block_until_ready(policy_forward(x, *params_fast))
    assert out.shape == (B, D_OUT)

    # Tight check: same bf16-rounded weights, f32 math.
    ref_bf16 = policy_ref(x, *[p.astype(jnp.float32) for p in params_fast])
    assert jnp.allclose(out, ref_bf16, atol=1e-2, rtol=1e-2), \
        "mismatch vs bf16-weight reference"

    # Module-semantics check: full-f32 reference, bf16-level tolerance.
    ref_f32 = policy_ref(x, *params_f32)
    assert jnp.allclose(out, ref_f32, atol=3e-2, rtol=3e-2), \
        "mismatch vs f32 reference"

    print("KERNEL_OK")
</pallas_src>

<mosaic_0001>
module attributes {stable_mosaic.version = 11 : i64} {
  func.func @_policy_kernel(%arg0: i32, %arg1: memref<8x14xf32, #tpu.memory_space<vmem>>, %arg2: memref<14x2048xbf16, #tpu.memory_space<vmem>>, %arg3: memref<1x2048xf32, #tpu.memory_space<vmem>>, %arg4: memref<2048x1024xbf16, #tpu.memory_space<vmem>>, %arg5: memref<1x1024xf32, #tpu.memory_space<vmem>>, %arg6: memref<1024x9xbf16, #tpu.memory_space<vmem>>, %arg7: memref<1x9xf32, #tpu.memory_space<vmem>>, %arg8: memref<1x8x9xf32, #tpu.memory_space<vmem>>) attributes {dimension_semantics = [#tpu.dimension_semantics<parallel>], iteration_bounds = array<i64: 2>, scalar_prefetch = 0 : i64, scratch_operands = 0 : i64, tpu.core_type = #tpu.core_type<tc>, window_params = [{pipeline_mode = #tpu.pipeline_mode<synchronous>, transform_indices = @transform_0, window_bounds = array<i64: 8, 14>}, {pipeline_mode = #tpu.pipeline_mode<synchronous>, transform_indices = @transform_1, window_bounds = array<i64: 14, 2048>}, {pipeline_mode = #tpu.pipeline_mode<synchronous>, transform_indices = @transform_2, window_bounds = array<i64: 1, 2048>}, {transform_indices = @transform_3, window_bounds = array<i64: 2048, 1024>}, {transform_indices = @transform_4, window_bounds = array<i64: 1, 1024>}, {transform_indices = @transform_5, window_bounds = array<i64: 1024, 9>}, {pipeline_mode = #tpu.pipeline_mode<synchronous>, transform_indices = @transform_6, window_bounds = array<i64: 1, 9>}, {transform_indices = @transform_7, window_bounds = array<i64: 1, 8, 9>}]} {
    %c0 = arith.constant 0 : index
    %c0_0 = arith.constant 0 : index
    %0 = vector.load %arg1[%c0, %c0_0] : memref<8x14xf32, #tpu.memory_space<vmem>>, vector<8x14xf32>
    %1 = arith.truncf %0 : vector<8x14xf32> to vector<8x14xbf16>
    %c0_1 = arith.constant 0 : index
    %c0_2 = arith.constant 0 : index
    %2 = vector.load %arg2[%c0_1, %c0_2] : memref<14x2048xbf16, #tpu.memory_space<vmem>>, vector<14x2048xbf16>
    %cst = arith.constant dense<0.000000e+00> : vector<8x2048xf32>
    %3 = tpu.matmul %1, %2, %cst {dimension_numbers = #tpu.dot_dimension_numbers<[1], [0], [0], [1], [0, 0, 1, 1], [], []>} : vector<8x14xbf16>, vector<14x2048xbf16>, vector<8x2048xf32> -> vector<8x2048xf32>
    %c0_3 = arith.constant 0 : index
    %c0_4 = arith.constant 0 : index
    %4 = vector.load %arg3[%c0_3, %c0_4] : memref<1x2048xf32, #tpu.memory_space<vmem>>, vector<1x2048xf32>
    %5 = vector.broadcast %4 : vector<1x2048xf32> to vector<8x2048xf32>
    %6 = arith.addf %3, %5 : vector<8x2048xf32>
    %cst_5 = arith.constant 0.000000e+00 : f32
    %7 = vector.broadcast %cst_5 : f32 to vector<8x2048xf32>
    %8 = arith.maximumf %6, %7 : vector<8x2048xf32>
    %9 = arith.truncf %8 : vector<8x2048xf32> to vector<8x2048xbf16>
    %c0_6 = arith.constant 0 : index
    %c0_7 = arith.constant 0 : index
    %10 = vector.load %arg4[%c0_6, %c0_7] : memref<2048x1024xbf16, #tpu.memory_space<vmem>>, vector<2048x1024xbf16>
    %cst_8 = arith.constant dense<0.000000e+00> : vector<8x1024xf32>
    %11 = tpu.matmul %9, %10, %cst_8 {dimension_numbers = #tpu.dot_dimension_numbers<[1], [0], [0], [1], [0, 0, 1, 1], [], []>} : vector<8x2048xbf16>, vector<2048x1024xbf16>, vector<8x1024xf32> -> vector<8x1024xf32>
    %c0_9 = arith.constant 0 : index
    %c0_10 = arith.constant 0 : index
    %12 = vector.load %arg5[%c0_9, %c0_10] : memref<1x1024xf32, #tpu.memory_space<vmem>>, vector<1x1024xf32>
    %13 = vector.broadcast %12 : vector<1x1024xf32> to vector<8x1024xf32>
    %14 = arith.addf %11, %13 : vector<8x1024xf32>
    %cst_11 = arith.constant 0.000000e+00 : f32
    %15 = vector.broadcast %cst_11 : f32 to vector<8x1024xf32>
    %16 = arith.maximumf %14, %15 : vector<8x1024xf32>
    %17 = arith.truncf %16 : vector<8x1024xf32> to vector<8x1024xbf16>
    %c0_12 = arith.constant 0 : index
    %c0_13 = arith.constant 0 : index
    %18 = vector.load %arg6[%c0_12, %c0_13] : memref<1024x9xbf16, #tpu.memory_space<vmem>>, vector<1024x9xbf16>
    %cst_14 = arith.constant dense<0.000000e+00> : vector<8x9xf32>
    %19 = tpu.matmul %17, %18, %cst_14 {dimension_numbers = #tpu.dot_dimension_numbers<[1], [0], [0], [1], [0, 0, 1, 1], [], []>} : vector<8x1024xbf16>, vector<1024x9xbf16>, vector<8x9xf32> -> vector<8x9xf32>
    %c0_i32 = arith.constant 0 : i32
    %20 = arith.cmpi eq, %arg0, %c0_i32 : i32
    %cst_15 = arith.constant 1.000000e+00 : f32
    %cst_16 = arith.constant 0.000000e+00 : f32
    %21 = arith.select %20, %cst_15, %cst_16 : f32
    %c0_17 = arith.constant 0 : index
    %c0_18 = arith.constant 0 : index
    %22 = vector.load %arg7[%c0_17, %c0_18] : memref<1x9xf32, #tpu.memory_space<vmem>>, vector<1x9xf32>
    %23 = vector.broadcast %21 : f32 to vector<1x9xf32>
    %24 = arith.mulf %22, %23 : vector<1x9xf32>
    %25 = vector.broadcast %24 : vector<1x9xf32> to vector<8x9xf32>
    %26 = arith.addf %19, %25 : vector<8x9xf32>
    %c0_19 = arith.constant 0 : index
    %c0_20 = arith.constant 0 : index
    %c0_21 = arith.constant 0 : index
    %27 = vector.load %arg8[%c0_19, %c0_20, %c0_21] : memref<1x8x9xf32, #tpu.memory_space<vmem>>, vector<1x8x9xf32>
    %28 = vector.shape_cast %27 : vector<1x8x9xf32> to vector<8x9xf32>
    %29 = vector.shape_cast %26 : vector<8x9xf32> to vector<1x8x9xf32>
    tpu.vector_store %arg8[%c0_19, %c0_20, %c0_21], %29 {strides = array<i32>} : memref<1x8x9xf32, #tpu.memory_space<vmem>>, vector<1x8x9xf32>,
    return
  }
  func.func @transform_0(%arg0: i32) -> (i32, i32) {
    %c0_i32 = arith.constant 0 : i32
    %c0_i32_0 = arith.constant 0 : i32
    %c0_i32_1 = arith.constant 0 : i32
    return %c0_i32, %c0_i32_0 : i32, i32
  }
  func.func @transform_1(%arg0: i32) -> (i32, i32) {
    %c0_i32 = arith.constant 0 : i32
    %c0_i32_0 = arith.constant 0 : i32
    %c0_i32_1 = arith.constant 0 : i32
    return %c0_i32, %c0_i32_0 : i32, i32
  }
  func.func @transform_2(%arg0: i32) -> (i32, i32) {
    %c0_i32 = arith.constant 0 : i32
    %c0_i32_0 = arith.constant 0 : i32
    %c0_i32_1 = arith.constant 0 : i32
    return %c0_i32, %c0_i32_0 : i32, i32
  }
  func.func @transform_3(%arg0: i32) -> (i32, i32) {
    %c0_i32 = arith.constant 0 : i32
    %c0_i32_0 = arith.constant 0 : i32
    return %c0_i32, %arg0 : i32, i32
  }
  func.func @transform_4(%arg0: i32) -> (i32, i32) {
    %c0_i32 = arith.constant 0 : i32
    %c0_i32_0 = arith.constant 0 : i32
    return %c0_i32, %arg0 : i32, i32
  }
  func.func @transform_5(%arg0: i32) -> (i32, i32) {
    %c0_i32 = arith.constant 0 : i32
    %c0_i32_0 = arith.constant 0 : i32
    return %arg0, %c0_i32 : i32, i32
  }
  func.func @transform_6(%arg0: i32) -> (i32, i32) {
    %c0_i32 = arith.constant 0 : i32
    %c0_i32_0 = arith.constant 0 : i32
    %c0_i32_1 = arith.constant 0 : i32
    return %c0_i32, %c0_i32_0 : i32, i32
  }
  func.func @transform_7(%arg0: i32) -> (i32, i32, i32) {
    %c0_i32 = arith.constant 0 : i32
    %c0_i32_0 = arith.constant 0 : i32
    %c0_i32_1 = arith.constant 0 : i32
    return %arg0, %c0_i32, %c0_i32_0 : i32, i32, i32
  }
}

</mosaic_0001>

<llo_original>
// kernel: tpu_custom_call.1
$region0: #{tpu_custom_call.1}
  #allocation0 [shape = 'u32[]', space=smem, size = 0x4, offset = 0x4, fixed_abs, tag = 'smem constant byte address 0x4 - core index']
  #allocation1 [shape = 'u32[144,128]{1,0:T(1,128)}', space=vmem, size = 0x12000, scoped, tag = 'internal scratch']
  %s0 = inlined_call_operand.hbm [shape: f32[8,14], index: 0, kind: input, shape index: {}]
  %s1 = inlined_call_operand.hbm [shape: bf16[14,2048], index: 1, kind: input, shape index: {}]
  %s2 = inlined_call_operand.hbm [shape: f32[1,2048], index: 2, kind: input, shape index: {}]
  %s3 = inlined_call_operand.hbm [shape: bf16[2048,2048], index: 3, kind: input, shape index: {}]
  %s4 = inlined_call_operand.hbm [shape: f32[1,2048], index: 4, kind: input, shape index: {}]
  %s5 = inlined_call_operand.vmem [shape: bf16[2048,9], index: 5, kind: input, shape index: {}]
  %s6 = inlined_call_operand.hbm [shape: f32[1,9], index: 6, kind: input, shape index: {}]
  %s7 = inlined_call_operand.hbm [shape: f32[2,8,9], index: 7, kind: output, shape index: {}]
  %s8 = sld [smem:[#allocation0]]
  $region85: #{tpu_custom_call.1} parent=0
    _
  %s10 = ssub.s32 1, %s8
  %s11 = scalar_select 0, %s10, %s8
  $region1: #{tpu_custom_call.1} parent=0
    #allocation2 [shape = 'u8[4096]{0}', space=vmem, size = 0x1000, scoped, tag = 'input window, operand 0, single buffered']
    #allocation3 [shape = 's32[2]{0}', space=sflag, size = 0x8, scoped, tag = 'scoped memory for tpu_custom_call.1']
    #allocation4 [shape = 's32[2]{0}', space=sflag, size = 0x8, scoped, tag = 'scoped memory for tpu_custom_call.1']
    #allocation5 [shape = 'u8[65536]{0}', space=vmem, size = 0x10000, scoped, tag = 'input window, operand 1, single buffered']
    #allocation6 [shape = 's32[1]{0}', space=sflag, size = 0x4, scoped, tag = 'scoped memory for tpu_custom_call.1']
    #allocation7 [shape = 'u8[8192]{0}', space=vmem, size = 0x2000, scoped, tag = 'input window, operand 2, single buffered']
    #allocation8 [shape = 'u8[8388608]{0}', space=vmem, size = 0x800000, scoped, tag = 'input window, operand 3']
    #allocation9 [shape = 's32[2]{0}', space=sflag, size = 0x8, scoped, tag = 'scoped memory for tpu_custom_call.1']
    #allocation10 [shape = 'u8[8192]{0}', space=vmem, size = 0x2000, scoped, tag = 'input window, operand 4']
    #allocation11 [shape = 'u8[512]{0}', space=vmem, size = 0x400, scoped, tag = 'input window, operand 6, single buffered']
    #allocation12 [shape = 's32[1]{0}', space=sflag, size = 0x4, scoped, tag = 'scoped memory for tpu_custom_call.1']
    #allocation13 [shape = 'u8[8192]{0}', space=vmem, size = 0x2000, scoped, tag = 'output window, operand 0']
    %12 = vsyncpa [#allocation3], 0
    %13 = vsyncpa [#allocation6], 0
    %14 = vsyncpa [#allocation9], 0
    %s15 = scalar_lea.sflag [#allocation9], 1
    %16 = vsyncpa %s15, 0
    %17 = vsyncpa [#allocation12], 0
    %18 = vsyncpa [#allocation4], 0
    %s19 = scalar_lea.sflag [#allocation4], 1
    %20 = vsyncpa %s19, 0
    loop: start=0, step=1, limit=4
    $region2: #{tpu_custom_call.1} parent=1 // loop_pre_header
      _
    $region3: #{tpu_custom_call.1} parent=1 // loop_header
      %s22 = sphi 0, %s26
      %p23 = scmp.ge.s32.totalorder %s22, 4
      %s30 = sphi 0, %s30
      %s32 = sphi 0, %s30
      %s33 = sphi 0, %s32
      %s47 = sphi 0, %s33
      %s51 = sphi 0, %s51
      %s53 = sphi 0, %s51
      %s54 = sphi 0, %s53
      %s68 = sphi 0, %s54
      %s72 = sphi 0, %s72
      %s74 = sphi 0, %s72
      %s75 = sphi 0, %s74
      %s89 = sphi 0, %s75
      %s95 = sphi 0, %s97
      %s98 = sphi 0, %s95
      %s99 = sphi 0, %s98
      %s115 = sphi 0, %s99
      %s121 = sphi 0, %s123
      %s124 = sphi 0, %s121
      %s125 = sphi 0, %s124
      %s141 = sphi 0, %s125
      %s147 = sphi 0, %s149
      %s150 = sphi 0, %s147
      %s151 = sphi 0, %s150
      %s167 = sphi 0, %s151
      %s171 = sphi 0, %s171
      %s173 = sphi 0, %s171
      %s174 = sphi 0, %s173
      %s188 = sphi 0, %s174
      %s194 = sphi 0, %s196
      %s197 = sphi 0, %s194
      %s198 = sphi 0, %s197
      %s214 = sphi 0, %s198
    $region4: #{tpu_custom_call.1} parent=1 // loop_header_branch
      %25 = sbr.rel (%p23) target = $region8
    $region5: #{tpu_custom_call.1} parent=1 // loop_body
      %s27 = ssub.s32 %s22, 1
      %s28 = ssub.s32 %s22, 2
      %s29 = sadd.s32 %s22, 1
      %s31 = sadd.s32 %s30, 1
      %p34 = scmp.eq.s32.totalorder %s22, 1
      %p35 = scmp.ne.s32.totalorder %s30, %s32
      %p36 = scmp.eq.s32.totalorder %s22, 0
      %p37 = por %p35, %p36
      %p38 = scmp.ne.s32.totalorder %s30, %s32
      %p39 = scmp.eq.s32.totalorder %s27, 1
      %p40 = por %p38, %p39
      %p41 = scmp.ne.s32.totalorder %s32, %s33
      %p42 = scmp.eq.s32.totalorder %s27, 0
      %p43 = por %p41, %p42
      %p44 = scmp.ne.s32.totalorder %s32, %s33
      %p45 = scmp.eq.s32.totalorder %s28, 1
      %p46 = por %p44, %p45
      %p48 = scmp.ne.s32.totalorder %s33, %s47
      %p49 = scmp.eq.s32.totalorder %s28, 0
      %p50 = por %p48, %p49
      %s52 = sadd.s32 %s51, 1
      %p55 = scmp.eq.s32.totalorder %s22, 1
      %p56 = scmp.ne.s32.totalorder %s51, %s53
      %p57 = scmp.eq.s32.totalorder %s22, 0
      %p58 = por %p56, %p57
      %p59 = scmp.ne.s32.totalorder %s51, %s53
      %p60 = scmp.eq.s32.totalorder %s27, 1
      %p61 = por %p59, %p60
      %p62 = scmp.ne.s32.totalorder %s53, %s54
      %p63 = scmp.eq.s32.totalorder %s27, 0
      %p64 = por %p62, %p63
      %p65 = scmp.ne.s32.totalorder %s53, %s54
      %p66 = scmp.eq.s32.totalorder %s28, 1
      %p67 = por %p65, %p66
      %p69 = scmp.ne.s32.totalorder %s54, %s68
      %p70 = scmp.eq.s32.totalorder %s28, 0
      %p71 = por %p69, %p70
      %s73 = sadd.s32 %s72, 1
      %p76 = scmp.eq.s32.totalorder %s22, 1
      %p77 = scmp.ne.s32.totalorder %s72, %s74
      %p78 = scmp.eq.s32.totalorder %s22, 0
      %p79 = por %p77, %p78
      %p80 = scmp.ne.s32.totalorder %s72, %s74
      %p81 = scmp.eq.s32.totalorder %s27, 1
      %p82 = por %p80, %p81
      %p83 = scmp.ne.s32.totalorder %s74, %s75
      %p84 = scmp.eq.s32.totalorder %s27, 0
      %p85 = por %p83, %p84
      %p86 = scmp.ne.s32.totalorder %s74, %s75
      %p87 = scmp.eq.s32.totalorder %s28, 1
      %p88 = por %p86, %p87
      %p90 = scmp.ne.s32.totalorder %s75, %s89
      %p91 = scmp.eq.s32.totalorder %s28, 0
      %p92 = por %p90, %p91
      %s93 = ssub.s32 %s22, %s29
      %p94 = scmp.eq.s32.totalorder %s93, 0
      %s96 = sadd.s32 %s95, 1
      %s97 = scalar_select %p94, %s95, %s96
      %p100 = pneg %p94
      %p101 = scmp.eq.s32.totalorder %s22, 1
      %p102 = por %p100, %p101
      %p103 = scmp.ne.s32.totalorder %s95, %s98
      %p104 = scmp.eq.s32.totalorder %s22, 0
      %p105 = por %p103, %p104
      %p106 = scmp.ne.s32.totalorder %s95, %s98
      %p107 = scmp.eq.s32.totalorder %s27, 1
      %p108 = por %p106, %p107
      %p109 = scmp.ne.s32.totalorder %s98, %s99
      %p110 = scmp.eq.s32.totalorder %s27, 0
      %p111 = por %p109, %p110
      %p112 = scmp.ne.s32.totalorder %s98, %s99
      %p113 = scmp.eq.s32.totalorder %s28, 1
      %p114 = por %p112, %p113
      %p116 = scmp.ne.s32.totalorder %s99, %s115
      %p117 = scmp.eq.s32.totalorder %s28, 0
      %p118 = por %p116, %p117
      %s119 = ssub.s32 %s22, %s29
      %p120 = scmp.eq.s32.totalorder %s119, 0
      %s122 = sadd.s32 %s121, 1
      %s123 = scalar_select %p120, %s121, %s122
      %p126 = pneg %p120
      %p127 = scmp.eq.s32.totalorder %s22, 1
      %p128 = por %p126, %p127
      %p129 = scmp.ne.s32.totalorder %s121, %s124
      %p130 = scmp.eq.s32.totalorder %s22, 0
      %p131 = por %p129, %p130
      %p132 = scmp.ne.s32.totalorder %s121, %s124
      %p133 = scmp.eq.s32.totalorder %s27, 1
      %p134 = por %p132, %p133
      %p135 = scmp.ne.s32.totalorder %s124, %s125
      %p136 = scmp.eq.s32.totalorder %s27, 0
      %p137 = por %p135, %p136
      %p138 = scmp.ne.s32.totalorder %s124, %s125
      %p139 = scmp.eq.s32.totalorder %s28, 1
      %p140 = por %p138, %p139
      %p142 = scmp.ne.s32.totalorder %s125, %s141
      %p143 = scmp.eq.s32.totalorder %s28, 0
      %p144 = por %p142, %p143
      %s145 = ssub.s32 %s22, %s29
      %p146 = scmp.eq.s32.totalorder %s145, 0
      %s148 = sadd.s32 %s147, 1
      %s149 = scalar_select %p146, %s147, %s148
      %p152 = pneg %p146
      %p153 = scmp.eq.s32.totalorder %s22, 1
      %p154 = por %p152, %p153
      %p155 = scmp.ne.s32.totalorder %s147, %s150
      %p156 = scmp.eq.s32.totalorder %s22, 0
      %p157 = por %p155, %p156
      %p158 = scmp.ne.s32.totalorder %s147, %s150
      %p159 = scmp.eq.s32.totalorder %s27, 1
      %p160 = por %p158, %p159
      %p161 = scmp.ne.s32.totalorder %s150, %s151
      %p162 = scmp.eq.s32.totalorder %s27, 0
      %p163 = por %p161, %p162
      %p164 = scmp.ne.s32.totalorder %s150, %s151
      %p165 = scmp.eq.s32.totalorder %s28, 1
      %p166 = por %p164, %p165
      %p168 = scmp.ne.s32.totalorder %s151, %s167
      %p169 = scmp.eq.s32.totalorder %s28, 0
      %p170 = por %p168, %p169
      %s172 = sadd.s32 %s171, 1
      %p175 = scmp.eq.s32.totalorder %s22, 1
      %p176 = scmp.ne.s32.totalorder %s171, %s173
      %p177 = scmp.eq.s32.totalorder %s22, 0
      %p178 = por %p176, %p177
      %p179 = scmp.ne.s32.totalorder %s171, %s173
      %p180 = scmp.eq.s32.totalorder %s27, 1
      %p181 = por %p179, %p180
      %p182 = scmp.ne.s32.totalorder %s173, %s174
      %p183 = scmp.eq.s32.totalorder %s27, 0
      %p184 = por %p182, %p183
      %p185 = scmp.ne.s32.totalorder %s173, %s174
      %p186 = scmp.eq.s32.totalorder %s28, 1
      %p187 = por %p185, %p186
      %p189 = scmp.ne.s32.totalorder %s174, %s188
      %p190 = scmp.eq.s32.totalorder %s28, 0
      %p191 = por %p189, %p190
      %s192 = ssub.s32 %s22, %s29
      %p193 = scmp.eq.s32.totalorder %s192, 0
      %s195 = sadd.s32 %s194, 1
      %s196 = scalar_select %p193, %s194, %s195
      %p199 = pneg %p193
      %p200 = scmp.eq.s32.totalorder %s22, 1
      %p201 = por %p199, %p200
      %p202 = scmp.ne.s32.totalorder %s194, %s197
      %p203 = scmp.eq.s32.totalorder %s22, 0
      %p204 = por %p202, %p203
      %p205 = scmp.ne.s32.totalorder %s194, %s197
      %p206 = scmp.eq.s32.totalorder %s27, 1
      %p207 = por %p205, %p206
      %p208 = scmp.ne.s32.totalorder %s197, %s198
      %p209 = scmp.eq.s32.totalorder %s27, 0
      %p210 = por %p208, %p209
      %p211 = scmp.ne.s32.totalorder %s197, %s198
      %p212 = scmp.eq.s32.totalorder %s28, 1
      %p213 = por %p211, %p212
      %p215 = scmp.ne.s32.totalorder %s198, %s214
      %p216 = scmp.eq.s32.totalorder %s28, 0
      %p217 = por %p215, %p216
      %p218 = scmp.le.s32.totalorder 1, %s22
      %p219 = scmp.lt.s32.totalorder %s22, 3
      %p220 = pnand %p218, %p219
      %p221 = pneg %p220
      // Predicated region
      $region9: #{tpu_custom_call.1} parent=5 // pred_check
        _
      $region10: #{tpu_custom_call.1} parent=5 // pred_check_branch
        %223 = sbr.rel (%p220) target = $region12
      $region11: #{tpu_custom_call.1} parent=5 // pred_region
        %s224 = ssub.s32 %s22, 1
        // Predicated region
        $region13: #{tpu_custom_call.1} parent=11 // pred_check
          %p225 = pneg %p43
        $region14: #{tpu_custom_call.1} parent=11 // pred_check_branch
          %227 = sbr.rel (%p225) target = $region16
        $region15: #{tpu_custom_call.1} parent=11 // pred_region
          %s229 = ssub.s32 128, 128
          %230 = vsyncadd [#allocation3], %s229
          %s232 = sshll.u32 [#allocation2], 4
          %s233 = int_to_ptr.vmem [resolvable:$true] %s232
          %235 = dma.hbm_to_vmem [thread:$0]  %s0, 128, %s233, [#allocation3]
        $region16: #{tpu_custom_call.1} parent=11 // pred_fallthru
          _
        // Predicated region
        $region17: #{tpu_custom_call.1} parent=11 // pred_check
          %p236 = pneg %p64
        $region18: #{tpu_custom_call.1} parent=11 // pred_check_branch
          %238 = sbr.rel (%p236) target = $region20
        $region19: #{tpu_custom_call.1} parent=11 // pred_region
          %s240 = ssub.s32 2048, 2048
          %241 = vsyncadd [#allocation6], %s240
          %s242 = sshll.u32 [#allocation5], 4
          %s243 = int_to_ptr.vmem [resolvable:$true] %s242
          %248 = dma.hbm_to_vmem [thread:$0]  %s1, 2048, %s243, [#allocation6], 1024, 1024, 64
        $region20: #{tpu_custom_call.1} parent=11 // pred_fallthru
          _
        // Predicated region
        $region21: #{tpu_custom_call.1} parent=11 // pred_check
          %p249 = pneg %p85
        $region22: #{tpu_custom_call.1} parent=11 // pred_check_branch
          %251 = sbr.rel (%p249) target = $region24
        $region23: #{tpu_custom_call.1} parent=11 // pred_region
          %s253 = ssub.s32 256, 256
          %254 = vsyncadd [#allocation6], %s253
          %s256 = sshll.u32 [#allocation7], 4
          %s257 = int_to_ptr.vmem [resolvable:$true] %s256
          %259 = dma.hbm_to_vmem [thread:$0]  %s2, 256, %s257, [#allocation6]
        $region24: #{tpu_custom_call.1} parent=11 // pred_fallthru
          _
        // Predicated region
        $region25: #{tpu_custom_call.1} parent=11 // pred_check
          %p260 = pneg %p184
        $region26: #{tpu_custom_call.1} parent=11 // pred_check_branch
          %262 = sbr.rel (%p260) target = $region28
        $region27: #{tpu_custom_call.1} parent=11 // pred_region
          %s264 = ssub.s32 16, 16
          %265 = vsyncadd [#allocation12], %s264
          %s267 = sshll.u32 [#allocation11], 4
          %s268 = int_to_ptr.vmem [resolvable:$true] %s267
          %270 = dma.hbm_to_vmem [thread:$0]  %s6, 16, %s268, [#allocation12]
        $region28: #{tpu_custom_call.1} parent=11 // pred_fallthru
          _
      $region12: #{tpu_custom_call.1} parent=5 // pred_fallthru
        _
      %p271 = scmp.lt.s32.totalorder %s22, 2
      // Predicated region
      $region29: #{tpu_custom_call.1} parent=5 // pred_check
        %p272 = pneg %p271
      $region30: #{tpu_custom_call.1} parent=5 // pred_check_branch
        %274 = sbr.rel (%p272) target = $region32
      $region31: #{tpu_custom_call.1} parent=5 // pred_region
        // Predicated region
        $region33: #{tpu_custom_call.1} parent=31 // pred_check
          %p275 = pneg %p105
        $region34: #{tpu_custom_call.1} parent=31 // pred_check_branch
          %277 = sbr.rel (%p275) target = $region36
        $region35: #{tpu_custom_call.1} parent=31 // pred_region
          %s278 = sand.u32 %s22, 1
          %s279 = scalar_lea.sflag [#allocation9], %s278
          %s280 = sand.u32 %s95, 1
          %s281 = smul.addr %s280, 8192
          %s282 = scalar_lea.vmem [#allocation8], %s281
          %s283 = smul.u32 8, %s22
          %s285 = ssub.s32 131072, 131072
          %286 = vsyncadd %s279, %s285
          %s287 = smul.addr %s283, 64
          %s288 = scalar_lea.hbm %s3, %s287
          %s289 = sshll.u32 %s282, 4
          %s290 = int_to_ptr.vmem [resolvable:$true] %s289
          %295 = dma.hbm_to_vmem [thread:$0]  %s288, 131072, %s290, %s279, 1024, 512, 32
        $region36: #{tpu_custom_call.1} parent=31 // pred_fallthru
          _
        // Predicated region
        $region37: #{tpu_custom_call.1} parent=31 // pred_check
          %p296 = pneg %p131
        $region38: #{tpu_custom_call.1} parent=31 // pred_check_branch
          %298 = sbr.rel (%p296) target = $region40
        $region39: #{tpu_custom_call.1} parent=31 // pred_region
          %s299 = sand.u32 %s22, 1
          %s300 = scalar_lea.sflag [#allocation9], %s299
          %s301 = sand.u32 %s121, 1
          %s302 = smul.addr %s301, 8
          %s303 = scalar_lea.vmem [#allocation10], %s302
          %s304 = smul.u32 8, %s22
          %s306 = ssub.s32 128, 128
          %307 = vsyncadd %s300, %s306
          %s308 = smul.addr %s304, 16
          %s309 = scalar_lea.hbm %s4, %s308
          %s311 = sshll.u32 %s303, 4
          %s312 = int_to_ptr.vmem [resolvable:$true] %s311
          %314 = dma.hbm_to_vmem [thread:$0]  %s309, 128, %s312, %s300
        $region40: #{tpu_custom_call.1} parent=31 // pred_fallthru
          _
        // Predicated region
        $region41: #{tpu_custom_call.1} parent=31 // pred_check
          %p315 = pneg %p157
        $region42: #{tpu_custom_call.1} parent=31 // pred_check_branch
          %317 = sbr.rel (%p315) target = $region44
        $region43: #{tpu_custom_call.1} parent=31 // pred_region
          %s318 = smul.u32 128, %s22
          %p319 = scmp.lt.s32.totalorder %s318, 255
          %s320 = scalar_select %p319, %s318, 255
          %s321 = smul.addr %s320, 4
          %s322 = scalar_lea.vmem %s5, %s321
          %s323 = smul.u32 128, %s22
        $region44: #{tpu_custom_call.1} parent=31 // pred_fallthru
          _
      $region32: #{tpu_custom_call.1} parent=5 // pred_fallthru
        _
      %p324 = scmp.le.s32.totalorder 1, %s22
      %p325 = scmp.lt.s32.totalorder %s22, 3
      %p326 = pnand %p324, %p325
      %p327 = pneg %p326
      // Predicated region
      $region45: #{tpu_custom_call.1} parent=5 // pred_check
        _
      $region46: #{tpu_custom_call.1} parent=5 // pred_check_branch
        %329 = sbr.rel (%p326) target = $region48
      $region47: #{tpu_custom_call.1} parent=5 // pred_region
        %s330 = ssub.s32 %s22, 1
        // Predicated region
        $region49: #{tpu_custom_call.1} parent=47 // pred_check
          %p331 = pneg %p43
        $region50: #{tpu_custom_call.1} parent=47 // pred_check_branch
          %333 = sbr.rel (%p331) target = $region52
        $region51: #{tpu_custom_call.1} parent=47 // pred_region
          %334 = dma.done [#allocation3], 128
        $region52: #{tpu_custom_call.1} parent=47 // pred_fallthru
          _
        // Predicated region
        $region53: #{tpu_custom_call.1} parent=47 // pred_check
          %p335 = pneg %p64
        $region54: #{tpu_custom_call.1} parent=47 // pred_check_branch
          %337 = sbr.rel (%p335) target = $region56
        $region55: #{tpu_custom_call.1} parent=47 // pred_region
          %338 = dma.done [#allocation6], 2048
        $region56: #{tpu_custom_call.1} parent=47 // pred_fallthru
          _
        // Predicated region
        $region57: #{tpu_custom_call.1} parent=47 // pred_check
          %p339 = pneg %p85
        $region58: #{tpu_custom_call.1} parent=47 // pred_check_branch
          %341 = sbr.rel (%p339) target = $region60
        $region59: #{tpu_custom_call.1} parent=47 // pred_region
          %342 = dma.done [#allocation6], 256
        $region60: #{tpu_custom_call.1} parent=47 // pred_fallthru
          _
        %s343 = sand.u32 %s27, 1
        %s344 = scalar_lea.sflag [#allocation9], %s343
        %s345 = sand.u32 %s98, 1
        %s346 = smul.addr %s345, 8192
        %s347 = scalar_lea.vmem [#allocation8], %s346
        // Predicated region
        $region61: #{tpu_custom_call.1} parent=47 // pred_check
          %p348 = pneg %p111
        $region62: #{tpu_custom_call.1} parent=47 // pred_check_branch
          %350 = sbr.rel (%p348) target = $region64
        $region63: #{tpu_custom_call.1} parent=47 // pred_region
          %351 = dma.done %s344, 131072
        $region64: #{tpu_custom_call.1} parent=47 // pred_fallthru
          _
        %s352 = sand.u32 %s27, 1
        %s353 = scalar_lea.sflag [#allocation9], %s352
        %s354 = sand.u32 %s124, 1
        %s355 = smul.addr %s354, 8
        %s356 = scalar_lea.vmem [#allocation10], %s355
        // Predicated region
        $region65: #{tpu_custom_call.1} parent=47 // pred_check
          %p357 = pneg %p137
        $region66: #{tpu_custom_call.1} parent=47 // pred_check_branch
          %359 = sbr.rel (%p357) target = $region68
        $region67: #{tpu_custom_call.1} parent=47 // pred_region
          %360 = dma.done %s353, 128
        $region68: #{tpu_custom_call.1} parent=47 // pred_fallthru
          _
        // Predicated region
        $region69: #{tpu_custom_call.1} parent=47 // pred_check
          %p361 = pneg %p184
        $region70: #{tpu_custom_call.1} parent=47 // pred_check_branch
          %363 = sbr.rel (%p361) target = $region72
        $region71: #{tpu_custom_call.1} parent=47 // pred_region
          %364 = dma.done [#allocation12], 16
        $region72: #{tpu_custom_call.1} parent=47 // pred_fallthru
          _
        %p365 = pneg %p43
        %p366 = pneg %p40
        %p367 = pneg %p64
        %p368 = pneg %p61
        %p369 = pneg %p85
        %p370 = pneg %p82
        %s371 = sand.u32 %s27, 1
        %s372 = scalar_lea.sflag [#allocation9], %s371
        %s373 = sand.u32 %s98, 1
        %s374 = smul.addr %s373, 8192
        %s375 = scalar_lea.vmem [#allocation8], %s374
        %p376 = pneg %p111
        %p377 = pneg %p108
        %s378 = sand.u32 %s27, 1
        %s379 = scalar_lea.sflag [#allocation9], %s378
        %s380 = sand.u32 %s124, 1
        %s381 = smul.addr %s380, 8
        %s382 = scalar_lea.vmem [#allocation10], %s381
        %p383 = pneg %p137
        %p384 = pneg %p134
        %s385 = smul.u32 128, %s27
        %p386 = scmp.lt.s32.totalorder %s385, 255
        %s387 = scalar_select %p386, %s385, 255
        %s388 = smul.addr %s387, 4
        %s389 = scalar_lea.vmem %s5, %s388
        %p390 = pneg %p163
        %p391 = pneg %p160
        %p392 = pneg %p184
        %p393 = pneg %p181
        %p394 = pneg %p210
        %p395 = pneg %p207
        %s396 = sand.u32 %s197, 1
        %s397 = scalar_lea.sflag [#allocation4], %s396
        %s398 = sand.u32 %s197, 1
        %s399 = smul.addr %s398, 8
        %s400 = scalar_lea.vmem [#allocation13], %s399
        %s401 = smul.u32 8, %s27
        %s402 = smul.u32 8, %s27
        %s403 = smul.u32 128, %s27
        %p404 = scmp.lt.s32.totalorder %s403, 255
        %s405 = scalar_select %p404, %s403, 255
        %s406 = smul.addr %s405, 4
        %s407 = scalar_lea.vmem %s5, %s406
        %s408 = smul.u32 128, %s27
        %v410 = vld [vmem:[#allocation2] sm:$0xff]
        %v411 = vpack.c.bf16 %v410, %v410
        %v412 = vld [vmem:[#allocation5] sm:$0xff]
        %v413 = vld [vmem:[#allocation5 + $0x8] sm:$0xff]
        %v414 = vld [vmem:[#allocation5 + $0x10] sm:$0xff]
        %v415 = vld [vmem:[#allocation5 + $0x18] sm:$0xff]
        %v416 = vld [vmem:[#allocation5 + $0x20] sm:$0xff]
        %v417 = vld [vmem:[#allocation5 + $0x28] sm:$0xff]
        %v418 = vld [vmem:[#allocation5 + $0x30] sm:$0xff]
        %v419 = vld [vmem:[#allocation5 + $0x38] sm:$0xff]
        %v420 = vld [vmem:[#allocation5 + $0x40] sm:$0x77]
        %v421 = vld [vmem:[#allocation5 + $0x48] sm:$0x77]
        %v422 = vld [vmem:[#allocation5 + $0x50] sm:$0x77]
        %v423 = vld [vmem:[#allocation5 + $0x58] sm:$0x77]
        %v424 = vld [vmem:[#allocation5 + $0x60] sm:$0x77]
        %v425 = vld [vmem:[#allocation5 + $0x68] sm:$0x77]
        %v426 = vld [vmem:[#allocation5 + $0x70] sm:$0x77]
        %v427 = vld [vmem:[#allocation5 + $0x78] sm:$0x77]
        %v428 = vld [vmem:[#allocation7] sm:$0xff]
        %v429 = vld [vmem:[#allocation7 + $0x8] sm:$0xff]
        %v432 = vlaneseq
        %v433 = vshrl.u32 %v432, 7
        %v434 = vsub.s32 0, %v433
        %v435 = vrot.slane %v428, %v434
        %v436 = vlaneseq
        %v437 = vshrl.u32 %v436, 7
        %v438 = vsub.s32 1, %v437
        %v439 = vrot.slane %v428, %v438
        %v440 = vlaneseq
        %v441 = vshrl.u32 %v440, 7
        %v442 = vsub.s32 2, %v441
        %v443 = vrot.slane %v428, %v442
        %v444 = vlaneseq
        %v445 = vshrl.u32 %v444, 7
        %v446 = vsub.s32 3, %v445
        %v447 = vrot.slane %v428, %v446
        %v448 = vlaneseq
        %v449 = vshrl.u32 %v448, 7
        %v450 = vsub.s32 4, %v449
        %v451 = vrot.slane %v428, %v450
        %v452 = vlaneseq
        %v453 = vshrl.u32 %v452, 7
        %v454 = vsub.s32 5, %v453
        %v455 = vrot.slane %v428, %v454
        %v456 = vlaneseq
        %v457 = vshrl.u32 %v456, 7
        %v458 = vsub.s32 6, %v457
        %v459 = vrot.slane %v428, %v458
        %v460 = vlaneseq
        %v461 = vshrl.u32 %v460, 7
        %v462 = vsub.s32 7, %v461
        %v463 = vrot.slane %v428, %v462
        %v464 = vlaneseq
        %v465 = vshrl.u32 %v464, 7
        %v466 = vsub.s32 0, %v465
        %v467 = vrot.slane %v429, %v466
        %v468 = vlaneseq
        %v469 = vshrl.u32 %v468, 7
        %v470 = vsub.s32 1, %v469
        %v471 = vrot.slane %v429, %v470
        %v472 = vlaneseq
        %v473 = vshrl.u32 %v472, 7
        %v474 = vsub.s32 2, %v473
        %v475 = vrot.slane %v429, %v474
        %v476 = vlaneseq
        %v477 = vshrl.u32 %v476, 7
        %v478 = vsub.s32 3, %v477
        %v479 = vrot.slane %v429, %v478
        %v480 = vlaneseq
        %v481 = vshrl.u32 %v480, 7
        %v482 = vsub.s32 4, %v481
        %v483 = vrot.slane %v429, %v482
        %v484 = vlaneseq
        %v485 = vshrl.u32 %v484, 7
        %v486 = vsub.s32 5, %v485
        %v487 = vrot.slane %v429, %v486
        %v488 = vlaneseq
        %v489 = vshrl.u32 %v488, 7
        %v490 = vsub.s32 6, %v489
        %v491 = vrot.slane %v429, %v490
        %v492 = vlaneseq
        %v493 = vshrl.u32 %v492, 7
        %v494 = vsub.s32 7, %v493
        %v495 = vrot.slane %v429, %v494
        %v528 = vunpack.c.l.b16 %v412
        %v529 = vunpack.c.h.b16 %v412
        %v530 = vunpack.c.l.b16 %v413
        %v531 = vunpack.c.h.b16 %v413
        %v532 = vunpack.c.l.b16 %v414
        %v533 = vunpack.c.h.b16 %v414
        %v534 = vunpack.c.l.b16 %v415
        %v535 = vunpack.c.h.b16 %v415
        %v536 = vunpack.c.l.b16 %v416
        %v537 = vunpack.c.h.b16 %v416
        %v538 = vunpack.c.l.b16 %v417
        %v539 = vunpack.c.h.b16 %v417
        %v540 = vunpack.c.l.b16 %v418
        %v541 = vunpack.c.h.b16 %v418
        %v542 = vunpack.c.l.b16 %v419
        %v543 = vunpack.c.h.b16 %v419
        %v544 = vunpack.c.l.b16 %v420
        %v545 = vunpack.c.h.b16 %v420
        %v546 = vunpack.c.l.b16 %v421
        %v547 = vunpack.c.h.b16 %v421
        %v548 = vunpack.c.l.b16 %v422
        %v549 = vunpack.c.h.b16 %v422
        %v550 = vunpack.c.l.b16 %v423
        %v551 = vunpack.c.h.b16 %v423
        %v552 = vunpack.c.l.b16 %v424
        %v553 = vunpack.c.h.b16 %v424
        %v554 = vunpack.c.l.b16 %v425
        %v555 = vunpack.c.h.b16 %v425
        %v556 = vunpack.c.l.b16 %v426
        %v557 = vunpack.c.h.b16 %v426
        %v558 = vunpack.c.l.b16 %v427
        %v559 = vunpack.c.h.b16 %v427
        %v560 = vpack.c.b16 %v544, %v528
        %v561 = vpack.c.b16 %v545, %v529
        %v562 = vpack.c.b16 %v546, %v530
        %v563 = vpack.c.b16 %v547, %v531
        %v564 = vpack.c.b16 %v548, %v532
        %v565 = vpack.c.b16 %v549, %v533
        %v566 = vpack.c.b16 %v550, %v534
        %v567 = vpack.c.b16 %v551, %v535
        %v568 = vpack.c.b16 %v552, %v536
        %v569 = vpack.c.b16 %v553, %v537
        %v570 = vpack.c.b16 %v554, %v538
        %v571 = vpack.c.b16 %v555, %v539
        %v572 = vpack.c.b16 %v556, %v540
        %v573 = vpack.c.b16 %v557, %v541
        %v574 = vpack.c.b16 %v558, %v542
        %v575 = vpack.c.b16 %v559, %v543
        %vm576 = vcmask 113664
        %v578 = vsel %vm576, %v411, 0
        %vm580 = vcmask 1046528
        %v582 = vsel %vm580, %v560, 0
        %v585 = vsel %vm580, %v561, 0
        %v588 = vsel %vm580, %v562, 0
        %v591 = vsel %vm580, %v563, 0
        %v594 = vsel %vm580, %v564, 0
        %v597 = vsel %vm580, %v565, 0
        %v600 = vsel %vm580, %v566, 0
        %v603 = vsel %vm580, %v567, 0
        %v606 = vsel %vm580, %v568, 0
        %v609 = vsel %vm580, %v569, 0
        %v612 = vsel %vm580, %v570, 0
        %v615 = vsel %vm580, %v571, 0
        %v618 = vsel %vm580, %v572, 0
        %v621 = vsel %vm580, %v573, 0
        %v624 = vsel %vm580, %v574, 0
        %v627 = vsel %vm580, %v575, 0
        %629 = vmatprep.subr.bf16.mxu0 %v585
        %630 = vmatpush1.bf16.msra.mxu0 %v582
        %631 = vmatprep.subr.bf16.mxu0 0
        %632 = vmatpush1.bf16.msra.mxu0 0
        %633 = vmatprep.subr.bf16.mxu0 0
        %634 = vmatpush1.bf16.msra.mxu0 0
        %635 = vmatprep.subr.bf16.mxu0 0
        %636 = vmatpush1.bf16.msra.mxu0 0
        %637 = vmatprep.subr.bf16.mxu0 0
        %638 = vmatpush1.bf16.msra.mxu0 0
        %639 = vmatprep.subr.bf16.mxu0 0
        %640 = vmatpush1.bf16.msra.mxu0 0
        %641 = vmatprep.subr.bf16.mxu0 0
        %642 = vmatpush1.bf16.msra.mxu0 0
        %643 = vmatprep.subr.bf16.mxu0 0
        %644 = vmatpush1.bf16.msra.mxu0 0
        %645 = vmatprep.subr.bf16.mxu0 0
        %646 = vmatpush1.bf16.msra.mxu0 0
        %647 = vmatprep.subr.bf16.mxu0 0
        %648 = vmatpush1.bf16.msra.mxu0 0
        %649 = vmatprep.subr.bf16.mxu0 0
        %650 = vmatpush1.bf16.msra.mxu0 0
        %651 = vmatprep.subr.bf16.mxu0 0
        %652 = vmatpush1.bf16.msra.mxu0 0
        %653 = vmatprep.subr.bf16.mxu0 0
        %654 = vmatpush1.bf16.msra.mxu0 0
        %655 = vmatprep.subr.bf16.mxu0 0
        %656 = vmatpush1.bf16.msra.mxu0 0
        %657 = vmatprep.subr.bf16.mxu0 0
        %658 = vmatpush1.bf16.msra.mxu0 0
        %659 = vmatprep.subr.bf16.mxu0 0
        %660 = vmatpush1.bf16.msra.mxu0 0
        %661 = vmatprep.mubr.bf16.mxu0 0
        %662 = vmatmul.mubr.bf16.gmra.mrb[0].mxu0 %v578
        %v663 = vpop.f32.mrb[0].mxu0
        %v664 = vadd.f32 %v435, %v663
        %v665 = vpop.f32.mrb[0].mxu0
        %v666 = vadd.f32 %v439, %v665
        %v667 = vpop.f32.mrb[0].mxu0
        %v668 = vpop.f32.mrb[0].mxu0
        %669 = vdwg.mxu0
        %670 = vmatprep.subr.bf16.mxu0 %v591
        %671 = vmatpush1.bf16.msra.mxu0 %v588
        %672 = vmatprep.subr.bf16.mxu0 0
        %673 = vmatpush1.bf16.msra.mxu0 0
        %674 = vmatprep.subr.bf16.mxu0 0
        %675 = vmatpush1.bf16.msra.mxu0 0
        %676 = vmatprep.subr.bf16.mxu0 0
        %677 = vmatpush1.bf16.msra.mxu0 0
        %678 = vmatprep.subr.bf16.mxu0 0
        %679 = vmatpush1.bf16.msra.mxu0 0
        %680 = vmatprep.subr.bf16.mxu0 0
        %681 = vmatpush1.bf16.msra.mxu0 0
        %682 = vmatprep.subr.bf16.mxu0 0
        %683 = vmatpush1.bf16.msra.mxu0 0
        %684 = vmatprep.subr.bf16.mxu0 0
        %685 = vmatpush1.bf16.msra.mxu0 0
        %686 = vmatprep.subr.bf16.mxu0 0
        %687 = vmatpush1.bf16.msra.mxu0 0
        %688 = vmatprep.subr.bf16.mxu0 0
        %689 = vmatpush1.bf16.msra.mxu0 0
        %690 = vmatprep.subr.bf16.mxu0 0
        %691 = vmatpush1.bf16.msra.mxu0 0
        %692 = vmatprep.subr.bf16.mxu0 0
        %693 = vmatpush1.bf16.msra.mxu0 0
        %694 = vmatprep.subr.bf16.mxu0 0
        %695 = vmatpush1.bf16.msra.mxu0 0
        %696 = vmatprep.subr.bf16.mxu0 0
        %697 = vmatpush1.bf16.msra.mxu0 0
        %698 = vmatprep.subr.bf16.mxu0 0
        %699 = vmatpush1.bf16.msra.mxu0 0
        %700 = vmatprep.subr.bf16.mxu0 0
        %701 = vmatpush1.bf16.msra.mxu0 0
        %702 = vmatprep.mubr.bf16.mxu0 0
        %703 = vmatmul.mubr.bf16.gmra.mrb[0].mxu0 %v578
        %v704 = vpop.f32.mrb[0].mxu0
        %v705 = vadd.f32 %v443, %v704
        %v706 = vpop.f32.mrb[0].mxu0
        %v707 = vadd.f32 %v447, %v706
        %v708 = vpop.f32.mrb[0].mxu0
        %v709 = vpop.f32.mrb[0].mxu0
        %710 = vdwg.mxu0
        %711 = vmatprep.subr.bf16.mxu0 %v597
        %712 = vmatpush1.bf16.msra.mxu0 %v594
        %713 = vmatprep.subr.bf16.mxu0 0
        %714 = vmatpush1.bf16.msra.mxu0 0
        %715 = vmatprep.subr.bf16.mxu0 0
        %716 = vmatpush1.bf16.msra.mxu0 0
        %717 = vmatprep.subr.bf16.mxu0 0
        %718 = vmatpush1.bf16.msra.mxu0 0
        %719 = vmatprep.subr.bf16.mxu0 0
        %720 = vmatpush1.bf16.msra.mxu0 0
        %721 = vmatprep.subr.bf16.mxu0 0
        %722 = vmatpush1.bf16.msra.mxu0 0
        %723 = vmatprep.subr.bf16.mxu0 0
        %724 = vmatpush1.bf16.msra.mxu0 0
        %725 = vmatprep.subr.bf16.mxu0 0
        %726 = vmatpush1.bf16.msra.mxu0 0
        %727 = vmatprep.subr.bf16.mxu0 0
        %728 = vmatpush1.bf16.msra.mxu0 0
        %729 = vmatprep.subr.bf16.mxu0 0
        %730 = vmatpush1.bf16.msra.mxu0 0
        %731 = vmatprep.subr.bf16.mxu0 0
        %732 = vmatpush1.bf16.msra.mxu0 0
        %733 = vmatprep.subr.bf16.mxu0 0
        %734 = vmatpush1.bf16.msra.mxu0 0
        %735 = vmatprep.subr.bf16.mxu0 0
        %736 = vmatpush1.bf16.msra.mxu0 0
        %737 = vmatprep.subr.bf16.mxu0 0
        %738 = vmatpush1.bf16.msra.mxu0 0
        %739 = vmatprep.subr.bf16.mxu0 0
        %740 = vmatpush1.bf16.msra.mxu0 0
        %741 = vmatprep.subr.bf16.mxu0 0
        %742 = vmatpush1.bf16.msra.mxu0 0
        %743 = vmatprep.mubr.bf16.mxu0 0
        %744 = vmatmul.mubr.bf16.gmra.mrb[0].mxu0 %v578
        %v745 = vpop.f32.mrb[0].mxu0
        %v746 = vadd.f32 %v451, %v745
        %v747 = vpop.f32.mrb[0].mxu0
        %v748 = vadd.f32 %v455, %v747
        %v749 = vpop.f32.mrb[0].mxu0
        %v750 = vpop.f32.mrb[0].mxu0
        %751 = vdwg.mxu0
        %752 = vmatprep.subr.bf16.mxu0 %v603
        %753 = vmatpush1.bf16.msra.mxu0 %v600
        %754 = vmatprep.subr.bf16.mxu0 0
        %755 = vmatpush1.bf16.msra.mxu0 0
        %756 = vmatprep.subr.bf16.mxu0 0
        %757 = vmatpush1.bf16.msra.mxu0 0
        %758 = vmatprep.subr.bf16.mxu0 0
        %759 = vmatpush1.bf16.msra.mxu0 0
        %760 = vmatprep.subr.bf16.mxu0 0
        %761 = vmatpush1.bf16.msra.mxu0 0
        %762 = vmatprep.subr.bf16.mxu0 0
        %763 = vmatpush1.bf16.msra.mxu0 0
        %764 = vmatprep.subr.bf16.mxu0 0
        %765 = vmatpush1.bf16.msra.mxu0 0
        %766 = vmatprep.subr.bf16.mxu0 0
        %767 = vmatpush1.bf16.msra.mxu0 0
        %768 = vmatprep.subr.bf16.mxu0 0
        %769 = vmatpush1.bf16.msra.mxu0 0
        %770 = vmatprep.subr.bf16.mxu0 0
        %771 = vmatpush1.bf16.msra.mxu0 0
        %772 = vmatprep.subr.bf16.mxu0 0
        %773 = vmatpush1.bf16.msra.mxu0 0
        %774 = vmatprep.subr.bf16.mxu0 0
        %775 = vmatpush1.bf16.msra.mxu0 0
        %776 = vmatprep.subr.bf16.mxu0 0
        %777 = vmatpush1.bf16.msra.mxu0 0
        %778 = vmatprep.subr.bf16.mxu0 0
        %779 = vmatpush1.bf16.msra.mxu0 0
        %780 = vmatprep.subr.bf16.mxu0 0
        %781 = vmatpush1.bf16.msra.mxu0 0
        %782 = vmatprep.subr.bf16.mxu0 0
        %783 = vmatpush1.bf16.msra.mxu0 0
        %784 = vmatprep.mubr.bf16.mxu0 0
        %785 = vmatmul.mubr.bf16.gmra.mrb[0].mxu0 %v578
        %v786 = vpop.f32.mrb[0].mxu0
        %v787 = vadd.f32 %v459, %v786
        %v788 = vpop.f32.mrb[0].mxu0
        %v789 = vadd.f32 %v463, %v788
        %v790 = vpop.f32.mrb[0].mxu0
        %v791 = vpop.f32.mrb[0].mxu0
        %792 = vdwg.mxu0
        %793 = vmatprep.subr.bf16.mxu0 %v609
        %794 = vmatpush1.bf16.msra.mxu0 %v606
        %795 = vmatprep.subr.bf16.mxu0 0
        %796 = vmatpush1.bf16.msra.mxu0 0
        %797 = vmatprep.subr.bf16.mxu0 0
        %798 = vmatpush1.bf16.msra.mxu0 0
        %799 = vmatprep.subr.bf16.mxu0 0
        %800 = vmatpush1.bf16.msra.mxu0 0
        %801 = vmatprep.subr.bf16.mxu0 0
        %802 = vmatpush1.bf16.msra.mxu0 0
        %803 = vmatprep.subr.bf16.mxu0 0
        %804 = vmatpush1.bf16.msra.mxu0 0
        %805 = vmatprep.subr.bf16.mxu0 0
        %806 = vmatpush1.bf16.msra.mxu0 0
        %807 = vmatprep.subr.bf16.mxu0 0
        %808 = vmatpush1.bf16.msra.mxu0 0
        %809 = vmatprep.subr.bf16.mxu0 0
        %810 = vmatpush1.bf16.msra.mxu0 0
        %811 = vmatprep.subr.bf16.mxu0 0
        %812 = vmatpush1.bf16.msra.mxu0 0
        %813 = vmatprep.subr.bf16.mxu0 0
        %814 = vmatpush1.bf16.msra.mxu0 0
        %815 = vmatprep.subr.bf16.mxu0 0
        %816 = vmatpush1.bf16.msra.mxu0 0
        %817 = vmatprep.subr.bf16.mxu0 0
        %818 = vmatpush1.bf16.msra.mxu0 0
        %819 = vmatprep.subr.bf16.mxu0 0
        %820 = vmatpush1.bf16.msra.mxu0 0
        %821 = vmatprep.subr.bf16.mxu0 0
        %822 = vmatpush1.bf16.msra.mxu0 0
        %823 = vmatprep.subr.bf16.mxu0 0
        %824 = vmatpush1.bf16.msra.mxu0 0
        %825 = vmatprep.mubr.bf16.mxu0 0
        %826 = vmatmul.mubr.bf16.gmra.mrb[0].mxu0 %v578
        %v827 = vpop.f32.mrb[0].mxu0
        %v828 = vadd.f32 %v467, %v827
        %v829 = vpop.f32.mrb[0].mxu0
        %v830 = vadd.f32 %v471, %v829
        %v831 = vpop.f32.mrb[0].mxu0
        %v832 = vpop.f32.mrb[0].mxu0
        %833 = vdwg.mxu0
        %834 = vmatprep.subr.bf16.mxu0 %v615
        %835 = vmatpush1.bf16.msra.mxu0 %v612
        %836 = vmatprep.subr.bf16.mxu0 0
        %837 = vmatpush1.bf16.msra.mxu0 0
        %838 = vmatprep.subr.bf16.mxu0 0
        %839 = vmatpush1.bf16.msra.mxu0 0
        %840 = vmatprep.subr.bf16.mxu0 0
        %841 = vmatpush1.bf16.msra.mxu0 0
        %842 = vmatprep.subr.bf16.mxu0 0
        %843 = vmatpush1.bf16.msra.mxu0 0
        %844 = vmatprep.subr.bf16.mxu0 0
        %845 = vmatpush1.bf16.msra.mxu0 0
        %846 = vmatprep.subr.bf16.mxu0 0
        %847 = vmatpush1.bf16.msra.mxu0 0
        %848 = vmatprep.subr.bf16.mxu0 0
        %849 = vmatpush1.bf16.msra.mxu0 0
        %850 = vmatprep.subr.bf16.mxu0 0
        %851 = vmatpush1.bf16.msra.mxu0 0
        %852 = vmatprep.subr.bf16.mxu0 0
        %853 = vmatpush1.bf16.msra.mxu0 0
        %854 = vmatprep.subr.bf16.mxu0 0
        %855 = vmatpush1.bf16.msra.mxu0 0
        %856 = vmatprep.subr.bf16.mxu0 0
        %857 = vmatpush1.bf16.msra.mxu0 0
        %858 = vmatprep.subr.bf16.mxu0 0
        %859 = vmatpush1.bf16.msra.mxu0 0
        %860 = vmatprep.subr.bf16.mxu0 0
        %861 = vmatpush1.bf16.msra.mxu0 0
        %862 = vmatprep.subr.bf16.mxu0 0
        %863 = vmatpush1.bf16.msra.mxu0 0
        %864 = vmatprep.subr.bf16.mxu0 0
        %865 = vmatpush1.bf16.msra.mxu0 0
        %866 = vmatprep.mubr.bf16.mxu0 0
        %867 = vmatmul.mubr.bf16.gmra.mrb[0].mxu0 %v578
        %v868 = vpop.f32.mrb[0].mxu0
        %v869 = vadd.f32 %v475, %v868
        %v870 = vpop.f32.mrb[0].mxu0
        %v871 = vadd.f32 %v479, %v870
        %v872 = vpop.f32.mrb[0].mxu0
        %v873 = vpop.f32.mrb[0].mxu0
        %874 = vdwg.mxu0
        %875 = vmatprep.subr.bf16.mxu0 %v621
        %876 = vmatpush1.bf16.msra.mxu0 %v618
        %877 = vmatprep.subr.bf16.mxu0 0
        %878 = vmatpush1.bf16.msra.mxu0 0
        %879 = vmatprep.subr.bf16.mxu0 0
        %880 = vmatpush1.bf16.msra.mxu0 0
        %881 = vmatprep.subr.bf16.mxu0 0
        %882 = vmatpush1.bf16.msra.mxu0 0
        %883 = vmatprep.subr.bf16.mxu0 0
        %884 = vmatpush1.bf16.msra.mxu0 0
        %885 = vmatprep.subr.bf16.mxu0 0
        %886 = vmatpush1.bf16.msra.mxu0 0
        %887 = vmatprep.subr.bf16.mxu0 0
        %888 = vmatpush1.bf16.msra.mxu0 0
        %889 = vmatprep.subr.bf16.mxu0 0
        %890 = vmatpush1.bf16.msra.mxu0 0
        %891 = vmatprep.subr.bf16.mxu0 0
        %892 = vmatpush1.bf16.msra.mxu0 0
        %893 = vmatprep.subr.bf16.mxu0 0
        %894 = vmatpush1.bf16.msra.mxu0 0
        %895 = vmatprep.subr.bf16.mxu0 0
        %896 = vmatpush1.bf16.msra.mxu0 0
        %897 = vmatprep.subr.bf16.mxu0 0
        %898 = vmatpush1.bf16.msra.mxu0 0
        %899 = vmatprep.subr.bf16.mxu0 0
        %900 = vmatpush1.bf16.msra.mxu0 0
        %901 = vmatprep.subr.bf16.mxu0 0
        %902 = vmatpush1.bf16.msra.mxu0 0
        %903 = vmatprep.subr.bf16.mxu0 0
        %904 = vmatpush1.bf16.msra.mxu0 0
        %905 = vmatprep.subr.bf16.mxu0 0
        %906 = vmatpush1.bf16.msra.mxu0 0
        %907 = vmatprep.mubr.bf16.mxu0 0
        %908 = vmatmul.mubr.bf16.gmra.mrb[0].mxu0 %v578
        %v909 = vpop.f32.mrb[0].mxu0
        %v910 = vadd.f32 %v483, %v909
        %v911 = vpop.f32.mrb[0].mxu0
        %v912 = vadd.f32 %v487, %v911
        %v913 = vpop.f32.mrb[0].mxu0
        %v914 = vpop.f32.mrb[0].mxu0
        %915 = vdwg.mxu0
        %916 = vmatprep.subr.bf16.mxu0 %v627
        %917 = vmatpush1.bf16.msra.mxu0 %v624
        %918 = vmatprep.subr.bf16.mxu0 0
        %919 = vmatpush1.bf16.msra.mxu0 0
        %920 = vmatprep.subr.bf16.mxu0 0
        %921 = vmatpush1.bf16.msra.mxu0 0
        %922 = vmatprep.subr.bf16.mxu0 0
        %923 = vmatpush1.bf16.msra.mxu0 0
        %924 = vmatprep.subr.bf16.mxu0 0
        %925 = vmatpush1.bf16.msra.mxu0 0
        %926 = vmatprep.subr.bf16.mxu0 0
        %927 = vmatpush1.bf16.msra.mxu0 0
        %928 = vmatprep.subr.bf16.mxu0 0
        %929 = vmatpush1.bf16.msra.mxu0 0
        %930 = vmatprep.subr.bf16.mxu0 0
        %931 = vmatpush1.bf16.msra.mxu0 0
        %932 = vmatprep.subr.bf16.mxu0 0
        %933 = vmatpush1.bf16.msra.mxu0 0
        %934 = vmatprep.subr.bf16.mxu0 0
        %935 = vmatpush1.bf16.msra.mxu0 0
        %936 = vmatprep.subr.bf16.mxu0 0
        %937 = vmatpush1.bf16.msra.mxu0 0
        %938 = vmatprep.subr.bf16.mxu0 0
        %939 = vmatpush1.bf16.msra.mxu0 0
        %940 = vmatprep.subr.bf16.mxu0 0
        %941 = vmatpush1.bf16.msra.mxu0 0
        %942 = vmatprep.subr.bf16.mxu0 0
        %943 = vmatpush1.bf16.msra.mxu0 0
        %944 = vmatprep.subr.bf16.mxu0 0
        %945 = vmatpush1.bf16.msra.mxu0 0
        %946 = vmatprep.subr.bf16.mxu0 0
        %947 = vmatpush1.bf16.msra.mxu0 0
        %948 = vmatprep.mubr.bf16.mxu0 0
        %949 = vmatmul.mubr.bf16.gmra.mrb[0].mxu0 %v578
        %v950 = vpop.f32.mrb[0].mxu0
        %v951 = vadd.f32 %v491, %v950
        %v952 = vpop.f32.mrb[0].mxu0
        %v953 = vadd.f32 %v495, %v952
        %v954 = vpop.f32.mrb[0].mxu0
        %v955 = vpop.f32.mrb[0].mxu0
        %956 = vdwg.mxu0
        %v957 = vmax.f32 %v664, 0.0
        %v958 = vmax.f32 %v666, 0.0
        %v959 = vmax.f32 %v705, 0.0
        %v960 = vmax.f32 %v707, 0.0
        %v961 = vmax.f32 %v746, 0.0
        %v962 = vmax.f32 %v748, 0.0
        %v963 = vmax.f32 %v787, 0.0
        %v964 = vmax.f32 %v789, 0.0
        %v965 = vmax.f32 %v828, 0.0
        %v966 = vmax.f32 %v830, 0.0
        %v967 = vmax.f32 %v869, 0.0
        %v968 = vmax.f32 %v871, 0.0
        %v969 = vmax.f32 %v910, 0.0
        %v970 = vmax.f32 %v912, 0.0
        %v971 = vmax.f32 %v951, 0.0
        %v972 = vmax.f32 %v953, 0.0
        %v973 = vpack.c.bf16 %v957, %v957
        %v974 = vpack.c.bf16 %v958, %v958
        %v975 = vpack.c.bf16 %v959, %v959
        %v976 = vpack.c.bf16 %v960, %v960
        %v977 = vpack.c.bf16 %v961, %v961
        %v978 = vpack.c.bf16 %v962, %v962
        %v979 = vpack.c.bf16 %v963, %v963
        %v980 = vpack.c.bf16 %v964, %v964
        %v981 = vpack.c.bf16 %v965, %v965
        %v982 = vpack.c.bf16 %v966, %v966
        %v983 = vpack.c.bf16 %v967, %v967
        %v984 = vpack.c.bf16 %v968, %v968
        %v985 = vpack.c.bf16 %v969, %v969
        %v986 = vpack.c.bf16 %v970, %v970
        %v987 = vpack.c.bf16 %v971, %v971
        %v988 = vpack.c.bf16 %v972, %v972
        %v989 = vld [vmem:[%s347] sm:$0xff]
        %v990 = vld [vmem:[%s347 + $0x8] sm:$0xff]
        %v991 = vld [vmem:[%s347 + $0x10] sm:$0xff]
        %v992 = vld [vmem:[%s347 + $0x18] sm:$0xff]
        %v993 = vld [vmem:[%s347 + $0x20] sm:$0xff]
        %v994 = vld [vmem:[%s347 + $0x28] sm:$0xff]
        %v995 = vld [vmem:[%s347 + $0x30] sm:$0xff]
        %v996 = vld [vmem:[%s347 + $0x38] sm:$0xff]
        %v997 = vld [vmem:[%s347 + $0x40] sm:$0xff]
        %v998 = vld [vmem:[%s347 + $0x48] sm:$0xff]
        %v999 = vld [vmem:[%s347 + $0x50] sm:$0xff]
        %v1000 = vld [vmem:[%s347 + $0x58] sm:$0xff]
        %v1001 = vld [vmem:[%s347 + $0x60] sm:$0xff]
        %v1002 = vld [vmem:[%s347 + $0x68] sm:$0xff]
        %v1003 = vld [vmem:[%s347 + $0x70] sm:$0xff]
        %v1004 = vld [vmem:[%s347 + $0x78] sm:$0xff]
        %v1005 = vld [vmem:[%s347 + $0x80] sm:$0xff]
        %v1006 = vld [vmem:[%s347 + $0x88] sm:$0xff]
        %v1007 = vld [vmem:[%s347 + $0x90] sm:$0xff]
        %v1008 = vld [vmem:[%s347 + $0x98] sm:$0xff]
        %v1009 = vld [vmem:[%s347 + $0xa0] sm:$0xff]
        %v1010 = vld [vmem:[%s347 + $0xa8] sm:$0xff]
        %v1011 = vld [vmem:[%s347 + $0xb0] sm:$0xff]
        %v1012 = vld [vmem:[%s347 + $0xb8] sm:$0xff]
        %v1013 = vld [vmem:[%s347 + $0xc0] sm:$0xff]
        %v1014 = vld [vmem:[%s347 + $0xc8] sm:$0xff]
        %v1015 = vld [vmem:[%s347 + $0xd0] sm:$0xff]
        %v1016 = vld [vmem:[%s347 + $0xd8] sm:$0xff]
        %v1017 = vld [vmem:[%s347 + $0xe0] sm:$0xff]
        %v1018 = vld [vmem:[%s347 + $0xe8] sm:$0xff]
        %v1019 = vld [vmem:[%s347 + $0xf0] sm:$0xff]
        %v1020 = vld [vmem:[%s347 + $0xf8] sm:$0xff]
        %v1021 = vld [vmem:[%s347 + $0x100] sm:$0xff]
        %v1022 = vld [vmem:[%s347 + $0x108] sm:$0xff]
        %v1023 = vld [vmem:[%s347 + $0x110] sm:$0xff]
        %v1024 = vld [vmem:[%s347 + $0x118] sm:$0xff]
        %v1025 = vld [vmem:[%s347 + $0x120] sm:$0xff]
        %v1026 = vld [vmem:[%s347 + $0x128] sm:$0xff]
        %v1027 = vld [vmem:[%s347 + $0x130] sm:$0xff]
        %v1028 = vld [vmem:[%s347 + $0x138] sm:$0xff]
        %v1029 = vld [vmem:[%s347 + $0x140] sm:$0xff]
        %v1030 = vld [vmem:[%s347 + $0x148] sm:$0xff]
        %v1031 = vld [vmem:[%s347 + $0x150] sm:$0xff]
        %v1032 = vld [vmem:[%s347 + $0x158] sm:$0xff]
        %v1033 = vld [vmem:[%s347 + $0x160] sm:$0xff]
        %v1034 = vld [vmem:[%s347 + $0x168] sm:$0xff]
        %v1035 = vld [vmem:[%s347 + $0x170] sm:$0xff]
        %v1036 = vld [vmem:[%s347 + $0x178] sm:$0xff]
        %v1037 = vld [vmem:[%s347 + $0x180] sm:$0xff]
        %v1038 = vld [vmem:[%s347 + $0x188] sm:$0xff]
        %v1039 = vld [vmem:[%s347 + $0x190] sm:$0xff]
        %v1040 = vld [vmem:[%s347 + $0x198] sm:$0xff]
        %v1041 = vld [vmem:[%s347 + $0x1a0] sm:$0xff]
        %v1042 = vld [vmem:[%s347 + $0x1a8] sm:$0xff]
        %v1043 = vld [vmem:[%s347 + $0x1b0] sm:$0xff]
        %v1044 = vld [vmem:[%s347 + $0x1b8] sm:$0xff]
        %v1045 = vld [vmem:[%s347 + $0x1c0] sm:$0xff]
        %v1046 = vld [vmem:[%s347 + $0x1c8] sm:$0xff]
        %v1047 = vld [vmem:[%s347 + $0x1d0] sm:$0xff]
        %v1048 = vld [vmem:[%s347 + $0x1d8] sm:$0xff]
        %v1049 = vld [vmem:[%s347 + $0x1e0] sm:$0xff]
        %v1050 = vld [vmem:[%s347 + $0x1e8] sm:$0xff]
        %v1051 = vld [vmem:[%s347 + $0x1f0] sm:$0xff]
        %v1052 = vld [vmem:[%s347 + $0x1f8] sm:$0xff]
        %v1053 = vld [vmem:[%s347 + $0x200] sm:$0xff]
        %v1054 = vld [vmem:[%s347 + $0x208] sm:$0xff]
        %v1055 = vld [vmem:[%s347 + $0x210] sm:$0xff]
        %v1056 = vld [vmem:[%s347 + $0x218] sm:$0xff]
        %v1057 = vld [vmem:[%s347 + $0x220] sm:$0xff]
        %v1058 = vld [vmem:[%s347 + $0x228] sm:$0xff]
        %v1059 = vld [vmem:[%s347 + $0x230] sm:$0xff]
        %v1060 = vld [vmem:[%s347 + $0x238] sm:$0xff]
        %v1061 = vld [vmem:[%s347 + $0x240] sm:$0xff]
        %v1062 = vld [vmem:[%s347 + $0x248] sm:$0xff]
        %v1063 = vld [vmem:[%s347 + $0x250] sm:$0xff]
        %v1064 = vld [vmem:[%s347 + $0x258] sm:$0xff]
        %v1065 = vld [vmem:[%s347 + $0x260] sm:$0xff]
        %v1066 = vld [vmem:[%s347 + $0x268] sm:$0xff]
        %v1067 = vld [vmem:[%s347 + $0x270] sm:$0xff]
        %v1068 = vld [vmem:[%s347 + $0x278] sm:$0xff]
        %v1069 = vld [vmem:[%s347 + $0x280] sm:$0xff]
        %v1070 = vld [vmem:[%s347 + $0x288] sm:$0xff]
        %v1071 = vld [vmem:[%s347 + $0x290] sm:$0xff]
        %v1072 = vld [vmem:[%s347 + $0x298] sm:$0xff]
        %v1073 = vld [vmem:[%s347 + $0x2a0] sm:$0xff]
        %v1074 = vld [vmem:[%s347 + $0x2a8] sm:$0xff]
        %v1075 = vld [vmem:[%s347 + $0x2b0] sm:$0xff]
        %v1076 = vld [vmem:[%s347 + $0x2b8] sm:$0xff]
        %v1077 = vld [vmem:[%s347 + $0x2c0] sm:$0xff]
        %v1078 = vld [vmem:[%s347 + $0x2c8] sm:$0xff]
        %v1079 = vld [vmem:[%s347 + $0x2d0] sm:$0xff]
        %v1080 = vld [vmem:[%s347 + $0x2d8] sm:$0xff]
        %v1081 = vld [vmem:[%s347 + $0x2e0] sm:$0xff]
        %v1082 = vld [vmem:[%s347 + $0x2e8] sm:$0xff]
        %v1083 = vld [vmem:[%s347 + $0x2f0] sm:$0xff]
        %v1084 = vld [vmem:[%s347 + $0x2f8] sm:$0xff]
        %v1085 = vld [vmem:[%s347 + $0x300] sm:$0xff]
        %v1086 = vld [vmem:[%s347 + $0x308] sm:$0xff]
        %v1087 = vld [vmem:[%s347 + $0x310] sm:$0xff]
        %v1088 = vld [vmem:[%s347 + $0x318] sm:$0xff]
        %v1089 = vld [vmem:[%s347 + $0x320] sm:$0xff]
        %v1090 = vld [vmem:[%s347 + $0x328] sm:$0xff]
        %v1091 = vld [vmem:[%s347 + $0x330] sm:$0xff]
        %v1092 = vld [vmem:[%s347 + $0x338] sm:$0xff]
        %v1093 = vld [vmem:[%s347 + $0x340] sm:$0xff]
        %v1094 = vld [vmem:[%s347 + $0x348] sm:$0xff]
        %v1095 = vld [vmem:[%s347 + $0x350] sm:$0xff]
        %v1096 = vld [vmem:[%s347 + $0x358] sm:$0xff]
        %v1097 = vld [vmem:[%s347 + $0x360] sm:$0xff]
        %v1098 = vld [vmem:[%s347 + $0x368] sm:$0xff]
        %v1099 = vld [vmem:[%s347 + $0x370] sm:$0xff]
        %v1100 = vld [vmem:[%s347 + $0x378] sm:$0xff]
        %v1101 = vld [vmem:[%s347 + $0x380] sm:$0xff]
        %v1102 = vld [vmem:[%s347 + $0x388] sm:$0xff]
        %v1103 = vld [vmem:[%s347 + $0x390] sm:$0xff]
        %v1104 = vld [vmem:[%s347 + $0x398] sm:$0xff]
        %v1105 = vld [vmem:[%s347 + $0x3a0] sm:$0xff]
        %v1106 = vld [vmem:[%s347 + $0x3a8] sm:$0xff]
        %v1107 = vld [vmem:[%s347 + $0x3b0] sm:$0xff]
        %v1108 = vld [vmem:[%s347 + $0x3b8] sm:$0xff]
        %v1109 = vld [vmem:[%s347 + $0x3c0] sm:$0xff]
        %v1110 = vld [vmem:[%s347 + $0x3c8] sm:$0xff]
        %v1111 = vld [vmem:[%s347 + $0x3d0] sm:$0xff]
        %v1112 = vld [vmem:[%s347 + $0x3d8] sm:$0xff]
        %v1113 = vld [vmem:[%s347 + $0x3e0] sm:$0xff]
        %v1114 = vld [vmem:[%s347 + $0x3e8] sm:$0xff]
        %v1115 = vld [vmem:[%s347 + $0x3f0] sm:$0xff]
        %v1116 = vld [vmem:[%s347 + $0x3f8] sm:$0xff]
        %v1117 = vld [vmem:[%s347 + $0x400] sm:$0xff]
        %v1118 = vld [vmem:[%s347 + $0x408] sm:$0xff]
        %v1119 = vld [vmem:[%s347 + $0x410] sm:$0xff]
        %v1120 = vld [vmem:[%s347 + $0x418] sm:$0xff]
        %v1121 = vld [vmem:[%s347 + $0x420] sm:$0xff]
        %v1122 = vld [vmem:[%s347 + $0x428] sm:$0xff]
        %v1123 = vld [vmem:[%s347 + $0x430] sm:$0xff]
        %v1124 = vld [vmem:[%s347 + $0x438] sm:$0xff]
        %v1125 = vld [vmem:[%s347 + $0x440] sm:$0xff]
        %v1126 = vld [vmem:[%s347 + $0x448] sm:$0xff]
        %v1127 = vld [vmem:[%s347 + $0x450] sm:$0xff]
        %v1128 = vld [vmem:[%s347 + $0x458] sm:$0xff]
        %v1129 = vld [vmem:[%s347 + $0x460] sm:$0xff]
        %v1130 = vld [vmem:[%s347 + $0x468] sm:$0xff]
        %v1131 = vld [vmem:[%s347 + $0x470] sm:$0xff]
        %v1132 = vld [vmem:[%s347 + $0x478] sm:$0xff]
        %v1133 = vld [vmem:[%s347 + $0x480] sm:$0xff]
        %v1134 = vld [vmem:[%s347 + $0x488] sm:$0xff]
        %v1135 = vld [vmem:[%s347 + $0x490] sm:$0xff]
        %v1136 = vld [vmem:[%s347 + $0x498] sm:$0xff]
        %v1137 = vld [vmem:[%s347 + $0x4a0] sm:$0xff]
        %v1138 = vld [vmem:[%s347 + $0x4a8] sm:$0xff]
        %v1139 = vld [vmem:[%s347 + $0x4b0] sm:$0xff]
        %v1140 = vld [vmem:[%s347 + $0x4b8] sm:$0xff]
        %v1141 = vld [vmem:[%s347 + $0x4c0] sm:$0xff]
        %v1142 = vld [vmem:[%s347 + $0x4c8] sm:$0xff]
        %v1143 = vld [vmem:[%s347 + $0x4d0] sm:$0xff]
        %v1144 = vld [vmem:[%s347 + $0x4d8] sm:$0xff]
        %v1145 = vld [vmem:[%s347 + $0x4e0] sm:$0xff]
        %v1146 = vld [vmem:[%s347 + $0x4e8] sm:$0xff]
        %v1147 = vld [vmem:[%s347 + $0x4f0] sm:$0xff]
        %v1148 = vld [vmem:[%s347 + $0x4f8] sm:$0xff]
        %v1149 = vld [vmem:[%s347 + $0x500] sm:$0xff]
        %v1150 = vld [vmem:[%s347 + $0x508] sm:$0xff]
        %v1151 = vld [vmem:[%s347 + $0x510] sm:$0xff]
        %v1152 = vld [vmem:[%s347 + $0x518] sm:$0xff]
        %v1153 = vld [vmem:[%s347 + $0x520] sm:$0xff]
        %v1154 = vld [vmem:[%s347 + $0x528] sm:$0xff]
        %v1155 = vld [vmem:[%s347 + $0x530] sm:$0xff]
        %v1156 = vld [vmem:[%s347 + $0x538] sm:$0xff]
        %v1157 = vld [vmem:[%s347 + $0x540] sm:$0xff]
        %v1158 = vld [vmem:[%s347 + $0x548] sm:$0xff]
        %v1159 = vld [vmem:[%s347 + $0x550] sm:$0xff]
        %v1160 = vld [vmem:[%s347 + $0x558] sm:$0xff]
        %v1161 = vld [vmem:[%s347 + $0x560] sm:$0xff]
        %v1162 = vld [vmem:[%s347 + $0x568] sm:$0xff]
        %v1163 = vld [vmem:[%s347 + $0x570] sm:$0xff]
        %v1164 = vld [vmem:[%s347 + $0x578] sm:$0xff]
        %v1165 = vld [vmem:[%s347 + $0x580] sm:$0xff]
        %v1166 = vld [vmem:[%s347 + $0x588] sm:$0xff]
        %v1167 = vld [vmem:[%s347 + $0x590] sm:$0xff]
        %v1168 = vld [vmem:[%s347 + $0x598] sm:$0xff]
        %v1169 = vld [vmem:[%s347 + $0x5a0] sm:$0xff]
        %v1170 = vld [vmem:[%s347 + $0x5a8] sm:$0xff]
        %v1171 = vld [vmem:[%s347 + $0x5b0] sm:$0xff]
        %v1172 = vld [vmem:[%s347 + $0x5b8] sm:$0xff]
        %v1173 = vld [vmem:[%s347 + $0x5c0] sm:$0xff]
        %v1174 = vld [vmem:[%s347 + $0x5c8] sm:$0xff]
        %v1175 = vld [vmem:[%s347 + $0x5d0] sm:$0xff]
        %v1176 = vld [vmem:[%s347 + $0x5d8] sm:$0xff]
        %v1177 = vld [vmem:[%s347 + $0x5e0] sm:$0xff]
        %v1178 = vld [vmem:[%s347 + $0x5e8] sm:$0xff]
        %v1179 = vld [vmem:[%s347 + $0x5f0] sm:$0xff]
        %v1180 = vld [vmem:[%s347 + $0x5f8] sm:$0xff]
        %v1181 = vld [vmem:[%s347 + $0x600] sm:$0xff]
        %v1182 = vld [vmem:[%s347 + $0x608] sm:$0xff]
        %v1183 = vld [vmem:[%s347 + $0x610] sm:$0xff]
        %v1184 = vld [vmem:[%s347 + $0x618] sm:$0xff]
        %v1185 = vld [vmem:[%s347 + $0x620] sm:$0xff]
        %v1186 = vld [vmem:[%s347 + $0x628] sm:$0xff]
        %v1187 = vld [vmem:[%s347 + $0x630] sm:$0xff]
        %v1188 = vld [vmem:[%s347 + $0x638] sm:$0xff]
        %v1189 = vld [vmem:[%s347 + $0x640] sm:$0xff]
        %v1190 = vld [vmem:[%s347 + $0x648] sm:$0xff]
        %v1191 = vld [vmem:[%s347 + $0x650] sm:$0xff]
        %v1192 = vld [vmem:[%s347 + $0x658] sm:$0xff]
        %v1193 = vld [vmem:[%s347 + $0x660] sm:$0xff]
        %v1194 = vld [vmem:[%s347 + $0x668] sm:$0xff]
        %v1195 = vld [vmem:[%s347 + $0x670] sm:$0xff]
        %v1196 = vld [vmem:[%s347 + $0x678] sm:$0xff]
        %v1197 = vld [vmem:[%s347 + $0x680] sm:$0xff]
        %v1198 = vld [vmem:[%s347 + $0x688] sm:$0xff]
        %v1199 = vld [vmem:[%s347 + $0x690] sm:$0xff]
        %v1200 = vld [vmem:[%s347 + $0x698] sm:$0xff]
        %v1201 = vld [vmem:[%s347 + $0x6a0] sm:$0xff]
        %v1202 = vld [vmem:[%s347 + $0x6a8] sm:$0xff]
        %v1203 = vld [vmem:[%s347 + $0x6b0] sm:$0xff]
        %v1204 = vld [vmem:[%s347 + $0x6b8] sm:$0xff]
        %v1205 = vld [vmem:[%s347 + $0x6c0] sm:$0xff]
        %v1206 = vld [vmem:[%s347 + $0x6c8] sm:$0xff]
        %v1207 = vld [vmem:[%s347 + $0x6d0] sm:$0xff]
        %v1208 = vld [vmem:[%s347 + $0x6d8] sm:$0xff]
        %v1209 = vld [vmem:[%s347 + $0x6e0] sm:$0xff]
        %v1210 = vld [vmem:[%s347 + $0x6e8] sm:$0xff]
        %v1211 = vld [vmem:[%s347 + $0x6f0] sm:$0xff]
        %v1212 = vld [vmem:[%s347 + $0x6f8] sm:$0xff]
        %v1213 = vld [vmem:[%s347 + $0x700] sm:$0xff]
        %v1214 = vld [vmem:[%s347 + $0x708] sm:$0xff]
        %v1215 = vld [vmem:[%s347 + $0x710] sm:$0xff]
        %v1216 = vld [vmem:[%s347 + $0x718] sm:$0xff]
        %v1217 = vld [vmem:[%s347 + $0x720] sm:$0xff]
        %v1218 = vld [vmem:[%s347 + $0x728] sm:$0xff]
        %v1219 = vld [vmem:[%s347 + $0x730] sm:$0xff]
        %v1220 = vld [vmem:[%s347 + $0x738] sm:$0xff]
        %v1221 = vld [vmem:[%s347 + $0x740] sm:$0xff]
        %v1222 = vld [vmem:[%s347 + $0x748] sm:$0xff]
        %v1223 = vld [vmem:[%s347 + $0x750] sm:$0xff]
        %v1224 = vld [vmem:[%s347 + $0x758] sm:$0xff]
        %v1225 = vld [vmem:[%s347 + $0x760] sm:$0xff]
        %v1226 = vld [vmem:[%s347 + $0x768] sm:$0xff]
        %v1227 = vld [vmem:[%s347 + $0x770] sm:$0xff]
        %v1228 = vld [vmem:[%s347 + $0x778] sm:$0xff]
        %v1229 = vld [vmem:[%s347 + $0x780] sm:$0xff]
        %v1230 = vld [vmem:[%s347 + $0x788] sm:$0xff]
        %v1231 = vld [vmem:[%s347 + $0x790] sm:$0xff]
        %v1232 = vld [vmem:[%s347 + $0x798] sm:$0xff]
        %v1233 = vld [vmem:[%s347 + $0x7a0] sm:$0xff]
        %v1234 = vld [vmem:[%s347 + $0x7a8] sm:$0xff]
        %v1235 = vld [vmem:[%s347 + $0x7b0] sm:$0xff]
        %v1236 = vld [vmem:[%s347 + $0x7b8] sm:$0xff]
        %v1237 = vld [vmem:[%s347 + $0x7c0] sm:$0xff]
        %v1238 = vld [vmem:[%s347 + $0x7c8] sm:$0xff]
        %v1239 = vld [vmem:[%s347 + $0x7d0] sm:$0xff]
        %v1240 = vld [vmem:[%s347 + $0x7d8] sm:$0xff]
        %v1241 = vld [vmem:[%s347 + $0x7e0] sm:$0xff]
        %v1242 = vld [vmem:[%s347 + $0x7e8] sm:$0xff]
        %v1243 = vld [vmem:[%s347 + $0x7f0] sm:$0xff]
        %v1244 = vld [vmem:[%s347 + $0x7f8] sm:$0xff]
        %v1245 = vld [vmem:[%s347 + $0x800] sm:$0xff]
        %v1246 = vld [vmem:[%s347 + $0x808] sm:$0xff]
        %v1247 = vld [vmem:[%s347 + $0x810] sm:$0xff]
        %v1248 = vld [vmem:[%s347 + $0x818] sm:$0xff]
        %v1249 = vld [vmem:[%s347 + $0x820] sm:$0xff]
        %v1250 = vld [vmem:[%s347 + $0x828] sm:$0xff]
        %v1251 = vld [vmem:[%s347 + $0x830] sm:$0xff]
        %v1252 = vld [vmem:[%s347 + $0x838] sm:$0xff]
        %v1253 = vld [vmem:[%s347 + $0x840] sm:$0xff]
        %v1254 = vld [vmem:[%s347 + $0x848] sm:$0xff]
        %v1255 = vld [vmem:[%s347 + $0x850] sm:$0xff]
        %v1256 = vld [vmem:[%s347 + $0x858] sm:$0xff]
        %v1257 = vld [vmem:[%s347 + $0x860] sm:$0xff]
        %v1258 = vld [vmem:[%s347 + $0x868] sm:$0xff]
        %v1259 = vld [vmem:[%s347 + $0x870] sm:$0xff]
        %v1260 = vld [vmem:[%s347 + $0x878] sm:$0xff]
        %v1261 = vld [vmem:[%s347 + $0x880] sm:$0xff]
        %v1262 = vld [vmem:[%s347 + $0x888] sm:$0xff]
        %v1263 = vld [vmem:[%s347 + $0x890] sm:$0xff]
        %v1264 = vld [vmem:[%s347 + $0x898] sm:$0xff]
        %v1265 = vld [vmem:[%s347 + $0x8a0] sm:$0xff]
        %v1266 = vld [vmem:[%s347 + $0x8a8] sm:$0xff]
        %v1267 = vld [vmem:[%s347 + $0x8b0] sm:$0xff]
        %v1268 = vld [vmem:[%s347 + $0x8b8] sm:$0xff]
        %v1269 = vld [vmem:[%s347 + $0x8c0] sm:$0xff]
        %v1270 = vld [vmem:[%s347 + $0x8c8] sm:$0xff]
        %v1271 = vld [vmem:[%s347 + $0x8d0] sm:$0xff]
        %v1272 = vld [vmem:[%s347 + $0x8d8] sm:$0xff]
        %v1273 = vld [vmem:[%s347 + $0x8e0] sm:$0xff]
        %v1274 = vld [vmem:[%s347 + $0x8e8] sm:$0xff]
        %v1275 = vld [vmem:[%s347 + $0x8f0] sm:$0xff]
        %v1276 = vld [vmem:[%s347 + $0x8f8] sm:$0xff]
        %v1277 = vld [vmem:[%s347 + $0x900] sm:$0xff]
        %v1278 = vld [vmem:[%s347 + $0x908] sm:$0xff]
        %v1279 = vld [vmem:[%s347 + $0x910] sm:$0xff]
        %v1280 = vld [vmem:[%s347 + $0x918] sm:$0xff]
        %v1281 = vld [vmem:[%s347 + $0x920] sm:$0xff]
        %v1282 = vld [vmem:[%s347 + $0x928] sm:$0xff]
        %v1283 = vld [vmem:[%s347 + $0x930] sm:$0xff]
        %v1284 = vld [vmem:[%s347 + $0x938] sm:$0xff]
        %v1285 = vld [vmem:[%s347 + $0x940] sm:$0xff]
        %v1286 = vld [vmem:[%s347 + $0x948] sm:$0xff]
        %v1287 = vld [vmem:[%s347 + $0x950] sm:$0xff]
        %v1288 = vld [vmem:[%s347 + $0x958] sm:$0xff]
        %v1289 = vld [vmem:[%s347 + $0x960] sm:$0xff]
        %v1290 = vld [vmem:[%s347 + $0x968] sm:$0xff]
        %v1291 = vld [vmem:[%s347 + $0x970] sm:$0xff]
        %v1292 = vld [vmem:[%s347 + $0x978] sm:$0xff]
        %v1293 = vld [vmem:[%s347 + $0x980] sm:$0xff]
        %v1294 = vld [vmem:[%s347 + $0x988] sm:$0xff]
        %v1295 = vld [vmem:[%s347 + $0x990] sm:$0xff]
        %v1296 = vld [vmem:[%s347 + $0x998] sm:$0xff]
        %v1297 = vld [vmem:[%s347 + $0x9a0] sm:$0xff]
        %v1298 = vld [vmem:[%s347 + $0x9a8] sm:$0xff]
        %v1299 = vld [vmem:[%s347 + $0x9b0] sm:$0xff]
        %v1300 = vld [vmem:[%s347 + $0x9b8] sm:$0xff]
        %v1301 = vld [vmem:[%s347 + $0x9c0] sm:$0xff]
        %v1302 = vld [vmem:[%s347 + $0x9c8] sm:$0xff]
        %v1303 = vld [vmem:[%s347 + $0x9d0] sm:$0xff]
        %v1304 = vld [vmem:[%s347 + $0x9d8] sm:$0xff]
        %v1305 = vld [vmem:[%s347 + $0x9e0] sm:$0xff]
        %v1306 = vld [vmem:[%s347 + $0x9e8] sm:$0xff]
        %v1307 = vld [vmem:[%s347 + $0x9f0] sm:$0xff]
        %v1308 = vld [vmem:[%s347 + $0x9f8] sm:$0xff]
        %v1309 = vld [vmem:[%s347 + $0xa00] sm:$0xff]
        %v1310 = vld [vmem:[%s347 + $0xa08] sm:$0xff]
        %v1311 = vld [vmem:[%s347 + $0xa10] sm:$0xff]
        %v1312 = vld [vmem:[%s347 + $0xa18] sm:$0xff]
        %v1313 = vld [vmem:[%s347 + $0xa20] sm:$0xff]
        %v1314 = vld [vmem:[%s347 + $0xa28] sm:$0xff]
        %v1315 = vld [vmem:[%s347 + $0xa30] sm:$0xff]
        %v1316 = vld [vmem:[%s347 + $0xa38] sm:$0xff]
        %v1317 = vld [vmem:[%s347 + $0xa40] sm:$0xff]
        %v1318 = vld [vmem:[%s347 + $0xa48] sm:$0xff]
        %v1319 = vld [vmem:[%s347 + $0xa50] sm:$0xff]
        %v1320 = vld [vmem:[%s347 + $0xa58] sm:$0xff]
        %v1321 = vld [vmem:[%s347 + $0xa60] sm:$0xff]
        %v1322 = vld [vmem:[%s347 + $0xa68] sm:$0xff]
        %v1323 = vld [vmem:[%s347 + $0xa70] sm:$0xff]
        %v1324 = vld [vmem:[%s347 + $0xa78] sm:$0xff]
        %v1325 = vld [vmem:[%s347 + $0xa80] sm:$0xff]
        %v1326 = vld [vmem:[%s347 + $0xa88] sm:$0xff]
        %v1327 = vld [vmem:[%s347 + $0xa90] sm:$0xff]
        %v1328 = vld [vmem:[%s347 + $0xa98] sm:$0xff]
        %v1329 = vld [vmem:[%s347 + $0xaa0] sm:$0xff]
        %v1330 = vld [vmem:[%s347 + $0xaa8] sm:$0xff]
        %v1331 = vld [vmem:[%s347 + $0xab0] sm:$0xff]
        %v1332 = vld [vmem:[%s347 + $0xab8] sm:$0xff]
        %v1333 = vld [vmem:[%s347 + $0xac0] sm:$0xff]
        %v1334 = vld [vmem:[%s347 + $0xac8] sm:$0xff]
        %v1335 = vld [vmem:[%s347 + $0xad0] sm:$0xff]
        %v1336 = vld [vmem:[%s347 + $0xad8] sm:$0xff]
        %v1337 = vld [vmem:[%s347 + $0xae0] sm:$0xff]
        %v1338 = vld [vmem:[%s347 + $0xae8] sm:$0xff]
        %v1339 = vld [vmem:[%s347 + $0xaf0] sm:$0xff]
        %v1340 = vld [vmem:[%s347 + $0xaf8] sm:$0xff]
        %v1341 = vld [vmem:[%s347 + $0xb00] sm:$0xff]
        %v1342 = vld [vmem:[%s347 + $0xb08] sm:$0xff]
        %v1343 = vld [vmem:[%s347 + $0xb10] sm:$0xff]
        %v1344 = vld [vmem:[%s347 + $0xb18] sm:$0xff]
        %v1345 = vld [vmem:[%s347 + $0xb20] sm:$0xff]
        %v1346 = vld [vmem:[%s347 + $0xb28] sm:$0xff]
        %v1347 = vld [vmem:[%s347 + $0xb30] sm:$0xff]
        %v1348 = vld [vmem:[%s347 + $0xb38] sm:$0xff]
        %v1349 = vld [vmem:[%s347 + $0xb40] sm:$0xff]
        %v1350 = vld [vmem:[%s347 + $0xb48] sm:$0xff]
        %v1351 = vld [vmem:[%s347 + $0xb50] sm:$0xff]
        %v1352 = vld [vmem:[%s347 + $0xb58] sm:$0xff]
        %v1353 = vld [vmem:[%s347 + $0xb60] sm:$0xff]
        %v1354 = vld [vmem:[%s347 + $0xb68] sm:$0xff]
        %v1355 = vld [vmem:[%s347 + $0xb70] sm:$0xff]
        %v1356 = vld [vmem:[%s347 + $0xb78] sm:$0xff]
        %v1357 = vld [vmem:[%s347 + $0xb80] sm:$0xff]
        %v1358 = vld [vmem:[%s347 + $0xb88] sm:$0xff]
        %v1359 = vld [vmem:[%s347 + $0xb90] sm:$0xff]
        %v1360 = vld [vmem:[%s347 + $0xb98] sm:$0xff]
        %v1361 = vld [vmem:[%s347 + $0xba0] sm:$0xff]
        %v1362 = vld [vmem:[%s347 + $0xba8] sm:$0xff]
        %v1363 = vld [vmem:[%s347 + $0xbb0] sm:$0xff]
        %v1364 = vld [vmem:[%s347 + $0xbb8] sm:$0xff]
        %v1365 = vld [vmem:[%s347 + $0xbc0] sm:$0xff]
        %v1366 = vld [vmem:[%s347 + $0xbc8] sm:$0xff]
        %v1367 = vld [vmem:[%s347 + $0xbd0] sm:$0xff]
        %v1368 = vld [vmem:[%s347 + $0xbd8] sm:$0xff]
        %v1369 = vld [vmem:[%s347 + $0xbe0] sm:$0xff]
        %v1370 = vld [vmem:[%s347 + $0xbe8] sm:$0xff]
        %v1371 = vld [vmem:[%s347 + $0xbf0] sm:$0xff]
        %v1372 = vld [vmem:[%s347 + $0xbf8] sm:$0xff]
        %v1373 = vld [vmem:[%s347 + $0xc00] sm:$0xff]
        %v1374 = vld [vmem:[%s347 + $0xc08] sm:$0xff]
        %v1375 = vld [vmem:[%s347 + $0xc10] sm:$0xff]
        %v1376 = vld [vmem:[%s347 + $0xc18] sm:$0xff]
        %v1377 = vld [vmem:[%s347 + $0xc20] sm:$0xff]
        %v1378 = vld [vmem:[%s347 + $0xc28] sm:$0xff]
        %v1379 = vld [vmem:[%s347 + $0xc30] sm:$0xff]
        %v1380 = vld [vmem:[%s347 + $0xc38] sm:$0xff]
        %v1381 = vld [vmem:[%s347 + $0xc40] sm:$0xff]
        %v1382 = vld [vmem:[%s347 + $0xc48] sm:$0xff]
        %v1383 = vld [vmem:[%s347 + $0xc50] sm:$0xff]
        %v1384 = vld [vmem:[%s347 + $0xc58] sm:$0xff]
        %v1385 = vld [vmem:[%s347 + $0xc60] sm:$0xff]
        %v1386 = vld [vmem:[%s347 + $0xc68] sm:$0xff]
        %v1387 = vld [vmem:[%s347 + $0xc70] sm:$0xff]
        %v1388 = vld [vmem:[%s347 + $0xc78] sm:$0xff]
        %v1389 = vld [vmem:[%s347 + $0xc80] sm:$0xff]
        %v1390 = vld [vmem:[%s347 + $0xc88] sm:$0xff]
        %v1391 = vld [vmem:[%s347 + $0xc90] sm:$0xff]
        %v1392 = vld [vmem:[%s347 + $0xc98] sm:$0xff]
        %v1393 = vld [vmem:[%s347 + $0xca0] sm:$0xff]
        %v1394 = vld [vmem:[%s347 + $0xca8] sm:$0xff]
        %v1395 = vld [vmem:[%s347 + $0xcb0] sm:$0xff]
        %v1396 = vld [vmem:[%s347 + $0xcb8] sm:$0xff]
        %v1397 = vld [vmem:[%s347 + $0xcc0] sm:$0xff]
        %v1398 = vld [vmem:[%s347 + $0xcc8] sm:$0xff]
        %v1399 = vld [vmem:[%s347 + $0xcd0] sm:$0xff]
        %v1400 = vld [vmem:[%s347 + $0xcd8] sm:$0xff]
        %v1401 = vld [vmem:[%s347 + $0xce0] sm:$0xff]
        %v1402 = vld [vmem:[%s347 + $0xce8] sm:$0xff]
        %v1403 = vld [vmem:[%s347 + $0xcf0] sm:$0xff]
        %v1404 = vld [vmem:[%s347 + $0xcf8] sm:$0xff]
        %v1405 = vld [vmem:[%s347 + $0xd00] sm:$0xff]
        %v1406 = vld [vmem:[%s347 + $0xd08] sm:$0xff]
        %v1407 = vld [vmem:[%s347 + $0xd10] sm:$0xff]
        %v1408 = vld [vmem:[%s347 + $0xd18] sm:$0xff]
        %v1409 = vld [vmem:[%s347 + $0xd20] sm:$0xff]
        %v1410 = vld [vmem:[%s347 + $0xd28] sm:$0xff]
        %v1411 = vld [vmem:[%s347 + $0xd30] sm:$0xff]
        %v1412 = vld [vmem:[%s347 + $0xd38] sm:$0xff]
        %v1413 = vld [vmem:[%s347 + $0xd40] sm:$0xff]
        %v1414 = vld [vmem:[%s347 + $0xd48] sm:$0xff]
        %v1415 = vld [vmem:[%s347 + $0xd50] sm:$0xff]
        %v1416 = vld [vmem:[%s347 + $0xd58] sm:$0xff]
        %v1417 = vld [vmem:[%s347 + $0xd60] sm:$0xff]
        %v1418 = vld [vmem:[%s347 + $0xd68] sm:$0xff]
        %v1419 = vld [vmem:[%s347 + $0xd70] sm:$0xff]
        %v1420 = vld [vmem:[%s347 + $0xd78] sm:$0xff]
        %v1421 = vld [vmem:[%s347 + $0xd80] sm:$0xff]
        %v1422 = vld [vmem:[%s347 + $0xd88] sm:$0xff]
        %v1423 = vld [vmem:[%s347 + $0xd90] sm:$0xff]
        %v1424 = vld [vmem:[%s347 + $0xd98] sm:$0xff]
        %v1425 = vld [vmem:[%s347 + $0xda0] sm:$0xff]
        %v1426 = vld [vmem:[%s347 + $0xda8] sm:$0xff]
        %v1427 = vld [vmem:[%s347 + $0xdb0] sm:$0xff]
        %v1428 = vld [vmem:[%s347 + $0xdb8] sm:$0xff]
        %v1429 = vld [vmem:[%s347 + $0xdc0] sm:$0xff]
        %v1430 = vld [vmem:[%s347 + $0xdc8] sm:$0xff]
        %v1431 = vld [vmem:[%s347 + $0xdd0] sm:$0xff]
        %v1432 = vld [vmem:[%s347 + $0xdd8] sm:$0xff]
        %v1433 = vld [vmem:[%s347 + $0xde0] sm:$0xff]
        %v1434 = vld [vmem:[%s347 + $0xde8] sm:$0xff]
        %v1435 = vld [vmem:[%s347 + $0xdf0] sm:$0xff]
        %v1436 = vld [vmem:[%s347 + $0xdf8] sm:$0xff]
        %v1437 = vld [vmem:[%s347 + $0xe00] sm:$0xff]
        %v1438 = vld [vmem:[%s347 + $0xe08] sm:$0xff]
        %v1439 = vld [vmem:[%s347 + $0xe10] sm:$0xff]
        %v1440 = vld [vmem:[%s347 + $0xe18] sm:$0xff]
        %v1441 = vld [vmem:[%s347 + $0xe20] sm:$0xff]
        %v1442 = vld [vmem:[%s347 + $0xe28] sm:$0xff]
        %v1443 = vld [vmem:[%s347 + $0xe30] sm:$0xff]
        %v1444 = vld [vmem:[%s347 + $0xe38] sm:$0xff]
        %v1445 = vld [vmem:[%s347 + $0xe40] sm:$0xff]
        %v1446 = vld [vmem:[%s347 + $0xe48] sm:$0xff]
        %v1447 = vld [vmem:[%s347 + $0xe50] sm:$0xff]
        %v1448 = vld [vmem:[%s347 + $0xe58] sm:$0xff]
        %v1449 = vld [vmem:[%s347 + $0xe60] sm:$0xff]
        %v1450 = vld [vmem:[%s347 + $0xe68] sm:$0xff]
        %v1451 = vld [vmem:[%s347 + $0xe70] sm:$0xff]
        %v1452 = vld [vmem:[%s347 + $0xe78] sm:$0xff]
        %v1453 = vld [vmem:[%s347 + $0xe80] sm:$0xff]
        %v1454 = vld [vmem:[%s347 + $0xe88] sm:$0xff]
        %v1455 = vld [vmem:[%s347 + $0xe90] sm:$0xff]
        %v1456 = vld [vmem:[%s347 + $0xe98] sm:$0xff]
        %v1457 = vld [vmem:[%s347 + $0xea0] sm:$0xff]
        %v1458 = vld [vmem:[%s347 + $0xea8] sm:$0xff]
        %v1459 = vld [vmem:[%s347 + $0xeb0] sm:$0xff]
        %v1460 = vld [vmem:[%s347 + $0xeb8] sm:$0xff]
        %v1461 = vld [vmem:[%s347 + $0xec0] sm:$0xff]
        %v1462 = vld [vmem:[%s347 + $0xec8] sm:$0xff]
        %v1463 = vld [vmem:[%s347 + $0xed0] sm:$0xff]
        %v1464 = vld [vmem:[%s347 + $0xed8] sm:$0xff]
        %v1465 = vld [vmem:[%s347 + $0xee0] sm:$0xff]
        %v1466 = vld [vmem:[%s347 + $0xee8] sm:$0xff]
        %v1467 = vld [vmem:[%s347 + $0xef0] sm:$0xff]
        %v1468 = vld [vmem:[%s347 + $0xef8] sm:$0xff]
        %v1469 = vld [vmem:[%s347 + $0xf00] sm:$0xff]
        %v1470 = vld [vmem:[%s347 + $0xf08] sm:$0xff]
        %v1471 = vld [vmem:[%s347 + $0xf10] sm:$0xff]
        %v1472 = vld [vmem:[%s347 + $0xf18] sm:$0xff]
        %v1473 = vld [vmem:[%s347 + $0xf20] sm:$0xff]
        %v1474 = vld [vmem:[%s347 + $0xf28] sm:$0xff]
        %v1475 = vld [vmem:[%s347 + $0xf30] sm:$0xff]
        %v1476 = vld [vmem:[%s347 + $0xf38] sm:$0xff]
        %v1477 = vld [vmem:[%s347 + $0xf40] sm:$0xff]
        %v1478 = vld [vmem:[%s347 + $0xf48] sm:$0xff]
        %v1479 = vld [vmem:[%s347 + $0xf50] sm:$0xff]
        %v1480 = vld [vmem:[%s347 + $0xf58] sm:$0xff]
        %v1481 = vld [vmem:[%s347 + $0xf60] sm:$0xff]
        %v1482 = vld [vmem:[%s347 + $0xf68] sm:$0xff]
        %v1483 = vld [vmem:[%s347 + $0xf70] sm:$0xff]
        %v1484 = vld [vmem:[%s347 + $0xf78] sm:$0xff]
        %v1485 = vld [vmem:[%s347 + $0xf80] sm:$0xff]
        %v1486 = vld [vmem:[%s347 + $0xf88] sm:$0xff]
        %v1487 = vld [vmem:[%s347 + $0xf90] sm:$0xff]
        %v1488 = vld [vmem:[%s347 + $0xf98] sm:$0xff]
        %v1489 = vld [vmem:[%s347 + $0xfa0] sm:$0xff]
        %v1490 = vld [vmem:[%s347 + $0xfa8] sm:$0xff]
        %v1491 = vld [vmem:[%s347 + $0xfb0] sm:$0xff]
        %v1492 = vld [vmem:[%s347 + $0xfb8] sm:$0xff]
        %v1493 = vld [vmem:[%s347 + $0xfc0] sm:$0xff]
        %v1494 = vld [vmem:[%s347 + $0xfc8] sm:$0xff]
        %v1495 = vld [vmem:[%s347 + $0xfd0] sm:$0xff]
        %v1496 = vld [vmem:[%s347 + $0xfd8] sm:$0xff]
        %v1497 = vld [vmem:[%s347 + $0xfe0] sm:$0xff]
        %v1498 = vld [vmem:[%s347 + $0xfe8] sm:$0xff]
        %v1499 = vld [vmem:[%s347 + $0xff0] sm:$0xff]
        %v1500 = vld [vmem:[%s347 + $0xff8] sm:$0xff]
        %v1501 = vld [vmem:[%s347 + $0x1000] sm:$0xff]
        %v1502 = vld [vmem:[%s347 + $0x1008] sm:$0xff]
        %v1503 = vld [vmem:[%s347 + $0x1010] sm:$0xff]
        %v1504 = vld [vmem:[%s347 + $0x1018] sm:$0xff]
        %v1505 = vld [vmem:[%s347 + $0x1020] sm:$0xff]
        %v1506 = vld [vmem:[%s347 + $0x1028] sm:$0xff]
        %v1507 = vld [vmem:[%s347 + $0x1030] sm:$0xff]
        %v1508 = vld [vmem:[%s347 + $0x1038] sm:$0xff]
        %v1509 = vld [vmem:[%s347 + $0x1040] sm:$0xff]
        %v1510 = vld [vmem:[%s347 + $0x1048] sm:$0xff]
        %v1511 = vld [vmem:[%s347 + $0x1050] sm:$0xff]
        %v1512 = vld [vmem:[%s347 + $0x1058] sm:$0xff]
        %v1513 = vld [vmem:[%s347 + $0x1060] sm:$0xff]
        %v1514 = vld [vmem:[%s347 + $0x1068] sm:$0xff]
        %v1515 = vld [vmem:[%s347 + $0x1070] sm:$0xff]
        %v1516 = vld [vmem:[%s347 + $0x1078] sm:$0xff]
        %v1517 = vld [vmem:[%s347 + $0x1080] sm:$0xff]
        %v1518 = vld [vmem:[%s347 + $0x1088] sm:$0xff]
        %v1519 = vld [vmem:[%s347 + $0x1090] sm:$0xff]
        %v1520 = vld [vmem:[%s347 + $0x1098] sm:$0xff]
        %v1521 = vld [vmem:[%s347 + $0x10a0] sm:$0xff]
        %v1522 = vld [vmem:[%s347 + $0x10a8] sm:$0xff]
        %v1523 = vld [vmem:[%s347 + $0x10b0] sm:$0xff]
        %v1524 = vld [vmem:[%s347 + $0x10b8] sm:$0xff]
        %v1525 = vld [vmem:[%s347 + $0x10c0] sm:$0xff]
        %v1526 = vld [vmem:[%s347 + $0x10c8] sm:$0xff]
        %v1527 = vld [vmem:[%s347 + $0x10d0] sm:$0xff]
        %v1528 = vld [vmem:[%s347 + $0x10d8] sm:$0xff]
        %v1529 = vld [vmem:[%s347 + $0x10e0] sm:$0xff]
        %v1530 = vld [vmem:[%s347 + $0x10e8] sm:$0xff]
        %v1531 = vld [vmem:[%s347 + $0x10f0] sm:$0xff]
        %v1532 = vld [vmem:[%s347 + $0x10f8] sm:$0xff]
        %v1533 = vld [vmem:[%s347 + $0x1100] sm:$0xff]
        %v1534 = vld [vmem:[%s347 + $0x1108] sm:$0xff]
        %v1535 = vld [vmem:[%s347 + $0x1110] sm:$0xff]
        %v1536 = vld [vmem:[%s347 + $0x1118] sm:$0xff]
        %v1537 = vld [vmem:[%s347 + $0x1120] sm:$0xff]
        %v1538 = vld [vmem:[%s347 + $0x1128] sm:$0xff]
        %v1539 = vld [vmem:[%s347 + $0x1130] sm:$0xff]
        %v1540 = vld [vmem:[%s347 + $0x1138] sm:$0xff]
        %v1541 = vld [vmem:[%s347 + $0x1140] sm:$0xff]
        %v1542 = vld [vmem:[%s347 + $0x1148] sm:$0xff]
        %v1543 = vld [vmem:[%s347 + $0x1150] sm:$0xff]
        %v1544 = vld [vmem:[%s347 + $0x1158] sm:$0xff]
        %v1545 = vld [vmem:[%s347 + $0x1160] sm:$0xff]
        %v1546 = vld [vmem:[%s347 + $0x1168] sm:$0xff]
        %v1547 = vld [vmem:[%s347 + $0x1170] sm:$0xff]
        %v1548 = vld [vmem:[%s347 + $0x1178] sm:$0xff]
        %v1549 = vld [vmem:[%s347 + $0x1180] sm:$0xff]
        %v1550 = vld [vmem:[%s347 + $0x1188] sm:$0xff]
        %v1551 = vld [vmem:[%s347 + $0x1190] sm:$0xff]
        %v1552 = vld [vmem:[%s347 + $0x1198] sm:$0xff]
        %v1553 = vld [vmem:[%s347 + $0x11a0] sm:$0xff]
        %v1554 = vld [vmem:[%s347 + $0x11a8] sm:$0xff]
        %v1555 = vld [vmem:[%s347 + $0x11b0] sm:$0xff]
        %v1556 = vld [vmem:[%s347 + $0x11b8] sm:$0xff]
        %v1557 = vld [vmem:[%s347 + $0x11c0] sm:$0xff]
        %v1558 = vld [vmem:[%s347 + $0x11c8] sm:$0xff]
        %v1559 = vld [vmem:[%s347 + $0x11d0] sm:$0xff]
        %v1560 = vld [vmem:[%s347 + $0x11d8] sm:$0xff]
        %v1561 = vld [vmem:[%s347 + $0x11e0] sm:$0xff]
        %v1562 = vld [vmem:[%s347 + $0x11e8] sm:$0xff]
        %v1563 = vld [vmem:[%s347 + $0x11f0] sm:$0xff]
        %v1564 = vld [vmem:[%s347 + $0x11f8] sm:$0xff]
        %v1565 = vld [vmem:[%s347 + $0x1200] sm:$0xff]
        %v1566 = vld [vmem:[%s347 + $0x1208] sm:$0xff]
        %v1567 = vld [vmem:[%s347 + $0x1210] sm:$0xff]
        %v1568 = vld [vmem:[%s347 + $0x1218] sm:$0xff]
        %v1569 = vld [vmem:[%s347 + $0x1220] sm:$0xff]
        %v1570 = vld [vmem:[%s347 + $0x1228] sm:$0xff]
        %v1571 = vld [vmem:[%s347 + $0x1230] sm:$0xff]
        %v1572 = vld [vmem:[%s347 + $0x1238] sm:$0xff]
        %v1573 = vld [vmem:[%s347 + $0x1240] sm:$0xff]
        %v1574 = vld [vmem:[%s347 + $0x1248] sm:$0xff]
        %v1575 = vld [vmem:[%s347 + $0x1250] sm:$0xff]
        %v1576 = vld [vmem:[%s347 + $0x1258] sm:$0xff]
        %v1577 = vld [vmem:[%s347 + $0x1260] sm:$0xff]
        %v1578 = vld [vmem:[%s347 + $0x1268] sm:$0xff]
        %v1579 = vld [vmem:[%s347 + $0x1270] sm:$0xff]
        %v1580 = vld [vmem:[%s347 + $0x1278] sm:$0xff]
        %v1581 = vld [vmem:[%s347 + $0x1280] sm:$0xff]
        %v1582 = vld [vmem:[%s347 + $0x1288] sm:$0xff]
        %v1583 = vld [vmem:[%s347 + $0x1290] sm:$0xff]
        %v1584 = vld [vmem:[%s347 + $0x1298] sm:$0xff]
        %v1585 = vld [vmem:[%s347 + $0x12a0] sm:$0xff]
        %v1586 = vld [vmem:[%s347 + $0x12a8] sm:$0xff]
        %v1587 = vld [vmem:[%s347 + $0x12b0] sm:$0xff]
        %v1588 = vld [vmem:[%s347 + $0x12b8] sm:$0xff]
        %v1589 = vld [vmem:[%s347 + $0x12c0] sm:$0xff]
        %v1590 = vld [vmem:[%s347 + $0x12c8] sm:$0xff]
        %v1591 = vld [vmem:[%s347 + $0x12d0] sm:$0xff]
        %v1592 = vld [vmem:[%s347 + $0x12d8] sm:$0xff]
        %v1593 = vld [vmem:[%s347 + $0x12e0] sm:$0xff]
        %v1594 = vld [vmem:[%s347 + $0x12e8] sm:$0xff]
        %v1595 = vld [vmem:[%s347 + $0x12f0] sm:$0xff]
        %v1596 = vld [vmem:[%s347 + $0x12f8] sm:$0xff]
        %v1597 = vld [vmem:[%s347 + $0x1300] sm:$0xff]
        %v1598 = vld [vmem:[%s347 + $0x1308] sm:$0xff]
        %v1599 = vld [vmem:[%s347 + $0x1310] sm:$0xff]
        %v1600 = vld [vmem:[%s347 + $0x1318] sm:$0xff]
        %v1601 = vld [vmem:[%s347 + $0x1320] sm:$0xff]
        %v1602 = vld [vmem:[%s347 + $0x1328] sm:$0xff]
        %v1603 = vld [vmem:[%s347 + $0x1330] sm:$0xff]
        %v1604 = vld [vmem:[%s347 + $0x1338] sm:$0xff]
        %v1605 = vld [vmem:[%s347 + $0x1340] sm:$0xff]
        %v1606 = vld [vmem:[%s347 + $0x1348] sm:$0xff]
        %v1607 = vld [vmem:[%s347 + $0x1350] sm:$0xff]
        %v1608 = vld [vmem:[%s347 + $0x1358] sm:$0xff]
        %v1609 = vld [vmem:[%s347 + $0x1360] sm:$0xff]
        %v1610 = vld [vmem:[%s347 + $0x1368] sm:$0xff]
        %v1611 = vld [vmem:[%s347 + $0x1370] sm:$0xff]
        %v1612 = vld [vmem:[%s347 + $0x1378] sm:$0xff]
        %v1613 = vld [vmem:[%s347 + $0x1380] sm:$0xff]
        %v1614 = vld [vmem:[%s347 + $0x1388] sm:$0xff]
        %v1615 = vld [vmem:[%s347 + $0x1390] sm:$0xff]
        %v1616 = vld [vmem:[%s347 + $0x1398] sm:$0xff]
        %v1617 = vld [vmem:[%s347 + $0x13a0] sm:$0xff]
        %v1618 = vld [vmem:[%s347 + $0x13a8] sm:$0xff]
        %v1619 = vld [vmem:[%s347 + $0x13b0] sm:$0xff]
        %v1620 = vld [vmem:[%s347 + $0x13b8] sm:$0xff]
        %v1621 = vld [vmem:[%s347 + $0x13c0] sm:$0xff]
        %v1622 = vld [vmem:[%s347 + $0x13c8] sm:$0xff]
        %v1623 = vld [vmem:[%s347 + $0x13d0] sm:$0xff]
        %v1624 = vld [vmem:[%s347 + $0x13d8] sm:$0xff]
        %v1625 = vld [vmem:[%s347 + $0x13e0] sm:$0xff]
        %v1626 = vld [vmem:[%s347 + $0x13e8] sm:$0xff]
        %v1627 = vld [vmem:[%s347 + $0x13f0] sm:$0xff]
        %v1628 = vld [vmem:[%s347 + $0x13f8] sm:$0xff]
        %v1629 = vld [vmem:[%s347 + $0x1400] sm:$0xff]
        %v1630 = vld [vmem:[%s347 + $0x1408] sm:$0xff]
        %v1631 = vld [vmem:[%s347 + $0x1410] sm:$0xff]
        %v1632 = vld [vmem:[%s347 + $0x1418] sm:$0xff]
        %v1633 = vld [vmem:[%s347 + $0x1420] sm:$0xff]
        %v1634 = vld [vmem:[%s347 + $0x1428] sm:$0xff]
        %v1635 = vld [vmem:[%s347 + $0x1430] sm:$0xff]
        %v1636 = vld [vmem:[%s347 + $0x1438] sm:$0xff]
        %v1637 = vld [vmem:[%s347 + $0x1440] sm:$0xff]
        %v1638 = vld [vmem:[%s347 + $0x1448] sm:$0xff]
        %v1639 = vld [vmem:[%s347 + $0x1450] sm:$0xff]
        %v1640 = vld [vmem:[%s347 + $0x1458] sm:$0xff]
        %v1641 = vld [vmem:[%s347 + $0x1460] sm:$0xff]
        %v1642 = vld [vmem:[%s347 + $0x1468] sm:$0xff]
        %v1643 = vld [vmem:[%s347 + $0x1470] sm:$0xff]
        %v1644 = vld [vmem:[%s347 + $0x1478] sm:$0xff]
        %v1645 = vld [vmem:[%s347 + $0x1480] sm:$0xff]
        %v1646 = vld [vmem:[%s347 + $0x1488] sm:$0xff]
        %v1647 = vld [vmem:[%s347 + $0x1490] sm:$0xff]
        %v1648 = vld [vmem:[%s347 + $0x1498] sm:$0xff]
        %v1649 = vld [vmem:[%s347 + $0x14a0] sm:$0xff]
        %v1650 = vld [vmem:[%s347 + $0x14a8] sm:$0xff]
        %v1651 = vld [vmem:[%s347 + $0x14b0] sm:$0xff]
        %v1652 = vld [vmem:[%s347 + $0x14b8] sm:$0xff]
        %v1653 = vld [vmem:[%s347 + $0x14c0] sm:$0xff]
        %v1654 = vld [vmem:[%s347 + $0x14c8] sm:$0xff]
        %v1655 = vld [vmem:[%s347 + $0x14d0] sm:$0xff]
        %v1656 = vld [vmem:[%s347 + $0x14d8] sm:$0xff]
        %v1657 = vld [vmem:[%s347 + $0x14e0] sm:$0xff]
        %v1658 = vld [vmem:[%s347 + $0x14e8] sm:$0xff]
        %v1659 = vld [vmem:[%s347 + $0x14f0] sm:$0xff]
        %v1660 = vld [vmem:[%s347 + $0x14f8] sm:$0xff]
        %v1661 = vld [vmem:[%s347 + $0x1500] sm:$0xff]
        %v1662 = vld [vmem:[%s347 + $0x1508] sm:$0xff]
        %v1663 = vld [vmem:[%s347 + $0x1510] sm:$0xff]
        %v1664 = vld [vmem:[%s347 + $0x1518] sm:$0xff]
        %v1665 = vld [vmem:[%s347 + $0x1520] sm:$0xff]
        %v1666 = vld [vmem:[%s347 + $0x1528] sm:$0xff]
        %v1667 = vld [vmem:[%s347 + $0x1530] sm:$0xff]
        %v1668 = vld [vmem:[%s347 + $0x1538] sm:$0xff]
        %v1669 = vld [vmem:[%s347 + $0x1540] sm:$0xff]
        %v1670 = vld [vmem:[%s347 + $0x1548] sm:$0xff]
        %v1671 = vld [vmem:[%s347 + $0x1550] sm:$0xff]
        %v1672 = vld [vmem:[%s347 + $0x1558] sm:$0xff]
        %v1673 = vld [vmem:[%s347 + $0x1560] sm:$0xff]
        %v1674 = vld [vmem:[%s347 + $0x1568] sm:$0xff]
        %v1675 = vld [vmem:[%s347 + $0x1570] sm:$0xff]
        %v1676 = vld [vmem:[%s347 + $0x1578] sm:$0xff]
        %v1677 = vld [vmem:[%s347 + $0x1580] sm:$0xff]
        %v1678 = vld [vmem:[%s347 + $0x1588] sm:$0xff]
        %v1679 = vld [vmem:[%s347 + $0x1590] sm:$0xff]
        %v1680 = vld [vmem:[%s347 + $0x1598] sm:$0xff]
        %v1681 = vld [vmem:[%s347 + $0x15a0] sm:$0xff]
        %v1682 = vld [vmem:[%s347 + $0x15a8] sm:$0xff]
        %v1683 = vld [vmem:[%s347 + $0x15b0] sm:$0xff]
        %v1684 = vld [vmem:[%s347 + $0x15b8] sm:$0xff]
        %v1685 = vld [vmem:[%s347 + $0x15c0] sm:$0xff]
        %v1686 = vld [vmem:[%s347 + $0x15c8] sm:$0xff]
        %v1687 = vld [vmem:[%s347 + $0x15d0] sm:$0xff]
        %v1688 = vld [vmem:[%s347 + $0x15d8] sm:$0xff]
        %v1689 = vld [vmem:[%s347 + $0x15e0] sm:$0xff]
        %v1690 = vld [vmem:[%s347 + $0x15e8] sm:$0xff]
        %v1691 = vld [vmem:[%s347 + $0x15f0] sm:$0xff]
        %v1692 = vld [vmem:[%s347 + $0x15f8] sm:$0xff]
        %v1693 = vld [vmem:[%s347 + $0x1600] sm:$0xff]
        %v1694 = vld [vmem:[%s347 + $0x1608] sm:$0xff]
        %v1695 = vld [vmem:[%s347 + $0x1610] sm:$0xff]
        %v1696 = vld [vmem:[%s347 + $0x1618] sm:$0xff]
        %v1697 = vld [vmem:[%s347 + $0x1620] sm:$0xff]
        %v1698 = vld [vmem:[%s347 + $0x1628] sm:$0xff]
        %v1699 = vld [vmem:[%s347 + $0x1630] sm:$0xff]
        %v1700 = vld [vmem:[%s347 + $0x1638] sm:$0xff]
        %v1701 = vld [vmem:[%s347 + $0x1640] sm:$0xff]
        %v1702 = vld [vmem:[%s347 + $0x1648] sm:$0xff]
        %v1703 = vld [vmem:[%s347 + $0x1650] sm:$0xff]
        %v1704 = vld [vmem:[%s347 + $0x1658] sm:$0xff]
        %v1705 = vld [vmem:[%s347 + $0x1660] sm:$0xff]
        %v1706 = vld [vmem:[%s347 + $0x1668] sm:$0xff]
        %v1707 = vld [vmem:[%s347 + $0x1670] sm:$0xff]
        %v1708 = vld [vmem:[%s347 + $0x1678] sm:$0xff]
        %v1709 = vld [vmem:[%s347 + $0x1680] sm:$0xff]
        %v1710 = vld [vmem:[%s347 + $0x1688] sm:$0xff]
        %v1711 = vld [vmem:[%s347 + $0x1690] sm:$0xff]
        %v1712 = vld [vmem:[%s347 + $0x1698] sm:$0xff]
        %v1713 = vld [vmem:[%s347 + $0x16a0] sm:$0xff]
        %v1714 = vld [vmem:[%s347 + $0x16a8] sm:$0xff]
        %v1715 = vld [vmem:[%s347 + $0x16b0] sm:$0xff]
        %v1716 = vld [vmem:[%s347 + $0x16b8] sm:$0xff]
        %v1717 = vld [vmem:[%s347 + $0x16c0] sm:$0xff]
        %v1718 = vld [vmem:[%s347 + $0x16c8] sm:$0xff]
        %v1719 = vld [vmem:[%s347 + $0x16d0] sm:$0xff]
        %v1720 = vld [vmem:[%s347 + $0x16d8] sm:$0xff]
        %v1721 = vld [vmem:[%s347 + $0x16e0] sm:$0xff]
        %v1722 = vld [vmem:[%s347 + $0x16e8] sm:$0xff]
        %v1723 = vld [vmem:[%s347 + $0x16f0] sm:$0xff]
        %v1724 = vld [vmem:[%s347 + $0x16f8] sm:$0xff]
        %v1725 = vld [vmem:[%s347 + $0x1700] sm:$0xff]
        %v1726 = vld [vmem:[%s347 + $0x1708] sm:$0xff]
        %v1727 = vld [vmem:[%s347 + $0x1710] sm:$0xff]
        %v1728 = vld [vmem:[%s347 + $0x1718] sm:$0xff]
        %v1729 = vld [vmem:[%s347 + $0x1720] sm:$0xff]
        %v1730 = vld [vmem:[%s347 + $0x1728] sm:$0xff]
        %v1731 = vld [vmem:[%s347 + $0x1730] sm:$0xff]
        %v1732 = vld [vmem:[%s347 + $0x1738] sm:$0xff]
        %v1733 = vld [vmem:[%s347 + $0x1740] sm:$0xff]
        %v1734 = vld [vmem:[%s347 + $0x1748] sm:$0xff]
        %v1735 = vld [vmem:[%s347 + $0x1750] sm:$0xff]
        %v1736 = vld [vmem:[%s347 + $0x1758] sm:$0xff]
        %v1737 = vld [vmem:[%s347 + $0x1760] sm:$0xff]
        %v1738 = vld [vmem:[%s347 + $0x1768] sm:$0xff]
        %v1739 = vld [vmem:[%s347 + $0x1770] sm:$0xff]
        %v1740 = vld [vmem:[%s347 + $0x1778] sm:$0xff]
        %v1741 = vld [vmem:[%s347 + $0x1780] sm:$0xff]
        %v1742 = vld [vmem:[%s347 + $0x1788] sm:$0xff]
        %v1743 = vld [vmem:[%s347 + $0x1790] sm:$0xff]
        %v1744 = vld [vmem:[%s347 + $0x1798] sm:$0xff]
        %v1745 = vld [vmem:[%s347 + $0x17a0] sm:$0xff]
        %v1746 = vld [vmem:[%s347 + $0x17a8] sm:$0xff]
        %v1747 = vld [vmem:[%s347 + $0x17b0] sm:$0xff]
        %v1748 = vld [vmem:[%s347 + $0x17b8] sm:$0xff]
        %v1749 = vld [vmem:[%s347 + $0x17c0] sm:$0xff]
        %v1750 = vld [vmem:[%s347 + $0x17c8] sm:$0xff]
        %v1751 = vld [vmem:[%s347 + $0x17d0] sm:$0xff]
        %v1752 = vld [vmem:[%s347 + $0x17d8] sm:$0xff]
        %v1753 = vld [vmem:[%s347 + $0x17e0] sm:$0xff]
        %v1754 = vld [vmem:[%s347 + $0x17e8] sm:$0xff]
        %v1755 = vld [vmem:[%s347 + $0x17f0] sm:$0xff]
        %v1756 = vld [vmem:[%s347 + $0x17f8] sm:$0xff]
        %v1757 = vld [vmem:[%s347 + $0x1800] sm:$0xff]
        %v1758 = vld [vmem:[%s347 + $0x1808] sm:$0xff]
        %v1759 = vld [vmem:[%s347 + $0x1810] sm:$0xff]
        %v1760 = vld [vmem:[%s347 + $0x1818] sm:$0xff]
        %v1761 = vld [vmem:[%s347 + $0x1820] sm:$0xff]
        %v1762 = vld [vmem:[%s347 + $0x1828] sm:$0xff]
        %v1763 = vld [vmem:[%s347 + $0x1830] sm:$0xff]
        %v1764 = vld [vmem:[%s347 + $0x1838] sm:$0xff]
        %v1765 = vld [vmem:[%s347 + $0x1840] sm:$0xff]
        %v1766 = vld [vmem:[%s347 + $0x1848] sm:$0xff]
        %v1767 = vld [vmem:[%s347 + $0x1850] sm:$0xff]
        %v1768 = vld [vmem:[%s347 + $0x1858] sm:$0xff]
        %v1769 = vld [vmem:[%s347 + $0x1860] sm:$0xff]
        %v1770 = vld [vmem:[%s347 + $0x1868] sm:$0xff]
        %v1771 = vld [vmem:[%s347 + $0x1870] sm:$0xff]
        %v1772 = vld [vmem:[%s347 + $0x1878] sm:$0xff]
        %v1773 = vld [vmem:[%s347 + $0x1880] sm:$0xff]
        %v1774 = vld [vmem:[%s347 + $0x1888] sm:$0xff]
        %v1775 = vld [vmem:[%s347 + $0x1890] sm:$0xff]
        %v1776 = vld [vmem:[%s347 + $0x1898] sm:$0xff]
        %v1777 = vld [vmem:[%s347 + $0x18a0] sm:$0xff]
        %v1778 = vld [vmem:[%s347 + $0x18a8] sm:$0xff]
        %v1779 = vld [vmem:[%s347 + $0x18b0] sm:$0xff]
        %v1780 = vld [vmem:[%s347 + $0x18b8] sm:$0xff]
        %v1781 = vld [vmem:[%s347 + $0x18c0] sm:$0xff]
        %v1782 = vld [vmem:[%s347 + $0x18c8] sm:$0xff]
        %v1783 = vld [vmem:[%s347 + $0x18d0] sm:$0xff]
        %v1784 = vld [vmem:[%s347 + $0x18d8] sm:$0xff]
        %v1785 = vld [vmem:[%s347 + $0x18e0] sm:$0xff]
        %v1786 = vld [vmem:[%s347 + $0x18e8] sm:$0xff]
        %v1787 = vld [vmem:[%s347 + $0x18f0] sm:$0xff]
        %v1788 = vld [vmem:[%s347 + $0x18f8] sm:$0xff]
        %v1789 = vld [vmem:[%s347 + $0x1900] sm:$0xff]
        %v1790 = vld [vmem:[%s347 + $0x1908] sm:$0xff]
        %v1791 = vld [vmem:[%s347 + $0x1910] sm:$0xff]
        %v1792 = vld [vmem:[%s347 + $0x1918] sm:$0xff]
        %v1793 = vld [vmem:[%s347 + $0x1920] sm:$0xff]
        %v1794 = vld [vmem:[%s347 + $0x1928] sm:$0xff]
        %v1795 = vld [vmem:[%s347 + $0x1930] sm:$0xff]
        %v1796 = vld [vmem:[%s347 + $0x1938] sm:$0xff]
        %v1797 = vld [vmem:[%s347 + $0x1940] sm:$0xff]
        %v1798 = vld [vmem:[%s347 + $0x1948] sm:$0xff]
        %v1799 = vld [vmem:[%s347 + $0x1950] sm:$0xff]
        %v1800 = vld [vmem:[%s347 + $0x1958] sm:$0xff]
        %v1801 = vld [vmem:[%s347 + $0x1960] sm:$0xff]
        %v1802 = vld [vmem:[%s347 + $0x1968] sm:$0xff]
        %v1803 = vld [vmem:[%s347 + $0x1970] sm:$0xff]
        %v1804 = vld [vmem:[%s347 + $0x1978] sm:$0xff]
        %v1805 = vld [vmem:[%s347 + $0x1980] sm:$0xff]
        %v1806 = vld [vmem:[%s347 + $0x1988] sm:$0xff]
        %v1807 = vld [vmem:[%s347 + $0x1990] sm:$0xff]
        %v1808 = vld [vmem:[%s347 + $0x1998] sm:$0xff]
        %v1809 = vld [vmem:[%s347 + $0x19a0] sm:$0xff]
        %v1810 = vld [vmem:[%s347 + $0x19a8] sm:$0xff]
        %v1811 = vld [vmem:[%s347 + $0x19b0] sm:$0xff]
        %v1812 = vld [vmem:[%s347 + $0x19b8] sm:$0xff]
        %v1813 = vld [vmem:[%s347 + $0x19c0] sm:$0xff]
        %v1814 = vld [vmem:[%s347 + $0x19c8] sm:$0xff]
        %v1815 = vld [vmem:[%s347 + $0x19d0] sm:$0xff]
        %v1816 = vld [vmem:[%s347 + $0x19d8] sm:$0xff]
        %v1817 = vld [vmem:[%s347 + $0x19e0] sm:$0xff]
        %v1818 = vld [vmem:[%s347 + $0x19e8] sm:$0xff]
        %v1819 = vld [vmem:[%s347 + $0x19f0] sm:$0xff]
        %v1820 = vld [vmem:[%s347 + $0x19f8] sm:$0xff]
        %v1821 = vld [vmem:[%s347 + $0x1a00] sm:$0xff]
        %v1822 = vld [vmem:[%s347 + $0x1a08] sm:$0xff]
        %v1823 = vld [vmem:[%s347 + $0x1a10] sm:$0xff]
        %v1824 = vld [vmem:[%s347 + $0x1a18] sm:$0xff]
        %v1825 = vld [vmem:[%s347 + $0x1a20] sm:$0xff]
        %v1826 = vld [vmem:[%s347 + $0x1a28] sm:$0xff]
        %v1827 = vld [vmem:[%s347 + $0x1a30] sm:$0xff]
        %v1828 = vld [vmem:[%s347 + $0x1a38] sm:$0xff]
        %v1829 = vld [vmem:[%s347 + $0x1a40] sm:$0xff]
        %v1830 = vld [vmem:[%s347 + $0x1a48] sm:$0xff]
        %v1831 = vld [vmem:[%s347 + $0x1a50] sm:$0xff]
        %v1832 = vld [vmem:[%s347 + $0x1a58] sm:$0xff]
        %v1833 = vld [vmem:[%s347 + $0x1a60] sm:$0xff]
        %v1834 = vld [vmem:[%s347 + $0x1a68] sm:$0xff]
        %v1835 = vld [vmem:[%s347 + $0x1a70] sm:$0xff]
        %v1836 = vld [vmem:[%s347 + $0x1a78] sm:$0xff]
        %v1837 = vld [vmem:[%s347 + $0x1a80] sm:$0xff]
        %v1838 = vld [vmem:[%s347 + $0x1a88] sm:$0xff]
        %v1839 = vld [vmem:[%s347 + $0x1a90] sm:$0xff]
        %v1840 = vld [vmem:[%s347 + $0x1a98] sm:$0xff]
        %v1841 = vld [vmem:[%s347 + $0x1aa0] sm:$0xff]
        %v1842 = vld [vmem:[%s347 + $0x1aa8] sm:$0xff]
        %v1843 = vld [vmem:[%s347 + $0x1ab0] sm:$0xff]
        %v1844 = vld [vmem:[%s347 + $0x1ab8] sm:$0xff]
        %v1845 = vld [vmem:[%s347 + $0x1ac0] sm:$0xff]
        %v1846 = vld [vmem:[%s347 + $0x1ac8] sm:$0xff]
        %v1847 = vld [vmem:[%s347 + $0x1ad0] sm:$0xff]
        %v1848 = vld [vmem:[%s347 + $0x1ad8] sm:$0xff]
        %v1849 = vld [vmem:[%s347 + $0x1ae0] sm:$0xff]
        %v1850 = vld [vmem:[%s347 + $0x1ae8] sm:$0xff]
        %v1851 = vld [vmem:[%s347 + $0x1af0] sm:$0xff]
        %v1852 = vld [vmem:[%s347 + $0x1af8] sm:$0xff]
        %v1853 = vld [vmem:[%s347 + $0x1b00] sm:$0xff]
        %v1854 = vld [vmem:[%s347 + $0x1b08] sm:$0xff]
        %v1855 = vld [vmem:[%s347 + $0x1b10] sm:$0xff]
        %v1856 = vld [vmem:[%s347 + $0x1b18] sm:$0xff]
        %v1857 = vld [vmem:[%s347 + $0x1b20] sm:$0xff]
        %v1858 = vld [vmem:[%s347 + $0x1b28] sm:$0xff]
        %v1859 = vld [vmem:[%s347 + $0x1b30] sm:$0xff]
        %v1860 = vld [vmem:[%s347 + $0x1b38] sm:$0xff]
        %v1861 = vld [vmem:[%s347 + $0x1b40] sm:$0xff]
        %v1862 = vld [vmem:[%s347 + $0x1b48] sm:$0xff]
        %v1863 = vld [vmem:[%s347 + $0x1b50] sm:$0xff]
        %v1864 = vld [vmem:[%s347 + $0x1b58] sm:$0xff]
        %v1865 = vld [vmem:[%s347 + $0x1b60] sm:$0xff]
        %v1866 = vld [vmem:[%s347 + $0x1b68] sm:$0xff]
        %v1867 = vld [vmem:[%s347 + $0x1b70] sm:$0xff]
        %v1868 = vld [vmem:[%s347 + $0x1b78] sm:$0xff]
        %v1869 = vld [vmem:[%s347 + $0x1b80] sm:$0xff]
        %v1870 = vld [vmem:[%s347 + $0x1b88] sm:$0xff]
        %v1871 = vld [vmem:[%s347 + $0x1b90] sm:$0xff]
        %v1872 = vld [vmem:[%s347 + $0x1b98] sm:$0xff]
        %v1873 = vld [vmem:[%s347 + $0x1ba0] sm:$0xff]
        %v1874 = vld [vmem:[%s347 + $0x1ba8] sm:$0xff]
        %v1875 = vld [vmem:[%s347 + $0x1bb0] sm:$0xff]
        %v1876 = vld [vmem:[%s347 + $0x1bb8] sm:$0xff]
        %v1877 = vld [vmem:[%s347 + $0x1bc0] sm:$0xff]
        %v1878 = vld [vmem:[%s347 + $0x1bc8] sm:$0xff]
        %v1879 = vld [vmem:[%s347 + $0x1bd0] sm:$0xff]
        %v1880 = vld [vmem:[%s347 + $0x1bd8] sm:$0xff]
        %v1881 = vld [vmem:[%s347 + $0x1be0] sm:$0xff]
        %v1882 = vld [vmem:[%s347 + $0x1be8] sm:$0xff]
        %v1883 = vld [vmem:[%s347 + $0x1bf0] sm:$0xff]
        %v1884 = vld [vmem:[%s347 + $0x1bf8] sm:$0xff]
        %v1885 = vld [vmem:[%s347 + $0x1c00] sm:$0xff]
        %v1886 = vld [vmem:[%s347 + $0x1c08] sm:$0xff]
        %v1887 = vld [vmem:[%s347 + $0x1c10] sm:$0xff]
        %v1888 = vld [vmem:[%s347 + $0x1c18] sm:$0xff]
        %v1889 = vld [vmem:[%s347 + $0x1c20] sm:$0xff]
        %v1890 = vld [vmem:[%s347 + $0x1c28] sm:$0xff]
        %v1891 = vld [vmem:[%s347 + $0x1c30] sm:$0xff]
        %v1892 = vld [vmem:[%s347 + $0x1c38] sm:$0xff]
        %v1893 = vld [vmem:[%s347 + $0x1c40] sm:$0xff]
        %v1894 = vld [vmem:[%s347 + $0x1c48] sm:$0xff]
        %v1895 = vld [vmem:[%s347 + $0x1c50] sm:$0xff]
        %v1896 = vld [vmem:[%s347 + $0x1c58] sm:$0xff]
        %v1897 = vld [vmem:[%s347 + $0x1c60] sm:$0xff]
        %v1898 = vld [vmem:[%s347 + $0x1c68] sm:$0xff]
        %v1899 = vld [vmem:[%s347 + $0x1c70] sm:$0xff]
        %v1900 = vld [vmem:[%s347 + $0x1c78] sm:$0xff]
        %v1901 = vld [vmem:[%s347 + $0x1c80] sm:$0xff]
        %v1902 = vld [vmem:[%s347 + $0x1c88] sm:$0xff]
        %v1903 = vld [vmem:[%s347 + $0x1c90] sm:$0xff]
        %v1904 = vld [vmem:[%s347 + $0x1c98] sm:$0xff]
        %v1905 = vld [vmem:[%s347 + $0x1ca0] sm:$0xff]
        %v1906 = vld [vmem:[%s347 + $0x1ca8] sm:$0xff]
        %v1907 = vld [vmem:[%s347 + $0x1cb0] sm:$0xff]
        %v1908 = vld [vmem:[%s347 + $0x1cb8] sm:$0xff]
        %v1909 = vld [vmem:[%s347 + $0x1cc0] sm:$0xff]
        %v1910 = vld [vmem:[%s347 + $0x1cc8] sm:$0xff]
        %v1911 = vld [vmem:[%s347 + $0x1cd0] sm:$0xff]
        %v1912 = vld [vmem:[%s347 + $0x1cd8] sm:$0xff]
        %v1913 = vld [vmem:[%s347 + $0x1ce0] sm:$0xff]
        %v1914 = vld [vmem:[%s347 + $0x1ce8] sm:$0xff]
        %v1915 = vld [vmem:[%s347 + $0x1cf0] sm:$0xff]
        %v1916 = vld [vmem:[%s347 + $0x1cf8] sm:$0xff]
        %v1917 = vld [vmem:[%s347 + $0x1d00] sm:$0xff]
        %v1918 = vld [vmem:[%s347 + $0x1d08] sm:$0xff]
        %v1919 = vld [vmem:[%s347 + $0x1d10] sm:$0xff]
        %v1920 = vld [vmem:[%s347 + $0x1d18] sm:$0xff]
        %v1921 = vld [vmem:[%s347 + $0x1d20] sm:$0xff]
        %v1922 = vld [vmem:[%s347 + $0x1d28] sm:$0xff]
        %v1923 = vld [vmem:[%s347 + $0x1d30] sm:$0xff]
        %v1924 = vld [vmem:[%s347 + $0x1d38] sm:$0xff]
        %v1925 = vld [vmem:[%s347 + $0x1d40] sm:$0xff]
        %v1926 = vld [vmem:[%s347 + $0x1d48] sm:$0xff]
        %v1927 = vld [vmem:[%s347 + $0x1d50] sm:$0xff]
        %v1928 = vld [vmem:[%s347 + $0x1d58] sm:$0xff]
        %v1929 = vld [vmem:[%s347 + $0x1d60] sm:$0xff]
        %v1930 = vld [vmem:[%s347 + $0x1d68] sm:$0xff]
        %v1931 = vld [vmem:[%s347 + $0x1d70] sm:$0xff]
        %v1932 = vld [vmem:[%s347 + $0x1d78] sm:$0xff]
        %v1933 = vld [vmem:[%s347 + $0x1d80] sm:$0xff]
        %v1934 = vld [vmem:[%s347 + $0x1d88] sm:$0xff]
        %v1935 = vld [vmem:[%s347 + $0x1d90] sm:$0xff]
        %v1936 = vld [vmem:[%s347 + $0x1d98] sm:$0xff]
        %v1937 = vld [vmem:[%s347 + $0x1da0] sm:$0xff]
        %v1938 = vld [vmem:[%s347 + $0x1da8] sm:$0xff]
        %v1939 = vld [vmem:[%s347 + $0x1db0] sm:$0xff]
        %v1940 = vld [vmem:[%s347 + $0x1db8] sm:$0xff]
        %v1941 = vld [vmem:[%s347 + $0x1dc0] sm:$0xff]
        %v1942 = vld [vmem:[%s347 + $0x1dc8] sm:$0xff]
        %v1943 = vld [vmem:[%s347 + $0x1dd0] sm:$0xff]
        %v1944 = vld [vmem:[%s347 + $0x1dd8] sm:$0xff]
        %v1945 = vld [vmem:[%s347 + $0x1de0] sm:$0xff]
        %v1946 = vld [vmem:[%s347 + $0x1de8] sm:$0xff]
        %v1947 = vld [vmem:[%s347 + $0x1df0] sm:$0xff]
        %v1948 = vld [vmem:[%s347 + $0x1df8] sm:$0xff]
        %v1949 = vld [vmem:[%s347 + $0x1e00] sm:$0xff]
        %v1950 = vld [vmem:[%s347 + $0x1e08] sm:$0xff]
        %v1951 = vld [vmem:[%s347 + $0x1e10] sm:$0xff]
        %v1952 = vld [vmem:[%s347 + $0x1e18] sm:$0xff]
        %v1953 = vld [vmem:[%s347 + $0x1e20] sm:$0xff]
        %v1954 = vld [vmem:[%s347 + $0x1e28] sm:$0xff]
        %v1955 = vld [vmem:[%s347 + $0x1e30] sm:$0xff]
        %v1956 = vld [vmem:[%s347 + $0x1e38] sm:$0xff]
        %v1957 = vld [vmem:[%s347 + $0x1e40] sm:$0xff]
        %v1958 = vld [vmem:[%s347 + $0x1e48] sm:$0xff]
        %v1959 = vld [vmem:[%s347 + $0x1e50] sm:$0xff]
        %v1960 = vld [vmem:[%s347 + $0x1e58] sm:$0xff]
        %v1961 = vld [vmem:[%s347 + $0x1e60] sm:$0xff]
        %v1962 = vld [vmem:[%s347 + $0x1e68] sm:$0xff]
        %v1963 = vld [vmem:[%s347 + $0x1e70] sm:$0xff]
        %v1964 = vld [vmem:[%s347 + $0x1e78] sm:$0xff]
        %v1965 = vld [vmem:[%s347 + $0x1e80] sm:$0xff]
        %v1966 = vld [vmem:[%s347 + $0x1e88] sm:$0xff]
        %v1967 = vld [vmem:[%s347 + $0x1e90] sm:$0xff]
        %v1968 = vld [vmem:[%s347 + $0x1e98] sm:$0xff]
        %v1969 = vld [vmem:[%s347 + $0x1ea0] sm:$0xff]
        %v1970 = vld [vmem:[%s347 + $0x1ea8] sm:$0xff]
        %v1971 = vld [vmem:[%s347 + $0x1eb0] sm:$0xff]
        %v1972 = vld [vmem:[%s347 + $0x1eb8] sm:$0xff]
        %v1973 = vld [vmem:[%s347 + $0x1ec0] sm:$0xff]
        %v1974 = vld [vmem:[%s347 + $0x1ec8] sm:$0xff]
        %v1975 = vld [vmem:[%s347 + $0x1ed0] sm:$0xff]
        %v1976 = vld [vmem:[%s347 + $0x1ed8] sm:$0xff]
        %v1977 = vld [vmem:[%s347 + $0x1ee0] sm:$0xff]
        %v1978 = vld [vmem:[%s347 + $0x1ee8] sm:$0xff]
        %v1979 = vld [vmem:[%s347 + $0x1ef0] sm:$0xff]
        %v1980 = vld [vmem:[%s347 + $0x1ef8] sm:$0xff]
        %v1981 = vld [vmem:[%s347 + $0x1f00] sm:$0xff]
        %v1982 = vld [vmem:[%s347 + $0x1f08] sm:$0xff]
        %v1983 = vld [vmem:[%s347 + $0x1f10] sm:$0xff]
        %v1984 = vld [vmem:[%s347 + $0x1f18] sm:$0xff]
        %v1985 = vld [vmem:[%s347 + $0x1f20] sm:$0xff]
        %v1986 = vld [vmem:[%s347 + $0x1f28] sm:$0xff]
        %v1987 = vld [vmem:[%s347 + $0x1f30] sm:$0xff]
        %v1988 = vld [vmem:[%s347 + $0x1f38] sm:$0xff]
        %v1989 = vld [vmem:[%s347 + $0x1f40] sm:$0xff]
        %v1990 = vld [vmem:[%s347 + $0x1f48] sm:$0xff]
        %v1991 = vld [vmem:[%s347 + $0x1f50] sm:$0xff]
        %v1992 = vld [vmem:[%s347 + $0x1f58] sm:$0xff]
        %v1993 = vld [vmem:[%s347 + $0x1f60] sm:$0xff]
        %v1994 = vld [vmem:[%s347 + $0x1f68] sm:$0xff]
        %v1995 = vld [vmem:[%s347 + $0x1f70] sm:$0xff]
        %v1996 = vld [vmem:[%s347 + $0x1f78] sm:$0xff]
        %v1997 = vld [vmem:[%s347 + $0x1f80] sm:$0xff]
        %v1998 = vld [vmem:[%s347 + $0x1f88] sm:$0xff]
        %v1999 = vld [vmem:[%s347 + $0x1f90] sm:$0xff]
        %v2000 = vld [vmem:[%s347 + $0x1f98] sm:$0xff]
        %v2001 = vld [vmem:[%s347 + $0x1fa0] sm:$0xff]
        %v2002 = vld [vmem:[%s347 + $0x1fa8] sm:$0xff]
        %v2003 = vld [vmem:[%s347 + $0x1fb0] sm:$0xff]
        %v2004 = vld [vmem:[%s347 + $0x1fb8] sm:$0xff]
        %v2005 = vld [vmem:[%s347 + $0x1fc0] sm:$0xff]
        %v2006 = vld [vmem:[%s347 + $0x1fc8] sm:$0xff]
        %v2007 = vld [vmem:[%s347 + $0x1fd0] sm:$0xff]
        %v2008 = vld [vmem:[%s347 + $0x1fd8] sm:$0xff]
        %v2009 = vld [vmem:[%s347 + $0x1fe0] sm:$0xff]
        %v2010 = vld [vmem:[%s347 + $0x1fe8] sm:$0xff]
        %v2011 = vld [vmem:[%s347 + $0x1ff0] sm:$0xff]
        %v2012 = vld [vmem:[%s347 + $0x1ff8] sm:$0xff]
        %v2013 = vld [vmem:[%s356] sm:$0xff]
        %v2015 = vlaneseq
        %v2016 = vshrl.u32 %v2015, 7
        %v2017 = vsub.s32 0, %v2016
        %v2018 = vrot.slane %v2013, %v2017
        %v2019 = vlaneseq
        %v2020 = vshrl.u32 %v2019, 7
        %v2021 = vsub.s32 1, %v2020
        %v2022 = vrot.slane %v2013, %v2021
        %v2023 = vlaneseq
        %v2024 = vshrl.u32 %v2023, 7
        %v2025 = vsub.s32 2, %v2024
        %v2026 = vrot.slane %v2013, %v2025
        %v2027 = vlaneseq
        %v2028 = vshrl.u32 %v2027, 7
        %v2029 = vsub.s32 3, %v2028
        %v2030 = vrot.slane %v2013, %v2029
        %v2031 = vlaneseq
        %v2032 = vshrl.u32 %v2031, 7
        %v2033 = vsub.s32 4, %v2032
        %v2034 = vrot.slane %v2013, %v2033
        %v2035 = vlaneseq
        %v2036 = vshrl.u32 %v2035, 7
        %v2037 = vsub.s32 5, %v2036
        %v2038 = vrot.slane %v2013, %v2037
        %v2039 = vlaneseq
        %v2040 = vshrl.u32 %v2039, 7
        %v2041 = vsub.s32 6, %v2040
        %v2042 = vrot.slane %v2013, %v2041
        %v2043 = vlaneseq
        %v2044 = vshrl.u32 %v2043, 7
        %v2045 = vsub.s32 7, %v2044
        %v2046 = vrot.slane %v2013, %v2045
        %v3079 = vunpack.c.l.b16 %v989
        %v3080 = vunpack.c.h.b16 %v989
        %v3081 = vunpack.c.l.b16 %v990
        %v3082 = vunpack.c.h.b16 %v990
        %v3083 = vunpack.c.l.b16 %v991
        %v3084 = vunpack.c.h.b16 %v991
        %v3085 = vunpack.c.l.b16 %v992
        %v3086 = vunpack.c.h.b16 %v992
        %v3087 = vunpack.c.l.b16 %v993
        %v3088 = vunpack.c.h.b16 %v993
        %v3089 = vunpack.c.l.b16 %v994
        %v3090 = vunpack.c.h.b16 %v994
        %v3091 = vunpack.c.l.b16 %v995
        %v3092 = vunpack.c.h.b16 %v995
        %v3093 = vunpack.c.l.b16 %v996
        %v3094 = vunpack.c.h.b16 %v996
        %v3095 = vunpack.c.l.b16 %v997
        %v3096 = vunpack.c.h.b16 %v997
        %v3097 = vunpack.c.l.b16 %v998
        %v3098 = vunpack.c.h.b16 %v998
        %v3099 = vunpack.c.l.b16 %v999
        %v3100 = vunpack.c.h.b16 %v999
        %v3101 = vunpack.c.l.b16 %v1000
        %v3102 = vunpack.c.h.b16 %v1000
        %v3103 = vunpack.c.l.b16 %v1001
        %v3104 = vunpack.c.h.b16 %v1001
        %v3105 = vunpack.c.l.b16 %v1002
        %v3106 = vunpack.c.h.b16 %v1002
        %v3107 = vunpack.c.l.b16 %v1003
        %v3108 = vunpack.c.h.b16 %v1003
        %v3109 = vunpack.c.l.b16 %v1004
        %v3110 = vunpack.c.h.b16 %v1004
        %v3111 = vunpack.c.l.b16 %v1005
        %v3112 = vunpack.c.h.b16 %v1005
        %v3113 = vunpack.c.l.b16 %v1006
        %v3114 = vunpack.c.h.b16 %v1006
        %v3115 = vunpack.c.l.b16 %v1007
        %v3116 = vunpack.c.h.b16 %v1007
        %v3117 = vunpack.c.l.b16 %v1008
        %v3118 = vunpack.c.h.b16 %v1008
        %v3119 = vunpack.c.l.b16 %v1009
        %v3120 = vunpack.c.h.b16 %v1009
        %v3121 = vunpack.c.l.b16 %v1010
        %v3122 = vunpack.c.h.b16 %v1010
        %v3123 = vunpack.c.l.b16 %v1011
        %v3124 = vunpack.c.h.b16 %v1011
        %v3125 = vunpack.c.l.b16 %v1012
        %v3126 = vunpack.c.h.b16 %v1012
        %v3127 = vunpack.c.l.b16 %v1013
        %v3128 = vunpack.c.h.b16 %v1013
        %v3129 = vunpack.c.l.b16 %v1014
        %v3130 = vunpack.c.h.b16 %v1014
        %v3131 = vunpack.c.l.b16 %v1015
        %v3132 = vunpack.c.h.b16 %v1015
        %v3133 = vunpack.c.l.b16 %v1016
        %v3134 = vunpack.c.h.b16 %v1016
        %v3135 = vunpack.c.l.b16 %v1017
        %v3136 = vunpack.c.h.b16 %v1017
        %v3137 = vunpack.c.l.b16 %v1018
        %v3138 = vunpack.c.h.b16 %v1018
        %v3139 = vunpack.c.l.b16 %v1019
        %v3140 = vunpack.c.h.b16 %v1019
        %v3141 = vunpack.c.l.b16 %v1020
        %v3142 = vunpack.c.h.b16 %v1020
        %v3143 = vunpack.c.l.b16 %v1021
        %v3144 = vunpack.c.h.b16 %v1021
        %v3145 = vunpack.c.l.b16 %v1022
        %v3146 = vunpack.c.h.b16 %v1022
        %v3147 = vunpack.c.l.b16 %v1023
        %v3148 = vunpack.c.h.b16 %v1023
        %v3149 = vunpack.c.l.b16 %v1024
        %v3150 = vunpack.c.h.b16 %v1024
        %v3151 = vunpack.c.l.b16 %v1025
        %v3152 = vunpack.c.h.b16 %v1025
        %v3153 = vunpack.c.l.b16 %v1026
        %v3154 = vunpack.c.h.b16 %v1026
        %v3155 = vunpack.c.l.b16 %v1027
        %v3156 = vunpack.c.h.b16 %v1027
        %v3157 = vunpack.c.l.b16 %v1028
        %v3158 = vunpack.c.h.b16 %v1028
        %v3159 = vunpack.c.l.b16 %v1029
        %v3160 = vunpack.c.h.b16 %v1029
        %v3161 = vunpack.c.l.b16 %v1030
        %v3162 = vunpack.c.h.b16 %v1030
        %v3163 = vunpack.c.l.b16 %v1031
        %v3164 = vunpack.c.h.b16 %v1031
        %v3165 = vunpack.c.l.b16 %v1032
        %v3166 = vunpack.c.h.b16 %v1032
        %v3167 = vunpack.c.l.b16 %v1033
        %v3168 = vunpack.c.h.b16 %v1033
        %v3169 = vunpack.c.l.b16 %v1034
        %v3170 = vunpack.c.h.b16 %v1034
        %v3171 = vunpack.c.l.b16 %v1035
        %v3172 = vunpack.c.h.b16 %v1035
        %v3173 = vunpack.c.l.b16 %v1036
        %v3174 = vunpack.c.h.b16 %v1036
        %v3175 = vunpack.c.l.b16 %v1037
        %v3176 = vunpack.c.h.b16 %v1037
        %v3177 = vunpack.c.l.b16 %v1038
        %v3178 = vunpack.c.h.b16 %v1038
        %v3179 = vunpack.c.l.b16 %v1039
        %v3180 = vunpack.c.h.b16 %v1039
        %v3181 = vunpack.c.l.b16 %v1040
        %v3182 = vunpack.c.h.b16 %v1040
        %v3183 = vunpack.c.l.b16 %v1041
        %v3184 = vunpack.c.h.b16 %v1041
        %v3185 = vunpack.c.l.b16 %v1042
        %v3186 = vunpack.c.h.b16 %v1042
        %v3187 = vunpack.c.l.b16 %v1043
        %v3188 = vunpack.c.h.b16 %v1043
        %v3189 = vunpack.c.l.b16 %v1044
        %v3190 = vunpack.c.h.b16 %v1044
        %v3191 = vunpack.c.l.b16 %v1045
        %v3192 = vunpack.c.h.b16 %v1045
        %v3193 = vunpack.c.l.b16 %v1046
        %v3194 = vunpack.c.h.b16 %v1046
        %v3195 = vunpack.c.l.b16 %v1047
        %v3196 = vunpack.c.h.b16 %v1047
        %v3197 = vunpack.c.l.b16 %v1048
        %v3198 = vunpack.c.h.b16 %v1048
        %v3199 = vunpack.c.l.b16 %v1049
        %v3200 = vunpack.c.h.b16 %v1049
        %v3201 = vunpack.c.l.b16 %v1050
        %v3202 = vunpack.c.h.b16 %v1050
        %v3203 = vunpack.c.l.b16 %v1051
        %v3204 = vunpack.c.h.b16 %v1051
        %v3205 = vunpack.c.l.b16 %v1052
        %v3206 = vunpack.c.h.b16 %v1052
        %v3207 = vunpack.c.l.b16 %v1053
        %v3208 = vunpack.c.h.b16 %v1053
        %v3209 = vunpack.c.l.b16 %v1054
        %v3210 = vunpack.c.h.b16 %v1054
        %v3211 = vunpack.c.l.b16 %v1055
        %v3212 = vunpack.c.h.b16 %v1055
        %v3213 = vunpack.c.l.b16 %v1056
        %v3214 = vunpack.c.h.b16 %v1056
        %v3215 = vunpack.c.l.b16 %v1057
        %v3216 = vunpack.c.h.b16 %v1057
        %v3217 = vunpack.c.l.b16 %v1058
        %v3218 = vunpack.c.h.b16 %v1058
        %v3219 = vunpack.c.l.b16 %v1059
        %v3220 = vunpack.c.h.b16 %v1059
        %v3221 = vunpack.c.l.b16 %v1060
        %v3222 = vunpack.c.h.b16 %v1060
        %v3223 = vunpack.c.l.b16 %v1061
        %v3224 = vunpack.c.h.b16 %v1061
        %v3225 = vunpack.c.l.b16 %v1062
        %v3226 = vunpack.c.h.b16 %v1062
        %v3227 = vunpack.c.l.b16 %v1063
        %v3228 = vunpack.c.h.b16 %v1063
        %v3229 = vunpack.c.l.b16 %v1064
        %v3230 = vunpack.c.h.b16 %v1064
        %v3231 = vunpack.c.l.b16 %v1065
        %v3232 = vunpack.c.h.b16 %v1065
        %v3233 = vunpack.c.l.b16 %v1066
        %v3234 = vunpack.c.h.b16 %v1066
        %v3235 = vunpack.c.l.b16 %v1067
        %v3236 = vunpack.c.h.b16 %v1067
        %v3237 = vunpack.c.l.b16 %v1068
        %v3238 = vunpack.c.h.b16 %v1068
        %v3239 = vunpack.c.l.b16 %v1069
        %v3240 = vunpack.c.h.b16 %v1069
        %v3241 = vunpack.c.l.b16 %v1070
        %v3242 = vunpack.c.h.b16 %v1070
        %v3243 = vunpack.c.l.b16 %v1071
        %v3244 = vunpack.c.h.b16 %v1071
        %v3245 = vunpack.c.l.b16 %v1072
        %v3246 = vunpack.c.h.b16 %v1072
        %v3247 = vunpack.c.l.b16 %v1073
        %v3248 = vunpack.c.h.b16 %v1073
        %v3249 = vunpack.c.l.b16 %v1074
        %v3250 = vunpack.c.h.b16 %v1074
        %v3251 = vunpack.c.l.b16 %v1075
        %v3252 = vunpack.c.h.b16 %v1075
        %v3253 = vunpack.c.l.b16 %v1076
        %v3254 = vunpack.c.h.b16 %v1076
        %v3255 = vunpack.c.l.b16 %v1077
        %v3256 = vunpack.c.h.b16 %v1077
        %v3257 = vunpack.c.l.b16 %v1078
        %v3258 = vunpack.c.h.b16 %v1078
        %v3259 = vunpack.c.l.b16 %v1079
        %v3260 = vunpack.c.h.b16 %v1079
        %v3261 = vunpack.c.l.b16 %v1080
        %v3262 = vunpack.c.h.b16 %v1080
        %v3263 = vunpack.c.l.b16 %v1081
        %v3264 = vunpack.c.h.b16 %v1081
        %v3265 = vunpack.c.l.b16 %v1082
        %v3266 = vunpack.c.h.b16 %v1082
        %v3267 = vunpack.c.l.b16 %v1083
        %v3268 = vunpack.c.h.b16 %v1083
        %v3269 = vunpack.c.l.b16 %v1084
        %v3270 = vunpack.c.h.b16 %v1084
        %v3271 = vunpack.c.l.b16 %v1085
        %v3272 = vunpack.c.h.b16 %v1085
        %v3273 = vunpack.c.l.b16 %v1086
        %v3274 = vunpack.c.h.b16 %v1086
        %v3275 = vunpack.c.l.b16 %v1087
        %v3276 = vunpack.c.h.b16 %v1087
        %v3277 = vunpack.c.l.b16 %v1088
        %v3278 = vunpack.c.h.b16 %v1088
        %v3279 = vunpack.c.l.b16 %v1089
        %v3280 = vunpack.c.h.b16 %v1089
        %v3281 = vunpack.c.l.b16 %v1090
        %v3282 = vunpack.c.h.b16 %v1090
        %v3283 = vunpack.c.l.b16 %v1091
        %v3284 = vunpack.c.h.b16 %v1091
        %v3285 = vunpack.c.l.b16 %v1092
        %v3286 = vunpack.c.h.b16 %v1092
        %v3287 = vunpack.c.l.b16 %v1093
        %v3288 = vunpack.c.h.b16 %v1093
        %v3289 = vunpack.c.l.b16 %v1094
        %v3290 = vunpack.c.h.b16 %v1094
        %v3291 = vunpack.c.l.b16 %v1095
        %v3292 = vunpack.c.h.b16 %v1095
        %v3293 = vunpack.c.l.b16 %v1096
        %v3294 = vunpack.c.h.b16 %v1096
        %v3295 = vunpack.c.l.b16 %v1097
        %v3296 = vunpack.c.h.b16 %v1097
        %v3297 = vunpack.c.l.b16 %v1098
        %v3298 = vunpack.c.h.b16 %v1098
        %v3299 = vunpack.c.l.b16 %v1099
        %v3300 = vunpack.c.h.b16 %v1099
        %v3301 = vunpack.c.l.b16 %v1100
        %v3302 = vunpack.c.h.b16 %v1100
        %v3303 = vunpack.c.l.b16 %v1101
        %v3304 = vunpack.c.h.b16 %v1101
        %v3305 = vunpack.c.l.b16 %v1102
        %v3306 = vunpack.c.h.b16 %v1102
        %v3307 = vunpack.c.l.b16 %v1103
        %v3308 = vunpack.c.h.b16 %v1103
        %v3309 = vunpack.c.l.b16 %v1104
        %v3310 = vunpack.c.h.b16 %v1104
        %v3311 = vunpack.c.l.b16 %v1105
        %v3312 = vunpack.c.h.b16 %v1105
        %v3313 = vunpack.c.l.b16 %v1106
        %v3314 = vunpack.c.h.b16 %v1106
        %v3315 = vunpack.c.l.b16 %v1107
        %v3316 = vunpack.c.h.b16 %v1107
        %v3317 = vunpack.c.l.b16 %v1108
        %v3318 = vunpack.c.h.b16 %v1108
        %v3319 = vunpack.c.l.b16 %v1109
        %v3320 = vunpack.c.h.b16 %v1109
        %v3321 = vunpack.c.l.b16 %v1110
        %v3322 = vunpack.c.h.b16 %v1110
        %v3323 = vunpack.c.l.b16 %v1111
        %v3324 = vunpack.c.h.b16 %v1111
        %v3325 = vunpack.c.l.b16 %v1112
        %v3326 = vunpack.c.h.b16 %v1112
        %v3327 = vunpack.c.l.b16 %v1113
        %v3328 = vunpack.c.h.b16 %v1113
        %v3329 = vunpack.c.l.b16 %v1114
        %v3330 = vunpack.c.h.b16 %v1114
        %v3331 = vunpack.c.l.b16 %v1115
        %v3332 = vunpack.c.h.b16 %v1115
        %v3333 = vunpack.c.l.b16 %v1116
        %v3334 = vunpack.c.h.b16 %v1116
        %v3335 = vunpack.c.l.b16 %v1117
        %v3336 = vunpack.c.h.b16 %v1117
        %v3337 = vunpack.c.l.b16 %v1118
        %v3338 = vunpack.c.h.b16 %v1118
        %v3339 = vunpack.c.l.b16 %v1119
        %v3340 = vunpack.c.h.b16 %v1119
        %v3341 = vunpack.c.l.b16 %v1120
        %v3342 = vunpack.c.h.b16 %v1120
        %v3343 = vunpack.c.l.b16 %v1121
        %v3344 = vunpack.c.h.b16 %v1121
        %v3345 = vunpack.c.l.b16 %v1122
        %v3346 = vunpack.c.h.b16 %v1122
        %v3347 = vunpack.c.l.b16 %v1123
        %v3348 = vunpack.c.h.b16 %v1123
        %v3349 = vunpack.c.l.b16 %v1124
        %v3350 = vunpack.c.h.b16 %v1124
        %v3351 = vunpack.c.l.b16 %v1125
        %v3352 = vunpack.c.h.b16 %v1125
        %v3353 = vunpack.c.l.b16 %v1126
        %v3354 = vunpack.c.h.b16 %v1126
        %v3355 = vunpack.c.l.b16 %v1127
        %v3356 = vunpack.c.h.b16 %v1127
        %v3357 = vunpack.c.l.b16 %v1128
        %v3358 = vunpack.c.h.b16 %v1128
        %v3359 = vunpack.c.l.b16 %v1129
        %v3360 = vunpack.c.h.b16 %v1129
        %v3361 = vunpack.c.l.b16 %v1130
        %v3362 = vunpack.c.h.b16 %v1130
        %v3363 = vunpack.c.l.b16 %v1131
        %v3364 = vunpack.c.h.b16 %v1131
        %v3365 = vunpack.c.l.b16 %v1132
        %v3366 = vunpack.c.h.b16 %v1132
        %v3367 = vunpack.c.l.b16 %v1133
        %v3368 = vunpack.c.h.b16 %v1133
        %v3369 = vunpack.c.l.b16 %v1134
        %v3370 = vunpack.c.h.b16 %v1134
        %v3371 = vunpack.c.l.b16 %v1135
        %v3372 = vunpack.c.h.b16 %v1135
        %v3373 = vunpack.c.l.b16 %v1136
        %v3374 = vunpack.c.h.b16 %v1136
        %v3375 = vunpack.c.l.b16 %v1137
        %v3376 = vunpack.c.h.b16 %v1137
        %v3377 = vunpack.c.l.b16 %v1138
        %v3378 = vunpack.c.h.b16 %v1138
        %v3379 = vunpack.c.l.b16 %v1139
        %v3380 = vunpack.c.h.b16 %v1139
        %v3381 = vunpack.c.l.b16 %v1140
        %v3382 = vunpack.c.h.b16 %v1140
        %v3383 = vunpack.c.l.b16 %v1141
        %v3384 = vunpack.c.h.b16 %v1141
        %v3385 = vunpack.c.l.b16 %v1142
        %v3386 = vunpack.c.h.b16 %v1142
        %v3387 = vunpack.c.l.b16 %v1143
        %v3388 = vunpack.c.h.b16 %v1143
        %v3389 = vunpack.c.l.b16 %v1144
        %v3390 = vunpack.c.h.b16 %v1144
        %v3391 = vunpack.c.l.b16 %v1145
        %v3392 = vunpack.c.h.b16 %v1145
        %v3393 = vunpack.c.l.b16 %v1146
        %v3394 = vunpack.c.h.b16 %v1146
        %v3395 = vunpack.c.l.b16 %v1147
        %v3396 = vunpack.c.h.b16 %v1147
        %v3397 = vunpack.c.l.b16 %v1148
        %v3398 = vunpack.c.h.b16 %v1148
        %v3399 = vunpack.c.l.b16 %v1149
        %v3400 = vunpack.c.h.b16 %v1149
        %v3401 = vunpack.c.l.b16 %v1150
        %v3402 = vunpack.c.h.b16 %v1150
        %v3403 = vunpack.c.l.b16 %v1151
        %v3404 = vunpack.c.h.b16 %v1151
        %v3405 = vunpack.c.l.b16 %v1152
        %v3406 = vunpack.c.h.b16 %v1152
        %v3407 = vunpack.c.l.b16 %v1153
        %v3408 = vunpack.c.h.b16 %v1153
        %v3409 = vunpack.c.l.b16 %v1154
        %v3410 = vunpack.c.h.b16 %v1154
        %v3411 = vunpack.c.l.b16 %v1155
        %v3412 = vunpack.c.h.b16 %v1155
        %v3413 = vunpack.c.l.b16 %v1156
        %v3414 = vunpack.c.h.b16 %v1156
        %v3415 = vunpack.c.l.b16 %v1157
        %v3416 = vunpack.c.h.b16 %v1157
        %v3417 = vunpack.c.l.b16 %v1158
        %v3418 = vunpack.c.h.b16 %v1158
        %v3419 = vunpack.c.l.b16 %v1159
        %v3420 = vunpack.c.h.b16 %v1159
        %v3421 = vunpack.c.l.b16 %v1160
        %v3422 = vunpack.c.h.b16 %v1160
        %v3423 = vunpack.c.l.b16 %v1161
        %v3424 = vunpack.c.h.b16 %v1161
        %v3425 = vunpack.c.l.b16 %v1162
        %v3426 = vunpack.c.h.b16 %v1162
        %v3427 = vunpack.c.l.b16 %v1163
        %v3428 = vunpack.c.h.b16 %v1163
        %v3429 = vunpack.c.l.b16 %v1164
        %v3430 = vunpack.c.h.b16 %v1164
        %v3431 = vunpack.c.l.b16 %v1165
        %v3432 = vunpack.c.h.b16 %v1165
        %v3433 = vunpack.c.l.b16 %v1166
        %v3434 = vunpack.c.h.b16 %v1166
        %v3435 = vunpack.c.l.b16 %v1167
        %v3436 = vunpack.c.h.b16 %v1167
        %v3437 = vunpack.c.l.b16 %v1168
        %v3438 = vunpack.c.h.b16 %v1168
        %v3439 = vunpack.c.l.b16 %v1169
        %v3440 = vunpack.c.h.b16 %v1169
        %v3441 = vunpack.c.l.b16 %v1170
        %v3442 = vunpack.c.h.b16 %v1170
        %v3443 = vunpack.c.l.b16 %v1171
        %v3444 = vunpack.c.h.b16 %v1171
        %v3445 = vunpack.c.l.b16 %v1172
        %v3446 = vunpack.c.h.b16 %v1172
        %v3447 = vunpack.c.l.b16 %v1173
        %v3448 = vunpack.c.h.b16 %v1173
        %v3449 = vunpack.c.l.b16 %v1174
        %v3450 = vunpack.c.h.b16 %v1174
        %v3451 = vunpack.c.l.b16 %v1175
        %v3452 = vunpack.c.h.b16 %v1175
        %v3453 = vunpack.c.l.b16 %v1176
        %v3454 = vunpack.c.h.b16 %v1176
        %v3455 = vunpack.c.l.b16 %v1177
        %v3456 = vunpack.c.h.b16 %v1177
        %v3457 = vunpack.c.l.b16 %v1178
        %v3458 = vunpack.c.h.b16 %v1178
        %v3459 = vunpack.c.l.b16 %v1179
        %v3460 = vunpack.c.h.b16 %v1179
        %v3461 = vunpack.c.l.b16 %v1180
        %v3462 = vunpack.c.h.b16 %v1180
        %v3463 = vunpack.c.l.b16 %v1181
        %v3464 = vunpack.c.h.b16 %v1181
        %v3465 = vunpack.c.l.b16 %v1182
        %v3466 = vunpack.c.h.b16 %v1182
        %v3467 = vunpack.c.l.b16 %v1183
        %v3468 = vunpack.c.h.b16 %v1183
        %v3469 = vunpack.c.l.b16 %v1184
        %v3470 = vunpack.c.h.b16 %v1184
        %v3471 = vunpack.c.l.b16 %v1185
        %v3472 = vunpack.c.h.b16 %v1185
        %v3473 = vunpack.c.l.b16 %v1186
        %v3474 = vunpack.c.h.b16 %v1186
        %v3475 = vunpack.c.l.b16 %v1187
        %v3476 = vunpack.c.h.b16 %v1187
        %v3477 = vunpack.c.l.b16 %v1188
        %v3478 = vunpack.c.h.b16 %v1188
        %v3479 = vunpack.c.l.b16 %v1189
        %v3480 = vunpack.c.h.b16 %v1189
        %v3481 = vunpack.c.l.b16 %v1190
        %v3482 = vunpack.c.h.b16 %v1190
        %v3483 = vunpack.c.l.b16 %v1191
        %v3484 = vunpack.c.h.b16 %v1191
        %v3485 = vunpack.c.l.b16 %v1192
        %v3486 = vunpack.c.h.b16 %v1192
        %v3487 = vunpack.c.l.b16 %v1193
        %v3488 = vunpack.c.h.b16 %v1193
        %v3489 = vunpack.c.l.b16 %v1194
        %v3490 = vunpack.c.h.b16 %v1194
        %v3491 = vunpack.c.l.b16 %v1195
        %v3492 = vunpack.c.h.b16 %v1195
        %v3493 = vunpack.c.l.b16 %v1196
        %v3494 = vunpack.c.h.b16 %v1196
        %v3495 = vunpack.c.l.b16 %v1197
        %v3496 = vunpack.c.h.b16 %v1197
        %v3497 = vunpack.c.l.b16 %v1198
        %v3498 = vunpack.c.h.b16 %v1198
        %v3499 = vunpack.c.l.b16 %v1199
        %v3500 = vunpack.c.h.b16 %v1199
        %v3501 = vunpack.c.l.b16 %v1200
        %v3502 = vunpack.c.h.b16 %v1200
        %v3503 = vunpack.c.l.b16 %v1201
        %v3504 = vunpack.c.h.b16 %v1201
        %v3505 = vunpack.c.l.b16 %v1202
        %v3506 = vunpack.c.h.b16 %v1202
        %v3507 = vunpack.c.l.b16 %v1203
        %v3508 = vunpack.c.h.b16 %v1203
        %v3509 = vunpack.c.l.b16 %v1204
        %v3510 = vunpack.c.h.b16 %v1204
        %v3511 = vunpack.c.l.b16 %v1205
        %v3512 = vunpack.c.h.b16 %v1205
        %v3513 = vunpack.c.l.b16 %v1206
        %v3514 = vunpack.c.h.b16 %v1206
        %v3515 = vunpack.c.l.b16 %v1207
        %v3516 = vunpack.c.h.b16 %v1207
        %v3517 = vunpack.c.l.b16 %v1208
        %v3518 = vunpack.c.h.b16 %v1208
        %v3519 = vunpack.c.l.b16 %v1209
        %v3520 = vunpack.c.h.b16 %v1209
        %v3521 = vunpack.c.l.b16 %v1210
        %v3522 = vunpack.c.h.b16 %v1210
        %v3523 = vunpack.c.l.b16 %v1211
        %v3524 = vunpack.c.h.b16 %v1211
        %v3525 = vunpack.c.l.b16 %v1212
        %v3526 = vunpack.c.h.b16 %v1212
        %v3527 = vunpack.c.l.b16 %v1213
        %v3528 = vunpack.c.h.b16 %v1213
        %v3529 = vunpack.c.l.b16 %v1214
        %v3530 = vunpack.c.h.b16 %v1214
        %v3531 = vunpack.c.l.b16 %v1215
        %v3532 = vunpack.c.h.b16 %v1215
        %v3533 = vunpack.c.l.b16 %v1216
        %v3534 = vunpack.c.h.b16 %v1216
        %v3535 = vunpack.c.l.b16 %v1217
        %v3536 = vunpack.c.h.b16 %v1217
        %v3537 = vunpack.c.l.b16 %v1218
        %v3538 = vunpack.c.h.b16 %v1218
        %v3539 = vunpack.c.l.b16 %v1219
        %v3540 = vunpack.c.h.b16 %v1219
        %v3541 = vunpack.c.l.b16 %v1220
        %v3542 = vunpack.c.h.b16 %v1220
        %v3543 = vunpack.c.l.b16 %v1221
        %v3544 = vunpack.c.h.b16 %v1221
        %v3545 = vunpack.c.l.b16 %v1222
        %v3546 = vunpack.c.h.b16 %v1222
        %v3547 = vunpack.c.l.b16 %v1223
        %v3548 = vunpack.c.h.b16 %v1223
        %v3549 = vunpack.c.l.b16 %v1224
        %v3550 = vunpack.c.h.b16 %v1224
        %v3551 = vunpack.c.l.b16 %v1225
        %v3552 = vunpack.c.h.b16 %v1225
        %v3553 = vunpack.c.l.b16 %v1226
        %v3554 = vunpack.c.h.b16 %v1226
        %v3555 = vunpack.c.l.b16 %v1227
        %v3556 = vunpack.c.h.b16 %v1227
        %v3557 = vunpack.c.l.b16 %v1228
        %v3558 = vunpack.c.h.b16 %v1228
        %v3559 = vunpack.c.l.b16 %v1229
        %v3560 = vunpack.c.h.b16 %v1229
        %v3561 = vunpack.c.l.b16 %v1230
        %v3562 = vunpack.c.h.b16 %v1230
        %v3563 = vunpack.c.l.b16 %v1231
        %v3564 = vunpack.c.h.b16 %v1231
        %v3565 = vunpack.c.l.b16 %v1232
        %v3566 = vunpack.c.h.b16 %v1232
        %v3567 = vunpack.c.l.b16 %v1233
        %v3568 = vunpack.c.h.b16 %v1233
        %v3569 = vunpack.c.l.b16 %v1234
        %v3570 = vunpack.c.h.b16 %v1234
        %v3571 = vunpack.c.l.b16 %v1235
        %v3572 = vunpack.c.h.b16 %v1235
        %v3573 = vunpack.c.l.b16 %v1236
        %v3574 = vunpack.c.h.b16 %v1236
        %v3575 = vunpack.c.l.b16 %v1237
        %v3576 = vunpack.c.h.b16 %v1237
        %v3577 = vunpack.c.l.b16 %v1238
        %v3578 = vunpack.c.h.b16 %v1238
        %v3579 = vunpack.c.l.b16 %v1239
        %v3580 = vunpack.c.h.b16 %v1239
        %v3581 = vunpack.c.l.b16 %v1240
        %v3582 = vunpack.c.h.b16 %v1240
        %v3583 = vunpack.c.l.b16 %v1241
        %v3584 = vunpack.c.h.b16 %v1241
        %v3585 = vunpack.c.l.b16 %v1242
        %v3586 = vunpack.c.h.b16 %v1242
        %v3587 = vunpack.c.l.b16 %v1243
        %v3588 = vunpack.c.h.b16 %v1243
        %v3589 = vunpack.c.l.b16 %v1244
        %v3590 = vunpack.c.h.b16 %v1244
        %v3591 = vunpack.c.l.b16 %v1245
        %v3592 = vunpack.c.h.b16 %v1245
        %v3593 = vunpack.c.l.b16 %v1246
        %v3594 = vunpack.c.h.b16 %v1246
        %v3595 = vunpack.c.l.b16 %v1247
        %v3596 = vunpack.c.h.b16 %v1247
        %v3597 = vunpack.c.l.b16 %v1248
        %v3598 = vunpack.c.h.b16 %v1248
        %v3599 = vunpack.c.l.b16 %v1249
        %v3600 = vunpack.c.h.b16 %v1249
        %v3601 = vunpack.c.l.b16 %v1250
        %v3602 = vunpack.c.h.b16 %v1250
        %v3603 = vunpack.c.l.b16 %v1251
        %v3604 = vunpack.c.h.b16 %v1251
        %v3605 = vunpack.c.l.b16 %v1252
        %v3606 = vunpack.c.h.b16 %v1252
        %v3607 = vunpack.c.l.b16 %v1253
        %v3608 = vunpack.c.h.b16 %v1253
        %v3609 = vunpack.c.l.b16 %v1254
        %v3610 = vunpack.c.h.b16 %v1254
        %v3611 = vunpack.c.l.b16 %v1255
        %v3612 = vunpack.c.h.b16 %v1255
        %v3613 = vunpack.c.l.b16 %v1256
        %v3614 = vunpack.c.h.b16 %v1256
        %v3615 = vunpack.c.l.b16 %v1257
        %v3616 = vunpack.c.h.b16 %v1257
        %v3617 = vunpack.c.l.b16 %v1258
        %v3618 = vunpack.c.h.b16 %v1258
        %v3619 = vunpack.c.l.b16 %v1259
        %v3620 = vunpack.c.h.b16 %v1259
        %v3621 = vunpack.c.l.b16 %v1260
        %v3622 = vunpack.c.h.b16 %v1260
        %v3623 = vunpack.c.l.b16 %v1261
        %v3624 = vunpack.c.h.b16 %v1261
        %v3625 = vunpack.c.l.b16 %v1262
        %v3626 = vunpack.c.h.b16 %v1262
        %v3627 = vunpack.c.l.b16 %v1263
        %v3628 = vunpack.c.h.b16 %v1263
        %v3629 = vunpack.c.l.b16 %v1264
        %v3630 = vunpack.c.h.b16 %v1264
        %v3631 = vunpack.c.l.b16 %v1265
        %v3632 = vunpack.c.h.b16 %v1265
        %v3633 = vunpack.c.l.b16 %v1266
        %v3634 = vunpack.c.h.b16 %v1266
        %v3635 = vunpack.c.l.b16 %v1267
        %v3636 = vunpack.c.h.b16 %v1267
        %v3637 = vunpack.c.l.b16 %v1268
        %v3638 = vunpack.c.h.b16 %v1268
        %v3639 = vunpack.c.l.b16 %v1269
        %v3640 = vunpack.c.h.b16 %v1269
        %v3641 = vunpack.c.l.b16 %v1270
        %v3642 = vunpack.c.h.b16 %v1270
        %v3643 = vunpack.c.l.b16 %v1271
        %v3644 = vunpack.c.h.b16 %v1271
        %v3645 = vunpack.c.l.b16 %v1272
        %v3646 = vunpack.c.h.b16 %v1272
        %v3647 = vunpack.c.l.b16 %v1273
        %v3648 = vunpack.c.h.b16 %v1273
        %v3649 = vunpack.c.l.b16 %v1274
        %v3650 = vunpack.c.h.b16 %v1274
        %v3651 = vunpack.c.l.b16 %v1275
        %v3652 = vunpack.c.h.b16 %v1275
        %v3653 = vunpack.c.l.b16 %v1276
        %v3654 = vunpack.c.h.b16 %v1276
        %v3655 = vunpack.c.l.b16 %v1277
        %v3656 = vunpack.c.h.b16 %v1277
        %v3657 = vunpack.c.l.b16 %v1278
        %v3658 = vunpack.c.h.b16 %v1278
        %v3659 = vunpack.c.l.b16 %v1279
        %v3660 = vunpack.c.h.b16 %v1279
        %v3661 = vunpack.c.l.b16 %v1280
        %v3662 = vunpack.c.h.b16 %v1280
        %v3663 = vunpack.c.l.b16 %v1281
        %v3664 = vunpack.c.h.b16 %v1281
        %v3665 = vunpack.c.l.b16 %v1282
        %v3666 = vunpack.c.h.b16 %v1282
        %v3667 = vunpack.c.l.b16 %v1283
        %v3668 = vunpack.c.h.b16 %v1283
        %v3669 = vunpack.c.l.b16 %v1284
        %v3670 = vunpack.c.h.b16 %v1284
        %v3671 = vunpack.c.l.b16 %v1285
        %v3672 = vunpack.c.h.b16 %v1285
        %v3673 = vunpack.c.l.b16 %v1286
        %v3674 = vunpack.c.h.b16 %v1286
        %v3675 = vunpack.c.l.b16 %v1287
        %v3676 = vunpack.c.h.b16 %v1287
        %v3677 = vunpack.c.l.b16 %v1288
        %v3678 = vunpack.c.h.b16 %v1288
        %v3679 = vunpack.c.l.b16 %v1289
        %v3680 = vunpack.c.h.b16 %v1289
        %v3681 = vunpack.c.l.b16 %v1290
        %v3682 = vunpack.c.h.b16 %v1290
        %v3683 = vunpack.c.l.b16 %v1291
        %v3684 = vunpack.c.h.b16 %v1291
        %v3685 = vunpack.c.l.b16 %v1292
        %v3686 = vunpack.c.h.b16 %v1292
        %v3687 = vunpack.c.l.b16 %v1293
        %v3688 = vunpack.c.h.b16 %v1293
        %v3689 = vunpack.c.l.b16 %v1294
        %v3690 = vunpack.c.h.b16 %v1294
        %v3691 = vunpack.c.l.b16 %v1295
        %v3692 = vunpack.c.h.b16 %v1295
        %v3693 = vunpack.c.l.b16 %v1296
        %v3694 = vunpack.c.h.b16 %v1296
        %v3695 = vunpack.c.l.b16 %v1297
        %v3696 = vunpack.c.h.b16 %v1297
        %v3697 = vunpack.c.l.b16 %v1298
        %v3698 = vunpack.c.h.b16 %v1298
        %v3699 = vunpack.c.l.b16 %v1299
        %v3700 = vunpack.c.h.b16 %v1299
        %v3701 = vunpack.c.l.b16 %v1300
        %v3702 = vunpack.c.h.b16 %v1300
        %v3703 = vunpack.c.l.b16 %v1301
        %v3704 = vunpack.c.h.b16 %v1301
        %v3705 = vunpack.c.l.b16 %v1302
        %v3706 = vunpack.c.h.b16 %v1302
        %v3707 = vunpack.c.l.b16 %v1303
        %v3708 = vunpack.c.h.b16 %v1303
        %v3709 = vunpack.c.l.b16 %v1304
        %v3710 = vunpack.c.h.b16 %v1304
        %v3711 = vunpack.c.l.b16 %v1305
        %v3712 = vunpack.c.h.b16 %v1305
        %v3713 = vunpack.c.l.b16 %v1306
        %v3714 = vunpack.c.h.b16 %v1306
        %v3715 = vunpack.c.l.b16 %v1307
        %v3716 = vunpack.c.h.b16 %v1307
        %v3717 = vunpack.c.l.b16 %v1308
        %v3718 = vunpack.c.h.b16 %v1308
        %v3719 = vunpack.c.l.b16 %v1309
        %v3720 = vunpack.c.h.b16 %v1309
        %v3721 = vunpack.c.l.b16 %v1310
        %v3722 = vunpack.c.h.b16 %v1310
        %v3723 = vunpack.c.l.b16 %v1311
        %v3724 = vunpack.c.h.b16 %v1311
        %v3725 = vunpack.c.l.b16 %v1312
        %v3726 = vunpack.c.h.b16 %v1312
        %v3727 = vunpack.c.l.b16 %v1313
        %v3728 = vunpack.c.h.b16 %v1313
        %v3729 = vunpack.c.l.b16 %v1314
        %v3730 = vunpack.c.h.b16 %v1314
        %v3731 = vunpack.c.l.b16 %v1315
        %v3732 = vunpack.c.h.b16 %v1315
        %v3733 = vunpack.c.l.b16 %v1316
        %v3734 = vunpack.c.h.b16 %v1316
        %v3735 = vunpack.c.l.b16 %v1317
        %v3736 = vunpack.c.h.b16 %v1317
        %v3737 = vunpack.c.l.b16 %v1318
        %v3738 = vunpack.c.h.b16 %v1318
        %v3739 = vunpack.c.l.b16 %v1319
        %v3740 = vunpack.c.h.b16 %v1319
        %v3741 = vunpack.c.l.b16 %v1320
        %v3742 = vunpack.c.h.b16 %v1320
        %v3743 = vunpack.c.l.b16 %v1321
        %v3744 = vunpack.c.h.b16 %v1321
        %v3745 = vunpack.c.l.b16 %v1322
        %v3746 = vunpack.c.h.b16 %v1322
        %v3747 = vunpack.c.l.b16 %v1323
        %v3748 = vunpack.c.h.b16 %v1323
        %v3749 = vunpack.c.l.b16 %v1324
        %v3750 = vunpack.c.h.b16 %v1324
        %v3751 = vunpack.c.l.b16 %v1325
        %v3752 = vunpack.c.h.b16 %v1325
        %v3753 = vunpack.c.l.b16 %v1326
        %v3754 = vunpack.c.h.b16 %v1326
        %v3755 = vunpack.c.l.b16 %v1327
        %v3756 = vunpack.c.h.b16 %v1327
        %v3757 = vunpack.c.l.b16 %v1328
        %v3758 = vunpack.c.h.b16 %v1328
        %v3759 = vunpack.c.l.b16 %v1329
        %v3760 = vunpack.c.h.b16 %v1329
        %v3761 = vunpack.c.l.b16 %v1330
        %v3762 = vunpack.c.h.b16 %v1330
        %v3763 = vunpack.c.l.b16 %v1331
        %v3764 = vunpack.c.h.b16 %v1331
        %v3765 = vunpack.c.l.b16 %v1332
        %v3766 = vunpack.c.h.b16 %v1332
        %v3767 = vunpack.c.l.b16 %v1333
        %v3768 = vunpack.c.h.b16 %v1333
        %v3769 = vunpack.c.l.b16 %v1334
        %v3770 = vunpack.c.h.b16 %v1334
        %v3771 = vunpack.c.l.b16 %v1335
        %v3772 = vunpack.c.h.b16 %v1335
        %v3773 = vunpack.c.l.b16 %v1336
        %v3774 = vunpack.c.h.b16 %v1336
        %v3775 = vunpack.c.l.b16 %v1337
        %v3776 = vunpack.c.h.b16 %v1337
        %v3777 = vunpack.c.l.b16 %v1338
        %v3778 = vunpack.c.h.b16 %v1338
        %v3779 = vunpack.c.l.b16 %v1339
        %v3780 = vunpack.c.h.b16 %v1339
        %v3781 = vunpack.c.l.b16 %v1340
        %v3782 = vunpack.c.h.b16 %v1340
        %v3783 = vunpack.c.l.b16 %v1341
        %v3784 = vunpack.c.h.b16 %v1341
        %v3785 = vunpack.c.l.b16 %v1342
        %v3786 = vunpack.c.h.b16 %v1342
        %v3787 = vunpack.c.l.b16 %v1343
        %v3788 = vunpack.c.h.b16 %v1343
        %v3789 = vunpack.c.l.b16 %v1344
        %v3790 = vunpack.c.h.b16 %v1344
        %v3791 = vunpack.c.l.b16 %v1345
        %v3792 = vunpack.c.h.b16 %v1345
        %v3793 = vunpack.c.l.b16 %v1346
        %v3794 = vunpack.c.h.b16 %v1346
        %v3795 = vunpack.c.l.b16 %v1347
        %v3796 = vunpack.c.h.b16 %v1347
        %v3797 = vunpack.c.l.b16 %v1348
        %v3798 = vunpack.c.h.b16 %v1348
        %v3799 = vunpack.c.l.b16 %v1349
        %v3800 = vunpack.c.h.b16 %v1349
        %v3801 = vunpack.c.l.b16 %v1350
        %v3802 = vunpack.c.h.b16 %v1350
        %v3803 = vunpack.c.l.b16 %v1351
        %v3804 = vunpack.c.h.b16 %v1351
        %v3805 = vunpack.c.l.b16 %v1352
        %v3806 = vunpack.c.h.b16 %v1352
        %v3807 = vunpack.c.l.b16 %v1353
        %v3808 = vunpack.c.h.b16 %v1353
        %v3809 = vunpack.c.l.b16 %v1354
        %v3810 = vunpack.c.h.b16 %v1354
        %v3811 = vunpack.c.l.b16 %v1355
        %v3812 = vunpack.c.h.b16 %v1355
        %v3813 = vunpack.c.l.b16 %v1356
        %v3814 = vunpack.c.h.b16 %v1356
        %v3815 = vunpack.c.l.b16 %v1357
        %v3816 = vunpack.c.h.b16 %v1357
        %v3817 = vunpack.c.l.b16 %v1358
        %v3818 = vunpack.c.h.b16 %v1358
        %v3819 = vunpack.c.l.b16 %v1359
        %v3820 = vunpack.c.h.b16 %v1359
        %v3821 = vunpack.c.l.b16 %v1360
        %v3822 = vunpack.c.h.b16 %v1360
        %v3823 = vunpack.c.l.b16 %v1361
        %v3824 = vunpack.c.h.b16 %v1361
        %v3825 = vunpack.c.l.b16 %v1362
        %v3826 = vunpack.c.h.b16 %v1362
        %v3827 = vunpack.c.l.b16 %v1363
        %v3828 = vunpack.c.h.b16 %v1363
        %v3829 = vunpack.c.l.b16 %v1364
        %v3830 = vunpack.c.h.b16 %v1364
        %v3831 = vunpack.c.l.b16 %v1365
        %v3832 = vunpack.c.h.b16 %v1365
        %v3833 = vunpack.c.l.b16 %v1366
        %v3834 = vunpack.c.h.b16 %v1366
        %v3835 = vunpack.c.l.b16 %v1367
        %v3836 = vunpack.c.h.b16 %v1367
        %v3837 = vunpack.c.l.b16 %v1368
        %v3838 = vunpack.c.h.b16 %v1368
        %v3839 = vunpack.c.l.b16 %v1369
        %v3840 = vunpack.c.h.b16 %v1369
        %v3841 = vunpack.c.l.b16 %v1370
        %v3842 = vunpack.c.h.b16 %v1370
        %v3843 = vunpack.c.l.b16 %v1371
        %v3844 = vunpack.c.h.b16 %v1371
        %v3845 = vunpack.c.l.b16 %v1372
        %v3846 = vunpack.c.h.b16 %v1372
        %v3847 = vunpack.c.l.b16 %v1373
        %v3848 = vunpack.c.h.b16 %v1373
        %v3849 = vunpack.c.l.b16 %v1374
        %v3850 = vunpack.c.h.b16 %v1374
        %v3851 = vunpack.c.l.b16 %v1375
        %v3852 = vunpack.c.h.b16 %v1375
        %v3853 = vunpack.c.l.b16 %v1376
        %v3854 = vunpack.c.h.b16 %v1376
        %v3855 = vunpack.c.l.b16 %v1377
        %v3856 = vunpack.c.h.b16 %v1377
        %v3857 = vunpack.c.l.b16 %v1378
        %v3858 = vunpack.c.h.b16 %v1378
        %v3859 = vunpack.c.l.b16 %v1379
        %v3860 = vunpack.c.h.b16 %v1379
        %v3861 = vunpack.c.l.b16 %v1380
        %v3862 = vunpack.c.h.b16 %v1380
        %v3863 = vunpack.c.l.b16 %v1381
        %v3864 = vunpack.c.h.b16 %v1381
        %v3865 = vunpack.c.l.b16 %v1382
        %v3866 = vunpack.c.h.b16 %v1382
        %v3867 = vunpack.c.l.b16 %v1383
        %v3868 = vunpack.c.h.b16 %v1383
        %v3869 = vunpack.c.l.b16 %v1384
        %v3870 = vunpack.c.h.b16 %v1384
        %v3871 = vunpack.c.l.b16 %v1385
        %v3872 = vunpack.c.h.b16 %v1385
        %v3873 = vunpack.c.l.b16 %v1386
        %v3874 = vunpack.c.h.b16 %v1386
        %v3875 = vunpack.c.l.b16 %v1387
        %v3876 = vunpack.c.h.b16 %v1387
        %v3877 = vunpack.c.l.b16 %v1388
        %v3878 = vunpack.c.h.b16 %v1388
        %v3879 = vunpack.c.l.b16 %v1389
        %v3880 = vunpack.c.h.b16 %v1389
        %v3881 = vunpack.c.l.b16 %v1390
        %v3882 = vunpack.c.h.b16 %v1390
        %v3883 = vunpack.c.l.b16 %v1391
        %v3884 = vunpack.c.h.b16 %v1391
        %v3885 = vunpack.c.l.b16 %v1392
        %v3886 = vunpack.c.h.b16 %v1392
        %v3887 = vunpack.c.l.b16 %v1393
        %v3888 = vunpack.c.h.b16 %v1393
        %v3889 = vunpack.c.l.b16 %v1394
        %v3890 = vunpack.c.h.b16 %v1394
        %v3891 = vunpack.c.l.b16 %v1395
        %v3892 = vunpack.c.h.b16 %v1395
        %v3893 = vunpack.c.l.b16 %v1396
        %v3894 = vunpack.c.h.b16 %v1396
        %v3895 = vunpack.c.l.b16 %v1397
        %v3896 = vunpack.c.h.b16 %v1397
        %v3897 = vunpack.c.l.b16 %v1398
        %v3898 = vunpack.c.h.b16 %v1398
        %v3899 = vunpack.c.l.b16 %v1399
        %v3900 = vunpack.c.h.b16 %v1399
        %v3901 = vunpack.c.l.b16 %v1400
        %v3902 = vunpack.c.h.b16 %v1400
        %v3903 = vunpack.c.l.b16 %v1401
        %v3904 = vunpack.c.h.b16 %v1401
        %v3905 = vunpack.c.l.b16 %v1402
        %v3906 = vunpack.c.h.b16 %v1402
        %v3907 = vunpack.c.l.b16 %v1403
        %v3908 = vunpack.c.h.b16 %v1403
        %v3909 = vunpack.c.l.b16 %v1404
        %v3910 = vunpack.c.h.b16 %v1404
        %v3911 = vunpack.c.l.b16 %v1405
        %v3912 = vunpack.c.h.b16 %v1405
        %v3913 = vunpack.c.l.b16 %v1406
        %v3914 = vunpack.c.h.b16 %v1406
        %v3915 = vunpack.c.l.b16 %v1407
        %v3916 = vunpack.c.h.b16 %v1407
        %v3917 = vunpack.c.l.b16 %v1408
        %v3918 = vunpack.c.h.b16 %v1408
        %v3919 = vunpack.c.l.b16 %v1409
        %v3920 = vunpack.c.h.b16 %v1409
        %v3921 = vunpack.c.l.b16 %v1410
        %v3922 = vunpack.c.h.b16 %v1410
        %v3923 = vunpack.c.l.b16 %v1411
        %v3924 = vunpack.c.h.b16 %v1411
        %v3925 = vunpack.c.l.b16 %v1412
        %v3926 = vunpack.c.h.b16 %v1412
        %v3927 = vunpack.c.l.b16 %v1413
        %v3928 = vunpack.c.h.b16 %v1413
        %v3929 = vunpack.c.l.b16 %v1414
        %v3930 = vunpack.c.h.b16 %v1414
        %v3931 = vunpack.c.l.b16 %v1415
        %v3932 = vunpack.c.h.b16 %v1415
        %v3933 = vunpack.c.l.b16 %v1416
        %v3934 = vunpack.c.h.b16 %v1416
        %v3935 = vunpack.c.l.b16 %v1417
        %v3936 = vunpack.c.h.b16 %v1417
        %v3937 = vunpack.c.l.b16 %v1418
        %v3938 = vunpack.c.h.b16 %v1418
        %v3939 = vunpack.c.l.b16 %v1419
        %v3940 = vunpack.c.h.b16 %v1419
        %v3941 = vunpack.c.l.b16 %v1420
        %v3942 = vunpack.c.h.b16 %v1420
        %v3943 = vunpack.c.l.b16 %v1421
        %v3944 = vunpack.c.h.b16 %v1421
        %v3945 = vunpack.c.l.b16 %v1422
        %v3946 = vunpack.c.h.b16 %v1422
        %v3947 = vunpack.c.l.b16 %v1423
        %v3948 = vunpack.c.h.b16 %v1423
        %v3949 = vunpack.c.l.b16 %v1424
        %v3950 = vunpack.c.h.b16 %v1424
        %v3951 = vunpack.c.l.b16 %v1425
        %v3952 = vunpack.c.h.b16 %v1425
        %v3953 = vunpack.c.l.b16 %v1426
        %v3954 = vunpack.c.h.b16 %v1426
        %v3955 = vunpack.c.l.b16 %v1427
        %v3956 = vunpack.c.h.b16 %v1427
        %v3957 = vunpack.c.l.b16 %v1428
        %v3958 = vunpack.c.h.b16 %v1428
        %v3959 = vunpack.c.l.b16 %v1429
        %v3960 = vunpack.c.h.b16 %v1429
        %v3961 = vunpack.c.l.b16 %v1430
        %v3962 = vunpack.c.h.b16 %v1430
        %v3963 = vunpack.c.l.b16 %v1431
        %v3964 = vunpack.c.h.b16 %v1431
        %v3965 = vunpack.c.l.b16 %v1432
        %v3966 = vunpack.c.h.b16 %v1432
        %v3967 = vunpack.c.l.b16 %v1433
        %v3968 = vunpack.c.h.b16 %v1433
        %v3969 = vunpack.c.l.b16 %v1434
        %v3970 = vunpack.c.h.b16 %v1434
        %v3971 = vunpack.c.l.b16 %v1435
        %v3972 = vunpack.c.h.b16 %v1435
        %v3973 = vunpack.c.l.b16 %v1436
        %v3974 = vunpack.c.h.b16 %v1436
        %v3975 = vunpack.c.l.b16 %v1437
        %v3976 = vunpack.c.h.b16 %v1437
        %v3977 = vunpack.c.l.b16 %v1438
        %v3978 = vunpack.c.h.b16 %v1438
        %v3979 = vunpack.c.l.b16 %v1439
        %v3980 = vunpack.c.h.b16 %v1439
        %v3981 = vunpack.c.l.b16 %v1440
        %v3982 = vunpack.c.h.b16 %v1440
        %v3983 = vunpack.c.l.b16 %v1441
        %v3984 = vunpack.c.h.b16 %v1441
        %v3985 = vunpack.c.l.b16 %v1442
        %v3986 = vunpack.c.h.b16 %v1442
        %v3987 = vunpack.c.l.b16 %v1443
        %v3988 = vunpack.c.h.b16 %v1443
        %v3989 = vunpack.c.l.b16 %v1444
        %v3990 = vunpack.c.h.b16 %v1444
        %v3991 = vunpack.c.l.b16 %v1445
        %v3992 = vunpack.c.h.b16 %v1445
        %v3993 = vunpack.c.l.b16 %v1446
        %v3994 = vunpack.c.h.b16 %v1446
        %v3995 = vunpack.c.l.b16 %v1447
        %v3996 = vunpack.c.h.b16 %v1447
        %v3997 = vunpack.c.l.b16 %v1448
        %v3998 = vunpack.c.h.b16 %v1448
        %v3999 = vunpack.c.l.b16 %v1449
        %v4000 = vunpack.c.h.b16 %v1449
        %v4001 = vunpack.c.l.b16 %v1450
        %v4002 = vunpack.c.h.b16 %v1450
        %v4003 = vunpack.c.l.b16 %v1451
        %v4004 = vunpack.c.h.b16 %v1451
        %v4005 = vunpack.c.l.b16 %v1452
        %v4006 = vunpack.c.h.b16 %v1452
        %v4007 = vunpack.c.l.b16 %v1453
        %v4008 = vunpack.c.h.b16 %v1453
        %v4009 = vunpack.c.l.b16 %v1454
        %v4010 = vunpack.c.h.b16 %v1454
        %v4011 = vunpack.c.l.b16 %v1455
        %v4012 = vunpack.c.h.b16 %v1455
        %v4013 = vunpack.c.l.b16 %v1456
        %v4014 = vunpack.c.h.b16 %v1456
        %v4015 = vunpack.c.l.b16 %v1457
        %v4016 = vunpack.c.h.b16 %v1457
        %v4017 = vunpack.c.l.b16 %v1458
        %v4018 = vunpack.c.h.b16 %v1458
        %v4019 = vunpack.c.l.b16 %v1459
        %v4020 = vunpack.c.h.b16 %v1459
        %v4021 = vunpack.c.l.b16 %v1460
        %v4022 = vunpack.c.h.b16 %v1460
        %v4023 = vunpack.c.l.b16 %v1461
        %v4024 = vunpack.c.h.b16 %v1461
        %v4025 = vunpack.c.l.b16 %v1462
        %v4026 = vunpack.c.h.b16 %v1462
        %v4027 = vunpack.c.l.b16 %v1463
        %v4028 = vunpack.c.h.b16 %v1463
        %v4029 = vunpack.c.l.b16 %v1464
        %v4030 = vunpack.c.h.b16 %v1464
        %v4031 = vunpack.c.l.b16 %v1465
        %v4032 = vunpack.c.h.b16 %v1465
        %v4033 = vunpack.c.l.b16 %v1466
        %v4034 = vunpack.c.h.b16 %v1466
        %v4035 = vunpack.c.l.b16 %v1467
        %v4036 = vunpack.c.h.b16 %v1467
        %v4037 = vunpack.c.l.b16 %v1468
        %v4038 = vunpack.c.h.b16 %v1468
        %v4039 = vunpack.c.l.b16 %v1469
        %v4040 = vunpack.c.h.b16 %v1469
        %v4041 = vunpack.c.l.b16 %v1470
        %v4042 = vunpack.c.h.b16 %v1470
        %v4043 = vunpack.c.l.b16 %v1471
        %v4044 = vunpack.c.h.b16 %v1471
        %v4045 = vunpack.c.l.b16 %v1472
        %v4046 = vunpack.c.h.b16 %v1472
        %v4047 = vunpack.c.l.b16 %v1473
        %v4048 = vunpack.c.h.b16 %v1473
        %v4049 = vunpack.c.l.b16 %v1474
        %v4050 = vunpack.c.h.b16 %v1474
        %v4051 = vunpack.c.l.b16 %v1475
        %v4052 = vunpack.c.h.b16 %v1475
        %v4053 = vunpack.c.l.b16 %v1476
        %v4054 = vunpack.c.h.b16 %v1476
        %v4055 = vunpack.c.l.b16 %v1477
        %v4056 = vunpack.c.h.b16 %v1477
        %v4057 = vunpack.c.l.b16 %v1478
        %v4058 = vunpack.c.h.b16 %v1478
        %v4059 = vunpack.c.l.b16 %v1479
        %v4060 = vunpack.c.h.b16 %v1479
        %v4061 = vunpack.c.l.b16 %v1480
        %v4062 = vunpack.c.h.b16 %v1480
        %v4063 = vunpack.c.l.b16 %v1481
        %v4064 = vunpack.c.h.b16 %v1481
        %v4065 = vunpack.c.l.b16 %v1482
        %v4066 = vunpack.c.h.b16 %v1482
        %v4067 = vunpack.c.l.b16 %v1483
        %v4068 = vunpack.c.h.b16 %v1483
        %v4069 = vunpack.c.l.b16 %v1484
        %v4070 = vunpack.c.h.b16 %v1484
        %v4071 = vunpack.c.l.b16 %v1485
        %v4072 = vunpack.c.h.b16 %v1485
        %v4073 = vunpack.c.l.b16 %v1486
        %v4074 = vunpack.c.h.b16 %v1486
        %v4075 = vunpack.c.l.b16 %v1487
        %v4076 = vunpack.c.h.b16 %v1487
        %v4077 = vunpack.c.l.b16 %v1488
        %v4078 = vunpack.c.h.b16 %v1488
        %v4079 = vunpack.c.l.b16 %v1489
        %v4080 = vunpack.c.h.b16 %v1489
        %v4081 = vunpack.c.l.b16 %v1490
        %v4082 = vunpack.c.h.b16 %v1490
        %v4083 = vunpack.c.l.b16 %v1491
        %v4084 = vunpack.c.h.b16 %v1491
        %v4085 = vunpack.c.l.b16 %v1492
        %v4086 = vunpack.c.h.b16 %v1492
        %v4087 = vunpack.c.l.b16 %v1493
        %v4088 = vunpack.c.h.b16 %v1493
        %v4089 = vunpack.c.l.b16 %v1494
        %v4090 = vunpack.c.h.b16 %v1494
        %v4091 = vunpack.c.l.b16 %v1495
        %v4092 = vunpack.c.h.b16 %v1495
        %v4093 = vunpack.c.l.b16 %v1496
        %v4094 = vunpack.c.h.b16 %v1496
        %v4095 = vunpack.c.l.b16 %v1497
        %v4096 = vunpack.c.h.b16 %v1497
        %v4097 = vunpack.c.l.b16 %v1498
        %v4098 = vunpack.c.h.b16 %v1498
        %v4099 = vunpack.c.l.b16 %v1499
        %v4100 = vunpack.c.h.b16 %v1499
        %v4101 = vunpack.c.l.b16 %v1500
        %v4102 = vunpack.c.h.b16 %v1500
        %v4103 = vunpack.c.l.b16 %v1501
        %v4104 = vunpack.c.h.b16 %v1501
        %v4105 = vunpack.c.l.b16 %v1502
        %v4106 = vunpack.c.h.b16 %v1502
        %v4107 = vunpack.c.l.b16 %v1503
        %v4108 = vunpack.c.h.b16 %v1503
        %v4109 = vunpack.c.l.b16 %v1504
        %v4110 = vunpack.c.h.b16 %v1504
        %v4111 = vunpack.c.l.b16 %v1505
        %v4112 = vunpack.c.h.b16 %v1505
        %v4113 = vunpack.c.l.b16 %v1506
        %v4114 = vunpack.c.h.b16 %v1506
        %v4115 = vunpack.c.l.b16 %v1507
        %v4116 = vunpack.c.h.b16 %v1507
        %v4117 = vunpack.c.l.b16 %v1508
        %v4118 = vunpack.c.h.b16 %v1508
        %v4119 = vunpack.c.l.b16 %v1509
        %v4120 = vunpack.c.h.b16 %v1509
        %v4121 = vunpack.c.l.b16 %v1510
        %v4122 = vunpack.c.h.b16 %v1510
        %v4123 = vunpack.c.l.b16 %v1511
        %v4124 = vunpack.c.h.b16 %v1511
        %v4125 = vunpack.c.l.b16 %v1512
        %v4126 = vunpack.c.h.b16 %v1512
        %v4127 = vunpack.c.l.b16 %v1513
        %v4128 = vunpack.c.h.b16 %v1513
        %v4129 = vunpack.c.l.b16 %v1514
        %v4130 = vunpack.c.h.b16 %v1514
        %v4131 = vunpack.c.l.b16 %v1515
        %v4132 = vunpack.c.h.b16 %v1515
        %v4133 = vunpack.c.l.b16 %v1516
        %v4134 = vunpack.c.h.b16 %v1516
        %v4135 = vunpack.c.l.b16 %v1517
        %v4136 = vunpack.c.h.b16 %v1517
        %v4137 = vunpack.c.l.b16 %v1518
        %v4138 = vunpack.c.h.b16 %v1518
        %v4139 = vunpack.c.l.b16 %v1519
        %v4140 = vunpack.c.h.b16 %v1519
        %v4141 = vunpack.c.l.b16 %v1520
        %v4142 = vunpack.c.h.b16 %v1520
        %v4143 = vunpack.c.l.b16 %v1521
        %v4144 = vunpack.c.h.b16 %v1521
        %v4145 = vunpack.c.l.b16 %v1522
        %v4146 = vunpack.c.h.b16 %v1522
        %v4147 = vunpack.c.l.b16 %v1523
        %v4148 = vunpack.c.h.b16 %v1523
        %v4149 = vunpack.c.l.b16 %v1524
        %v4150 = vunpack.c.h.b16 %v1524
        %v4151 = vunpack.c.l.b16 %v1525
        %v4152 = vunpack.c.h.b16 %v1525
        %v4153 = vunpack.c.l.b16 %v1526
        %v4154 = vunpack.c.h.b16 %v1526
        %v4155 = vunpack.c.l.b16 %v1527
        %v4156 = vunpack.c.h.b16 %v1527
        %v4157 = vunpack.c.l.b16 %v1528
        %v4158 = vunpack.c.h.b16 %v1528
        %v4159 = vunpack.c.l.b16 %v1529
        %v4160 = vunpack.c.h.b16 %v1529
        %v4161 = vunpack.c.l.b16 %v1530
        %v4162 = vunpack.c.h.b16 %v1530
        %v4163 = vunpack.c.l.b16 %v1531
        %v4164 = vunpack.c.h.b16 %v1531
        %v4165 = vunpack.c.l.b16 %v1532
        %v4166 = vunpack.c.h.b16 %v1532
        %v4167 = vunpack.c.l.b16 %v1533
        %v4168 = vunpack.c.h.b16 %v1533
        %v4169 = vunpack.c.l.b16 %v1534
        %v4170 = vunpack.c.h.b16 %v1534
        %v4171 = vunpack.c.l.b16 %v1535
        %v4172 = vunpack.c.h.b16 %v1535
        %v4173 = vunpack.c.l.b16 %v1536
        %v4174 = vunpack.c.h.b16 %v1536
        %v4175 = vunpack.c.l.b16 %v1537
        %v4176 = vunpack.c.h.b16 %v1537
        %v4177 = vunpack.c.l.b16 %v1538
        %v4178 = vunpack.c.h.b16 %v1538
        %v4179 = vunpack.c.l.b16 %v1539
        %v4180 = vunpack.c.h.b16 %v1539
        %v4181 = vunpack.c.l.b16 %v1540
        %v4182 = vunpack.c.h.b16 %v1540
        %v4183 = vunpack.c.l.b16 %v1541
        %v4184 = vunpack.c.h.b16 %v1541
        %v4185 = vunpack.c.l.b16 %v1542
        %v4186 = vunpack.c.h.b16 %v1542
        %v4187 = vunpack.c.l.b16 %v1543
        %v4188 = vunpack.c.h.b16 %v1543
        %v4189 = vunpack.c.l.b16 %v1544
        %v4190 = vunpack.c.h.b16 %v1544
        %v4191 = vunpack.c.l.b16 %v1545
        %v4192 = vunpack.c.h.b16 %v1545
        %v4193 = vunpack.c.l.b16 %v1546
        %v4194 = vunpack.c.h.b16 %v1546
        %v4195 = vunpack.c.l.b16 %v1547
        %v4196 = vunpack.c.h.b16 %v1547
        %v4197 = vunpack.c.l.b16 %v1548
        %v4198 = vunpack.c.h.b16 %v1548
        %v4199 = vunpack.c.l.b16 %v1549
        %v4200 = vunpack.c.h.b16 %v1549
        %v4201 = vunpack.c.l.b16 %v1550
        %v4202 = vunpack.c.h.b16 %v1550
        %v4203 = vunpack.c.l.b16 %v1551
        %v4204 = vunpack.c.h.b16 %v1551
        %v4205 = vunpack.c.l.b16 %v1552
        %v4206 = vunpack.c.h.b16 %v1552
        %v4207 = vunpack.c.l.b16 %v1553
        %v4208 = vunpack.c.h.b16 %v1553
        %v4209 = vunpack.c.l.b16 %v1554
        %v4210 = vunpack.c.h.b16 %v1554
        %v4211 = vunpack.c.l.b16 %v1555
        %v4212 = vunpack.c.h.b16 %v1555
        %v4213 = vunpack.c.l.b16 %v1556
        %v4214 = vunpack.c.h.b16 %v1556
        %v4215 = vunpack.c.l.b16 %v1557
        %v4216 = vunpack.c.h.b16 %v1557
        %v4217 = vunpack.c.l.b16 %v1558
        %v4218 = vunpack.c.h.b16 %v1558
        %v4219 = vunpack.c.l.b16 %v1559
        %v4220 = vunpack.c.h.b16 %v1559
        %v4221 = vunpack.c.l.b16 %v1560
        %v4222 = vunpack.c.h.b16 %v1560
        %v4223 = vunpack.c.l.b16 %v1561
        %v4224 = vunpack.c.h.b16 %v1561
        %v4225 = vunpack.c.l.b16 %v1562
        %v4226 = vunpack.c.h.b16 %v1562
        %v4227 = vunpack.c.l.b16 %v1563
        %v4228 = vunpack.c.h.b16 %v1563
        %v4229 = vunpack.c.l.b16 %v1564
        %v4230 = vunpack.c.h.b16 %v1564
        %v4231 = vunpack.c.l.b16 %v1565
        %v4232 = vunpack.c.h.b16 %v1565
        %v4233 = vunpack.c.l.b16 %v1566
        %v4234 = vunpack.c.h.b16 %v1566
        %v4235 = vunpack.c.l.b16 %v1567
        %v4236 = vunpack.c.h.b16 %v1567
        %v4237 = vunpack.c.l.b16 %v1568
        %v4238 = vunpack.c.h.b16 %v1568
        %v4239 = vunpack.c.l.b16 %v1569
        %v4240 = vunpack.c.h.b16 %v1569
        %v4241 = vunpack.c.l.b16 %v1570
        %v4242 = vunpack.c.h.b16 %v1570
        %v4243 = vunpack.c.l.b16 %v1571
        %v4244 = vunpack.c.h.b16 %v1571
        %v4245 = vunpack.c.l.b16 %v1572
        %v4246 = vunpack.c.h.b16 %v1572
        %v4247 = vunpack.c.l.b16 %v1573
        %v4248 = vunpack.c.h.b16 %v1573
        %v4249 = vunpack.c.l.b16 %v1574
        %v4250 = vunpack.c.h.b16 %v1574
        %v4251 = vunpack.c.l.b16 %v1575
        %v4252 = vunpack.c.h.b16 %v1575
        %v4253 = vunpack.c.l.b16 %v1576
        %v4254 = vunpack.c.h.b16 %v1576
        %v4255 = vunpack.c.l.b16 %v1577
        %v4256 = vunpack.c.h.b16 %v1577
        %v4257 = vunpack.c.l.b16 %v1578
        %v4258 = vunpack.c.h.b16 %v1578
        %v4259 = vunpack.c.l.b16 %v1579
        %v4260 = vunpack.c.h.b16 %v1579
        %v4261 = vunpack.c.l.b16 %v1580
        %v4262 = vunpack.c.h.b16 %v1580
        %v4263 = vunpack.c.l.b16 %v1581
        %v4264 = vunpack.c.h.b16 %v1581
        %v4265 = vunpack.c.l.b16 %v1582
        %v4266 = vunpack.c.h.b16 %v1582
        %v4267 = vunpack.c.l.b16 %v1583
        %v4268 = vunpack.c.h.b16 %v1583
        %v4269 = vunpack.c.l.b16 %v1584
        %v4270 = vunpack.c.h.b16 %v1584
        %v4271 = vunpack.c.l.b16 %v1585
        %v4272 = vunpack.c.h.b16 %v1585
        %v4273 = vunpack.c.l.b16 %v1586
        %v4274 = vunpack.c.h.b16 %v1586
        %v4275 = vunpack.c.l.b16 %v1587
        %v4276 = vunpack.c.h.b16 %v1587
        %v4277 = vunpack.c.l.b16 %v1588
        %v4278 = vunpack.c.h.b16 %v1588
        %v4279 = vunpack.c.l.b16 %v1589
        %v4280 = vunpack.c.h.b16 %v1589
        %v4281 = vunpack.c.l.b16 %v1590
        %v4282 = vunpack.c.h.b16 %v1590
        %v4283 = vunpack.c.l.b16 %v1591
        %v4284 = vunpack.c.h.b16 %v1591
        %v4285 = vunpack.c.l.b16 %v1592
        %v4286 = vunpack.c.h.b16 %v1592
        %v4287 = vunpack.c.l.b16 %v1593
        %v4288 = vunpack.c.h.b16 %v1593
        %v4289 = vunpack.c.l.b16 %v1594
        %v4290 = vunpack.c.h.b16 %v1594
        %v4291 = vunpack.c.l.b16 %v1595
        %v4292 = vunpack.c.h.b16 %v1595
        %v4293 = vunpack.c.l.b16 %v1596
        %v4294 = vunpack.c.h.b16 %v1596
        %v4295 = vunpack.c.l.b16 %v1597
        %v4296 = vunpack.c.h.b16 %v1597
        %v4297 = vunpack.c.l.b16 %v1598
        %v4298 = vunpack.c.h.b16 %v1598
        %v4299 = vunpack.c.l.b16 %v1599
        %v4300 = vunpack.c.h.b16 %v1599
        %v4301 = vunpack.c.l.b16 %v1600
        %v4302 = vunpack.c.h.b16 %v1600
        %v4303 = vunpack.c.l.b16 %v1601
        %v4304 = vunpack.c.h.b16 %v1601
        %v4305 = vunpack.c.l.b16 %v1602
        %v4306 = vunpack.c.h.b16 %v1602
        %v4307 = vunpack.c.l.b16 %v1603
        %v4308 = vunpack.c.h.b16 %v1603
        %v4309 = vunpack.c.l.b16 %v1604
        %v4310 = vunpack.c.h.b16 %v1604
        %v4311 = vunpack.c.l.b16 %v1605
        %v4312 = vunpack.c.h.b16 %v1605
        %v4313 = vunpack.c.l.b16 %v1606
        %v4314 = vunpack.c.h.b16 %v1606
        %v4315 = vunpack.c.l.b16 %v1607
        %v4316 = vunpack.c.h.b16 %v1607
        %v4317 = vunpack.c.l.b16 %v1608
        %v4318 = vunpack.c.h.b16 %v1608
        %v4319 = vunpack.c.l.b16 %v1609
        %v4320 = vunpack.c.h.b16 %v1609
        %v4321 = vunpack.c.l.b16 %v1610
        %v4322 = vunpack.c.h.b16 %v1610
        %v4323 = vunpack.c.l.b16 %v1611
        %v4324 = vunpack.c.h.b16 %v1611
        %v4325 = vunpack.c.l.b16 %v1612
        %v4326 = vunpack.c.h.b16 %v1612
        %v4327 = vunpack.c.l.b16 %v1613
        %v4328 = vunpack.c.h.b16 %v1613
        %v4329 = vunpack.c.l.b16 %v1614
        %v4330 = vunpack.c.h.b16 %v1614
        %v4331 = vunpack.c.l.b16 %v1615
        %v4332 = vunpack.c.h.b16 %v1615
        %v4333 = vunpack.c.l.b16 %v1616
        %v4334 = vunpack.c.h.b16 %v1616
        %v4335 = vunpack.c.l.b16 %v1617
        %v4336 = vunpack.c.h.b16 %v1617
        %v4337 = vunpack.c.l.b16 %v1618
        %v4338 = vunpack.c.h.b16 %v1618
        %v4339 = vunpack.c.l.b16 %v1619
        %v4340 = vunpack.c.h.b16 %v1619
        %v4341 = vunpack.c.l.b16 %v1620
        %v4342 = vunpack.c.h.b16 %v1620
        %v4343 = vunpack.c.l.b16 %v1621
        %v4344 = vunpack.c.h.b16 %v1621
        %v4345 = vunpack.c.l.b16 %v1622
        %v4346 = vunpack.c.h.b16 %v1622
        %v4347 = vunpack.c.l.b16 %v1623
        %v4348 = vunpack.c.h.b16 %v1623
        %v4349 = vunpack.c.l.b16 %v1624
        %v4350 = vunpack.c.h.b16 %v1624
        %v4351 = vunpack.c.l.b16 %v1625
        %v4352 = vunpack.c.h.b16 %v1625
        %v4353 = vunpack.c.l.b16 %v1626
        %v4354 = vunpack.c.h.b16 %v1626
        %v4355 = vunpack.c.l.b16 %v1627
        %v4356 = vunpack.c.h.b16 %v1627
        %v4357 = vunpack.c.l.b16 %v1628
        %v4358 = vunpack.c.h.b16 %v1628
        %v4359 = vunpack.c.l.b16 %v1629
        %v4360 = vunpack.c.h.b16 %v1629
        %v4361 = vunpack.c.l.b16 %v1630
        %v4362 = vunpack.c.h.b16 %v1630
        %v4363 = vunpack.c.l.b16 %v1631
        %v4364 = vunpack.c.h.b16 %v1631
        %v4365 = vunpack.c.l.b16 %v1632
        %v4366 = vunpack.c.h.b16 %v1632
        %v4367 = vunpack.c.l.b16 %v1633
        %v4368 = vunpack.c.h.b16 %v1633
        %v4369 = vunpack.c.l.b16 %v1634
        %v4370 = vunpack.c.h.b16 %v1634
        %v4371 = vunpack.c.l.b16 %v1635
        %v4372 = vunpack.c.h.b16 %v1635
        %v4373 = vunpack.c.l.b16 %v1636
        %v4374 = vunpack.c.h.b16 %v1636
        %v4375 = vunpack.c.l.b16 %v1637
        %v4376 = vunpack.c.h.b16 %v1637
        %v4377 = vunpack.c.l.b16 %v1638
        %v4378 = vunpack.c.h.b16 %v1638
        %v4379 = vunpack.c.l.b16 %v1639
        %v4380 = vunpack.c.h.b16 %v1639
        %v4381 = vunpack.c.l.b16 %v1640
        %v4382 = vunpack.c.h.b16 %v1640
        %v4383 = vunpack.c.l.b16 %v1641
        %v4384 = vunpack.c.h.b16 %v1641
        %v4385 = vunpack.c.l.b16 %v1642
        %v4386 = vunpack.c.h.b16 %v1642
        %v4387 = vunpack.c.l.b16 %v1643
        %v4388 = vunpack.c.h.b16 %v1643
        %v4389 = vunpack.c.l.b16 %v1644
        %v4390 = vunpack.c.h.b16 %v1644
        %v4391 = vunpack.c.l.b16 %v1645
        %v4392 = vunpack.c.h.b16 %v1645
        %v4393 = vunpack.c.l.b16 %v1646
        %v4394 = vunpack.c.h.b16 %v1646
        %v4395 = vunpack.c.l.b16 %v1647
        %v4396 = vunpack.c.h.b16 %v1647
        %v4397 = vunpack.c.l.b16 %v1648
        %v4398 = vunpack.c.h.b16 %v1648
        %v4399 = vunpack.c.l.b16 %v1649
        %v4400 = vunpack.c.h.b16 %v1649
        %v4401 = vunpack.c.l.b16 %v1650
        %v4402 = vunpack.c.h.b16 %v1650
        %v4403 = vunpack.c.l.b16 %v1651
        %v4404 = vunpack.c.h.b16 %v1651
        %v4405 = vunpack.c.l.b16 %v1652
        %v4406 = vunpack.c.h.b16 %v1652
        %v4407 = vunpack.c.l.b16 %v1653
        %v4408 = vunpack.c.h.b16 %v1653
        %v4409 = vunpack.c.l.b16 %v1654
        %v4410 = vunpack.c.h.b16 %v1654
        %v4411 = vunpack.c.l.b16 %v1655
        %v4412 = vunpack.c.h.b16 %v1655
        %v4413 = vunpack.c.l.b16 %v1656
        %v4414 = vunpack.c.h.b16 %v1656
        %v4415 = vunpack.c.l.b16 %v1657
        %v4416 = vunpack.c.h.b16 %v1657
        %v4417 = vunpack.c.l.b16 %v1658
        %v4418 = vunpack.c.h.b16 %v1658
        %v4419 = vunpack.c.l.b16 %v1659
        %v4420 = vunpack.c.h.b16 %v1659
        %v4421 = vunpack.c.l.b16 %v1660
        %v4422 = vunpack.c.h.b16 %v1660
        %v4423 = vunpack.c.l.b16 %v1661
        %v4424 = vunpack.c.h.b16 %v1661
        %v4425 = vunpack.c.l.b16 %v1662
        %v4426 = vunpack.c.h.b16 %v1662
        %v4427 = vunpack.c.l.b16 %v1663
        %v4428 = vunpack.c.h.b16 %v1663
        %v4429 = vunpack.c.l.b16 %v1664
        %v4430 = vunpack.c.h.b16 %v1664
        %v4431 = vunpack.c.l.b16 %v1665
        %v4432 = vunpack.c.h.b16 %v1665
        %v4433 = vunpack.c.l.b16 %v1666
        %v4434 = vunpack.c.h.b16 %v1666
        %v4435 = vunpack.c.l.b16 %v1667
        %v4436 = vunpack.c.h.b16 %v1667
        %v4437 = vunpack.c.l.b16 %v1668
        %v4438 = vunpack.c.h.b16 %v1668
        %v4439 = vunpack.c.l.b16 %v1669
        %v4440 = vunpack.c.h.b16 %v1669
        %v4441 = vunpack.c.l.b16 %v1670
        %v4442 = vunpack.c.h.b16 %v1670
        %v4443 = vunpack.c.l.b16 %v1671
        %v4444 = vunpack.c.h.b16 %v1671
        %v4445 = vunpack.c.l.b16 %v1672
        %v4446 = vunpack.c.h.b16 %v1672
        %v4447 = vunpack.c.l.b16 %v1673
        %v4448 = vunpack.c.h.b16 %v1673
        %v4449 = vunpack.c.l.b16 %v1674
        %v4450 = vunpack.c.h.b16 %v1674
        %v4451 = vunpack.c.l.b16 %v1675
        %v4452 = vunpack.c.h.b16 %v1675
        %v4453 = vunpack.c.l.b16 %v1676
        %v4454 = vunpack.c.h.b16 %v1676
        %v4455 = vunpack.c.l.b16 %v1677
        %v4456 = vunpack.c.h.b16 %v1677
        %v4457 = vunpack.c.l.b16 %v1678
        %v4458 = vunpack.c.h.b16 %v1678
        %v4459 = vunpack.c.l.b16 %v1679
        %v4460 = vunpack.c.h.b16 %v1679
        %v4461 = vunpack.c.l.b16 %v1680
        %v4462 = vunpack.c.h.b16 %v1680
        %v4463 = vunpack.c.l.b16 %v1681
        %v4464 = vunpack.c.h.b16 %v1681
        %v4465 = vunpack.c.l.b16 %v1682
        %v4466 = vunpack.c.h.b16 %v1682
        %v4467 = vunpack.c.l.b16 %v1683
        %v4468 = vunpack.c.h.b16 %v1683
        %v4469 = vunpack.c.l.b16 %v1684
        %v4470 = vunpack.c.h.b16 %v1684
        %v4471 = vunpack.c.l.b16 %v1685
        %v4472 = vunpack.c.h.b16 %v1685
        %v4473 = vunpack.c.l.b16 %v1686
        %v4474 = vunpack.c.h.b16 %v1686
        %v4475 = vunpack.c.l.b16 %v1687
        %v4476 = vunpack.c.h.b16 %v1687
        %v4477 = vunpack.c.l.b16 %v1688
        %v4478 = vunpack.c.h.b16 %v1688
        %v4479 = vunpack.c.l.b16 %v1689
        %v4480 = vunpack.c.h.b16 %v1689
        %v4481 = vunpack.c.l.b16 %v1690
        %v4482 = vunpack.c.h.b16 %v1690
        %v4483 = vunpack.c.l.b16 %v1691
        %v4484 = vunpack.c.h.b16 %v1691
        %v4485 = vunpack.c.l.b16 %v1692
        %v4486 = vunpack.c.h.b16 %v1692
        %v4487 = vunpack.c.l.b16 %v1693
        %v4488 = vunpack.c.h.b16 %v1693
        %v4489 = vunpack.c.l.b16 %v1694
        %v4490 = vunpack.c.h.b16 %v1694
        %v4491 = vunpack.c.l.b16 %v1695
        %v4492 = vunpack.c.h.b16 %v1695
        %v4493 = vunpack.c.l.b16 %v1696
        %v4494 = vunpack.c.h.b16 %v1696
        %v4495 = vunpack.c.l.b16 %v1697
        %v4496 = vunpack.c.h.b16 %v1697
        %v4497 = vunpack.c.l.b16 %v1698
        %v4498 = vunpack.c.h.b16 %v1698
        %v4499 = vunpack.c.l.b16 %v1699
        %v4500 = vunpack.c.h.b16 %v1699
        %v4501 = vunpack.c.l.b16 %v1700
        %v4502 = vunpack.c.h.b16 %v1700
        %v4503 = vunpack.c.l.b16 %v1701
        %v4504 = vunpack.c.h.b16 %v1701
        %v4505 = vunpack.c.l.b16 %v1702
        %v4506 = vunpack.c.h.b16 %v1702
        %v4507 = vunpack.c.l.b16 %v1703
        %v4508 = vunpack.c.h.b16 %v1703
        %v4509 = vunpack.c.l.b16 %v1704
        %v4510 = vunpack.c.h.b16 %v1704
        %v4511 = vunpack.c.l.b16 %v1705
        %v4512 = vunpack.c.h.b16 %v1705
        %v4513 = vunpack.c.l.b16 %v1706
        %v4514 = vunpack.c.h.b16 %v1706
        %v4515 = vunpack.c.l.b16 %v1707
        %v4516 = vunpack.c.h.b16 %v1707
        %v4517 = vunpack.c.l.b16 %v1708
        %v4518 = vunpack.c.h.b16 %v1708
        %v4519 = vunpack.c.l.b16 %v1709
        %v4520 = vunpack.c.h.b16 %v1709
        %v4521 = vunpack.c.l.b16 %v1710
        %v4522 = vunpack.c.h.b16 %v1710
        %v4523 = vunpack.c.l.b16 %v1711
        %v4524 = vunpack.c.h.b16 %v1711
        %v4525 = vunpack.c.l.b16 %v1712
        %v4526 = vunpack.c.h.b16 %v1712
        %v4527 = vunpack.c.l.b16 %v1713
        %v4528 = vunpack.c.h.b16 %v1713
        %v4529 = vunpack.c.l.b16 %v1714
        %v4530 = vunpack.c.h.b16 %v1714
        %v4531 = vunpack.c.l.b16 %v1715
        %v4532 = vunpack.c.h.b16 %v1715
        %v4533 = vunpack.c.l.b16 %v1716
        %v4534 = vunpack.c.h.b16 %v1716
        %v4535 = vunpack.c.l.b16 %v1717
        %v4536 = vunpack.c.h.b16 %v1717
        %v4537 = vunpack.c.l.b16 %v1718
        %v4538 = vunpack.c.h.b16 %v1718
        %v4539 = vunpack.c.l.b16 %v1719
        %v4540 = vunpack.c.h.b16 %v1719
        %v4541 = vunpack.c.l.b16 %v1720
        %v4542 = vunpack.c.h.b16 %v1720
        %v4543 = vunpack.c.l.b16 %v1721
        %v4544 = vunpack.c.h.b16 %v1721
        %v4545 = vunpack.c.l.b16 %v1722
        %v4546 = vunpack.c.h.b16 %v1722
        %v4547 = vunpack.c.l.b16 %v1723
        %v4548 = vunpack.c.h.b16 %v1723
        %v4549 = vunpack.c.l.b16 %v1724
        %v4550 = vunpack.c.h.b16 %v1724
        %v4551 = vunpack.c.l.b16 %v1725
        %v4552 = vunpack.c.h.b16 %v1725
        %v4553 = vunpack.c.l.b16 %v1726
        %v4554 = vunpack.c.h.b16 %v1726
        %v4555 = vunpack.c.l.b16 %v1727
        %v4556 = vunpack.c.h.b16 %v1727
        %v4557 = vunpack.c.l.b16 %v1728
        %v4558 = vunpack.c.h.b16 %v1728
        %v4559 = vunpack.c.l.b16 %v1729
        %v4560 = vunpack.c.h.b16 %v1729
        %v4561 = vunpack.c.l.b16 %v1730
        %v4562 = vunpack.c.h.b16 %v1730
        %v4563 = vunpack.c.l.b16 %v1731
        %v4564 = vunpack.c.h.b16 %v1731
        %v4565 = vunpack.c.l.b16 %v1732
        %v4566 = vunpack.c.h.b16 %v1732
        %v4567 = vunpack.c.l.b16 %v1733
        %v4568 = vunpack.c.h.b16 %v1733
        %v4569 = vunpack.c.l.b16 %v1734
        %v4570 = vunpack.c.h.b16 %v1734
        %v4571 = vunpack.c.l.b16 %v1735
        %v4572 = vunpack.c.h.b16 %v1735
        %v4573 = vunpack.c.l.b16 %v1736
        %v4574 = vunpack.c.h.b16 %v1736
        %v4575 = vunpack.c.l.b16 %v1737
        %v4576 = vunpack.c.h.b16 %v1737
        %v4577 = vunpack.c.l.b16 %v1738
        %v4578 = vunpack.c.h.b16 %v1738
        %v4579 = vunpack.c.l.b16 %v1739
        %v4580 = vunpack.c.h.b16 %v1739
        %v4581 = vunpack.c.l.b16 %v1740
        %v4582 = vunpack.c.h.b16 %v1740
        %v4583 = vunpack.c.l.b16 %v1741
        %v4584 = vunpack.c.h.b16 %v1741
        %v4585 = vunpack.c.l.b16 %v1742
        %v4586 = vunpack.c.h.b16 %v1742
        %v4587 = vunpack.c.l.b16 %v1743
        %v4588 = vunpack.c.h.b16 %v1743
        %v4589 = vunpack.c.l.b16 %v1744
        %v4590 = vunpack.c.h.b16 %v1744
        %v4591 = vunpack.c.l.b16 %v1745
        %v4592 = vunpack.c.h.b16 %v1745
        %v4593 = vunpack.c.l.b16 %v1746
        %v4594 = vunpack.c.h.b16 %v1746
        %v4595 = vunpack.c.l.b16 %v1747
        %v4596 = vunpack.c.h.b16 %v1747
        %v4597 = vunpack.c.l.b16 %v1748
        %v4598 = vunpack.c.h.b16 %v1748
        %v4599 = vunpack.c.l.b16 %v1749
        %v4600 = vunpack.c.h.b16 %v1749
        %v4601 = vunpack.c.l.b16 %v1750
        %v4602 = vunpack.c.h.b16 %v1750
        %v4603 = vunpack.c.l.b16 %v1751
        %v4604 = vunpack.c.h.b16 %v1751
        %v4605 = vunpack.c.l.b16 %v1752
        %v4606 = vunpack.c.h.b16 %v1752
        %v4607 = vunpack.c.l.b16 %v1753
        %v4608 = vunpack.c.h.b16 %v1753
        %v4609 = vunpack.c.l.b16 %v1754
        %v4610 = vunpack.c.h.b16 %v1754
        %v4611 = vunpack.c.l.b16 %v1755
        %v4612 = vunpack.c.h.b16 %v1755
        %v4613 = vunpack.c.l.b16 %v1756
        %v4614 = vunpack.c.h.b16 %v1756
        %v4615 = vunpack.c.l.b16 %v1757
        %v4616 = vunpack.c.h.b16 %v1757
        %v4617 = vunpack.c.l.b16 %v1758
        %v4618 = vunpack.c.h.b16 %v1758
        %v4619 = vunpack.c.l.b16 %v1759
        %v4620 = vunpack.c.h.b16 %v1759
        %v4621 = vunpack.c.l.b16 %v1760
        %v4622 = vunpack.c.h.b16 %v1760
        %v4623 = vunpack.c.l.b16 %v1761
        %v4624 = vunpack.c.h.b16 %v1761
        %v4625 = vunpack.c.l.b16 %v1762
        %v4626 = vunpack.c.h.b16 %v1762
        %v4627 = vunpack.c.l.b16 %v1763
        %v4628 = vunpack.c.h.b16 %v1763
        %v4629 = vunpack.c.l.b16 %v1764
        %v4630 = vunpack.c.h.b16 %v1764
        %v4631 = vunpack.c.l.b16 %v1765
        %v4632 = vunpack.c.h.b16 %v1765
        %v4633 = vunpack.c.l.b16 %v1766
        %v4634 = vunpack.c.h.b16 %v1766
        %v4635 = vunpack.c.l.b16 %v1767
        %v4636 = vunpack.c.h.b16 %v1767
        %v4637 = vunpack.c.l.b16 %v1768
        %v4638 = vunpack.c.h.b16 %v1768
        %v4639 = vunpack.c.l.b16 %v1769
        %v4640 = vunpack.c.h.b16 %v1769
        %v4641 = vunpack.c.l.b16 %v1770
        %v4642 = vunpack.c.h.b16 %v1770
        %v4643 = vunpack.c.l.b16 %v1771
        %v4644 = vunpack.c.h.b16 %v1771
        %v4645 = vunpack.c.l.b16 %v1772
        %v4646 = vunpack.c.h.b16 %v1772
        %v4647 = vunpack.c.l.b16 %v1773
        %v4648 = vunpack.c.h.b16 %v1773
        %v4649 = vunpack.c.l.b16 %v1774
        %v4650 = vunpack.c.h.b16 %v1774
        %v4651 = vunpack.c.l.b16 %v1775
        %v4652 = vunpack.c.h.b16 %v1775
        %v4653 = vunpack.c.l.b16 %v1776
        %v4654 = vunpack.c.h.b16 %v1776
        %v4655 = vunpack.c.l.b16 %v1777
        %v4656 = vunpack.c.h.b16 %v1777
        %v4657 = vunpack.c.l.b16 %v1778
        %v4658 = vunpack.c.h.b16 %v1778
        %v4659 = vunpack.c.l.b16 %v1779
        %v4660 = vunpack.c.h.b16 %v1779
        %v4661 = vunpack.c.l.b16 %v1780
        %v4662 = vunpack.c.h.b16 %v1780
        %v4663 = vunpack.c.l.b16 %v1781
        %v4664 = vunpack.c.h.b16 %v1781
        %v4665 = vunpack.c.l.b16 %v1782
        %v4666 = vunpack.c.h.b16 %v1782
        %v4667 = vunpack.c.l.b16 %v1783
        %v4668 = vunpack.c.h.b16 %v1783
        %v4669 = vunpack.c.l.b16 %v1784
        %v4670 = vunpack.c.h.b16 %v1784
        %v4671 = vunpack.c.l.b16 %v1785
        %v4672 = vunpack.c.h.b16 %v1785
        %v4673 = vunpack.c.l.b16 %v1786
        %v4674 = vunpack.c.h.b16 %v1786
        %v4675 = vunpack.c.l.b16 %v1787
        %v4676 = vunpack.c.h.b16 %v1787
        %v4677 = vunpack.c.l.b16 %v1788
        %v4678 = vunpack.c.h.b16 %v1788
        %v4679 = vunpack.c.l.b16 %v1789
        %v4680 = vunpack.c.h.b16 %v1789
        %v4681 = vunpack.c.l.b16 %v1790
        %v4682 = vunpack.c.h.b16 %v1790
        %v4683 = vunpack.c.l.b16 %v1791
        %v4684 = vunpack.c.h.b16 %v1791
        %v4685 = vunpack.c.l.b16 %v1792
        %v4686 = vunpack.c.h.b16 %v1792
        %v4687 = vunpack.c.l.b16 %v1793
        %v4688 = vunpack.c.h.b16 %v1793
        %v4689 = vunpack.c.l.b16 %v1794
        %v4690 = vunpack.c.h.b16 %v1794
        %v4691 = vunpack.c.l.b16 %v1795
        %v4692 = vunpack.c.h.b16 %v1795
        %v4693 = vunpack.c.l.b16 %v1796
        %v4694 = vunpack.c.h.b16 %v1796
        %v4695 = vunpack.c.l.b16 %v1797
        %v4696 = vunpack.c.h.b16 %v1797
        %v4697 = vunpack.c.l.b16 %v1798
        %v4698 = vunpack.c.h.b16 %v1798
        %v4699 = vunpack.c.l.b16 %v1799
        %v4700 = vunpack.c.h.b16 %v1799
        %v4701 = vunpack.c.l.b16 %v1800
        %v4702 = vunpack.c.h.b16 %v1800
        %v4703 = vunpack.c.l.b16 %v1801
        %v4704 = vunpack.c.h.b16 %v1801
        %v4705 = vunpack.c.l.b16 %v1802
        %v4706 = vunpack.c.h.b16 %v1802
        %v4707 = vunpack.c.l.b16 %v1803
        %v4708 = vunpack.c.h.b16 %v1803
        %v4709 = vunpack.c.l.b16 %v1804
        %v4710 = vunpack.c.h.b16 %v1804
        %v4711 = vunpack.c.l.b16 %v1805
        %v4712 = vunpack.c.h.b16 %v1805
        %v4713 = vunpack.c.l.b16 %v1806
        %v4714 = vunpack.c.h.b16 %v1806
        %v4715 = vunpack.c.l.b16 %v1807
        %v4716 = vunpack.c.h.b16 %v1807
        %v4717 = vunpack.c.l.b16 %v1808
        %v4718 = vunpack.c.h.b16 %v1808
        %v4719 = vunpack.c.l.b16 %v1809
        %v4720 = vunpack.c.h.b16 %v1809
        %v4721 = vunpack.c.l.b16 %v1810
        %v4722 = vunpack.c.h.b16 %v1810
        %v4723 = vunpack.c.l.b16 %v1811
        %v4724 = vunpack.c.h.b16 %v1811
        %v4725 = vunpack.c.l.b16 %v1812
        %v4726 = vunpack.c.h.b16 %v1812
        %v4727 = vunpack.c.l.b16 %v1813
        %v4728 = vunpack.c.h.b16 %v1813
        %v4729 = vunpack.c.l.b16 %v1814
        %v4730 = vunpack.c.h.b16 %v1814
        %v4731 = vunpack.c.l.b16 %v1815
        %v4732 = vunpack.c.h.b16 %v1815
        %v4733 = vunpack.c.l.b16 %v1816
        %v4734 = vunpack.c.h.b16 %v1816
        %v4735 = vunpack.c.l.b16 %v1817
        %v4736 = vunpack.c.h.b16 %v1817
        %v4737 = vunpack.c.l.b16 %v1818
        %v4738 = vunpack.c.h.b16 %v1818
        %v4739 = vunpack.c.l.b16 %v1819
        %v4740 = vunpack.c.h.b16 %v1819
        %v4741 = vunpack.c.l.b16 %v1820
        %v4742 = vunpack.c.h.b16 %v1820
        %v4743 = vunpack.c.l.b16 %v1821
        %v4744 = vunpack.c.h.b16 %v1821
        %v4745 = vunpack.c.l.b16 %v1822
        %v4746 = vunpack.c.h.b16 %v1822
        %v4747 = vunpack.c.l.b16 %v1823
        %v4748 = vunpack.c.h.b16 %v1823
        %v4749 = vunpack.c.l.b16 %v1824
        %v4750 = vunpack.c.h.b16 %v1824
        %v4751 = vunpack.c.l.b16 %v1825
        %v4752 = vunpack.c.h.b16 %v1825
        %v4753 = vunpack.c.l.b16 %v1826
        %v4754 = vunpack.c.h.b16 %v1826
        %v4755 = vunpack.c.l.b16 %v1827
        %v4756 = vunpack.c.h.b16 %v1827
        %v4757 = vunpack.c.l.b16 %v1828
        %v4758 = vunpack.c.h.b16 %v1828
        %v4759 = vunpack.c.l.b16 %v1829
        %v4760 = vunpack.c.h.b16 %v1829
        %v4761 = vunpack.c.l.b16 %v1830
        %v4762 = vunpack.c.h.b16 %v1830
        %v4763 = vunpack.c.l.b16 %v1831
        %v4764 = vunpack.c.h.b16 %v1831
        %v4765 = vunpack.c.l.b16 %v1832
        %v4766 = vunpack.c.h.b16 %v1832
        %v4767 = vunpack.c.l.b16 %v1833
        %v4768 = vunpack.c.h.b16 %v1833
        %v4769 = vunpack.c.l.b16 %v1834
        %v4770 = vunpack.c.h.b16 %v1834
        %v4771 = vunpack.c.l.b16 %v1835
        %v4772 = vunpack.c.h.b16 %v1835
        %v4773 = vunpack.c.l.b16 %v1836
        %v4774 = vunpack.c.h.b16 %v1836
        %v4775 = vunpack.c.l.b16 %v1837
        %v4776 = vunpack.c.h.b16 %v1837
        %v4777 = vunpack.c.l.b16 %v1838
        %v4778 = vunpack.c.h.b16 %v1838
        %v4779 = vunpack.c.l.b16 %v1839
        %v4780 = vunpack.c.h.b16 %v1839
        %v4781 = vunpack.c.l.b16 %v1840
        %v4782 = vunpack.c.h.b16 %v1840
        %v4783 = vunpack.c.l.b16 %v1841
        %v4784 = vunpack.c.h.b16 %v1841
        %v4785 = vunpack.c.l.b16 %v1842
        %v4786 = vunpack.c.h.b16 %v1842
        %v4787 = vunpack.c.l.b16 %v1843
        %v4788 = vunpack.c.h.b16 %v1843
        %v4789 = vunpack.c.l.b16 %v1844
        %v4790 = vunpack.c.h.b16 %v1844
        %v4791 = vunpack.c.l.b16 %v1845
        %v4792 = vunpack.c.h.b16 %v1845
        %v4793 = vunpack.c.l.b16 %v1846
        %v4794 = vunpack.c.h.b16 %v1846
        %v4795 = vunpack.c.l.b16 %v1847
        %v4796 = vunpack.c.h.b16 %v1847
        %v4797 = vunpack.c.l.b16 %v1848
        %v4798 = vunpack.c.h.b16 %v1848
        %v4799 = vunpack.c.l.b16 %v1849
        %v4800 = vunpack.c.h.b16 %v1849
        %v4801 = vunpack.c.l.b16 %v1850
        %v4802 = vunpack.c.h.b16 %v1850
        %v4803 = vunpack.c.l.b16 %v1851
        %v4804 = vunpack.c.h.b16 %v1851
        %v4805 = vunpack.c.l.b16 %v1852
        %v4806 = vunpack.c.h.b16 %v1852
        %v4807 = vunpack.c.l.b16 %v1853
        %v4808 = vunpack.c.h.b16 %v1853
        %v4809 = vunpack.c.l.b16 %v1854
        %v4810 = vunpack.c.h.b16 %v1854
        %v4811 = vunpack.c.l.b16 %v1855
        %v4812 = vunpack.c.h.b16 %v1855
        %v4813 = vunpack.c.l.b16 %v1856
        %v4814 = vunpack.c.h.b16 %v1856
        %v4815 = vunpack.c.l.b16 %v1857
        %v4816 = vunpack.c.h.b16 %v1857
        %v4817 = vunpack.c.l.b16 %v1858
        %v4818 = vunpack.c.h.b16 %v1858
        %v4819 = vunpack.c.l.b16 %v1859
        %v4820 = vunpack.c.h.b16 %v1859
        %v4821 = vunpack.c.l.b16 %v1860
        %v4822 = vunpack.c.h.b16 %v1860
        %v4823 = vunpack.c.l.b16 %v1861
        %v4824 = vunpack.c.h.b16 %v1861
        %v4825 = vunpack.c.l.b16 %v1862
        %v4826 = vunpack.c.h.b16 %v1862
        %v4827 = vunpack.c.l.b16 %v1863
        %v4828 = vunpack.c.h.b16 %v1863
        %v4829 = vunpack.c.l.b16 %v1864
        %v4830 = vunpack.c.h.b16 %v1864
        %v4831 = vunpack.c.l.b16 %v1865
        %v4832 = vunpack.c.h.b16 %v1865
        %v4833 = vunpack.c.l.b16 %v1866
        %v4834 = vunpack.c.h.b16 %v1866
        %v4835 = vunpack.c.l.b16 %v1867
        %v4836 = vunpack.c.h.b16 %v1867
        %v4837 = vunpack.c.l.b16 %v1868
        %v4838 = vunpack.c.h.b16 %v1868
        %v4839 = vunpack.c.l.b16 %v1869
        %v4840 = vunpack.c.h.b16 %v1869
        %v4841 = vunpack.c.l.b16 %v1870
        %v4842 = vunpack.c.h.b16 %v1870
        %v4843 = vunpack.c.l.b16 %v1871
        %v4844 = vunpack.c.h.b16 %v1871
        %v4845 = vunpack.c.l.b16 %v1872
        %v4846 = vunpack.c.h.b16 %v1872
        %v4847 = vunpack.c.l.b16 %v1873
        %v4848 = vunpack.c.h.b16 %v1873
        %v4849 = vunpack.c.l.b16 %v1874
        %v4850 = vunpack.c.h.b16 %v1874
        %v4851 = vunpack.c.l.b16 %v1875
        %v4852 = vunpack.c.h.b16 %v1875
        %v4853 = vunpack.c.l.b16 %v1876
        %v4854 = vunpack.c.h.b16 %v1876
        %v4855 = vunpack.c.l.b16 %v1877
        %v4856 = vunpack.c.h.b16 %v1877
        %v4857 = vunpack.c.l.b16 %v1878
        %v4858 = vunpack.c.h.b16 %v1878
        %v4859 = vunpack.c.l.b16 %v1879
        %v4860 = vunpack.c.h.b16 %v1879
        %v4861 = vunpack.c.l.b16 %v1880
        %v4862 = vunpack.c.h.b16 %v1880
        %v4863 = vunpack.c.l.b16 %v1881
        %v4864 = vunpack.c.h.b16 %v1881
        %v4865 = vunpack.c.l.b16 %v1882
        %v4866 = vunpack.c.h.b16 %v1882
        %v4867 = vunpack.c.l.b16 %v1883
        %v4868 = vunpack.c.h.b16 %v1883
        %v4869 = vunpack.c.l.b16 %v1884
        %v4870 = vunpack.c.h.b16 %v1884
        %v4871 = vunpack.c.l.b16 %v1885
        %v4872 = vunpack.c.h.b16 %v1885
        %v4873 = vunpack.c.l.b16 %v1886
        %v4874 = vunpack.c.h.b16 %v1886
        %v4875 = vunpack.c.l.b16 %v1887
        %v4876 = vunpack.c.h.b16 %v1887
        %v4877 = vunpack.c.l.b16 %v1888
        %v4878 = vunpack.c.h.b16 %v1888
        %v4879 = vunpack.c.l.b16 %v1889
        %v4880 = vunpack.c.h.b16 %v1889
        %v4881 = vunpack.c.l.b16 %v1890
        %v4882 = vunpack.c.h.b16 %v1890
        %v4883 = vunpack.c.l.b16 %v1891
        %v4884 = vunpack.c.h.b16 %v1891
        %v4885 = vunpack.c.l.b16 %v1892
        %v4886 = vunpack.c.h.b16 %v1892
        %v4887 = vunpack.c.l.b16 %v1893
        %v4888 = vunpack.c.h.b16 %v1893
        %v4889 = vunpack.c.l.b16 %v1894
        %v4890 = vunpack.c.h.b16 %v1894
        %v4891 = vunpack.c.l.b16 %v1895
        %v4892 = vunpack.c.h.b16 %v1895
        %v4893 = vunpack.c.l.b16 %v1896
        %v4894 = vunpack.c.h.b16 %v1896
        %v4895 = vunpack.c.l.b16 %v1897
        %v4896 = vunpack.c.h.b16 %v1897
        %v4897 = vunpack.c.l.b16 %v1898
        %v4898 = vunpack.c.h.b16 %v1898
        %v4899 = vunpack.c.l.b16 %v1899
        %v4900 = vunpack.c.h.b16 %v1899
        %v4901 = vunpack.c.l.b16 %v1900
        %v4902 = vunpack.c.h.b16 %v1900
        %v4903 = vunpack.c.l.b16 %v1901
        %v4904 = vunpack.c.h.b16 %v1901
        %v4905 = vunpack.c.l.b16 %v1902
        %v4906 = vunpack.c.h.b16 %v1902
        %v4907 = vunpack.c.l.b16 %v1903
        %v4908 = vunpack.c.h.b16 %v1903
        %v4909 = vunpack.c.l.b16 %v1904
        %v4910 = vunpack.c.h.b16 %v1904
        %v4911 = vunpack.c.l.b16 %v1905
        %v4912 = vunpack.c.h.b16 %v1905
        %v4913 = vunpack.c.l.b16 %v1906
        %v4914 = vunpack.c.h.b16 %v1906
        %v4915 = vunpack.c.l.b16 %v1907
        %v4916 = vunpack.c.h.b16 %v1907
        %v4917 = vunpack.c.l.b16 %v1908
        %v4918 = vunpack.c.h.b16 %v1908
        %v4919 = vunpack.c.l.b16 %v1909
        %v4920 = vunpack.c.h.b16 %v1909
        %v4921 = vunpack.c.l.b16 %v1910
        %v4922 = vunpack.c.h.b16 %v1910
        %v4923 = vunpack.c.l.b16 %v1911
        %v4924 = vunpack.c.h.b16 %v1911
        %v4925 = vunpack.c.l.b16 %v1912
        %v4926 = vunpack.c.h.b16 %v1912
        %v4927 = vunpack.c.l.b16 %v1913
        %v4928 = vunpack.c.h.b16 %v1913
        %v4929 = vunpack.c.l.b16 %v1914
        %v4930 = vunpack.c.h.b16 %v1914
        %v4931 = vunpack.c.l.b16 %v1915
        %v4932 = vunpack.c.h.b16 %v1915
        %v4933 = vunpack.c.l.b16 %v1916
        %v4934 = vunpack.c.h.b16 %v1916
        %v4935 = vunpack.c.l.b16 %v1917
        %v4936 = vunpack.c.h.b16 %v1917
        %v4937 = vunpack.c.l.b16 %v1918
        %v4938 = vunpack.c.h.b16 %v1918
        %v4939 = vunpack.c.l.b16 %v1919
        %v4940 = vunpack.c.h.b16 %v1919
        %v4941 = vunpack.c.l.b16 %v1920
        %v4942 = vunpack.c.h.b16 %v1920
        %v4943 = vunpack.c.l.b16 %v1921
        %v4944 = vunpack.c.h.b16 %v1921
        %v4945 = vunpack.c.l.b16 %v1922
        %v4946 = vunpack.c.h.b16 %v1922
        %v4947 = vunpack.c.l.b16 %v1923
        %v4948 = vunpack.c.h.b16 %v1923
        %v4949 = vunpack.c.l.b16 %v1924
        %v4950 = vunpack.c.h.b16 %v1924
        %v4951 = vunpack.c.l.b16 %v1925
        %v4952 = vunpack.c.h.b16 %v1925
        %v4953 = vunpack.c.l.b16 %v1926
        %v4954 = vunpack.c.h.b16 %v1926
        %v4955 = vunpack.c.l.b16 %v1927
        %v4956 = vunpack.c.h.b16 %v1927
        %v4957 = vunpack.c.l.b16 %v1928
        %v4958 = vunpack.c.h.b16 %v1928
        %v4959 = vunpack.c.l.b16 %v1929
        %v4960 = vunpack.c.h.b16 %v1929
        %v4961 = vunpack.c.l.b16 %v1930
        %v4962 = vunpack.c.h.b16 %v1930
        %v4963 = vunpack.c.l.b16 %v1931
        %v4964 = vunpack.c.h.b16 %v1931
        %v4965 = vunpack.c.l.b16 %v1932
        %v4966 = vunpack.c.h.b16 %v1932
        %v4967 = vunpack.c.l.b16 %v1933
        %v4968 = vunpack.c.h.b16 %v1933
        %v4969 = vunpack.c.l.b16 %v1934
        %v4970 = vunpack.c.h.b16 %v1934
        %v4971 = vunpack.c.l.b16 %v1935
        %v4972 = vunpack.c.h.b16 %v1935
        %v4973 = vunpack.c.l.b16 %v1936
        %v4974 = vunpack.c.h.b16 %v1936
        %v4975 = vunpack.c.l.b16 %v1937
        %v4976 = vunpack.c.h.b16 %v1937
        %v4977 = vunpack.c.l.b16 %v1938
        %v4978 = vunpack.c.h.b16 %v1938
        %v4979 = vunpack.c.l.b16 %v1939
        %v4980 = vunpack.c.h.b16 %v1939
        %v4981 = vunpack.c.l.b16 %v1940
        %v4982 = vunpack.c.h.b16 %v1940
        %v4983 = vunpack.c.l.b16 %v1941
        %v4984 = vunpack.c.h.b16 %v1941
        %v4985 = vunpack.c.l.b16 %v1942
        %v4986 = vunpack.c.h.b16 %v1942
        %v4987 = vunpack.c.l.b16 %v1943
        %v4988 = vunpack.c.h.b16 %v1943
        %v4989 = vunpack.c.l.b16 %v1944
        %v4990 = vunpack.c.h.b16 %v1944
        %v4991 = vunpack.c.l.b16 %v1945
        %v4992 = vunpack.c.h.b16 %v1945
        %v4993 = vunpack.c.l.b16 %v1946
        %v4994 = vunpack.c.h.b16 %v1946
        %v4995 = vunpack.c.l.b16 %v1947
        %v4996 = vunpack.c.h.b16 %v1947
        %v4997 = vunpack.c.l.b16 %v1948
        %v4998 = vunpack.c.h.b16 %v1948
        %v4999 = vunpack.c.l.b16 %v1949
        %v5000 = vunpack.c.h.b16 %v1949
        %v5001 = vunpack.c.l.b16 %v1950
        %v5002 = vunpack.c.h.b16 %v1950
        %v5003 = vunpack.c.l.b16 %v1951
        %v5004 = vunpack.c.h.b16 %v1951
        %v5005 = vunpack.c.l.b16 %v1952
        %v5006 = vunpack.c.h.b16 %v1952
        %v5007 = vunpack.c.l.b16 %v1953
        %v5008 = vunpack.c.h.b16 %v1953
        %v5009 = vunpack.c.l.b16 %v1954
        %v5010 = vunpack.c.h.b16 %v1954
        %v5011 = vunpack.c.l.b16 %v1955
        %v5012 = vunpack.c.h.b16 %v1955
        %v5013 = vunpack.c.l.b16 %v1956
        %v5014 = vunpack.c.h.b16 %v1956
        %v5015 = vunpack.c.l.b16 %v1957
        %v5016 = vunpack.c.h.b16 %v1957
        %v5017 = vunpack.c.l.b16 %v1958
        %v5018 = vunpack.c.h.b16 %v1958
        %v5019 = vunpack.c.l.b16 %v1959
        %v5020 = vunpack.c.h.b16 %v1959
        %v5021 = vunpack.c.l.b16 %v1960
        %v5022 = vunpack.c.h.b16 %v1960
        %v5023 = vunpack.c.l.b16 %v1961
        %v5024 = vunpack.c.h.b16 %v1961
        %v5025 = vunpack.c.l.b16 %v1962
        %v5026 = vunpack.c.h.b16 %v1962
        %v5027 = vunpack.c.l.b16 %v1963
        %v5028 = vunpack.c.h.b16 %v1963
        %v5029 = vunpack.c.l.b16 %v1964
        %v5030 = vunpack.c.h.b16 %v1964
        %v5031 = vunpack.c.l.b16 %v1965
        %v5032 = vunpack.c.h.b16 %v1965
        %v5033 = vunpack.c.l.b16 %v1966
        %v5034 = vunpack.c.h.b16 %v1966
        %v5035 = vunpack.c.l.b16 %v1967
        %v5036 = vunpack.c.h.b16 %v1967
        %v5037 = vunpack.c.l.b16 %v1968
        %v5038 = vunpack.c.h.b16 %v1968
        %v5039 = vunpack.c.l.b16 %v1969
        %v5040 = vunpack.c.h.b16 %v1969
        %v5041 = vunpack.c.l.b16 %v1970
        %v5042 = vunpack.c.h.b16 %v1970
        %v5043 = vunpack.c.l.b16 %v1971
        %v5044 = vunpack.c.h.b16 %v1971
        %v5045 = vunpack.c.l.b16 %v1972
        %v5046 = vunpack.c.h.b16 %v1972
        %v5047 = vunpack.c.l.b16 %v1973
        %v5048 = vunpack.c.h.b16 %v1973
        %v5049 = vunpack.c.l.b16 %v1974
        %v5050 = vunpack.c.h.b16 %v1974
        %v5051 = vunpack.c.l.b16 %v1975
        %v5052 = vunpack.c.h.b16 %v1975
        %v5053 = vunpack.c.l.b16 %v1976
        %v5054 = vunpack.c.h.b16 %v1976
        %v5055 = vunpack.c.l.b16 %v1977
        %v5056 = vunpack.c.h.b16 %v1977
        %v5057 = vunpack.c.l.b16 %v1978
        %v5058 = vunpack.c.h.b16 %v1978
        %v5059 = vunpack.c.l.b16 %v1979
        %v5060 = vunpack.c.h.b16 %v1979
        %v5061 = vunpack.c.l.b16 %v1980
        %v5062 = vunpack.c.h.b16 %v1980
        %v5063 = vunpack.c.l.b16 %v1981
        %v5064 = vunpack.c.h.b16 %v1981
        %v5065 = vunpack.c.l.b16 %v1982
        %v5066 = vunpack.c.h.b16 %v1982
        %v5067 = vunpack.c.l.b16 %v1983
        %v5068 = vunpack.c.h.b16 %v1983
        %v5069 = vunpack.c.l.b16 %v1984
        %v5070 = vunpack.c.h.b16 %v1984
        %v5071 = vunpack.c.l.b16 %v1985
        %v5072 = vunpack.c.h.b16 %v1985
        %v5073 = vunpack.c.l.b16 %v1986
        %v5074 = vunpack.c.h.b16 %v1986
        %v5075 = vunpack.c.l.b16 %v1987
        %v5076 = vunpack.c.h.b16 %v1987
        %v5077 = vunpack.c.l.b16 %v1988
        %v5078 = vunpack.c.h.b16 %v1988
        %v5079 = vunpack.c.l.b16 %v1989
        %v5080 = vunpack.c.h.b16 %v1989
        %v5081 = vunpack.c.l.b16 %v1990
        %v5082 = vunpack.c.h.b16 %v1990
        %v5083 = vunpack.c.l.b16 %v1991
        %v5084 = vunpack.c.h.b16 %v1991
        %v5085 = vunpack.c.l.b16 %v1992
        %v5086 = vunpack.c.h.b16 %v1992
        %v5087 = vunpack.c.l.b16 %v1993
        %v5088 = vunpack.c.h.b16 %v1993
        %v5089 = vunpack.c.l.b16 %v1994
        %v5090 = vunpack.c.h.b16 %v1994
        %v5091 = vunpack.c.l.b16 %v1995
        %v5092 = vunpack.c.h.b16 %v1995
        %v5093 = vunpack.c.l.b16 %v1996
        %v5094 = vunpack.c.h.b16 %v1996
        %v5095 = vunpack.c.l.b16 %v1997
        %v5096 = vunpack.c.h.b16 %v1997
        %v5097 = vunpack.c.l.b16 %v1998
        %v5098 = vunpack.c.h.b16 %v1998
        %v5099 = vunpack.c.l.b16 %v1999
        %v5100 = vunpack.c.h.b16 %v1999
        %v5101 = vunpack.c.l.b16 %v2000
        %v5102 = vunpack.c.h.b16 %v2000
        %v5103 = vunpack.c.l.b16 %v2001
        %v5104 = vunpack.c.h.b16 %v2001
        %v5105 = vunpack.c.l.b16 %v2002
        %v5106 = vunpack.c.h.b16 %v2002
        %v5107 = vunpack.c.l.b16 %v2003
        %v5108 = vunpack.c.h.b16 %v2003
        %v5109 = vunpack.c.l.b16 %v2004
        %v5110 = vunpack.c.h.b16 %v2004
        %v5111 = vunpack.c.l.b16 %v2005
        %v5112 = vunpack.c.h.b16 %v2005
        %v5113 = vunpack.c.l.b16 %v2006
        %v5114 = vunpack.c.h.b16 %v2006
        %v5115 = vunpack.c.l.b16 %v2007
        %v5116 = vunpack.c.h.b16 %v2007
        %v5117 = vunpack.c.l.b16 %v2008
        %v5118 = vunpack.c.h.b16 %v2008
        %v5119 = vunpack.c.l.b16 %v2009
        %v5120 = vunpack.c.h.b16 %v2009
        %v5121 = vunpack.c.l.b16 %v2010
        %v5122 = vunpack.c.h.b16 %v2010
        %v5123 = vunpack.c.l.b16 %v2011
        %v5124 = vunpack.c.h.b16 %v2011
        %v5125 = vunpack.c.l.b16 %v2012
        %v5126 = vunpack.c.h.b16 %v2012
        %v5127 = vpack.c.b16 %v3087, %v3079
        %v5128 = vpack.c.b16 %v3088, %v3080
        %v5129 = vpack.c.b16 %v3089, %v3081
        %v5130 = vpack.c.b16 %v3090, %v3082
        %v5131 = vpack.c.b16 %v3091, %v3083
        %v5132 = vpack.c.b16 %v3092, %v3084
        %v5133 = vpack.c.b16 %v3093, %v3085
        %v5134 = vpack.c.b16 %v3094, %v3086
        %v5135 = vpack.c.b16 %v3103, %v3095
        %v5136 = vpack.c.b16 %v3104, %v3096
        %v5137 = vpack.c.b16 %v3105, %v3097
        %v5138 = vpack.c.b16 %v3106, %v3098
        %v5139 = vpack.c.b16 %v3107, %v3099
        %v5140 = vpack.c.b16 %v3108, %v3100
        %v5141 = vpack.c.b16 %v3109, %v3101
        %v5142 = vpack.c.b16 %v3110, %v3102
        %v5143 = vpack.c.b16 %v3119, %v3111
        %v5144 = vpack.c.b16 %v3120, %v3112
        %v5145 = vpack.c.b16 %v3121, %v3113
        %v5146 = vpack.c.b16 %v3122, %v3114
        %v5147 = vpack.c.b16 %v3123, %v3115
        %v5148 = vpack.c.b16 %v3124, %v3116
        %v5149 = vpack.c.b16 %v3125, %v3117
        %v5150 = vpack.c.b16 %v3126, %v3118
        %v5151 = vpack.c.b16 %v3135, %v3127
        %v5152 = vpack.c.b16 %v3136, %v3128
        %v5153 = vpack.c.b16 %v3137, %v3129
        %v5154 = vpack.c.b16 %v3138, %v3130
        %v5155 = vpack.c.b16 %v3139, %v3131
        %v5156 = vpack.c.b16 %v3140, %v3132
        %v5157 = vpack.c.b16 %v3141, %v3133
        %v5158 = vpack.c.b16 %v3142, %v3134
        %v5159 = vpack.c.b16 %v3151, %v3143
        %v5160 = vpack.c.b16 %v3152, %v3144
        %v5161 = vpack.c.b16 %v3153, %v3145
        %v5162 = vpack.c.b16 %v3154, %v3146
        %v5163 = vpack.c.b16 %v3155, %v3147
        %v5164 = vpack.c.b16 %v3156, %v3148
        %v5165 = vpack.c.b16 %v3157, %v3149
        %v5166 = vpack.c.b16 %v3158, %v3150
        %v5167 = vpack.c.b16 %v3167, %v3159
        %v5168 = vpack.c.b16 %v3168, %v3160
        %v5169 = vpack.c.b16 %v3169, %v3161
        %v5170 = vpack.c.b16 %v3170, %v3162
        %v5171 = vpack.c.b16 %v3171, %v3163
        %v5172 = vpack.c.b16 %v3172, %v3164
        %v5173 = vpack.c.b16 %v3173, %v3165
        %v5174 = vpack.c.b16 %v3174, %v3166
        %v5175 = vpack.c.b16 %v3183, %v3175
        %v5176 = vpack.c.b16 %v3184, %v3176
        %v5177 = vpack.c.b16 %v3185, %v3177
        %v5178 = vpack.c.b16 %v3186, %v3178
        %v5179 = vpack.c.b16 %v3187, %v3179
        %v5180 = vpack.c.b16 %v3188, %v3180
        %v5181 = vpack.c.b16 %v3189, %v3181
        %v5182 = vpack.c.b16 %v3190, %v3182
        %v5183 = vpack.c.b16 %v3199, %v3191
        %v5184 = vpack.c.b16 %v3200, %v3192
        %v5185 = vpack.c.b16 %v3201, %v3193
        %v5186 = vpack.c.b16 %v3202, %v3194
        %v5187 = vpack.c.b16 %v3203, %v3195
        %v5188 = vpack.c.b16 %v3204, %v3196
        %v5189 = vpack.c.b16 %v3205, %v3197
        %v5190 = vpack.c.b16 %v3206, %v3198
        %v5191 = vpack.c.b16 %v3215, %v3207
        %v5192 = vpack.c.b16 %v3216, %v3208
        %v5193 = vpack.c.b16 %v3217, %v3209
        %v5194 = vpack.c.b16 %v3218, %v3210
        %v5195 = vpack.c.b16 %v3219, %v3211
        %v5196 = vpack.c.b16 %v3220, %v3212
        %v5197 = vpack.c.b16 %v3221, %v3213
        %v5198 = vpack.c.b16 %v3222, %v3214
        %v5199 = vpack.c.b16 %v3231, %v3223
        %v5200 = vpack.c.b16 %v3232, %v3224
        %v5201 = vpack.c.b16 %v3233, %v3225
        %v5202 = vpack.c.b16 %v3234, %v3226
        %v5203 = vpack.c.b16 %v3235, %v3227
        %v5204 = vpack.c.b16 %v3236, %v3228
        %v5205 = vpack.c.b16 %v3237, %v3229
        %v5206 = vpack.c.b16 %v3238, %v3230
        %v5207 = vpack.c.b16 %v3247, %v3239
        %v5208 = vpack.c.b16 %v3248, %v3240
        %v5209 = vpack.c.b16 %v3249, %v3241
        %v5210 = vpack.c.b16 %v3250, %v3242
        %v5211 = vpack.c.b16 %v3251, %v3243
        %v5212 = vpack.c.b16 %v3252, %v3244
        %v5213 = vpack.c.b16 %v3253, %v3245
        %v5214 = vpack.c.b16 %v3254, %v3246
        %v5215 = vpack.c.b16 %v3263, %v3255
        %v5216 = vpack.c.b16 %v3264, %v3256
        %v5217 = vpack.c.b16 %v3265, %v3257
        %v5218 = vpack.c.b16 %v3266, %v3258
        %v5219 = vpack.c.b16 %v3267, %v3259
        %v5220 = vpack.c.b16 %v3268, %v3260
        %v5221 = vpack.c.b16 %v3269, %v3261
        %v5222 = vpack.c.b16 %v3270, %v3262
        %v5223 = vpack.c.b16 %v3279, %v3271
        %v5224 = vpack.c.b16 %v3280, %v3272
        %v5225 = vpack.c.b16 %v3281, %v3273
        %v5226 = vpack.c.b16 %v3282, %v3274
        %v5227 = vpack.c.b16 %v3283, %v3275
        %v5228 = vpack.c.b16 %v3284, %v3276
        %v5229 = vpack.c.b16 %v3285, %v3277
        %v5230 = vpack.c.b16 %v3286, %v3278
        %v5231 = vpack.c.b16 %v3295, %v3287
        %v5232 = vpack.c.b16 %v3296, %v3288
        %v5233 = vpack.c.b16 %v3297, %v3289
        %v5234 = vpack.c.b16 %v3298, %v3290
        %v5235 = vpack.c.b16 %v3299, %v3291
        %v5236 = vpack.c.b16 %v3300, %v3292
        %v5237 = vpack.c.b16 %v3301, %v3293
        %v5238 = vpack.c.b16 %v3302, %v3294
        %v5239 = vpack.c.b16 %v3311, %v3303
        %v5240 = vpack.c.b16 %v3312, %v3304
        %v5241 = vpack.c.b16 %v3313, %v3305
        %v5242 = vpack.c.b16 %v3314, %v3306
        %v5243 = vpack.c.b16 %v3315, %v3307
        %v5244 = vpack.c.b16 %v3316, %v3308
        %v5245 = vpack.c.b16 %v3317, %v3309
        %v5246 = vpack.c.b16 %v3318, %v3310
        %v5247 = vpack.c.b16 %v3327, %v3319
        %v5248 = vpack.c.b16 %v3328, %v3320
        %v5249 = vpack.c.b16 %v3329, %v3321
        %v5250 = vpack.c.b16 %v3330, %v3322
        %v5251 = vpack.c.b16 %v3331, %v3323
        %v5252 = vpack.c.b16 %v3332, %v3324
        %v5253 = vpack.c.b16 %v3333, %v3325
        %v5254 = vpack.c.b16 %v3334, %v3326
        %v5255 = vpack.c.b16 %v3343, %v3335
        %v5256 = vpack.c.b16 %v3344, %v3336
        %v5257 = vpack.c.b16 %v3345, %v3337
        %v5258 = vpack.c.b16 %v3346, %v3338
        %v5259 = vpack.c.b16 %v3347, %v3339
        %v5260 = vpack.c.b16 %v3348, %v3340
        %v5261 = vpack.c.b16 %v3349, %v3341
        %v5262 = vpack.c.b16 %v3350, %v3342
        %v5263 = vpack.c.b16 %v3359, %v3351
        %v5264 = vpack.c.b16 %v3360, %v3352
        %v5265 = vpack.c.b16 %v3361, %v3353
        %v5266 = vpack.c.b16 %v3362, %v3354
        %v5267 = vpack.c.b16 %v3363, %v3355
        %v5268 = vpack.c.b16 %v3364, %v3356
        %v5269 = vpack.c.b16 %v3365, %v3357
        %v5270 = vpack.c.b16 %v3366, %v3358
        %v5271 = vpack.c.b16 %v3375, %v3367
        %v5272 = vpack.c.b16 %v3376, %v3368
        %v5273 = vpack.c.b16 %v3377, %v3369
        %v5274 = vpack.c.b16 %v3378, %v3370
        %v5275 = vpack.c.b16 %v3379, %v3371
        %v5276 = vpack.c.b16 %v3380, %v3372
        %v5277 = vpack.c.b16 %v3381, %v3373
        %v5278 = vpack.c.b16 %v3382, %v3374
        %v5279 = vpack.c.b16 %v3391, %v3383
        %v5280 = vpack.c.b16 %v3392, %v3384
        %v5281 = vpack.c.b16 %v3393, %v3385
        %v5282 = vpack.c.b16 %v3394, %v3386
        %v5283 = vpack.c.b16 %v3395, %v3387
        %v5284 = vpack.c.b16 %v3396, %v3388
        %v5285 = vpack.c.b16 %v3397, %v3389
        %v5286 = vpack.c.b16 %v3398, %v3390
        %v5287 = vpack.c.b16 %v3407, %v3399
        %v5288 = vpack.c.b16 %v3408, %v3400
        %v5289 = vpack.c.b16 %v3409, %v3401
        %v5290 = vpack.c.b16 %v3410, %v3402
        %v5291 = vpack.c.b16 %v3411, %v3403
        %v5292 = vpack.c.b16 %v3412, %v3404
        %v5293 = vpack.c.b16 %v3413, %v3405
        %v5294 = vpack.c.b16 %v3414, %v3406
        %v5295 = vpack.c.b16 %v3423, %v3415
        %v5296 = vpack.c.b16 %v3424, %v3416
        %v5297 = vpack.c.b16 %v3425, %v3417
        %v5298 = vpack.c.b16 %v3426, %v3418
        %v5299 = vpack.c.b16 %v3427, %v3419
        %v5300 = vpack.c.b16 %v3428, %v3420
        %v5301 = vpack.c.b16 %v3429, %v3421
        %v5302 = vpack.c.b16 %v3430, %v3422
        %v5303 = vpack.c.b16 %v3439, %v3431
        %v5304 = vpack.c.b16 %v3440, %v3432
        %v5305 = vpack.c.b16 %v3441, %v3433
        %v5306 = vpack.c.b16 %v3442, %v3434
        %v5307 = vpack.c.b16 %v3443, %v3435
        %v5308 = vpack.c.b16 %v3444, %v3436
        %v5309 = vpack.c.b16 %v3445, %v3437
        %v5310 = vpack.c.b16 %v3446, %v3438
        %v5311 = vpack.c.b16 %v3455, %v3447
        %v5312 = vpack.c.b16 %v3456, %v3448
        %v5313 = vpack.c.b16 %v3457, %v3449
        %v5314 = vpack.c.b16 %v3458, %v3450
        %v5315 = vpack.c.b16 %v3459, %v3451
        %v5316 = vpack.c.b16 %v3460, %v3452
        %v5317 = vpack.c.b16 %v3461, %v3453
        %v5318 = vpack.c.b16 %v3462, %v3454
        %v5319 = vpack.c.b16 %v3471, %v3463
        %v5320 = vpack.c.b16 %v3472, %v3464
        %v5321 = vpack.c.b16 %v3473, %v3465
        %v5322 = vpack.c.b16 %v3474, %v3466
        %v5323 = vpack.c.b16 %v3475, %v3467
        %v5324 = vpack.c.b16 %v3476, %v3468
        %v5325 = vpack.c.b16 %v3477, %v3469
        %v5326 = vpack.c.b16 %v3478, %v3470
        %v5327 = vpack.c.b16 %v3487, %v3479
        %v5328 = vpack.c.b16 %v3488, %v3480
        %v5329 = vpack.c.b16 %v3489, %v3481
        %v5330 = vpack.c.b16 %v3490, %v3482
        %v5331 = vpack.c.b16 %v3491, %v3483
        %v5332 = vpack.c.b16 %v3492, %v3484
        %v5333 = vpack.c.b16 %v3493, %v3485
        %v5334 = vpack.c.b16 %v3494, %v3486
        %v5335 = vpack.c.b16 %v3503, %v3495
        %v5336 = vpack.c.b16 %v3504, %v3496
        %v5337 = vpack.c.b16 %v3505, %v3497
        %v5338 = vpack.c.b16 %v3506, %v3498
        %v5339 = vpack.c.b16 %v3507, %v3499
        %v5340 = vpack.c.b16 %v3508, %v3500
        %v5341 = vpack.c.b16 %v3509, %v3501
        %v5342 = vpack.c.b16 %v3510, %v3502
        %v5343 = vpack.c.b16 %v3519, %v3511
        %v5344 = vpack.c.b16 %v3520, %v3512
        %v5345 = vpack.c.b16 %v3521, %v3513
        %v5346 = vpack.c.b16 %v3522, %v3514
        %v5347 = vpack.c.b16 %v3523, %v3515
        %v5348 = vpack.c.b16 %v3524, %v3516
        %v5349 = vpack.c.b16 %v3525, %v3517
        %v5350 = vpack.c.b16 %v3526, %v3518
        %v5351 = vpack.c.b16 %v3535, %v3527
        %v5352 = vpack.c.b16 %v3536, %v3528
        %v5353 = vpack.c.b16 %v3537, %v3529
        %v5354 = vpack.c.b16 %v3538, %v3530
        %v5355 = vpack.c.b16 %v3539, %v3531
        %v5356 = vpack.c.b16 %v3540, %v3532
        %v5357 = vpack.c.b16 %v3541, %v3533
        %v5358 = vpack.c.b16 %v3542, %v3534
        %v5359 = vpack.c.b16 %v3551, %v3543
        %v5360 = vpack.c.b16 %v3552, %v3544
        %v5361 = vpack.c.b16 %v3553, %v3545
        %v5362 = vpack.c.b16 %v3554, %v3546
        %v5363 = vpack.c.b16 %v3555, %v3547
        %v5364 = vpack.c.b16 %v3556, %v3548
        %v5365 = vpack.c.b16 %v3557, %v3549
        %v5366 = vpack.c.b16 %v3558, %v3550
        %v5367 = vpack.c.b16 %v3567, %v3559
        %v5368 = vpack.c.b16 %v3568, %v3560
        %v5369 = vpack.c.b16 %v3569, %v3561
        %v5370 = vpack.c.b16 %v3570, %v3562
        %v5371 = vpack.c.b16 %v3571, %v3563
        %v5372 = vpack.c.b16 %v3572, %v3564
        %v5373 = vpack.c.b16 %v3573, %v3565
        %v5374 = vpack.c.b16 %v3574, %v3566
        %v5375 = vpack.c.b16 %v3583, %v3575
        %v5376 = vpack.c.b16 %v3584, %v3576
        %v5377 = vpack.c.b16 %v3585, %v3577
        %v5378 = vpack.c.b16 %v3586, %v3578
        %v5379 = vpack.c.b16 %v3587, %v3579
        %v5380 = vpack.c.b16 %v3588, %v3580
        %v5381 = vpack.c.b16 %v3589, %v3581
        %v5382 = vpack.c.b16 %v3590, %v3582
        %v5383 = vpack.c.b16 %v3599, %v3591
        %v5384 = vpack.c.b16 %v3600, %v3592
        %v5385 = vpack.c.b16 %v3601, %v3593
        %v5386 = vpack.c.b16 %v3602, %v3594
        %v5387 = vpack.c.b16 %v3603, %v3595
        %v5388 = vpack.c.b16 %v3604, %v3596
        %v5389 = vpack.c.b16 %v3605, %v3597
        %v5390 = vpack.c.b16 %v3606, %v3598
        %v5391 = vpack.c.b16 %v3615, %v3607
        %v5392 = vpack.c.b16 %v3616, %v3608
        %v5393 = vpack.c.b16 %v3617, %v3609
        %v5394 = vpack.c.b16 %v3618, %v3610
        %v5395 = vpack.c.b16 %v3619, %v3611
        %v5396 = vpack.c.b16 %v3620, %v3612
        %v5397 = vpack.c.b16 %v3621, %v3613
        %v5398 = vpack.c.b16 %v3622, %v3614
        %v5399 = vpack.c.b16 %v3631, %v3623
        %v5400 = vpack.c.b16 %v3632, %v3624
        %v5401 = vpack.c.b16 %v3633, %v3625
        %v5402 = vpack.c.b16 %v3634, %v3626
        %v5403 = vpack.c.b16 %v3635, %v3627
        %v5404 = vpack.c.b16 %v3636, %v3628
        %v5405 = vpack.c.b16 %v3637, %v3629
        %v5406 = vpack.c.b16 %v3638, %v3630
        %v5407 = vpack.c.b16 %v3647, %v3639
        %v5408 = vpack.c.b16 %v3648, %v3640
        %v5409 = vpack.c.b16 %v3649, %v3641
        %v5410 = vpack.c.b16 %v3650, %v3642
        %v5411 = vpack.c.b16 %v3651, %v3643
        %v5412 = vpack.c.b16 %v3652, %v3644
        %v5413 = vpack.c.b16 %v3653, %v3645
        %v5414 = vpack.c.b16 %v3654, %v3646
        %v5415 = vpack.c.b16 %v3663, %v3655
        %v5416 = vpack.c.b16 %v3664, %v3656
        %v5417 = vpack.c.b16 %v3665, %v3657
        %v5418 = vpack.c.b16 %v3666, %v3658
        %v5419 = vpack.c.b16 %v3667, %v3659
        %v5420 = vpack.c.b16 %v3668, %v3660
        %v5421 = vpack.c.b16 %v3669, %v3661
        %v5422 = vpack.c.b16 %v3670, %v3662
        %v5423 = vpack.c.b16 %v3679, %v3671
        %v5424 = vpack.c.b16 %v3680, %v3672
        %v5425 = vpack.c.b16 %v3681, %v3673
        %v5426 = vpack.c.b16 %v3682, %v3674
        %v5427 = vpack.c.b16 %v3683, %v3675
        %v5428 = vpack.c.b16 %v3684, %v3676
        %v5429 = vpack.c.b16 %v3685, %v3677
        %v5430 = vpack.c.b16 %v3686, %v3678
        %v5431 = vpack.c.b16 %v3695, %v3687
        %v5432 = vpack.c.b16 %v3696, %v3688
        %v5433 = vpack.c.b16 %v3697, %v3689
        %v5434 = vpack.c.b16 %v3698, %v3690
        %v5435 = vpack.c.b16 %v3699, %v3691
        %v5436 = vpack.c.b16 %v3700, %v3692
        %v5437 = vpack.c.b16 %v3701, %v3693
        %v5438 = vpack.c.b16 %v3702, %v3694
        %v5439 = vpack.c.b16 %v3711, %v3703
        %v5440 = vpack.c.b16 %v3712, %v3704
        %v5441 = vpack.c.b16 %v3713, %v3705
        %v5442 = vpack.c.b16 %v3714, %v3706
        %v5443 = vpack.c.b16 %v3715, %v3707
        %v5444 = vpack.c.b16 %v3716, %v3708
        %v5445 = vpack.c.b16 %v3717, %v3709
        %v5446 = vpack.c.b16 %v3718, %v3710
        %v5447 = vpack.c.b16 %v3727, %v3719
        %v5448 = vpack.c.b16 %v3728, %v3720
        %v5449 = vpack.c.b16 %v3729, %v3721
        %v5450 = vpack.c.b16 %v3730, %v3722
        %v5451 = vpack.c.b16 %v3731, %v3723
        %v5452 = vpack.c.b16 %v3732, %v3724
        %v5453 = vpack.c.b16 %v3733, %v3725
        %v5454 = vpack.c.b16 %v3734, %v3726
        %v5455 = vpack.c.b16 %v3743, %v3735
        %v5456 = vpack.c.b16 %v3744, %v3736
        %v5457 = vpack.c.b16 %v3745, %v3737
        %v5458 = vpack.c.b16 %v3746, %v3738
        %v5459 = vpack.c.b16 %v3747, %v3739
        %v5460 = vpack.c.b16 %v3748, %v3740
        %v5461 = vpack.c.b16 %v3749, %v3741
        %v5462 = vpack.c.b16 %v3750, %v3742
        %v5463 = vpack.c.b16 %v3759, %v3751
        %v5464 = vpack.c.b16 %v3760, %v3752
        %v5465 = vpack.c.b16 %v3761, %v3753
        %v5466 = vpack.c.b16 %v3762, %v3754
        %v5467 = vpack.c.b16 %v3763, %v3755
        %v5468 = vpack.c.b16 %v3764, %v3756
        %v5469 = vpack.c.b16 %v3765, %v3757
        %v5470 = vpack.c.b16 %v3766, %v3758
        %v5471 = vpack.c.b16 %v3775, %v3767
        %v5472 = vpack.c.b16 %v3776, %v3768
        %v5473 = vpack.c.b16 %v3777, %v3769
        %v5474 = vpack.c.b16 %v3778, %v3770
        %v5475 = vpack.c.b16 %v3779, %v3771
        %v5476 = vpack.c.b16 %v3780, %v3772
        %v5477 = vpack.c.b16 %v3781, %v3773
        %v5478 = vpack.c.b16 %v3782, %v3774
        %v5479 = vpack.c.b16 %v3791, %v3783
        %v5480 = vpack.c.b16 %v3792, %v3784
        %v5481 = vpack.c.b16 %v3793, %v3785
        %v5482 = vpack.c.b16 %v3794, %v3786
        %v5483 = vpack.c.b16 %v3795, %v3787
        %v5484 = vpack.c.b16 %v3796, %v3788
        %v5485 = vpack.c.b16 %v3797, %v3789
        %v5486 = vpack.c.b16 %v3798, %v3790
        %v5487 = vpack.c.b16 %v3807, %v3799
        %v5488 = vpack.c.b16 %v3808, %v3800
        %v5489 = vpack.c.b16 %v3809, %v3801
        %v5490 = vpack.c.b16 %v3810, %v3802
        %v5491 = vpack.c.b16 %v3811, %v3803
        %v5492 = vpack.c.b16 %v3812, %v3804
        %v5493 = vpack.c.b16 %v3813, %v3805
        %v5494 = vpack.c.b16 %v3814, %v3806
        %v5495 = vpack.c.b16 %v3823, %v3815
        %v5496 = vpack.c.b16 %v3824, %v3816
        %v5497 = vpack.c.b16 %v3825, %v3817
        %v5498 = vpack.c.b16 %v3826, %v3818
        %v5499 = vpack.c.b16 %v3827, %v3819
        %v5500 = vpack.c.b16 %v3828, %v3820
        %v5501 = vpack.c.b16 %v3829, %v3821
        %v5502 = vpack.c.b16 %v3830, %v3822
        %v5503 = vpack.c.b16 %v3839, %v3831
        %v5504 = vpack.c.b16 %v3840, %v3832
        %v5505 = vpack.c.b16 %v3841, %v3833
        %v5506 = vpack.c.b16 %v3842, %v3834
        %v5507 = vpack.c.b16 %v3843, %v3835
        %v5508 = vpack.c.b16 %v3844, %v3836
        %v5509 = vpack.c.b16 %v3845, %v3837
        %v5510 = vpack.c.b16 %v3846, %v3838
        %v5511 = vpack.c.b16 %v3855, %v3847
        %v5512 = vpack.c.b16 %v3856, %v3848
        %v5513 = vpack.c.b16 %v3857, %v3849
        %v5514 = vpack.c.b16 %v3858, %v3850
        %v5515 = vpack.c.b16 %v3859, %v3851
        %v5516 = vpack.c.b16 %v3860, %v3852
        %v5517 = vpack.c.b16 %v3861, %v3853
        %v5518 = vpack.c.b16 %v3862, %v3854
        %v5519 = vpack.c.b16 %v3871, %v3863
        %v5520 = vpack.c.b16 %v3872, %v3864
        %v5521 = vpack.c.b16 %v3873, %v3865
        %v5522 = vpack.c.b16 %v3874, %v3866
        %v5523 = vpack.c.b16 %v3875, %v3867
        %v5524 = vpack.c.b16 %v3876, %v3868
        %v5525 = vpack.c.b16 %v3877, %v3869
        %v5526 = vpack.c.b16 %v3878, %v3870
        %v5527 = vpack.c.b16 %v3887, %v3879
        %v5528 = vpack.c.b16 %v3888, %v3880
        %v5529 = vpack.c.b16 %v3889, %v3881
        %v5530 = vpack.c.b16 %v3890, %v3882
        %v5531 = vpack.c.b16 %v3891, %v3883
        %v5532 = vpack.c.b16 %v3892, %v3884
        %v5533 = vpack.c.b16 %v3893, %v3885
        %v5534 = vpack.c.b16 %v3894, %v3886
        %v5535 = vpack.c.b16 %v3903, %v3895
        %v5536 = vpack.c.b16 %v3904, %v3896
        %v5537 = vpack.c.b16 %v3905, %v3897
        %v5538 = vpack.c.b16 %v3906, %v3898
        %v5539 = vpack.c.b16 %v3907, %v3899
        %v5540 = vpack.c.b16 %v3908, %v3900
        %v5541 = vpack.c.b16 %v3909, %v3901
        %v5542 = vpack.c.b16 %v3910, %v3902
        %v5543 = vpack.c.b16 %v3919, %v3911
        %v5544 = vpack.c.b16 %v3920, %v3912
        %v5545 = vpack.c.b16 %v3921, %v3913
        %v5546 = vpack.c.b16 %v3922, %v3914
        %v5547 = vpack.c.b16 %v3923, %v3915
        %v5548 = vpack.c.b16 %v3924, %v3916
        %v5549 = vpack.c.b16 %v3925, %v3917
        %v5550 = vpack.c.b16 %v3926, %v3918
        %v5551 = vpack.c.b16 %v3935, %v3927
        %v5552 = vpack.c.b16 %v3936, %v3928
        %v5553 = vpack.c.b16 %v3937, %v3929
        %v5554 = vpack.c.b16 %v3938, %v3930
        %v5555 = vpack.c.b16 %v3939, %v3931
        %v5556 = vpack.c.b16 %v3940, %v3932
        %v5557 = vpack.c.b16 %v3941, %v3933
        %v5558 = vpack.c.b16 %v3942, %v3934
        %v5559 = vpack.c.b16 %v3951, %v3943
        %v5560 = vpack.c.b16 %v3952, %v3944
        %v5561 = vpack.c.b16 %v3953, %v3945
        %v5562 = vpack.c.b16 %v3954, %v3946
        %v5563 = vpack.c.b16 %v3955, %v3947
        %v5564 = vpack.c.b16 %v3956, %v3948
        %v5565 = vpack.c.b16 %v3957, %v3949
        %v5566 = vpack.c.b16 %v3958, %v3950
        %v5567 = vpack.c.b16 %v3967, %v3959
        %v5568 = vpack.c.b16 %v3968, %v3960
        %v5569 = vpack.c.b16 %v3969, %v3961
        %v5570 = vpack.c.b16 %v3970, %v3962
        %v5571 = vpack.c.b16 %v3971, %v3963
        %v5572 = vpack.c.b16 %v3972, %v3964
        %v5573 = vpack.c.b16 %v3973, %v3965
        %v5574 = vpack.c.b16 %v3974, %v3966
        %v5575 = vpack.c.b16 %v3983, %v3975
        %v5576 = vpack.c.b16 %v3984, %v3976
        %v5577 = vpack.c.b16 %v3985, %v3977
        %v5578 = vpack.c.b16 %v3986, %v3978
        %v5579 = vpack.c.b16 %v3987, %v3979
        %v5580 = vpack.c.b16 %v3988, %v3980
        %v5581 = vpack.c.b16 %v3989, %v3981
        %v5582 = vpack.c.b16 %v3990, %v3982
        %v5583 = vpack.c.b16 %v3999, %v3991
        %v5584 = vpack.c.b16 %v4000, %v3992
        %v5585 = vpack.c.b16 %v4001, %v3993
        %v5586 = vpack.c.b16 %v4002, %v3994
        %v5587 = vpack.c.b16 %v4003, %v3995
        %v5588 = vpack.c.b16 %v4004, %v3996
        %v5589 = vpack.c.b16 %v4005, %v3997
        %v5590 = vpack.c.b16 %v4006, %v3998
        %v5591 = vpack.c.b16 %v4015, %v4007
        %v5592 = vpack.c.b16 %v4016, %v4008
        %v5593 = vpack.c.b16 %v4017, %v4009
        %v5594 = vpack.c.b16 %v4018, %v4010
        %v5595 = vpack.c.b16 %v4019, %v4011
        %v5596 = vpack.c.b16 %v4020, %v4012
        %v5597 = vpack.c.b16 %v4021, %v4013
        %v5598 = vpack.c.b16 %v4022, %v4014
        %v5599 = vpack.c.b16 %v4031, %v4023
        %v5600 = vpack.c.b16 %v4032, %v4024
        %v5601 = vpack.c.b16 %v4033, %v4025
        %v5602 = vpack.c.b16 %v4034, %v4026
        %v5603 = vpack.c.b16 %v4035, %v4027
        %v5604 = vpack.c.b16 %v4036, %v4028
        %v5605 = vpack.c.b16 %v4037, %v4029
        %v5606 = vpack.c.b16 %v4038, %v4030
        %v5607 = vpack.c.b16 %v4047, %v4039
        %v5608 = vpack.c.b16 %v4048, %v4040
        %v5609 = vpack.c.b16 %v4049, %v4041
        %v5610 = vpack.c.b16 %v4050, %v4042
        %v5611 = vpack.c.b16 %v4051, %v4043
        %v5612 = vpack.c.b16 %v4052, %v4044
        %v5613 = vpack.c.b16 %v4053, %v4045
        %v5614 = vpack.c.b16 %v4054, %v4046
        %v5615 = vpack.c.b16 %v4063, %v4055
        %v5616 = vpack.c.b16 %v4064, %v4056
        %v5617 = vpack.c.b16 %v4065, %v4057
        %v5618 = vpack.c.b16 %v4066, %v4058
        %v5619 = vpack.c.b16 %v4067, %v4059
        %v5620 = vpack.c.b16 %v4068, %v4060
        %v5621 = vpack.c.b16 %v4069, %v4061
        %v5622 = vpack.c.b16 %v4070, %v4062
        %v5623 = vpack.c.b16 %v4079, %v4071
        %v5624 = vpack.c.b16 %v4080, %v4072
        %v5625 = vpack.c.b16 %v4081, %v4073
        %v5626 = vpack.c.b16 %v4082, %v4074
        %v5627 = vpack.c.b16 %v4083, %v4075
        %v5628 = vpack.c.b16 %v4084, %v4076
        %v5629 = vpack.c.b16 %v4085, %v4077
        %v5630 = vpack.c.b16 %v4086, %v4078
        %v5631 = vpack.c.b16 %v4095, %v4087
        %v5632 = vpack.c.b16 %v4096, %v4088
        %v5633 = vpack.c.b16 %v4097, %v4089
        %v5634 = vpack.c.b16 %v4098, %v4090
        %v5635 = vpack.c.b16 %v4099, %v4091
        %v5636 = vpack.c.b16 %v4100, %v4092
        %v5637 = vpack.c.b16 %v4101, %v4093
        %v5638 = vpack.c.b16 %v4102, %v4094
        %v5639 = vpack.c.b16 %v4111, %v4103
        %v5640 = vpack.c.b16 %v4112, %v4104
        %v5641 = vpack.c.b16 %v4113, %v4105
        %v5642 = vpack.c.b16 %v4114, %v4106
        %v5643 = vpack.c.b16 %v4115, %v4107
        %v5644 = vpack.c.b16 %v4116, %v4108
        %v5645 = vpack.c.b16 %v4117, %v4109
        %v5646 = vpack.c.b16 %v4118, %v4110
        %v5647 = vpack.c.b16 %v4127, %v4119
        %v5648 = vpack.c.b16 %v4128, %v4120
        %v5649 = vpack.c.b16 %v4129, %v4121
        %v5650 = vpack.c.b16 %v4130, %v4122
        %v5651 = vpack.c.b16 %v4131, %v4123
        %v5652 = vpack.c.b16 %v4132, %v4124
        %v5653 = vpack.c.b16 %v4133, %v4125
        %v5654 = vpack.c.b16 %v4134, %v4126
        %v5655 = vpack.c.b16 %v4143, %v4135
        %v5656 = vpack.c.b16 %v4144, %v4136
        %v5657 = vpack.c.b16 %v4145, %v4137
        %v5658 = vpack.c.b16 %v4146, %v4138
        %v5659 = vpack.c.b16 %v4147, %v4139
        %v5660 = vpack.c.b16 %v4148, %v4140
        %v5661 = vpack.c.b16 %v4149, %v4141
        %v5662 = vpack.c.b16 %v4150, %v4142
        %v5663 = vpack.c.b16 %v4159, %v4151
        %v5664 = vpack.c.b16 %v4160, %v4152
        %v5665 = vpack.c.b16 %v4161, %v4153
        %v5666 = vpack.c.b16 %v4162, %v4154
        %v5667 = vpack.c.b16 %v4163, %v4155
        %v5668 = vpack.c.b16 %v4164, %v4156
        %v5669 = vpack.c.b16 %v4165, %v4157
        %v5670 = vpack.c.b16 %v4166, %v4158
        %v5671 = vpack.c.b16 %v4175, %v4167
        %v5672 = vpack.c.b16 %v4176, %v4168
        %v5673 = vpack.c.b16 %v4177, %v4169
        %v5674 = vpack.c.b16 %v4178, %v4170
        %v5675 = vpack.c.b16 %v4179, %v4171
        %v5676 = vpack.c.b16 %v4180, %v4172
        %v5677 = vpack.c.b16 %v4181, %v4173
        %v5678 = vpack.c.b16 %v4182, %v4174
        %v5679 = vpack.c.b16 %v4191, %v4183
        %v5680 = vpack.c.b16 %v4192, %v4184
        %v5681 = vpack.c.b16 %v4193, %v4185
        %v5682 = vpack.c.b16 %v4194, %v4186
        %v5683 = vpack.c.b16 %v4195, %v4187
        %v5684 = vpack.c.b16 %v4196, %v4188
        %v5685 = vpack.c.b16 %v4197, %v4189
        %v5686 = vpack.c.b16 %v4198, %v4190
        %v5687 = vpack.c.b16 %v4207, %v4199
        %v5688 = vpack.c.b16 %v4208, %v4200
        %v5689 = vpack.c.b16 %v4209, %v4201
        %v5690 = vpack.c.b16 %v4210, %v4202
        %v5691 = vpack.c.b16 %v4211, %v4203
        %v5692 = vpack.c.b16 %v4212, %v4204
        %v5693 = vpack.c.b16 %v4213, %v4205
        %v5694 = vpack.c.b16 %v4214, %v4206
        %v5695 = vpack.c.b16 %v4223, %v4215
        %v5696 = vpack.c.b16 %v4224, %v4216
        %v5697 = vpack.c.b16 %v4225, %v4217
        %v5698 = vpack.c.b16 %v4226, %v4218
        %v5699 = vpack.c.b16 %v4227, %v4219
        %v5700 = vpack.c.b16 %v4228, %v4220
        %v5701 = vpack.c.b16 %v4229, %v4221
        %v5702 = vpack.c.b16 %v4230, %v4222
        %v5703 = vpack.c.b16 %v4239, %v4231
        %v5704 = vpack.c.b16 %v4240, %v4232
        %v5705 = vpack.c.b16 %v4241, %v4233
        %v5706 = vpack.c.b16 %v4242, %v4234
        %v5707 = vpack.c.b16 %v4243, %v4235
        %v5708 = vpack.c.b16 %v4244, %v4236
        %v5709 = vpack.c.b16 %v4245, %v4237
        %v5710 = vpack.c.b16 %v4246, %v4238
        %v5711 = vpack.c.b16 %v4255, %v4247
        %v5712 = vpack.c.b16 %v4256, %v4248
        %v5713 = vpack.c.b16 %v4257, %v4249
        %v5714 = vpack.c.b16 %v4258, %v4250
        %v5715 = vpack.c.b16 %v4259, %v4251
        %v5716 = vpack.c.b16 %v4260, %v4252
        %v5717 = vpack.c.b16 %v4261, %v4253
        %v5718 = vpack.c.b16 %v4262, %v4254
        %v5719 = vpack.c.b16 %v4271, %v4263
        %v5720 = vpack.c.b16 %v4272, %v4264
        %v5721 = vpack.c.b16 %v4273, %v4265
        %v5722 = vpack.c.b16 %v4274, %v4266
        %v5723 = vpack.c.b16 %v4275, %v4267
        %v5724 = vpack.c.b16 %v4276, %v4268
        %v5725 = vpack.c.b16 %v4277, %v4269
        %v5726 = vpack.c.b16 %v4278, %v4270
        %v5727 = vpack.c.b16 %v4287, %v4279
        %v5728 = vpack.c.b16 %v4288, %v4280
        %v5729 = vpack.c.b16 %v4289, %v4281
        %v5730 = vpack.c.b16 %v4290, %v4282
        %v5731 = vpack.c.b16 %v4291, %v4283
        %v5732 = vpack.c.b16 %v4292, %v4284
        %v5733 = vpack.c.b16 %v4293, %v4285
        %v5734 = vpack.c.b16 %v4294, %v4286
        %v5735 = vpack.c.b16 %v4303, %v4295
        %v5736 = vpack.c.b16 %v4304, %v4296
        %v5737 = vpack.c.b16 %v4305, %v4297
        %v5738 = vpack.c.b16 %v4306, %v4298
        %v5739 = vpack.c.b16 %v4307, %v4299
        %v5740 = vpack.c.b16 %v4308, %v4300
        %v5741 = vpack.c.b16 %v4309, %v4301
        %v5742 = vpack.c.b16 %v4310, %v4302
        %v5743 = vpack.c.b16 %v4319, %v4311
        %v5744 = vpack.c.b16 %v4320, %v4312
        %v5745 = vpack.c.b16 %v4321, %v4313
        %v5746 = vpack.c.b16 %v4322, %v4314
        %v5747 = vpack.c.b16 %v4323, %v4315
        %v5748 = vpack.c.b16 %v4324, %v4316
        %v5749 = vpack.c.b16 %v4325, %v4317
        %v5750 = vpack.c.b16 %v4326, %v4318
        %v5751 = vpack.c.b16 %v4335, %v4327
        %v5752 = vpack.c.b16 %v4336, %v4328
        %v5753 = vpack.c.b16 %v4337, %v4329
        %v5754 = vpack.c.b16 %v4338, %v4330
        %v5755 = vpack.c.b16 %v4339, %v4331
        %v5756 = vpack.c.b16 %v4340, %v4332
        %v5757 = vpack.c.b16 %v4341, %v4333
        %v5758 = vpack.c.b16 %v4342, %v4334
        %v5759 = vpack.c.b16 %v4351, %v4343
        %v5760 = vpack.c.b16 %v4352, %v4344
        %v5761 = vpack.c.b16 %v4353, %v4345
        %v5762 = vpack.c.b16 %v4354, %v4346
        %v5763 = vpack.c.b16 %v4355, %v4347
        %v5764 = vpack.c.b16 %v4356, %v4348
        %v5765 = vpack.c.b16 %v4357, %v4349
        %v5766 = vpack.c.b16 %v4358, %v4350
        %v5767 = vpack.c.b16 %v4367, %v4359
        %v5768 = vpack.c.b16 %v4368, %v4360
        %v5769 = vpack.c.b16 %v4369, %v4361
        %v5770 = vpack.c.b16 %v4370, %v4362
        %v5771 = vpack.c.b16 %v4371, %v4363
        %v5772 = vpack.c.b16 %v4372, %v4364
        %v5773 = vpack.c.b16 %v4373, %v4365
        %v5774 = vpack.c.b16 %v4374, %v4366
        %v5775 = vpack.c.b16 %v4383, %v4375
        %v5776 = vpack.c.b16 %v4384, %v4376
        %v5777 = vpack.c.b16 %v4385, %v4377
        %v5778 = vpack.c.b16 %v4386, %v4378
        %v5779 = vpack.c.b16 %v4387, %v4379
        %v5780 = vpack.c.b16 %v4388, %v4380
        %v5781 = vpack.c.b16 %v4389, %v4381
        %v5782 = vpack.c.b16 %v4390, %v4382
        %v5783 = vpack.c.b16 %v4399, %v4391
        %v5784 = vpack.c.b16 %v4400, %v4392
        %v5785 = vpack.c.b16 %v4401, %v4393
        %v5786 = vpack.c.b16 %v4402, %v4394
        %v5787 = vpack.c.b16 %v4403, %v4395
        %v5788 = vpack.c.b16 %v4404, %v4396
        %v5789 = vpack.c.b16 %v4405, %v4397
        %v5790 = vpack.c.b16 %v4406, %v4398
        %v5791 = vpack.c.b16 %v4415, %v4407
        %v5792 = vpack.c.b16 %v4416, %v4408
        %v5793 = vpack.c.b16 %v4417, %v4409
        %v5794 = vpack.c.b16 %v4418, %v4410
        %v5795 = vpack.c.b16 %v4419, %v4411
        %v5796 = vpack.c.b16 %v4420, %v4412
        %v5797 = vpack.c.b16 %v4421, %v4413
        %v5798 = vpack.c.b16 %v4422, %v4414
        %v5799 = vpack.c.b16 %v4431, %v4423
        %v5800 = vpack.c.b16 %v4432, %v4424
        %v5801 = vpack.c.b16 %v4433, %v4425
        %v5802 = vpack.c.b16 %v4434, %v4426
        %v5803 = vpack.c.b16 %v4435, %v4427
        %v5804 = vpack.c.b16 %v4436, %v4428
        %v5805 = vpack.c.b16 %v4437, %v4429
        %v5806 = vpack.c.b16 %v4438, %v4430
        %v5807 = vpack.c.b16 %v4447, %v4439
        %v5808 = vpack.c.b16 %v4448, %v4440
        %v5809 = vpack.c.b16 %v4449, %v4441
        %v5810 = vpack.c.b16 %v4450, %v4442
        %v5811 = vpack.c.b16 %v4451, %v4443
        %v5812 = vpack.c.b16 %v4452, %v4444
        %v5813 = vpack.c.b16 %v4453, %v4445
        %v5814 = vpack.c.b16 %v4454, %v4446
        %v5815 = vpack.c.b16 %v4463, %v4455
        %v5816 = vpack.c.b16 %v4464, %v4456
        %v5817 = vpack.c.b16 %v4465, %v4457
        %v5818 = vpack.c.b16 %v4466, %v4458
        %v5819 = vpack.c.b16 %v4467, %v4459
        %v5820 = vpack.c.b16 %v4468, %v4460
        %v5821 = vpack.c.b16 %v4469, %v4461
        %v5822 = vpack.c.b16 %v4470, %v4462
        %v5823 = vpack.c.b16 %v4479, %v4471
        %v5824 = vpack.c.b16 %v4480, %v4472
        %v5825 = vpack.c.b16 %v4481, %v4473
        %v5826 = vpack.c.b16 %v4482, %v4474
        %v5827 = vpack.c.b16 %v4483, %v4475
        %v5828 = vpack.c.b16 %v4484, %v4476
        %v5829 = vpack.c.b16 %v4485, %v4477
        %v5830 = vpack.c.b16 %v4486, %v4478
        %v5831 = vpack.c.b16 %v4495, %v4487
        %v5832 = vpack.c.b16 %v4496, %v4488
        %v5833 = vpack.c.b16 %v4497, %v4489
        %v5834 = vpack.c.b16 %v4498, %v4490
        %v5835 = vpack.c.b16 %v4499, %v4491
        %v5836 = vpack.c.b16 %v4500, %v4492
        %v5837 = vpack.c.b16 %v4501, %v4493
        %v5838 = vpack.c.b16 %v4502, %v4494
        %v5839 = vpack.c.b16 %v4511, %v4503
        %v5840 = vpack.c.b16 %v4512, %v4504
        %v5841 = vpack.c.b16 %v4513, %v4505
        %v5842 = vpack.c.b16 %v4514, %v4506
        %v5843 = vpack.c.b16 %v4515, %v4507
        %v5844 = vpack.c.b16 %v4516, %v4508
        %v5845 = vpack.c.b16 %v4517, %v4509
        %v5846 = vpack.c.b16 %v4518, %v4510
        %v5847 = vpack.c.b16 %v4527, %v4519
        %v5848 = vpack.c.b16 %v4528, %v4520
        %v5849 = vpack.c.b16 %v4529, %v4521
        %v5850 = vpack.c.b16 %v4530, %v4522
        %v5851 = vpack.c.b16 %v4531, %v4523
        %v5852 = vpack.c.b16 %v4532, %v4524
        %v5853 = vpack.c.b16 %v4533, %v4525
        %v5854 = vpack.c.b16 %v4534, %v4526
        %v5855 = vpack.c.b16 %v4543, %v4535
        %v5856 = vpack.c.b16 %v4544, %v4536
        %v5857 = vpack.c.b16 %v4545, %v4537
        %v5858 = vpack.c.b16 %v4546, %v4538
        %v5859 = vpack.c.b16 %v4547, %v4539
        %v5860 = vpack.c.b16 %v4548, %v4540
        %v5861 = vpack.c.b16 %v4549, %v4541
        %v5862 = vpack.c.b16 %v4550, %v4542
        %v5863 = vpack.c.b16 %v4559, %v4551
        %v5864 = vpack.c.b16 %v4560, %v4552
        %v5865 = vpack.c.b16 %v4561, %v4553
        %v5866 = vpack.c.b16 %v4562, %v4554
        %v5867 = vpack.c.b16 %v4563, %v4555
        %v5868 = vpack.c.b16 %v4564, %v4556
        %v5869 = vpack.c.b16 %v4565, %v4557
        %v5870 = vpack.c.b16 %v4566, %v4558
        %v5871 = vpack.c.b16 %v4575, %v4567
        %v5872 = vpack.c.b16 %v4576, %v4568
        %v5873 = vpack.c.b16 %v4577, %v4569
        %v5874 = vpack.c.b16 %v4578, %v4570
        %v5875 = vpack.c.b16 %v4579, %v4571
        %v5876 = vpack.c.b16 %v4580, %v4572
        %v5877 = vpack.c.b16 %v4581, %v4573
        %v5878 = vpack.c.b16 %v4582, %v4574
        %v5879 = vpack.c.b16 %v4591, %v4583
        %v5880 = vpack.c.b16 %v4592, %v4584
        %v5881 = vpack.c.b16 %v4593, %v4585
        %v5882 = vpack.c.b16 %v4594, %v4586
        %v5883 = vpack.c.b16 %v4595, %v4587
        %v5884 = vpack.c.b16 %v4596, %v4588
        %v5885 = vpack.c.b16 %v4597, %v4589
        %v5886 = vpack.c.b16 %v4598, %v4590
        %v5887 = vpack.c.b16 %v4607, %v4599
        %v5888 = vpack.c.b16 %v4608, %v4600
        %v5889 = vpack.c.b16 %v4609, %v4601
        %v5890 = vpack.c.b16 %v4610, %v4602
        %v5891 = vpack.c.b16 %v4611, %v4603
        %v5892 = vpack.c.b16 %v4612, %v4604
        %v5893 = vpack.c.b16 %v4613, %v4605
        %v5894 = vpack.c.b16 %v4614, %v4606
        %v5895 = vpack.c.b16 %v4623, %v4615
        %v5896 = vpack.c.b16 %v4624, %v4616
        %v5897 = vpack.c.b16 %v4625, %v4617
        %v5898 = vpack.c.b16 %v4626, %v4618
        %v5899 = vpack.c.b16 %v4627, %v4619
        %v5900 = vpack.c.b16 %v4628, %v4620
        %v5901 = vpack.c.b16 %v4629, %v4621
        %v5902 = vpack.c.b16 %v4630, %v4622
        %v5903 = vpack.c.b16 %v4639, %v4631
        %v5904 = vpack.c.b16 %v4640, %v4632
        %v5905 = vpack.c.b16 %v4641, %v4633
        %v5906 = vpack.c.b16 %v4642, %v4634
        %v5907 = vpack.c.b16 %v4643, %v4635
        %v5908 = vpack.c.b16 %v4644, %v4636
        %v5909 = vpack.c.b16 %v4645, %v4637
        %v5910 = vpack.c.b16 %v4646, %v4638
        %v5911 = vpack.c.b16 %v4655, %v4647
        %v5912 = vpack.c.b16 %v4656, %v4648
        %v5913 = vpack.c.b16 %v4657, %v4649
        %v5914 = vpack.c.b16 %v4658, %v4650
        %v5915 = vpack.c.b16 %v4659, %v4651
        %v5916 = vpack.c.b16 %v4660, %v4652
        %v5917 = vpack.c.b16 %v4661, %v4653
        %v5918 = vpack.c.b16 %v4662, %v4654
        %v5919 = vpack.c.b16 %v4671, %v4663
        %v5920 = vpack.c.b16 %v4672, %v4664
        %v5921 = vpack.c.b16 %v4673, %v4665
        %v5922 = vpack.c.b16 %v4674, %v4666
        %v5923 = vpack.c.b16 %v4675, %v4667
        %v5924 = vpack.c.b16 %v4676, %v4668
        %v5925 = vpack.c.b16 %v4677, %v4669
        %v5926 = vpack.c.b16 %v4678, %v4670
        %v5927 = vpack.c.b16 %v4687, %v4679
        %v5928 = vpack.c.b16 %v4688, %v4680
        %v5929 = vpack.c.b16 %v4689, %v4681
        %v5930 = vpack.c.b16 %v4690, %v4682
        %v5931 = vpack.c.b16 %v4691, %v4683
        %v5932 = vpack.c.b16 %v4692, %v4684
        %v5933 = vpack.c.b16 %v4693, %v4685
        %v5934 = vpack.c.b16 %v4694, %v4686
        %v5935 = vpack.c.b16 %v4703, %v4695
        %v5936 = vpack.c.b16 %v4704, %v4696
        %v5937 = vpack.c.b16 %v4705, %v4697
        %v5938 = vpack.c.b16 %v4706, %v4698
        %v5939 = vpack.c.b16 %v4707, %v4699
        %v5940 = vpack.c.b16 %v4708, %v4700
        %v5941 = vpack.c.b16 %v4709, %v4701
        %v5942 = vpack.c.b16 %v4710, %v4702
        %v5943 = vpack.c.b16 %v4719, %v4711
        %v5944 = vpack.c.b16 %v4720, %v4712
        %v5945 = vpack.c.b16 %v4721, %v4713
        %v5946 = vpack.c.b16 %v4722, %v4714
        %v5947 = vpack.c.b16 %v4723, %v4715
        %v5948 = vpack.c.b16 %v4724, %v4716
        %v5949 = vpack.c.b16 %v4725, %v4717
        %v5950 = vpack.c.b16 %v4726, %v4718
        %v5951 = vpack.c.b16 %v4735, %v4727
        %v5952 = vpack.c.b16 %v4736, %v4728
        %v5953 = vpack.c.b16 %v4737, %v4729
        %v5954 = vpack.c.b16 %v4738, %v4730
        %v5955 = vpack.c.b16 %v4739, %v4731
        %v5956 = vpack.c.b16 %v4740, %v4732
        %v5957 = vpack.c.b16 %v4741, %v4733
        %v5958 = vpack.c.b16 %v4742, %v4734
        %v5959 = vpack.c.b16 %v4751, %v4743
        %v5960 = vpack.c.b16 %v4752, %v4744
        %v5961 = vpack.c.b16 %v4753, %v4745
        %v5962 = vpack.c.b16 %v4754, %v4746
        %v5963 = vpack.c.b16 %v4755, %v4747
        %v5964 = vpack.c.b16 %v4756, %v4748
        %v5965 = vpack.c.b16 %v4757, %v4749
        %v5966 = vpack.c.b16 %v4758, %v4750
        %v5967 = vpack.c.b16 %v4767, %v4759
        %v5968 = vpack.c.b16 %v4768, %v4760
        %v5969 = vpack.c.b16 %v4769, %v4761
        %v5970 = vpack.c.b16 %v4770, %v4762
        %v5971 = vpack.c.b16 %v4771, %v4763
        %v5972 = vpack.c.b16 %v4772, %v4764
        %v5973 = vpack.c.b16 %v4773, %v4765
        %v5974 = vpack.c.b16 %v4774, %v4766
        %v5975 = vpack.c.b16 %v4783, %v4775
        %v5976 = vpack.c.b16 %v4784, %v4776
        %v5977 = vpack.c.b16 %v4785, %v4777
        %v5978 = vpack.c.b16 %v4786, %v4778
        %v5979 = vpack.c.b16 %v4787, %v4779
        %v5980 = vpack.c.b16 %v4788, %v4780
        %v5981 = vpack.c.b16 %v4789, %v4781
        %v5982 = vpack.c.b16 %v4790, %v4782
        %v5983 = vpack.c.b16 %v4799, %v4791
        %v5984 = vpack.c.b16 %v4800, %v4792
        %v5985 = vpack.c.b16 %v4801, %v4793
        %v5986 = vpack.c.b16 %v4802, %v4794
        %v5987 = vpack.c.b16 %v4803, %v4795
        %v5988 = vpack.c.b16 %v4804, %v4796
        %v5989 = vpack.c.b16 %v4805, %v4797
        %v5990 = vpack.c.b16 %v4806, %v4798
        %v5991 = vpack.c.b16 %v4815, %v4807
        %v5992 = vpack.c.b16 %v4816, %v4808
        %v5993 = vpack.c.b16 %v4817, %v4809
        %v5994 = vpack.c.b16 %v4818, %v4810
        %v5995 = vpack.c.b16 %v4819, %v4811
        %v5996 = vpack.c.b16 %v4820, %v4812
        %v5997 = vpack.c.b16 %v4821, %v4813
        %v5998 = vpack.c.b16 %v4822, %v4814
        %v5999 = vpack.c.b16 %v4831, %v4823
        %v6000 = vpack.c.b16 %v4832, %v4824
        %v6001 = vpack.c.b16 %v4833, %v4825
        %v6002 = vpack.c.b16 %v4834, %v4826
        %v6003 = vpack.c.b16 %v4835, %v4827
        %v6004 = vpack.c.b16 %v4836, %v4828
        %v6005 = vpack.c.b16 %v4837, %v4829
        %v6006 = vpack.c.b16 %v4838, %v4830
        %v6007 = vpack.c.b16 %v4847, %v4839
        %v6008 = vpack.c.b16 %v4848, %v4840
        %v6009 = vpack.c.b16 %v4849, %v4841
        %v6010 = vpack.c.b16 %v4850, %v4842
        %v6011 = vpack.c.b16 %v4851, %v4843
        %v6012 = vpack.c.b16 %v4852, %v4844
        %v6013 = vpack.c.b16 %v4853, %v4845
        %v6014 = vpack.c.b16 %v4854, %v4846
        %v6015 = vpack.c.b16 %v4863, %v4855
        %v6016 = vpack.c.b16 %v4864, %v4856
        %v6017 = vpack.c.b16 %v4865, %v4857
        %v6018 = vpack.c.b16 %v4866, %v4858
        %v6019 = vpack.c.b16 %v4867, %v4859
        %v6020 = vpack.c.b16 %v4868, %v4860
        %v6021 = vpack.c.b16 %v4869, %v4861
        %v6022 = vpack.c.b16 %v4870, %v4862
        %v6023 = vpack.c.b16 %v4879, %v4871
        %v6024 = vpack.c.b16 %v4880, %v4872
        %v6025 = vpack.c.b16 %v4881, %v4873
        %v6026 = vpack.c.b16 %v4882, %v4874
        %v6027 = vpack.c.b16 %v4883, %v4875
        %v6028 = vpack.c.b16 %v4884, %v4876
        %v6029 = vpack.c.b16 %v4885, %v4877
        %v6030 = vpack.c.b16 %v4886, %v4878
        %v6031 = vpack.c.b16 %v4895, %v4887
        %v6032 = vpack.c.b16 %v4896, %v4888
        %v6033 = vpack.c.b16 %v4897, %v4889
        %v6034 = vpack.c.b16 %v4898, %v4890
        %v6035 = vpack.c.b16 %v4899, %v4891
        %v6036 = vpack.c.b16 %v4900, %v4892
        %v6037 = vpack.c.b16 %v4901, %v4893
        %v6038 = vpack.c.b16 %v4902, %v4894
        %v6039 = vpack.c.b16 %v4911, %v4903
        %v6040 = vpack.c.b16 %v4912, %v4904
        %v6041 = vpack.c.b16 %v4913, %v4905
        %v6042 = vpack.c.b16 %v4914, %v4906
        %v6043 = vpack.c.b16 %v4915, %v4907
        %v6044 = vpack.c.b16 %v4916, %v4908
        %v6045 = vpack.c.b16 %v4917, %v4909
        %v6046 = vpack.c.b16 %v4918, %v4910
        %v6047 = vpack.c.b16 %v4927, %v4919
        %v6048 = vpack.c.b16 %v4928, %v4920
        %v6049 = vpack.c.b16 %v4929, %v4921
        %v6050 = vpack.c.b16 %v4930, %v4922
        %v6051 = vpack.c.b16 %v4931, %v4923
        %v6052 = vpack.c.b16 %v4932, %v4924
        %v6053 = vpack.c.b16 %v4933, %v4925
        %v6054 = vpack.c.b16 %v4934, %v4926
        %v6055 = vpack.c.b16 %v4943, %v4935
        %v6056 = vpack.c.b16 %v4944, %v4936
        %v6057 = vpack.c.b16 %v4945, %v4937
        %v6058 = vpack.c.b16 %v4946, %v4938
        %v6059 = vpack.c.b16 %v4947, %v4939
        %v6060 = vpack.c.b16 %v4948, %v4940
        %v6061 = vpack.c.b16 %v4949, %v4941
        %v6062 = vpack.c.b16 %v4950, %v4942
        %v6063 = vpack.c.b16 %v4959, %v4951
        %v6064 = vpack.c.b16 %v4960, %v4952
        %v6065 = vpack.c.b16 %v4961, %v4953
        %v6066 = vpack.c.b16 %v4962, %v4954
        %v6067 = vpack.c.b16 %v4963, %v4955
        %v6068 = vpack.c.b16 %v4964, %v4956
        %v6069 = vpack.c.b16 %v4965, %v4957
        %v6070 = vpack.c.b16 %v4966, %v4958
        %v6071 = vpack.c.b16 %v4975, %v4967
        %v6072 = vpack.c.b16 %v4976, %v4968
        %v6073 = vpack.c.b16 %v4977, %v4969
        %v6074 = vpack.c.b16 %v4978, %v4970
        %v6075 = vpack.c.b16 %v4979, %v4971
        %v6076 = vpack.c.b16 %v4980, %v4972
        %v6077 = vpack.c.b16 %v4981, %v4973
        %v6078 = vpack.c.b16 %v4982, %v4974
        %v6079 = vpack.c.b16 %v4991, %v4983
        %v6080 = vpack.c.b16 %v4992, %v4984
        %v6081 = vpack.c.b16 %v4993, %v4985
        %v6082 = vpack.c.b16 %v4994, %v4986
        %v6083 = vpack.c.b16 %v4995, %v4987
        %v6084 = vpack.c.b16 %v4996, %v4988
        %v6085 = vpack.c.b16 %v4997, %v4989
        %v6086 = vpack.c.b16 %v4998, %v4990
        %v6087 = vpack.c.b16 %v5007, %v4999
        %v6088 = vpack.c.b16 %v5008, %v5000
        %v6089 = vpack.c.b16 %v5009, %v5001
        %v6090 = vpack.c.b16 %v5010, %v5002
        %v6091 = vpack.c.b16 %v5011, %v5003
        %v6092 = vpack.c.b16 %v5012, %v5004
        %v6093 = vpack.c.b16 %v5013, %v5005
        %v6094 = vpack.c.b16 %v5014, %v5006
        %v6095 = vpack.c.b16 %v5023, %v5015
        %v6096 = vpack.c.b16 %v5024, %v5016
        %v6097 = vpack.c.b16 %v5025, %v5017
        %v6098 = vpack.c.b16 %v5026, %v5018
        %v6099 = vpack.c.b16 %v5027, %v5019
        %v6100 = vpack.c.b16 %v5028, %v5020
        %v6101 = vpack.c.b16 %v5029, %v5021
        %v6102 = vpack.c.b16 %v5030, %v5022
        %v6103 = vpack.c.b16 %v5039, %v5031
        %v6104 = vpack.c.b16 %v5040, %v5032
        %v6105 = vpack.c.b16 %v5041, %v5033
        %v6106 = vpack.c.b16 %v5042, %v5034
        %v6107 = vpack.c.b16 %v5043, %v5035
        %v6108 = vpack.c.b16 %v5044, %v5036
        %v6109 = vpack.c.b16 %v5045, %v5037
        %v6110 = vpack.c.b16 %v5046, %v5038
        %v6111 = vpack.c.b16 %v5055, %v5047
        %v6112 = vpack.c.b16 %v5056, %v5048
        %v6113 = vpack.c.b16 %v5057, %v5049
        %v6114 = vpack.c.b16 %v5058, %v5050
        %v6115 = vpack.c.b16 %v5059, %v5051
        %v6116 = vpack.c.b16 %v5060, %v5052
        %v6117 = vpack.c.b16 %v5061, %v5053
        %v6118 = vpack.c.b16 %v5062, %v5054
        %v6119 = vpack.c.b16 %v5071, %v5063
        %v6120 = vpack.c.b16 %v5072, %v5064
        %v6121 = vpack.c.b16 %v5073, %v5065
        %v6122 = vpack.c.b16 %v5074, %v5066
        %v6123 = vpack.c.b16 %v5075, %v5067
        %v6124 = vpack.c.b16 %v5076, %v5068
        %v6125 = vpack.c.b16 %v5077, %v5069
        %v6126 = vpack.c.b16 %v5078, %v5070
        %v6127 = vpack.c.b16 %v5087, %v5079
        %v6128 = vpack.c.b16 %v5088, %v5080
        %v6129 = vpack.c.b16 %v5089, %v5081
        %v6130 = vpack.c.b16 %v5090, %v5082
        %v6131 = vpack.c.b16 %v5091, %v5083
        %v6132 = vpack.c.b16 %v5092, %v5084
        %v6133 = vpack.c.b16 %v5093, %v5085
        %v6134 = vpack.c.b16 %v5094, %v5086
        %v6135 = vpack.c.b16 %v5103, %v5095
        %v6136 = vpack.c.b16 %v5104, %v5096
        %v6137 = vpack.c.b16 %v5105, %v5097
        %v6138 = vpack.c.b16 %v5106, %v5098
        %v6139 = vpack.c.b16 %v5107, %v5099
        %v6140 = vpack.c.b16 %v5108, %v5100
        %v6141 = vpack.c.b16 %v5109, %v5101
        %v6142 = vpack.c.b16 %v5110, %v5102
        %v6143 = vpack.c.b16 %v5119, %v5111
        %v6144 = vpack.c.b16 %v5120, %v5112
        %v6145 = vpack.c.b16 %v5121, %v5113
        %v6146 = vpack.c.b16 %v5122, %v5114
        %v6147 = vpack.c.b16 %v5123, %v5115
        %v6148 = vpack.c.b16 %v5124, %v5116
        %v6149 = vpack.c.b16 %v5125, %v5117
        %v6150 = vpack.c.b16 %v5126, %v5118
        %7175 = vmatprep.subr.bf16.mxu0 %v5128
        %7176 = vmatpush1.bf16.msra.mxu0 %v5127
        %7177 = vmatprep.subr.bf16.mxu0 %v5136
        %7178 = vmatpush1.bf16.msra.mxu0 %v5135
        %7179 = vmatprep.subr.bf16.mxu0 %v5144
        %7180 = vmatpush1.bf16.msra.mxu0 %v5143
        %7181 = vmatprep.subr.bf16.mxu0 %v5152
        %7182 = vmatpush1.bf16.msra.mxu0 %v5151
        %7183 = vmatprep.subr.bf16.mxu0 %v5160
        %7184 = vmatpush1.bf16.msra.mxu0 %v5159
        %7185 = vmatprep.subr.bf16.mxu0 %v5168
        %7186 = vmatpush1.bf16.msra.mxu0 %v5167
        %7187 = vmatprep.subr.bf16.mxu0 %v5176
        %7188 = vmatpush1.bf16.msra.mxu0 %v5175
        %7189 = vmatprep.subr.bf16.mxu0 %v5184
        %7190 = vmatpush1.bf16.msra.mxu0 %v5183
        %7191 = vmatprep.subr.bf16.mxu0 %v5192
        %7192 = vmatpush1.bf16.msra.mxu0 %v5191
        %7193 = vmatprep.subr.bf16.mxu0 %v5200
        %7194 = vmatpush1.bf16.msra.mxu0 %v5199
        %7195 = vmatprep.subr.bf16.mxu0 %v5208
        %7196 = vmatpush1.bf16.msra.mxu0 %v5207
        %7197 = vmatprep.subr.bf16.mxu0 %v5216
        %7198 = vmatpush1.bf16.msra.mxu0 %v5215
        %7199 = vmatprep.subr.bf16.mxu0 %v5224
        %7200 = vmatpush1.bf16.msra.mxu0 %v5223
        %7201 = vmatprep.subr.bf16.mxu0 %v5232
        %7202 = vmatpush1.bf16.msra.mxu0 %v5231
        %7203 = vmatprep.subr.bf16.mxu0 %v5240
        %7204 = vmatpush1.bf16.msra.mxu0 %v5239
        %7205 = vmatprep.subr.bf16.mxu0 %v5248
        %7206 = vmatpush1.bf16.msra.mxu0 %v5247
        %7207 = vmatprep.mubr.bf16.mxu0 %v974
        %7208 = vmatmul.mubr.bf16.gmra.mrb[0].mxu0 %v973
        %v7209 = vpop.f32.mrb[0].mxu0
        %v7210 = vadd.f32 %v2018, %v7209
        %v7211 = vpop.f32.mrb[0].mxu0
        %v7212 = vadd.f32 %v2022, %v7211
        %v7213 = vpop.f32.mrb[0].mxu0
        %v7214 = vpop.f32.mrb[0].mxu0
        %7215 = vdwg.mxu0
        %7216 = vmatprep.subr.bf16.mxu0 %v5256
        %7217 = vmatpush1.bf16.msra.mxu0 %v5255
        %7218 = vmatprep.subr.bf16.mxu0 %v5264
        %7219 = vmatpush1.bf16.msra.mxu0 %v5263
        %7220 = vmatprep.subr.bf16.mxu0 %v5272
        %7221 = vmatpush1.bf16.msra.mxu0 %v5271
        %7222 = vmatprep.subr.bf16.mxu0 %v5280
        %7223 = vmatpush1.bf16.msra.mxu0 %v5279
        %7224 = vmatprep.subr.bf16.mxu0 %v5288
        %7225 = vmatpush1.bf16.msra.mxu0 %v5287
        %7226 = vmatprep.subr.bf16.mxu0 %v5296
        %7227 = vmatpush1.bf16.msra.mxu0 %v5295
        %7228 = vmatprep.subr.bf16.mxu0 %v5304
        %7229 = vmatpush1.bf16.msra.mxu0 %v5303
        %7230 = vmatprep.subr.bf16.mxu0 %v5312
        %7231 = vmatpush1.bf16.msra.mxu0 %v5311
        %7232 = vmatprep.subr.bf16.mxu0 %v5320
        %7233 = vmatpush1.bf16.msra.mxu0 %v5319
        %7234 = vmatprep.subr.bf16.mxu0 %v5328
        %7235 = vmatpush1.bf16.msra.mxu0 %v5327
        %7236 = vmatprep.subr.bf16.mxu0 %v5336
        %7237 = vmatpush1.bf16.msra.mxu0 %v5335
        %7238 = vmatprep.subr.bf16.mxu0 %v5344
        %7239 = vmatpush1.bf16.msra.mxu0 %v5343
        %7240 = vmatprep.subr.bf16.mxu0 %v5352
        %7241 = vmatpush1.bf16.msra.mxu0 %v5351
        %7242 = vmatprep.subr.bf16.mxu0 %v5360
        %7243 = vmatpush1.bf16.msra.mxu0 %v5359
        %7244 = vmatprep.subr.bf16.mxu0 %v5368
        %7245 = vmatpush1.bf16.msra.mxu0 %v5367
        %7246 = vmatprep.subr.bf16.mxu0 %v5376
        %7247 = vmatpush1.bf16.msra.mxu0 %v5375
        %7248 = vmatprep.mubr.bf16.mxu0 %v976
        %7249 = vmatmul.mubr.bf16.gmra.mrb[0].mxu0 %v975
        %v7250 = vpop.f32.mrb[0].mxu0
        %v7251 = vadd.f32 %v7210, %v7250
        %v7252 = vpop.f32.mrb[0].mxu0
        %v7253 = vadd.f32 %v7212, %v7252
        %v7254 = vpop.f32.mrb[0].mxu0
        %v7255 = vpop.f32.mrb[0].mxu0
        %7256 = vdwg.mxu0
        %7257 = vmatprep.subr.bf16.mxu0 %v5384
        %7258 = vmatpush1.bf16.msra.mxu0 %v5383
        %7259 = vmatprep.subr.bf16.mxu0 %v5392
        %7260 = vmatpush1.bf16.msra.mxu0 %v5391
        %7261 = vmatprep.subr.bf16.mxu0 %v5400
        %7262 = vmatpush1.bf16.msra.mxu0 %v5399
        %7263 = vmatprep.subr.bf16.mxu0 %v5408
        %7264 = vmatpush1.bf16.msra.mxu0 %v5407
        %7265 = vmatprep.subr.bf16.mxu0 %v5416
        %7266 = vmatpush1.bf16.msra.mxu0 %v5415
        %7267 = vmatprep.subr.bf16.mxu0 %v5424
        %7268 = vmatpush1.bf16.msra.mxu0 %v5423
        %7269 = vmatprep.subr.bf16.mxu0 %v5432
        %7270 = vmatpush1.bf16.msra.mxu0 %v5431
        %7271 = vmatprep.subr.bf16.mxu0 %v5440
        %7272 = vmatpush1.bf16.msra.mxu0 %v5439
        %7273 = vmatprep.subr.bf16.mxu0 %v5448
        %7274 = vmatpush1.bf16.msra.mxu0 %v5447
        %7275 = vmatprep.subr.bf16.mxu0 %v5456
        %7276 = vmatpush1.bf16.msra.mxu0 %v5455
        %7277 = vmatprep.subr.bf16.mxu0 %v5464
        %7278 = vmatpush1.bf16.msra.mxu0 %v5463
        %7279 = vmatprep.subr.bf16.mxu0 %v5472
        %7280 = vmatpush1.bf16.msra.mxu0 %v5471
        %7281 = vmatprep.subr.bf16.mxu0 %v5480
        %7282 = vmatpush1.bf16.msra.mxu0 %v5479
        %7283 = vmatprep.subr.bf16.mxu0 %v5488
        %7284 = vmatpush1.bf16.msra.mxu0 %v5487
        %7285 = vmatprep.subr.bf16.mxu0 %v5496
        %7286 = vmatpush1.bf16.msra.mxu0 %v5495
        %7287 = vmatprep.subr.bf16.mxu0 %v5504
        %7288 = vmatpush1.bf16.msra.mxu0 %v5503
        %7289 = vmatprep.mubr.bf16.mxu0 %v978
        %7290 = vmatmul.mubr.bf16.gmra.mrb[0].mxu0 %v977
        %v7291 = vpop.f32.mrb[0].mxu0
        %v7292 = vadd.f32 %v7251, %v7291
        %v7293 = vpop.f32.mrb[0].mxu0
        %v7294 = vadd.f32 %v7253, %v7293
        %v7295 = vpop.f32.mrb[0].mxu0
        %v7296 = vpop.f32.mrb[0].mxu0
        %7297 = vdwg.mxu0
        %7298 = vmatprep.subr.bf16.mxu0 %v5512
        %7299 = vmatpush1.bf16.msra.mxu0 %v5511
        %7300 = vmatprep.subr.bf16.mxu0 %v5520
        %7301 = vmatpush1.bf16.msra.mxu0 %v5519
        %7302 = vmatprep.subr.bf16.mxu0 %v5528
        %7303 = vmatpush1.bf16.msra.mxu0 %v5527
        %7304 = vmatprep.subr.bf16.mxu0 %v5536
        %7305 = vmatpush1.bf16.msra.mxu0 %v5535
        %7306 = vmatprep.subr.bf16.mxu0 %v5544
        %7307 = vmatpush1.bf16.msra.mxu0 %v5543
        %7308 = vmatprep.subr.bf16.mxu0 %v5552
        %7309 = vmatpush1.bf16.msra.mxu0 %v5551
        %7310 = vmatprep.subr.bf16.mxu0 %v5560
        %7311 = vmatpush1.bf16.msra.mxu0 %v5559
        %7312 = vmatprep.subr.bf16.mxu0 %v5568
        %7313 = vmatpush1.bf16.msra.mxu0 %v5567
        %7314 = vmatprep.subr.bf16.mxu0 %v5576
        %7315 = vmatpush1.bf16.msra.mxu0 %v5575
        %7316 = vmatprep.subr.bf16.mxu0 %v5584
        %7317 = vmatpush1.bf16.msra.mxu0 %v5583
        %7318 = vmatprep.subr.bf16.mxu0 %v5592
        %7319 = vmatpush1.bf16.msra.mxu0 %v5591
        %7320 = vmatprep.subr.bf16.mxu0 %v5600
        %7321 = vmatpush1.bf16.msra.mxu0 %v5599
        %7322 = vmatprep.subr.bf16.mxu0 %v5608
        %7323 = vmatpush1.bf16.msra.mxu0 %v5607
        %7324 = vmatprep.subr.bf16.mxu0 %v5616
        %7325 = vmatpush1.bf16.msra.mxu0 %v5615
        %7326 = vmatprep.subr.bf16.mxu0 %v5624
        %7327 = vmatpush1.bf16.msra.mxu0 %v5623
        %7328 = vmatprep.subr.bf16.mxu0 %v5632
        %7329 = vmatpush1.bf16.msra.mxu0 %v5631
        %7330 = vmatprep.mubr.bf16.mxu0 %v980
        %7331 = vmatmul.mubr.bf16.gmra.mrb[0].mxu0 %v979
        %v7332 = vpop.f32.mrb[0].mxu0
        %v7333 = vadd.f32 %v7292, %v7332
        %v7334 = vpop.f32.mrb[0].mxu0
        %v7335 = vadd.f32 %v7294, %v7334
        %v7336 = vpop.f32.mrb[0].mxu0
        %v7337 = vpop.f32.mrb[0].mxu0
        %7338 = vdwg.mxu0
        %7339 = vmatprep.subr.bf16.mxu0 %v5640
        %7340 = vmatpush1.bf16.msra.mxu0 %v5639
        %7341 = vmatprep.subr.bf16.mxu0 %v5648
        %7342 = vmatpush1.bf16.msra.mxu0 %v5647
        %7343 = vmatprep.subr.bf16.mxu0 %v5656
        %7344 = vmatpush1.bf16.msra.mxu0 %v5655
        %7345 = vmatprep.subr.bf16.mxu0 %v5664
        %7346 = vmatpush1.bf16.msra.mxu0 %v5663
        %7347 = vmatprep.subr.bf16.mxu0 %v5672
        %7348 = vmatpush1.bf16.msra.mxu0 %v5671
        %7349 = vmatprep.subr.bf16.mxu0 %v5680
        %7350 = vmatpush1.bf16.msra.mxu0 %v5679
        %7351 = vmatprep.subr.bf16.mxu0 %v5688
        %7352 = vmatpush1.bf16.msra.mxu0 %v5687
        %7353 = vmatprep.subr.bf16.mxu0 %v5696
        %7354 = vmatpush1.bf16.msra.mxu0 %v5695
        %7355 = vmatprep.subr.bf16.mxu0 %v5704
        %7356 = vmatpush1.bf16.msra.mxu0 %v5703
        %7357 = vmatprep.subr.bf16.mxu0 %v5712
        %7358 = vmatpush1.bf16.msra.mxu0 %v5711
        %7359 = vmatprep.subr.bf16.mxu0 %v5720
        %7360 = vmatpush1.bf16.msra.mxu0 %v5719
        %7361 = vmatprep.subr.bf16.mxu0 %v5728
        %7362 = vmatpush1.bf16.msra.mxu0 %v5727
        %7363 = vmatprep.subr.bf16.mxu0 %v5736
        %7364 = vmatpush1.bf16.msra.mxu0 %v5735
        %7365 = vmatprep.subr.bf16.mxu0 %v5744
        %7366 = vmatpush1.bf16.msra.mxu0 %v5743
        %7367 = vmatprep.subr.bf16.mxu0 %v5752
        %7368 = vmatpush1.bf16.msra.mxu0 %v5751
        %7369 = vmatprep.subr.bf16.mxu0 %v5760
        %7370 = vmatpush1.bf16.msra.mxu0 %v5759
        %7371 = vmatprep.mubr.bf16.mxu0 %v982
        %7372 = vmatmul.mubr.bf16.gmra.mrb[0].mxu0 %v981
        %v7373 = vpop.f32.mrb[0].mxu0
        %v7374 = vadd.f32 %v7333, %v7373
        %v7375 = vpop.f32.mrb[0].mxu0
        %v7376 = vadd.f32 %v7335, %v7375
        %v7377 = vpop.f32.mrb[0].mxu0
        %v7378 = vpop.f32.mrb[0].mxu0
        %7379 = vdwg.mxu0
        %7380 = vmatprep.subr.bf16.mxu0 %v5768
        %7381 = vmatpush1.bf16.msra.mxu0 %v5767
        %7382 = vmatprep.subr.bf16.mxu0 %v5776
        %7383 = vmatpush1.bf16.msra.mxu0 %v5775
        %7384 = vmatprep.subr.bf16.mxu0 %v5784
        %7385 = vmatpush1.bf16.msra.mxu0 %v5783
        %7386 = vmatprep.subr.bf16.mxu0 %v5792
        %7387 = vmatpush1.bf16.msra.mxu0 %v5791
        %7388 = vmatprep.subr.bf16.mxu0 %v5800
        %7389 = vmatpush1.bf16.msra.mxu0 %v5799
        %7390 = vmatprep.subr.bf16.mxu0 %v5808
        %7391 = vmatpush1.bf16.msra.mxu0 %v5807
        %7392 = vmatprep.subr.bf16.mxu0 %v5816
        %7393 = vmatpush1.bf16.msra.mxu0 %v5815
        %7394 = vmatprep.subr.bf16.mxu0 %v5824
        %7395 = vmatpush1.bf16.msra.mxu0 %v5823
        %7396 = vmatprep.subr.bf16.mxu0 %v5832
        %7397 = vmatpush1.bf16.msra.mxu0 %v5831
        %7398 = vmatprep.subr.bf16.mxu0 %v5840
        %7399 = vmatpush1.bf16.msra.mxu0 %v5839
        %7400 = vmatprep.subr.bf16.mxu0 %v5848
        %7401 = vmatpush1.bf16.msra.mxu0 %v5847
        %7402 = vmatprep.subr.bf16.mxu0 %v5856
        %7403 = vmatpush1.bf16.msra.mxu0 %v5855
        %7404 = vmatprep.subr.bf16.mxu0 %v5864
        %7405 = vmatpush1.bf16.msra.mxu0 %v5863
        %7406 = vmatprep.subr.bf16.mxu0 %v5872
        %7407 = vmatpush1.bf16.msra.mxu0 %v5871
        %7408 = vmatprep.subr.bf16.mxu0 %v5880
        %7409 = vmatpush1.bf16.msra.mxu0 %v5879
        %7410 = vmatprep.subr.bf16.mxu0 %v5888
        %7411 = vmatpush1.bf16.msra.mxu0 %v5887
        %7412 = vmatprep.mubr.bf16.mxu0 %v984
        %7413 = vmatmul.mubr.bf16.gmra.mrb[0].mxu0 %v983
        %v7414 = vpop.f32.mrb[0].mxu0
        %v7415 = vadd.f32 %v7374, %v7414
        %v7416 = vpop.f32.mrb[0].mxu0
        %v7417 = vadd.f32 %v7376, %v7416
        %v7418 = vpop.f32.mrb[0].mxu0
        %v7419 = vpop.f32.mrb[0].mxu0
        %7420 = vdwg.mxu0
        %7421 = vmatprep.subr.bf16.mxu0 %v5896
        %7422 = vmatpush1.bf16.msra.mxu0 %v5895
        %7423 = vmatprep.subr.bf16.mxu0 %v5904
        %7424 = vmatpush1.bf16.msra.mxu0 %v5903
        %7425 = vmatprep.subr.bf16.mxu0 %v5912
        %7426 = vmatpush1.bf16.msra.mxu0 %v5911
        %7427 = vmatprep.subr.bf16.mxu0 %v5920
        %7428 = vmatpush1.bf16.msra.mxu0 %v5919
        %7429 = vmatprep.subr.bf16.mxu0 %v5928
        %7430 = vmatpush1.bf16.msra.mxu0 %v5927
        %7431 = vmatprep.subr.bf16.mxu0 %v5936
        %7432 = vmatpush1.bf16.msra.mxu0 %v5935
        %7433 = vmatprep.subr.bf16.mxu0 %v5944
        %7434 = vmatpush1.bf16.msra.mxu0 %v5943
        %7435 = vmatprep.subr.bf16.mxu0 %v5952
        %7436 = vmatpush1.bf16.msra.mxu0 %v5951
        %7437 = vmatprep.subr.bf16.mxu0 %v5960
        %7438 = vmatpush1.bf16.msra.mxu0 %v5959
        %7439 = vmatprep.subr.bf16.mxu0 %v5968
        %7440 = vmatpush1.bf16.msra.mxu0 %v5967
        %7441 = vmatprep.subr.bf16.mxu0 %v5976
        %7442 = vmatpush1.bf16.msra.mxu0 %v5975
        %7443 = vmatprep.subr.bf16.mxu0 %v5984
        %7444 = vmatpush1.bf16.msra.mxu0 %v5983
        %7445 = vmatprep.subr.bf16.mxu0 %v5992
        %7446 = vmatpush1.bf16.msra.mxu0 %v5991
        %7447 = vmatprep.subr.bf16.mxu0 %v6000
        %7448 = vmatpush1.bf16.msra.mxu0 %v5999
        %7449 = vmatprep.subr.bf16.mxu0 %v6008
        %7450 = vmatpush1.bf16.msra.mxu0 %v6007
        %7451 = vmatprep.subr.bf16.mxu0 %v6016
        %7452 = vmatpush1.bf16.msra.mxu0 %v6015
        %7453 = vmatprep.mubr.bf16.mxu0 %v986
        %7454 = vmatmul.mubr.bf16.gmra.mrb[0].mxu0 %v985
        %v7455 = vpop.f32.mrb[0].mxu0
        %v7456 = vadd.f32 %v7415, %v7455
        %v7457 = vpop.f32.mrb[0].mxu0
        %v7458 = vadd.f32 %v7417, %v7457
        %v7459 = vpop.f32.mrb[0].mxu0
        %v7460 = vpop.f32.mrb[0].mxu0
        %7461 = vdwg.mxu0
        %7462 = vmatprep.subr.bf16.mxu0 %v6024
        %7463 = vmatpush1.bf16.msra.mxu0 %v6023
        %7464 = vmatprep.subr.bf16.mxu0 %v6032
        %7465 = vmatpush1.bf16.msra.mxu0 %v6031
        %7466 = vmatprep.subr.bf16.mxu0 %v6040
        %7467 = vmatpush1.bf16.msra.mxu0 %v6039
        %7468 = vmatprep.subr.bf16.mxu0 %v6048
        %7469 = vmatpush1.bf16.msra.mxu0 %v6047
        %7470 = vmatprep.subr.bf16.mxu0 %v6056
        %7471 = vmatpush1.bf16.msra.mxu0 %v6055
        %7472 = vmatprep.subr.bf16.mxu0 %v6064
        %7473 = vmatpush1.bf16.msra.mxu0 %v6063
        %7474 = vmatprep.subr.bf16.mxu0 %v6072
        %7475 = vmatpush1.bf16.msra.mxu0 %v6071
        %7476 = vmatprep.subr.bf16.mxu0 %v6080
        %7477 = vmatpush1.bf16.msra.mxu0 %v6079
        %7478 = vmatprep.subr.bf16.mxu0 %v6088
        %7479 = vmatpush1.bf16.msra.mxu0 %v6087
        %7480 = vmatprep.subr.bf16.mxu0 %v6096
        %7481 = vmatpush1.bf16.msra.mxu0 %v6095
        %7482 = vmatprep.subr.bf16.mxu0 %v6104
        %7483 = vmatpush1.bf16.msra.mxu0 %v6103
        %7484 = vmatprep.subr.bf16.mxu0 %v6112
        %7485 = vmatpush1.bf16.msra.mxu0 %v6111
        %7486 = vmatprep.subr.bf16.mxu0 %v6120
        %7487 = vmatpush1.bf16.msra.mxu0 %v6119
        %7488 = vmatprep.subr.bf16.mxu0 %v6128
        %7489 = vmatpush1.bf16.msra.mxu0 %v6127
        %7490 = vmatprep.subr.bf16.mxu0 %v6136
        %7491 = vmatpush1.bf16.msra.mxu0 %v6135
        %7492 = vmatprep.subr.bf16.mxu0 %v6144
        %7493 = vmatpush1.bf16.msra.mxu0 %v6143
        %7494 = vmatprep.mubr.bf16.mxu0 %v988
        %7495 = vmatmul.mubr.bf16.gmra.mrb[0].mxu0 %v987
        %v7496 = vpop.f32.mrb[0].mxu0
        %v7497 = vadd.f32 %v7456, %v7496
        %v7498 = vpop.f32.mrb[0].mxu0
        %v7499 = vadd.f32 %v7458, %v7498
        %v7500 = vpop.f32.mrb[0].mxu0
        %v7501 = vpop.f32.mrb[0].mxu0
        %7502 = vdwg.mxu0
        %7503 = vmatprep.subr.bf16.mxu0 %v5130
        %7504 = vmatpush1.bf16.msra.mxu0 %v5129
        %7505 = vmatprep.subr.bf16.mxu0 %v5138
        %7506 = vmatpush1.bf16.msra.mxu0 %v5137
        %7507 = vmatprep.subr.bf16.mxu0 %v5146
        %7508 = vmatpush1.bf16.msra.mxu0 %v5145
        %7509 = vmatprep.subr.bf16.mxu0 %v5154
        %7510 = vmatpush1.bf16.msra.mxu0 %v5153
        %7511 = vmatprep.subr.bf16.mxu0 %v5162
        %7512 = vmatpush1.bf16.msra.mxu0 %v5161
        %7513 = vmatprep.subr.bf16.mxu0 %v5170
        %7514 = vmatpush1.bf16.msra.mxu0 %v5169
        %7515 = vmatprep.subr.bf16.mxu0 %v5178
        %7516 = vmatpush1.bf16.msra.mxu0 %v5177
        %7517 = vmatprep.subr.bf16.mxu0 %v5186
        %7518 = vmatpush1.bf16.msra.mxu0 %v5185
        %7519 = vmatprep.subr.bf16.mxu0 %v5194
        %7520 = vmatpush1.bf16.msra.mxu0 %v5193
        %7521 = vmatprep.subr.bf16.mxu0 %v5202
        %7522 = vmatpush1.bf16.msra.mxu0 %v5201
        %7523 = vmatprep.subr.bf16.mxu0 %v5210
        %7524 = vmatpush1.bf16.msra.mxu0 %v5209
        %7525 = vmatprep.subr.bf16.mxu0 %v5218
        %7526 = vmatpush1.bf16.msra.mxu0 %v5217
        %7527 = vmatprep.subr.bf16.mxu0 %v5226
        %7528 = vmatpush1.bf16.msra.mxu0 %v5225
        %7529 = vmatprep.subr.bf16.mxu0 %v5234
        %7530 = vmatpush1.bf16.msra.mxu0 %v5233
        %7531 = vmatprep.subr.bf16.mxu0 %v5242
        %7532 = vmatpush1.bf16.msra.mxu0 %v5241
        %7533 = vmatprep.subr.bf16.mxu0 %v5250
        %7534 = vmatpush1.bf16.msra.mxu0 %v5249
        %7535 = vmatprep.mubr.bf16.mxu0 %v974
        %7536 = vmatmul.mubr.bf16.gmra.mrb[0].mxu0 %v973
        %v7537 = vpop.f32.mrb[0].mxu0
        %v7538 = vadd.f32 %v2026, %v7537
        %v7539 = vpop.f32.mrb[0].mxu0
        %v7540 = vadd.f32 %v2030, %v7539
        %v7541 = vpop.f32.mrb[0].mxu0
        %v7542 = vpop.f32.mrb[0].mxu0
        %7543 = vdwg.mxu0
        %7544 = vmatprep.subr.bf16.mxu0 %v5258
        %7545 = vmatpush1.bf16.msra.mxu0 %v5257
        %7546 = vmatprep.subr.bf16.mxu0 %v5266
        %7547 = vmatpush1.bf16.msra.mxu0 %v5265
        %7548 = vmatprep.subr.bf16.mxu0 %v5274
        %7549 = vmatpush1.bf16.msra.mxu0 %v5273
        %7550 = vmatprep.subr.bf16.mxu0 %v5282
        %7551 = vmatpush1.bf16.msra.mxu0 %v5281
        %7552 = vmatprep.subr.bf16.mxu0 %v5290
        %7553 = vmatpush1.bf16.msra.mxu0 %v5289
        %7554 = vmatprep.subr.bf16.mxu0 %v5298
        %7555 = vmatpush1.bf16.msra.mxu0 %v5297
        %7556 = vmatprep.subr.bf16.mxu0 %v5306
        %7557 = vmatpush1.bf16.msra.mxu0 %v5305
        %7558 = vmatprep.subr.bf16.mxu0 %v5314
        %7559 = vmatpush1.bf16.msra.mxu0 %v5313
        %7560 = vmatprep.subr.bf16.mxu0 %v5322
        %7561 = vmatpush1.bf16.msra.mxu0 %v5321
        %7562 = vmatprep.subr.bf16.mxu0 %v5330
        %7563 = vmatpush1.bf16.msra.mxu0 %v5329
        %7564 = vmatprep.subr.bf16.mxu0 %v5338
        %7565 = vmatpush1.bf16.msra.mxu0 %v5337
        %7566 = vmatprep.subr.bf16.mxu0 %v5346
        %7567 = vmatpush1.bf16.msra.mxu0 %v5345
        %7568 = vmatprep.subr.bf16.mxu0 %v5354
        %7569 = vmatpush1.bf16.msra.mxu0 %v5353
        %7570 = vmatprep.subr.bf16.mxu0 %v5362
        %7571 = vmatpush1.bf16.msra.mxu0 %v5361
        %7572 = vmatprep.subr.bf16.mxu0 %v5370
        %7573 = vmatpush1.bf16.msra.mxu0 %v5369
        %7574 = vmatprep.subr.bf16.mxu0 %v5378
        %7575 = vmatpush1.bf16.msra.mxu0 %v5377
        %7576 = vmatprep.mubr.bf16.mxu0 %v976
        %7577 = vmatmul.mubr.bf16.gmra.mrb[0].mxu0 %v975
        %v7578 = vpop.f32.mrb[0].mxu0
        %v7579 = vadd.f32 %v7538, %v7578
        %v7580 = vpop.f32.mrb[0].mxu0
        %v7581 = vadd.f32 %v7540, %v7580
        %v7582 = vpop.f32.mrb[0].mxu0
        %v7583 = vpop.f32.mrb[0].mxu0
        %7584 = vdwg.mxu0
        %7585 = vmatprep.subr.bf16.mxu0 %v5386
        %7586 = vmatpush1.bf16.msra.mxu0 %v5385
        %7587 = vmatprep.subr.bf16.mxu0 %v5394
        %7588 = vmatpush1.bf16.msra.mxu0 %v5393
        %7589 = vmatprep.subr.bf16.mxu0 %v5402
        %7590 = vmatpush1.bf16.msra.mxu0 %v5401
        %7591 = vmatprep.subr.bf16.mxu0 %v5410
        %7592 = vmatpush1.bf16.msra.mxu0 %v5409
        %7593 = vmatprep.subr.bf16.mxu0 %v5418
        %7594 = vmatpush1.bf16.msra.mxu0 %v5417
        %7595 = vmatprep.subr.bf16.mxu0 %v5426
        %7596 = vmatpush1.bf16.msra.mxu0 %v5425
        %7597 = vmatprep.subr.bf16.mxu0 %v5434
        %7598 = vmatpush1.bf16.msra.mxu0 %v5433
        %7599 = vmatprep.subr.bf16.mxu0 %v5442
        %7600 = vmatpush1.bf16.msra.mxu0 %v5441
        %7601 = vmatprep.subr.bf16.mxu0 %v5450
        %7602 = vmatpush1.bf16.msra.mxu0 %v5449
        %7603 = vmatprep.subr.bf16.mxu0 %v5458
        %7604 = vmatpush1.bf16.msra.mxu0 %v5457
        %7605 = vmatprep.subr.bf16.mxu0 %v5466
        %7606 = vmatpush1.bf16.msra.mxu0 %v5465
        %7607 = vmatprep.subr.bf16.mxu0 %v5474
        %7608 = vmatpush1.bf16.msra.mxu0 %v5473
        %7609 = vmatprep.subr.bf16.mxu0 %v5482
        %7610 = vmatpush1.bf16.msra.mxu0 %v5481
        %7611 = vmatprep.subr.bf16.mxu0 %v5490
        %7612 = vmatpush1.bf16.msra.mxu0 %v5489
        %7613 = vmatprep.subr.bf16.mxu0 %v5498
        %7614 = vmatpush1.bf16.msra.mxu0 %v5497
        %7615 = vmatprep.subr.bf16.mxu0 %v5506
        %7616 = vmatpush1.bf16.msra.mxu0 %v5505
        %7617 = vmatprep.mubr.bf16.mxu0 %v978
        %7618 = vmatmul.mubr.bf16.gmra.mrb[0].mxu0 %v977
        %v7619 = vpop.f32.mrb[0].mxu0
        %v7620 = vadd.f32 %v7579, %v7619
        %v7621 = vpop.f32.mrb[0].mxu0
        %v7622 = vadd.f32 %v7581, %v7621
        %v7623 = vpop.f32.mrb[0].mxu0
        %v7624 = vpop.f32.mrb[0].mxu0
        %7625 = vdwg.mxu0
        %7626 = vmatprep.subr.bf16.mxu0 %v5514
        %7627 = vmatpush1.bf16.msra.mxu0 %v5513
        %7628 = vmatprep.subr.bf16.mxu0 %v5522
        %7629 = vmatpush1.bf16.msra.mxu0 %v5521
        %7630 = vmatprep.subr.bf16.mxu0 %v5530
        %7631 = vmatpush1.bf16.msra.mxu0 %v5529
        %7632 = vmatprep.subr.bf16.mxu0 %v5538
        %7633 = vmatpush1.bf16.msra.mxu0 %v5537
        %7634 = vmatprep.subr.bf16.mxu0 %v5546
        %7635 = vmatpush1.bf16.msra.mxu0 %v5545
        %7636 = vmatprep.subr.bf16.mxu0 %v5554
        %7637 = vmatpush1.bf16.msra.mxu0 %v5553
        %7638 = vmatprep.subr.bf16.mxu0 %v5562
        %7639 = vmatpush1.bf16.msra.mxu0 %v5561
        %7640 = vmatprep.subr.bf16.mxu0 %v5570
        %7641 = vmatpush1.bf16.msra.mxu0 %v5569
        %7642 = vmatprep.subr.bf16.mxu0 %v5578
        %7643 = vmatpush1.bf16.msra.mxu0 %v5577
        %7644 = vmatprep.subr.bf16.mxu0 %v5586
        %7645 = vmatpush1.bf16.msra.mxu0 %v5585
        %7646 = vmatprep.subr.bf16.mxu0 %v5594
        %7647 = vmatpush1.bf16.msra.mxu0 %v5593
        %7648 = vmatprep.subr.bf16.mxu0 %v5602
        %7649 = vmatpush1.bf16.msra.mxu0 %v5601
        %7650 = vmatprep.subr.bf16.mxu0 %v5610
        %7651 = vmatpush1.bf16.msra.mxu0 %v5609
        %7652 = vmatprep.subr.bf16.mxu0 %v5618
        %7653 = vmatpush1.bf16.msra.mxu0 %v5617
        %7654 = vmatprep.subr.bf16.mxu0 %v5626
        %7655 = vmatpush1.bf16.msra.mxu0 %v5625
        %7656 = vmatprep.subr.bf16.mxu0 %v5634
        %7657 = vmatpush1.bf16.msra.mxu0 %v5633
        %7658 = vmatprep.mubr.bf16.mxu0 %v980
        %7659 = vmatmul.mubr.bf16.gmra.mrb[0].mxu0 %v979
        %v7660 = vpop.f32.mrb[0].mxu0
        %v7661 = vadd.f32 %v7620, %v7660
        %v7662 = vpop.f32.mrb[0].mxu0
        %v7663 = vadd.f32 %v7622, %v7662
        %v7664 = vpop.f32.mrb[0].mxu0
        %v7665 = vpop.f32.mrb[0].mxu0
        %7666 = vdwg.mxu0
        %7667 = vmatprep.subr.bf16.mxu0 %v5642
        %7668 = vmatpush1.bf16.msra.mxu0 %v5641
        %7669 = vmatprep.subr.bf16.mxu0 %v5650
        %7670 = vmatpush1.bf16.msra.mxu0 %v5649
        %7671 = vmatprep.subr.bf16.mxu0 %v5658
        %7672 = vmatpush1.bf16.msra.mxu0 %v5657
        %7673 = vmatprep.subr.bf16.mxu0 %v5666
        %7674 = vmatpush1.bf16.msra.mxu0 %v5665
        %7675 = vmatprep.subr.bf16.mxu0 %v5674
        %7676 = vmatpush1.bf16.msra.mxu0 %v5673
        %7677 = vmatprep.subr.bf16.mxu0 %v5682
        %7678 = vmatpush1.bf16.msra.mxu0 %v5681
        %7679 = vmatprep.subr.bf16.mxu0 %v5690
        %7680 = vmatpush1.bf16.msra.mxu0 %v5689
        %7681 = vmatprep.subr.bf16.mxu0 %v5698
        %7682 = vmatpush1.bf16.msra.mxu0 %v5697
        %7683 = vmatprep.subr.bf16.mxu0 %v5706
        %7684 = vmatpush1.bf16.msra.mxu0 %v5705
        %7685 = vmatprep.subr.bf16.mxu0 %v5714
        %7686 = vmatpush1.bf16.msra.mxu0 %v5713
        %7687 = vmatprep.subr.bf16.mxu0 %v5722
        %7688 = vmatpush1.bf16.msra.mxu0 %v5721
        %7689 = vmatprep.subr.bf16.mxu0 %v5730
        %7690 = vmatpush1.bf16.msra.mxu0 %v5729
        %7691 = vmatprep.subr.bf16.mxu0 %v5738
        %7692 = vmatpush1.bf16.msra.mxu0 %v5737
        %7693 = vmatprep.subr.bf16.mxu0 %v5746
        %7694 = vmatpush1.bf16.msra.mxu0 %v5745
        %7695 = vmatprep.subr.bf16.mxu0 %v5754
        %7696 = vmatpush1.bf16.msra.mxu0 %v5753
        %7697 = vmatprep.subr.bf16.mxu0 %v5762
        %7698 = vmatpush1.bf16.msra.mxu0 %v5761
        %7699 = vmatprep.mubr.bf16.mxu0 %v982
        %7700 = vmatmul.mubr.bf16.gmra.mrb[0].mxu0 %v981
        %v7701 = vpop.f32.mrb[0].mxu0
        %v7702 = vadd.f32 %v7661, %v7701
        %v7703 = vpop.f32.mrb[0].mxu0
        %v7704 = vadd.f32 %v7663, %v7703
        %v7705 = vpop.f32.mrb[0].mxu0
        %v7706 = vpop.f32.mrb[0].mxu0
        %7707 = vdwg.mxu0
        %7708 = vmatprep.subr.bf16.mxu0 %v5770
        %7709 = vmatpush1.bf16.msra.mxu0 %v5769
        %7710 = vmatprep.subr.bf16.mxu0 %v5778
        %7711 = vmatpush1.bf16.msra.mxu0 %v5777
        %7712 = vmatprep.subr.bf16.mxu0 %v5786
        %7713 = vmatpush1.bf16.msra.mxu0 %v5785
        %7714 = vmatprep.subr.bf16.mxu0 %v5794
        %7715 = vmatpush1.bf16.msra.mxu0 %v5793
        %7716 = vmatprep.subr.bf16.mxu0 %v5802
        %7717 = vmatpush1.bf16.msra.mxu0 %v5801
        %7718 = vmatprep.subr.bf16.mxu0 %v5810
        %7719 = vmatpush1.bf16.msra.mxu0 %v5809
        %7720 = vmatprep.subr.bf16.mxu0 %v5818
        %7721 = vmatpush1.bf16.msra.mxu0 %v5817
        %7722 = vmatprep.subr.bf16.mxu0 %v5826
        %7723 = vmatpush1.bf16.msra.mxu0 %v5825
        %7724 = vmatprep.subr.bf16.mxu0 %v5834
        %7725 = vmatpush1.bf16.msra.mxu0 %v5833
        %7726 = vmatprep.subr.bf16.mxu0 %v5842
        %7727 = vmatpush1.bf16.msra.mxu0 %v5841
        %7728 = vmatprep.subr.bf16.mxu0 %v5850
        %7729 = vmatpush1.bf16.msra.mxu0 %v5849
        %7730 = vmatprep.subr.bf16.mxu0 %v5858
        %7731 = vmatpush1.bf16.msra.mxu0 %v5857
        %7732 = vmatprep.subr.bf16.mxu0 %v5866
        %7733 = vmatpush1.bf16.msra.mxu0 %v5865
        %7734 = vmatprep.subr.bf16.mxu0 %v5874
        %7735 = vmatpush1.bf16.msra.mxu0 %v5873
        %7736 = vmatprep.subr.bf16.mxu0 %v5882
        %7737 = vmatpush1.bf16.msra.mxu0 %v5881
        %7738 = vmatprep.subr.bf16.mxu0 %v5890
        %7739 = vmatpush1.bf16.msra.mxu0 %v5889
        %7740 = vmatprep.mubr.bf16.mxu0 %v984
        %7741 = vmatmul.mubr.bf16.gmra.mrb[0].mxu0 %v983
        %v7742 = vpop.f32.mrb[0].mxu0
        %v7743 = vadd.f32 %v7702, %v7742
        %v7744 = vpop.f32.mrb[0].mxu0
        %v7745 = vadd.f32 %v7704, %v7744
        %v7746 = vpop.f32.mrb[0].mxu0
        %v7747 = vpop.f32.mrb[0].mxu0
        %7748 = vdwg.mxu0
        %7749 = vmatprep.subr.bf16.mxu0 %v5898
        %7750 = vmatpush1.bf16.msra.mxu0 %v5897
        %7751 = vmatprep.subr.bf16.mxu0 %v5906
        %7752 = vmatpush1.bf16.msra.mxu0 %v5905
        %7753 = vmatprep.subr.bf16.mxu0 %v5914
        %7754 = vmatpush1.bf16.msra.mxu0 %v5913
        %7755 = vmatprep.subr.bf16.mxu0 %v5922
        %7756 = vmatpush1.bf16.msra.mxu0 %v5921
        %7757 = vmatprep.subr.bf16.mxu0 %v5930
        %7758 = vmatpush1.bf16.msra.mxu0 %v5929
        %7759 = vmatprep.subr.bf16.mxu0 %v5938
        %7760 = vmatpush1.bf16.msra.mxu0 %v5937
        %7761 = vmatprep.subr.bf16.mxu0 %v5946
        %7762 = vmatpush1.bf16.msra.mxu0 %v5945
        %7763 = vmatprep.subr.bf16.mxu0 %v5954
        %7764 = vmatpush1.bf16.msra.mxu0 %v5953
        %7765 = vmatprep.subr.bf16.mxu0 %v5962
        %7766 = vmatpush1.bf16.msra.mxu0 %v5961
        %7767 = vmatprep.subr.bf16.mxu0 %v5970
        %7768 = vmatpush1.bf16.msra.mxu0 %v5969
        %7769 = vmatprep.subr.bf16.mxu0 %v5978
        %7770 = vmatpush1.bf16.msra.mxu0 %v5977
        %7771 = vmatprep.subr.bf16.mxu0 %v5986
        %7772 = vmatpush1.bf16.msra.mxu0 %v5985
        %7773 = vmatprep.subr.bf16.mxu0 %v5994
        %7774 = vmatpush1.bf16.msra.mxu0 %v5993
        %7775 = vmatprep.subr.bf16.mxu0 %v6002
        %7776 = vmatpush1.bf16.msra.mxu0 %v6001
        %7777 = vmatprep.subr.bf16.mxu0 %v6010
        %7778 = vmatpush1.bf16.msra.mxu0 %v6009
        %7779 = vmatprep.subr.bf16.mxu0 %v6018
        %7780 = vmatpush1.bf16.msra.mxu0 %v6017
        %7781 = vmatprep.mubr.bf16.mxu0 %v986
        %7782 = vmatmul.mubr.bf16.gmra.mrb[0].mxu0 %v985
        %v7783 = vpop.f32.mrb[0].mxu0
        %v7784 = vadd.f32 %v7743, %v7783
        %v7785 = vpop.f32.mrb[0].mxu0
        %v7786 = vadd.f32 %v7745, %v7785
        %v7787 = vpop.f32.mrb[0].mxu0
        %v7788 = vpop.f32.mrb[0].mxu0
        %7789 = vdwg.mxu0
        %7790 = vmatprep.subr.bf16.mxu0 %v6026
        %7791 = vmatpush1.bf16.msra.mxu0 %v6025
        %7792 = vmatprep.subr.bf16.mxu0 %v6034
        %7793 = vmatpush1.bf16.msra.mxu0 %v6033
        %7794 = vmatprep.subr.bf16.mxu0 %v6042
        %7795 = vmatpush1.bf16.msra.mxu0 %v6041
        %7796 = vmatprep.subr.bf16.mxu0 %v6050
        %7797 = vmatpush1.bf16.msra.mxu0 %v6049
        %7798 = vmatprep.subr.bf16.mxu0 %v6058
        %7799 = vmatpush1.bf16.msra.mxu0 %v6057
        %7800 = vmatprep.subr.bf16.mxu0 %v6066
        %7801 = vmatpush1.bf16.msra.mxu0 %v6065
        %7802 = vmatprep.subr.bf16.mxu0 %v6074
        %7803 = vmatpush1.bf16.msra.mxu0 %v6073
        %7804 = vmatprep.subr.bf16.mxu0 %v6082
        %7805 = vmatpush1.bf16.msra.mxu0 %v6081
        %7806 = vmatprep.subr.bf16.mxu0 %v6090
        %7807 = vmatpush1.bf16.msra.mxu0 %v6089
        %7808 = vmatprep.subr.bf16.mxu0 %v6098
        %7809 = vmatpush1.bf16.msra.mxu0 %v6097
        %7810 = vmatprep.subr.bf16.mxu0 %v6106
        %7811 = vmatpush1.bf16.msra.mxu0 %v6105
        %7812 = vmatprep.subr.bf16.mxu0 %v6114
        %7813 = vmatpush1.bf16.msra.mxu0 %v6113
        %7814 = vmatprep.subr.bf16.mxu0 %v6122
        %7815 = vmatpush1.bf16.msra.mxu0 %v6121
        %7816 = vmatprep.subr.bf16.mxu0 %v6130
        %7817 = vmatpush1.bf16.msra.mxu0 %v6129
        %7818 = vmatprep.subr.bf16.mxu0 %v6138
        %7819 = vmatpush1.bf16.msra.mxu0 %v6137
        %7820 = vmatprep.subr.bf16.mxu0 %v6146
        %7821 = vmatpush1.bf16.msra.mxu0 %v6145
        %7822 = vmatprep.mubr.bf16.mxu0 %v988
        %7823 = vmatmul.mubr.bf16.gmra.mrb[0].mxu0 %v987
        %v7824 = vpop.f32.mrb[0].mxu0
        %v7825 = vadd.f32 %v7784, %v7824
        %v7826 = vpop.f32.mrb[0].mxu0
        %v7827 = vadd.f32 %v7786, %v7826
        %v7828 = vpop.f32.mrb[0].mxu0
        %v7829 = vpop.f32.mrb[0].mxu0
        %7830 = vdwg.mxu0
        %7831 = vmatprep.subr.bf16.mxu0 %v5132
        %7832 = vmatpush1.bf16.msra.mxu0 %v5131
        %7833 = vmatprep.subr.bf16.mxu0 %v5140
        %7834 = vmatpush1.bf16.msra.mxu0 %v5139
        %7835 = vmatprep.subr.bf16.mxu0 %v5148
        %7836 = vmatpush1.bf16.msra.mxu0 %v5147
        %7837 = vmatprep.subr.bf16.mxu0 %v5156
        %7838 = vmatpush1.bf16.msra.mxu0 %v5155
        %7839 = vmatprep.subr.bf16.mxu0 %v5164
        %7840 = vmatpush1.bf16.msra.mxu0 %v5163
        %7841 = vmatprep.subr.bf16.mxu0 %v5172
        %7842 = vmatpush1.bf16.msra.mxu0 %v5171
        %7843 = vmatprep.subr.bf16.mxu0 %v5180
        %7844 = vmatpush1.bf16.msra.mxu0 %v5179
        %7845 = vmatprep.subr.bf16.mxu0 %v5188
        %7846 = vmatpush1.bf16.msra.mxu0 %v5187
        %7847 = vmatprep.subr.bf16.mxu0 %v5196
        %7848 = vmatpush1.bf16.msra.mxu0 %v5195
        %7849 = vmatprep.subr.bf16.mxu0 %v5204
        %7850 = vmatpush1.bf16.msra.mxu0 %v5203
        %7851 = vmatprep.subr.bf16.mxu0 %v5212
        %7852 = vmatpush1.bf16.msra.mxu0 %v5211
        %7853 = vmatprep.subr.bf16.mxu0 %v5220
        %7854 = vmatpush1.bf16.msra.mxu0 %v5219
        %7855 = vmatprep.subr.bf16.mxu0 %v5228
        %7856 = vmatpush1.bf16.msra.mxu0 %v5227
        %7857 = vmatprep.subr.bf16.mxu0 %v5236
        %7858 = vmatpush1.bf16.msra.mxu0 %v5235
        %7859 = vmatprep.subr.bf16.mxu0 %v5244
        %7860 = vmatpush1.bf16.msra.mxu0 %v5243
        %7861 = vmatprep.subr.bf16.mxu0 %v5252
        %7862 = vmatpush1.bf16.msra.mxu0 %v5251
        %7863 = vmatprep.mubr.bf16.mxu0 %v974
        %7864 = vmatmul.mubr.bf16.gmra.mrb[0].mxu0 %v973
        %v7865 = vpop.f32.mrb[0].mxu0
        %v7866 = vadd.f32 %v2034, %v7865
        %v7867 = vpop.f32.mrb[0].mxu0
        %v7868 = vadd.f32 %v2038, %v7867
        %v7869 = vpop.f32.mrb[0].mxu0
        %v7870 = vpop.f32.mrb[0].mxu0
        %7871 = vdwg.mxu0
        %7872 = vmatprep.subr.bf16.mxu0 %v5260
        %7873 = vmatpush1.bf16.msra.mxu0 %v5259
        %7874 = vmatprep.subr.bf16.mxu0 %v5268
        %7875 = vmatpush1.bf16.msra.mxu0 %v5267
        %7876 = vmatprep.subr.bf16.mxu0 %v5276
        %7877 = vmatpush1.bf16.msra.mxu0 %v5275
        %7878 = vmatprep.subr.bf16.mxu0 %v5284
        %7879 = vmatpush1.bf16.msra.mxu0 %v5283
        %7880 = vmatprep.subr.bf16.mxu0 %v5292
        %7881 = vmatpush1.bf16.msra.mxu0 %v5291
        %7882 = vmatprep.subr.bf16.mxu0 %v5300
        %7883 = vmatpush1.bf16.msra.mxu0 %v5299
        %7884 = vmatprep.subr.bf16.mxu0 %v5308
        %7885 = vmatpush1.bf16.msra.mxu0 %v5307
        %7886 = vmatprep.subr.bf16.mxu0 %v5316
        %7887 = vmatpush1.bf16.msra.mxu0 %v5315
        %7888 = vmatprep.subr.bf16.mxu0 %v5324
        %7889 = vmatpush1.bf16.msra.mxu0 %v5323
        %7890 = vmatprep.subr.bf16.mxu0 %v5332
        %7891 = vmatpush1.bf16.msra.mxu0 %v5331
        %7892 = vmatprep.subr.bf16.mxu0 %v5340
        %7893 = vmatpush1.bf16.msra.mxu0 %v5339
        %7894 = vmatprep.subr.bf16.mxu0 %v5348
        %7895 = vmatpush1.bf16.msra.mxu0 %v5347
        %7896 = vmatprep.subr.bf16.mxu0 %v5356
        %7897 = vmatpush1.bf16.msra.mxu0 %v5355
        %7898 = vmatprep.subr.bf16.mxu0 %v5364
        %7899 = vmatpush1.bf16.msra.mxu0 %v5363
        %7900 = vmatprep.subr.bf16.mxu0 %v5372
        %7901 = vmatpush1.bf16.msra.mxu0 %v5371
        %7902 = vmatprep.subr.bf16.mxu0 %v5380
        %7903 = vmatpush1.bf16.msra.mxu0 %v5379
        %7904 = vmatprep.mubr.bf16.mxu0 %v976
        %7905 = vmatmul.mubr.bf16.gmra.mrb[0].mxu0 %v975
        %v7906 = vpop.f32.mrb[0].mxu0
        %v7907 = vadd.f32 %v7866, %v7906
        %v7908 = vpop.f32.mrb[0].mxu0
        %v7909 = vadd.f32 %v7868, %v7908
        %v7910 = vpop.f32.mrb[0].mxu0
        %v7911 = vpop.f32.mrb[0].mxu0
        %7912 = vdwg.mxu0
        %7913 = vmatprep.subr.bf16.mxu0 %v5388
        %7914 = vmatpush1.bf16.msra.mxu0 %v5387
        %7915 = vmatprep.subr.bf16.mxu0 %v5396
        %7916 = vmatpush1.bf16.msra.mxu0 %v5395
        %7917 = vmatprep.subr.bf16.mxu0 %v5404
        %7918 = vmatpush1.bf16.msra.mxu0 %v5403
        %7919 = vmatprep.subr.bf16.mxu0 %v5412
        %7920 = vmatpush1.bf16.msra.mxu0 %v5411
        %7921 = vmatprep.subr.bf16.mxu0 %v5420
        %7922 = vmatpush1.bf16.msra.mxu0 %v5419
        %7923 = vmatprep.subr.bf16.mxu0 %v5428
        %7924 = vmatpush1.bf16.msra.mxu0 %v5427
        %7925 = vmatprep.subr.bf16.mxu0 %v5436
        %7926 = vmatpush1.bf16.msra.mxu0 %v5435
        %7927 = vmatprep.subr.bf16.mxu0 %v5444
        %7928 = vmatpush1.bf16.msra.mxu0 %v5443
        %7929 = vmatprep.subr.bf16.mxu0 %v5452
        %7930 = vmatpush1.bf16.msra.mxu0 %v5451
        %7931 = vmatprep.subr.bf16.mxu0 %v5460
        %7932 = vmatpush1.bf16.msra.mxu0 %v5459
        %7933 = vmatprep.subr.bf16.mxu0 %v5468
        %7934 = vmatpush1.bf16.msra.mxu0 %v5467
        %7935 = vmatprep.subr.bf16.mxu0 %v5476
        %7936 = vmatpush1.bf16.msra.mxu0 %v5475
        %7937 = vmatprep.subr.bf16.mxu0 %v5484
        %7938 = vmatpush1.bf16.msra.mxu0 %v5483
        %7939 = vmatprep.subr.bf16.mxu0 %v5492
        %7940 = vmatpush1.bf16.msra.mxu0 %v5491
        %7941 = vmatprep.subr.bf16.mxu0 %v5500
        %7942 = vmatpush1.bf16.msra.mxu0 %v5499
        %7943 = vmatprep.subr.bf16.mxu0 %v5508
        %7944 = vmatpush1.bf16.msra.mxu0 %v5507
        %7945 = vmatprep.mubr.bf16.mxu0 %v978
        %7946 = vmatmul.mubr.bf16.gmra.mrb[0].mxu0 %v977
        %v7947 = vpop.f32.mrb[0].mxu0
        %v7948 = vadd.f32 %v7907, %v7947
        %v7949 = vpop.f32.mrb[0].mxu0
        %v7950 = vadd.f32 %v7909, %v7949
        %v7951 = vpop.f32.mrb[0].mxu0
        %v7952 = vpop.f32.mrb[0].mxu0
        %7953 = vdwg.mxu0
        %7954 = vmatprep.subr.bf16.mxu0 %v5516
        %7955 = vmatpush1.bf16.msra.mxu0 %v5515
        %7956 = vmatprep.subr.bf16.mxu0 %v5524
        %7957 = vmatpush1.bf16.msra.mxu0 %v5523
        %7958 = vmatprep.subr.bf16.mxu0 %v5532
        %7959 = vmatpush1.bf16.msra.mxu0 %v5531
        %7960 = vmatprep.subr.bf16.mxu0 %v5540
        %7961 = vmatpush1.bf16.msra.mxu0 %v5539
        %7962 = vmatprep.subr.bf16.mxu0 %v5548
        %7963 = vmatpush1.bf16.msra.mxu0 %v5547
        %7964 = vmatprep.subr.bf16.mxu0 %v5556
        %7965 = vmatpush1.bf16.msra.mxu0 %v5555
        %7966 = vmatprep.subr.bf16.mxu0 %v5564
        %7967 = vmatpush1.bf16.msra.mxu0 %v5563
        %7968 = vmatprep.subr.bf16.mxu0 %v5572
        %7969 = vmatpush1.bf16.msra.mxu0 %v5571
        %7970 = vmatprep.subr.bf16.mxu0 %v5580
        %7971 = vmatpush1.bf16.msra.mxu0 %v5579
        %7972 = vmatprep.subr.bf16.mxu0 %v5588
        %7973 = vmatpush1.bf16.msra.mxu0 %v5587
        %7974 = vmatprep.subr.bf16.mxu0 %v5596
        %7975 = vmatpush1.bf16.msra.mxu0 %v5595
        %7976 = vmatprep.subr.bf16.mxu0 %v5604
        %7977 = vmatpush1.bf16.msra.mxu0 %v5603
        %7978 = vmatprep.subr.bf16.mxu0 %v5612
        %7979 = vmatpush1.bf16.msra.mxu0 %v5611
        %7980 = vmatprep.subr.bf16.mxu0 %v5620
        %7981 = vmatpush1.bf16.msra.mxu0 %v5619
        %7982 = vmatprep.subr.bf16.mxu0 %v5628
        %7983 = vmatpush1.bf16.msra.mxu0 %v5627
        %7984 = vmatprep.subr.bf16.mxu0 %v5636
        %7985 = vmatpush1.bf16.msra.mxu0 %v5635
        %7986 = vmatprep.mubr.bf16.mxu0 %v980
        %7987 = vmatmul.mubr.bf16.gmra.mrb[0].mxu0 %v979
        %v7988 = vpop.f32.mrb[0].mxu0
        %v7989 = vadd.f32 %v7948, %v7988
        %v7990 = vpop.f32.mrb[0].mxu0
        %v7991 = vadd.f32 %v7950, %v7990
        %v7992 = vpop.f32.mrb[0].mxu0
        %v7993 = vpop.f32.mrb[0].mxu0
        %7994 = vdwg.mxu0
        %7995 = vmatprep.subr.bf16.mxu0 %v5644
        %7996 = vmatpush1.bf16.msra.mxu0 %v5643
        %7997 = vmatprep.subr.bf16.mxu0 %v5652
        %7998 = vmatpush1.bf16.msra.mxu0 %v5651
        %7999 = vmatprep.subr.bf16.mxu0 %v5660
        %8000 = vmatpush1.bf16.msra.mxu0 %v5659
        %8001 = vmatprep.subr.bf16.mxu0 %v5668
        %8002 = vmatpush1.bf16.msra.mxu0 %v5667
        %8003 = vmatprep.subr.bf16.mxu0 %v5676
        %8004 = vmatpush1.bf16.msra.mxu0 %v5675
        %8005 = vmatprep.subr.bf16.mxu0 %v5684
        %8006 = vmatpush1.bf16.msra.mxu0 %v5683
        %8007 = vmatprep.subr.bf16.mxu0 %v5692
        %8008 = vmatpush1.bf16.msra.mxu0 %v5691
        %8009 = vmatprep.subr.bf16.mxu0 %v5700
        %8010 = vmatpush1.bf16.msra.mxu0 %v5699
        %8011 = vmatprep.subr.bf16.mxu0 %v5708
        %8012 = vmatpush1.bf16.msra.mxu0 %v5707
        %8013 = vmatprep.subr.bf16.mxu0 %v5716
        %8014 = vmatpush1.bf16.msra.mxu0 %v5715
        %8015 = vmatprep.subr.bf16.mxu0 %v5724
        %8016 = vmatpush1.bf16.msra.mxu0 %v5723
        %8017 = vmatprep.subr.bf16.mxu0 %v5732
        %8018 = vmatpush1.bf16.msra.mxu0 %v5731
        %8019 = vmatprep.subr.bf16.mxu0 %v5740
        %8020 = vmatpush1.bf16.msra.mxu0 %v5739
        %8021 = vmatprep.subr.bf16.mxu0 %v5748
        %8022 = vmatpush1.bf16.msra.mxu0 %v5747
        %8023 = vmatprep.subr.bf16.mxu0 %v5756
        %8024 = vmatpush1.bf16.msra.mxu0 %v5755
        %8025 = vmatprep.subr.bf16.mxu0 %v5764
        %8026 = vmatpush1.bf16.msra.mxu0 %v5763
        %8027 = vmatprep.mubr.bf16.mxu0 %v982
        %8028 = vmatmul.mubr.bf16.gmra.mrb[0].mxu0 %v981
        %v8029 = vpop.f32.mrb[0].mxu0
        %v8030 = vadd.f32 %v7989, %v8029
        %v8031 = vpop.f32.mrb[0].mxu0
        %v8032 = vadd.f32 %v7991, %v8031
        %v8033 = vpop.f32.mrb[0].mxu0
        %v8034 = vpop.f32.mrb[0].mxu0
        %8035 = vdwg.mxu0
        %8036 = vmatprep.subr.bf16.mxu0 %v5772
        %8037 = vmatpush1.bf16.msra.mxu0 %v5771
        %8038 = vmatprep.subr.bf16.mxu0 %v5780
        %8039 = vmatpush1.bf16.msra.mxu0 %v5779
        %8040 = vmatprep.subr.bf16.mxu0 %v5788
        %8041 = vmatpush1.bf16.msra.mxu0 %v5787
        %8042 = vmatprep.subr.bf16.mxu0 %v5796
        %8043 = vmatpush1.bf16.msra.mxu0 %v5795
        %8044 = vmatprep.subr.bf16.mxu0 %v5804
        %8045 = vmatpush1.bf16.msra.mxu0 %v5803
        %8046 = vmatprep.subr.bf16.mxu0 %v5812
        %8047 = vmatpush1.bf16.msra.mxu0 %v5811
        %8048 = vmatprep.subr.bf16.mxu0 %v5820
        %8049 = vmatpush1.bf16.msra.mxu0 %v5819
        %8050 = vmatprep.subr.bf16.mxu0 %v5828
        %8051 = vmatpush1.bf16.msra.mxu0 %v5827
        %8052 = vmatprep.subr.bf16.mxu0 %v5836
        %8053 = vmatpush1.bf16.msra.mxu0 %v5835
        %8054 = vmatprep.subr.bf16.mxu0 %v5844
        %8055 = vmatpush1.bf16.msra.mxu0 %v5843
        %8056 = vmatprep.subr.bf16.mxu0 %v5852
        %8057 = vmatpush1.bf16.msra.mxu0 %v5851
        %8058 = vmatprep.subr.bf16.mxu0 %v5860
        %8059 = vmatpush1.bf16.msra.mxu0 %v5859
        %8060 = vmatprep.subr.bf16.mxu0 %v5868
        %8061 = vmatpush1.bf16.msra.mxu0 %v5867
        %8062 = vmatprep.subr.bf16.mxu0 %v5876
        %8063 = vmatpush1.bf16.msra.mxu0 %v5875
        %8064 = vmatprep.subr.bf16.mxu0 %v5884
        %8065 = vmatpush1.bf16.msra.mxu0 %v5883
        %8066 = vmatprep.subr.bf16.mxu0 %v5892
        %8067 = vmatpush1.bf16.msra.mxu0 %v5891
        %8068 = vmatprep.mubr.bf16.mxu0 %v984
        %8069 = vmatmul.mubr.bf16.gmra.mrb[0].mxu0 %v983
        %v8070 = vpop.f32.mrb[0].mxu0
        %v8071 = vadd.f32 %v8030, %v8070
        %v8072 = vpop.f32.mrb[0].mxu0
        %v8073 = vadd.f32 %v8032, %v8072
        %v8074 = vpop.f32.mrb[0].mxu0
        %v8075 = vpop.f32.mrb[0].mxu0
        %8076 = vdwg.mxu0
        %8077 = vmatprep.subr.bf16.mxu0 %v5900
        %8078 = vmatpush1.bf16.msra.mxu0 %v5899
        %8079 = vmatprep.subr.bf16.mxu0 %v5908
        %8080 = vmatpush1.bf16.msra.mxu0 %v5907
        %8081 = vmatprep.subr.bf16.mxu0 %v5916
        %8082 = vmatpush1.bf16.msra.mxu0 %v5915
        %8083 = vmatprep.subr.bf16.mxu0 %v5924
        %8084 = vmatpush1.bf16.msra.mxu0 %v5923
        %8085 = vmatprep.subr.bf16.mxu0 %v5932
        %8086 = vmatpush1.bf16.msra.mxu0 %v5931
        %8087 = vmatprep.subr.bf16.mxu0 %v5940
        %8088 = vmatpush1.bf16.msra.mxu0 %v5939
        %8089 = vmatprep.subr.bf16.mxu0 %v5948
        %8090 = vmatpush1.bf16.msra.mxu0 %v5947
        %8091 = vmatprep.subr.bf16.mxu0 %v5956
        %8092 = vmatpush1.bf16.msra.mxu0 %v5955
        %8093 = vmatprep.subr.bf16.mxu0 %v5964
        %8094 = vmatpush1.bf16.msra.mxu0 %v5963
        %8095 = vmatprep.subr.bf16.mxu0 %v5972
        %8096 = vmatpush1.bf16.msra.mxu0 %v5971
        %8097 = vmatprep.subr.bf16.mxu0 %v5980
        %8098 = vmatpush1.bf16.msra.mxu0 %v5979
        %8099 = vmatprep.subr.bf16.mxu0 %v5988
        %8100 = vmatpush1.bf16.msra.mxu0 %v5987
        %8101 = vmatprep.subr.bf16.mxu0 %v5996
        %8102 = vmatpush1.bf16.msra.mxu0 %v5995
        %8103 = vmatprep.subr.bf16.mxu0 %v6004
        %8104 = vmatpush1.bf16.msra.mxu0 %v6003
        %8105 = vmatprep.subr.bf16.mxu0 %v6012
        %8106 = vmatpush1.bf16.msra.mxu0 %v6011
        %8107 = vmatprep.subr.bf16.mxu0 %v6020
        %8108 = vmatpush1.bf16.msra.mxu0 %v6019
        %8109 = vmatprep.mubr.bf16.mxu0 %v986
        %8110 = vmatmul.mubr.bf16.gmra.mrb[0].mxu0 %v985
        %v8111 = vpop.f32.mrb[0].mxu0
        %v8112 = vadd.f32 %v8071, %v8111
        %v8113 = vpop.f32.mrb[0].mxu0
        %v8114 = vadd.f32 %v8073, %v8113
        %v8115 = vpop.f32.mrb[0].mxu0
        %v8116 = vpop.f32.mrb[0].mxu0
        %8117 = vdwg.mxu0
        %8118 = vmatprep.subr.bf16.mxu0 %v6028
        %8119 = vmatpush1.bf16.msra.mxu0 %v6027
        %8120 = vmatprep.subr.bf16.mxu0 %v6036
        %8121 = vmatpush1.bf16.msra.mxu0 %v6035
        %8122 = vmatprep.subr.bf16.mxu0 %v6044
        %8123 = vmatpush1.bf16.msra.mxu0 %v6043
        %8124 = vmatprep.subr.bf16.mxu0 %v6052
        %8125 = vmatpush1.bf16.msra.mxu0 %v6051
        %8126 = vmatprep.subr.bf16.mxu0 %v6060
        %8127 = vmatpush1.bf16.msra.mxu0 %v6059
        %8128 = vmatprep.subr.bf16.mxu0 %v6068
        %8129 = vmatpush1.bf16.msra.mxu0 %v6067
        %8130 = vmatprep.subr.bf16.mxu0 %v6076
        %8131 = vmatpush1.bf16.msra.mxu0 %v6075
        %8132 = vmatprep.subr.bf16.mxu0 %v6084
        %8133 = vmatpush1.bf16.msra.mxu0 %v6083
        %8134 = vmatprep.subr.bf16.mxu0 %v6092
        %8135 = vmatpush1.bf16.msra.mxu0 %v6091
        %8136 = vmatprep.subr.bf16.mxu0 %v6100
        %8137 = vmatpush1.bf16.msra.mxu0 %v6099
        %8138 = vmatprep.subr.bf16.mxu0 %v6108
        %8139 = vmatpush1.bf16.msra.mxu0 %v6107
        %8140 = vmatprep.subr.bf16.mxu0 %v6116
        %8141 = vmatpush1.bf16.msra.mxu0 %v6115
        %8142 = vmatprep.subr.bf16.mxu0 %v6124
        %8143 = vmatpush1.bf16.msra.mxu0 %v6123
        %8144 = vmatprep.subr.bf16.mxu0 %v6132
        %8145 = vmatpush1.bf16.msra.mxu0 %v6131
        %8146 = vmatprep.subr.bf16.mxu0 %v6140
        %8147 = vmatpush1.bf16.msra.mxu0 %v6139
        %8148 = vmatprep.subr.bf16.mxu0 %v6148
        %8149 = vmatpush1.bf16.msra.mxu0 %v6147
        %8150 = vmatprep.mubr.bf16.mxu0 %v988
        %8151 = vmatmul.mubr.bf16.gmra.mrb[0].mxu0 %v987
        %v8152 = vpop.f32.mrb[0].mxu0
        %v8153 = vadd.f32 %v8112, %v8152
        %v8154 = vpop.f32.mrb[0].mxu0
        %v8155 = vadd.f32 %v8114, %v8154
        %v8156 = vpop.f32.mrb[0].mxu0
        %v8157 = vpop.f32.mrb[0].mxu0
        %8158 = vdwg.mxu0
        %8159 = vmatprep.subr.bf16.mxu0 %v5134
        %8160 = vmatpush1.bf16.msra.mxu0 %v5133
        %8161 = vmatprep.subr.bf16.mxu0 %v5142
        %8162 = vmatpush1.bf16.msra.mxu0 %v5141
        %8163 = vmatprep.subr.bf16.mxu0 %v5150
        %8164 = vmatpush1.bf16.msra.mxu0 %v5149
        %8165 = vmatprep.subr.bf16.mxu0 %v5158
        %8166 = vmatpush1.bf16.msra.mxu0 %v5157
        %8167 = vmatprep.subr.bf16.mxu0 %v5166
        %8168 = vmatpush1.bf16.msra.mxu0 %v5165
        %8169 = vmatprep.subr.bf16.mxu0 %v5174
        %8170 = vmatpush1.bf16.msra.mxu0 %v5173
        %8171 = vmatprep.subr.bf16.mxu0 %v5182
        %8172 = vmatpush1.bf16.msra.mxu0 %v5181
        %8173 = vmatprep.subr.bf16.mxu0 %v5190
        %8174 = vmatpush1.bf16.msra.mxu0 %v5189
        %8175 = vmatprep.subr.bf16.mxu0 %v5198
        %8176 = vmatpush1.bf16.msra.mxu0 %v5197
        %8177 = vmatprep.subr.bf16.mxu0 %v5206
        %8178 = vmatpush1.bf16.msra.mxu0 %v5205
        %8179 = vmatprep.subr.bf16.mxu0 %v5214
        %8180 = vmatpush1.bf16.msra.mxu0 %v5213
        %8181 = vmatprep.subr.bf16.mxu0 %v5222
        %8182 = vmatpush1.bf16.msra.mxu0 %v5221
        %8183 = vmatprep.subr.bf16.mxu0 %v5230
        %8184 = vmatpush1.bf16.msra.mxu0 %v5229
        %8185 = vmatprep.subr.bf16.mxu0 %v5238
        %8186 = vmatpush1.bf16.msra.mxu0 %v5237
        %8187 = vmatprep.subr.bf16.mxu0 %v5246
        %8188 = vmatpush1.bf16.msra.mxu0 %v5245
        %8189 = vmatprep.subr.bf16.mxu0 %v5254
        %8190 = vmatpush1.bf16.msra.mxu0 %v5253
        %8191 = vmatprep.mubr.bf16.mxu0 %v974
        %8192 = vmatmul.mubr.bf16.gmra.mrb[0].mxu0 %v973
        %v8193 = vpop.f32.mrb[0].mxu0
        %v8194 = vadd.f32 %v2042, %v8193
        %v8195 = vpop.f32.mrb[0].mxu0
        %v8196 = vadd.f32 %v2046, %v8195
        %v8197 = vpop.f32.mrb[0].mxu0
        %v8198 = vpop.f32.mrb[0].mxu0
        %8199 = vdwg.mxu0
        %8200 = vmatprep.subr.bf16.mxu0 %v5262
        %8201 = vmatpush1.bf16.msra.mxu0 %v5261
        %8202 = vmatprep.subr.bf16.mxu0 %v5270
        %8203 = vmatpush1.bf16.msra.mxu0 %v5269
        %8204 = vmatprep.subr.bf16.mxu0 %v5278
        %8205 = vmatpush1.bf16.msra.mxu0 %v5277
        %8206 = vmatprep.subr.bf16.mxu0 %v5286
        %8207 = vmatpush1.bf16.msra.mxu0 %v5285
        %8208 = vmatprep.subr.bf16.mxu0 %v5294
        %8209 = vmatpush1.bf16.msra.mxu0 %v5293
        %8210 = vmatprep.subr.bf16.mxu0 %v5302
        %8211 = vmatpush1.bf16.msra.mxu0 %v5301
        %8212 = vmatprep.subr.bf16.mxu0 %v5310
        %8213 = vmatpush1.bf16.msra.mxu0 %v5309
        %8214 = vmatprep.subr.bf16.mxu0 %v5318
        %8215 = vmatpush1.bf16.msra.mxu0 %v5317
        %8216 = vmatprep.subr.bf16.mxu0 %v5326
        %8217 = vmatpush1.bf16.msra.mxu0 %v5325
        %8218 = vmatprep.subr.bf16.mxu0 %v5334
        %8219 = vmatpush1.bf16.msra.mxu0 %v5333
        %8220 = vmatprep.subr.bf16.mxu0 %v5342
        %8221 = vmatpush1.bf16.msra.mxu0 %v5341
        %8222 = vmatprep.subr.bf16.mxu0 %v5350
        %8223 = vmatpush1.bf16.msra.mxu0 %v5349
        %8224 = vmatprep.subr.bf16.mxu0 %v5358
        %8225 = vmatpush1.bf16.msra.mxu0 %v5357
        %8226 = vmatprep.subr.bf16.mxu0 %v5366
        %8227 = vmatpush1.bf16.msra.mxu0 %v5365
        %8228 = vmatprep.subr.bf16.mxu0 %v5374
        %8229 = vmatpush1.bf16.msra.mxu0 %v5373
        %8230 = vmatprep.subr.bf16.mxu0 %v5382
        %8231 = vmatpush1.bf16.msra.mxu0 %v5381
        %8232 = vmatprep.mubr.bf16.mxu0 %v976
        %8233 = vmatmul.mubr.bf16.gmra.mrb[0].mxu0 %v975
        %v8234 = vpop.f32.mrb[0].mxu0
        %v8235 = vadd.f32 %v8194, %v8234
        %v8236 = vpop.f32.mrb[0].mxu0
        %v8237 = vadd.f32 %v8196, %v8236
        %v8238 = vpop.f32.mrb[0].mxu0
        %v8239 = vpop.f32.mrb[0].mxu0
        %8240 = vdwg.mxu0
        %8241 = vmatprep.subr.bf16.mxu0 %v5390
        %8242 = vmatpush1.bf16.msra.mxu0 %v5389
        %8243 = vmatprep.subr.bf16.mxu0 %v5398
        %8244 = vmatpush1.bf16.msra.mxu0 %v5397
        %8245 = vmatprep.subr.bf16.mxu0 %v5406
        %8246 = vmatpush1.bf16.msra.mxu0 %v5405
        %8247 = vmatprep.subr.bf16.mxu0 %v5414
        %8248 = vmatpush1.bf16.msra.mxu0 %v5413
        %8249 = vmatprep.subr.bf16.mxu0 %v5422
        %8250 = vmatpush1.bf16.msra.mxu0 %v5421
        %8251 = vmatprep.subr.bf16.mxu0 %v5430
        %8252 = vmatpush1.bf16.msra.mxu0 %v5429
        %8253 = vmatprep.subr.bf16.mxu0 %v5438
        %8254 = vmatpush1.bf16.msra.mxu0 %v5437
        %8255 = vmatprep.subr.bf16.mxu0 %v5446
        %8256 = vmatpush1.bf16.msra.mxu0 %v5445
        %8257 = vmatprep.subr.bf16.mxu0 %v5454
        %8258 = vmatpush1.bf16.msra.mxu0 %v5453
        %8259 = vmatprep.subr.bf16.mxu0 %v5462
        %8260 = vmatpush1.bf16.msra.mxu0 %v5461
        %8261 = vmatprep.subr.bf16.mxu0 %v5470
        %8262 = vmatpush1.bf16.msra.mxu0 %v5469
        %8263 = vmatprep.subr.bf16.mxu0 %v5478
        %8264 = vmatpush1.bf16.msra.mxu0 %v5477
        %8265 = vmatprep.subr.bf16.mxu0 %v5486
        %8266 = vmatpush1.bf16.msra.mxu0 %v5485
        %8267 = vmatprep.subr.bf16.mxu0 %v5494
        %8268 = vmatpush1.bf16.msra.mxu0 %v5493
        %8269 = vmatprep.subr.bf16.mxu0 %v5502
        %8270 = vmatpush1.bf16.msra.mxu0 %v5501
        %8271 = vmatprep.subr.bf16.mxu0 %v5510
        %8272 = vmatpush1.bf16.msra.mxu0 %v5509
        %8273 = vmatprep.mubr.bf16.mxu0 %v978
        %8274 = vmatmul.mubr.bf16.gmra.mrb[0].mxu0 %v977
        %v8275 = vpop.f32.mrb[0].mxu0
        %v8276 = vadd.f32 %v8235, %v8275
        %v8277 = vpop.f32.mrb[0].mxu0
        %v8278 = vadd.f32 %v8237, %v8277
        %v8279 = vpop.f32.mrb[0].mxu0
        %v8280 = vpop.f32.mrb[0].mxu0
        %8281 = vdwg.mxu0
        %8282 = vmatprep.subr.bf16.mxu0 %v5518
        %8283 = vmatpush1.bf16.msra.mxu0 %v5517
        %8284 = vmatprep.subr.bf16.mxu0 %v5526
        %8285 = vmatpush1.bf16.msra.mxu0 %v5525
        %8286 = vmatprep.subr.bf16.mxu0 %v5534
        %8287 = vmatpush1.bf16.msra.mxu0 %v5533
        %8288 = vmatprep.subr.bf16.mxu0 %v5542
        %8289 = vmatpush1.bf16.msra.mxu0 %v5541
        %8290 = vmatprep.subr.bf16.mxu0 %v5550
        %8291 = vmatpush1.bf16.msra.mxu0 %v5549
        %8292 = vmatprep.subr.bf16.mxu0 %v5558
        %8293 = vmatpush1.bf16.msra.mxu0 %v5557
        %8294 = vmatprep.subr.bf16.mxu0 %v5566
        %8295 = vmatpush1.bf16.msra.mxu0 %v5565
        %8296 = vmatprep.subr.bf16.mxu0 %v5574
        %8297 = vmatpush1.bf16.msra.mxu0 %v5573
        %8298 = vmatprep.subr.bf16.mxu0 %v5582
        %8299 = vmatpush1.bf16.msra.mxu0 %v5581
        %8300 = vmatprep.subr.bf16.mxu0 %v5590
        %8301 = vmatpush1.bf16.msra.mxu0 %v5589
        %8302 = vmatprep.subr.bf16.mxu0 %v5598
        %8303 = vmatpush1.bf16.msra.mxu0 %v5597
        %8304 = vmatprep.subr.bf16.mxu0 %v5606
        %8305 = vmatpush1.bf16.msra.mxu0 %v5605
        %8306 = vmatprep.subr.bf16.mxu0 %v5614
        %8307 = vmatpush1.bf16.msra.mxu0 %v5613
        %8308 = vmatprep.subr.bf16.mxu0 %v5622
        %8309 = vmatpush1.bf16.msra.mxu0 %v5621
        %8310 = vmatprep.subr.bf16.mxu0 %v5630
        %8311 = vmatpush1.bf16.msra.mxu0 %v5629
        %8312 = vmatprep.subr.bf16.mxu0 %v5638
        %8313 = vmatpush1.bf16.msra.mxu0 %v5637
        %8314 = vmatprep.mubr.bf16.mxu0 %v980
        %8315 = vmatmul.mubr.bf16.gmra.mrb[0].mxu0 %v979
        %v8316 = vpop.f32.mrb[0].mxu0
        %v8317 = vadd.f32 %v8276, %v8316
        %v8318 = vpop.f32.mrb[0].mxu0
        %v8319 = vadd.f32 %v8278, %v8318
        %v8320 = vpop.f32.mrb[0].mxu0
        %v8321 = vpop.f32.mrb[0].mxu0
        %8322 = vdwg.mxu0
        %8323 = vmatprep.subr.bf16.mxu0 %v5646
        %8324 = vmatpush1.bf16.msra.mxu0 %v5645
        %8325 = vmatprep.subr.bf16.mxu0 %v5654
        %8326 = vmatpush1.bf16.msra.mxu0 %v5653
        %8327 = vmatprep.subr.bf16.mxu0 %v5662
        %8328 = vmatpush1.bf16.msra.mxu0 %v5661
        %8329 = vmatprep.subr.bf16.mxu0 %v5670
        %8330 = vmatpush1.bf16.msra.mxu0 %v5669
        %8331 = vmatprep.subr.bf16.mxu0 %v5678
        %8332 = vmatpush1.bf16.msra.mxu0 %v5677
        %8333 = vmatprep.subr.bf16.mxu0 %v5686
        %8334 = vmatpush1.bf16.msra.mxu0 %v5685
        %8335 = vmatprep.subr.bf16.mxu0 %v5694
        %8336 = vmatpush1.bf16.msra.mxu0 %v5693
        %8337 = vmatprep.subr.bf16.mxu0 %v5702
        %8338 = vmatpush1.bf16.msra.mxu0 %v5701
        %8339 = vmatprep.subr.bf16.mxu0 %v5710
        %8340 = vmatpush1.bf16.msra.mxu0 %v5709
        %8341 = vmatprep.subr.bf16.mxu0 %v5718
        %8342 = vmatpush1.bf16.msra.mxu0 %v5717
        %8343 = vmatprep.subr.bf16.mxu0 %v5726
        %8344 = vmatpush1.bf16.msra.mxu0 %v5725
        %8345 = vmatprep.subr.bf16.mxu0 %v5734
        %8346 = vmatpush1.bf16.msra.mxu0 %v5733
        %8347 = vmatprep.subr.bf16.mxu0 %v5742
        %8348 = vmatpush1.bf16.msra.mxu0 %v5741
        %8349 = vmatprep.subr.bf16.mxu0 %v5750
        %8350 = vmatpush1.bf16.msra.mxu0 %v5749
        %8351 = vmatprep.subr.bf16.mxu0 %v5758
        %8352 = vmatpush1.bf16.msra.mxu0 %v5757
        %8353 = vmatprep.subr.bf16.mxu0 %v5766
        %8354 = vmatpush1.bf16.msra.mxu0 %v5765
        %8355 = vmatprep.mubr.bf16.mxu0 %v982
        %8356 = vmatmul.mubr.bf16.gmra.mrb[0].mxu0 %v981
        %v8357 = vpop.f32.mrb[0].mxu0
        %v8358 = vadd.f32 %v8317, %v8357
        %v8359 = vpop.f32.mrb[0].mxu0
        %v8360 = vadd.f32 %v8319, %v8359
        %v8361 = vpop.f32.mrb[0].mxu0
        %v8362 = vpop.f32.mrb[0].mxu0
        %8363 = vdwg.mxu0
        %8364 = vmatprep.subr.bf16.mxu0 %v5774
        %8365 = vmatpush1.bf16.msra.mxu0 %v5773
        %8366 = vmatprep.subr.bf16.mxu0 %v5782
        %8367 = vmatpush1.bf16.msra.mxu0 %v5781
        %8368 = vmatprep.subr.bf16.mxu0 %v5790
        %8369 = vmatpush1.bf16.msra.mxu0 %v5789
        %8370 = vmatprep.subr.bf16.mxu0 %v5798
        %8371 = vmatpush1.bf16.msra.mxu0 %v5797
        %8372 = vmatprep.subr.bf16.mxu0 %v5806
        %8373 = vmatpush1.bf16.msra.mxu0 %v5805
        %8374 = vmatprep.subr.bf16.mxu0 %v5814
        %8375 = vmatpush1.bf16.msra.mxu0 %v5813
        %8376 = vmatprep.subr.bf16.mxu0 %v5822
        %8377 = vmatpush1.bf16.msra.mxu0 %v5821
        %8378 = vmatprep.subr.bf16.mxu0 %v5830
        %8379 = vmatpush1.bf16.msra.mxu0 %v5829
        %8380 = vmatprep.subr.bf16.mxu0 %v5838
        %8381 = vmatpush1.bf16.msra.mxu0 %v5837
        %8382 = vmatprep.subr.bf16.mxu0 %v5846
        %8383 = vmatpush1.bf16.msra.mxu0 %v5845
        %8384 = vmatprep.subr.bf16.mxu0 %v5854
        %8385 = vmatpush1.bf16.msra.mxu0 %v5853
        %8386 = vmatprep.subr.bf16.mxu0 %v5862
        %8387 = vmatpush1.bf16.msra.mxu0 %v5861
        %8388 = vmatprep.subr.bf16.mxu0 %v5870
        %8389 = vmatpush1.bf16.msra.mxu0 %v5869
        %8390 = vmatprep.subr.bf16.mxu0 %v5878
        %8391 = vmatpush1.bf16.msra.mxu0 %v5877
        %8392 = vmatprep.subr.bf16.mxu0 %v5886
        %8393 = vmatpush1.bf16.msra.mxu0 %v5885
        %8394 = vmatprep.subr.bf16.mxu0 %v5894
        %8395 = vmatpush1.bf16.msra.mxu0 %v5893
        %8396 = vmatprep.mubr.bf16.mxu0 %v984
        %8397 = vmatmul.mubr.bf16.gmra.mrb[0].mxu0 %v983
        %v8398 = vpop.f32.mrb[0].mxu0
        %v8399 = vadd.f32 %v8358, %v8398
        %v8400 = vpop.f32.mrb[0].mxu0
        %v8401 = vadd.f32 %v8360, %v8400
        %v8402 = vpop.f32.mrb[0].mxu0
        %v8403 = vpop.f32.mrb[0].mxu0
        %8404 = vdwg.mxu0
        %8405 = vmatprep.subr.bf16.mxu0 %v5902
        %8406 = vmatpush1.bf16.msra.mxu0 %v5901
        %8407 = vmatprep.subr.bf16.mxu0 %v5910
        %8408 = vmatpush1.bf16.msra.mxu0 %v5909
        %8409 = vmatprep.subr.bf16.mxu0 %v5918
        %8410 = vmatpush1.bf16.msra.mxu0 %v5917
        %8411 = vmatprep.subr.bf16.mxu0 %v5926
        %8412 = vmatpush1.bf16.msra.mxu0 %v5925
        %8413 = vmatprep.subr.bf16.mxu0 %v5934
        %8414 = vmatpush1.bf16.msra.mxu0 %v5933
        %8415 = vmatprep.subr.bf16.mxu0 %v5942
        %8416 = vmatpush1.bf16.msra.mxu0 %v5941
        %8417 = vmatprep.subr.bf16.mxu0 %v5950
        %8418 = vmatpush1.bf16.msra.mxu0 %v5949
        %8419 = vmatprep.subr.bf16.mxu0 %v5958
        %8420 = vmatpush1.bf16.msra.mxu0 %v5957
        %8421 = vmatprep.subr.bf16.mxu0 %v5966
        %8422 = vmatpush1.bf16.msra.mxu0 %v5965
        %8423 = vmatprep.subr.bf16.mxu0 %v5974
        %8424 = vmatpush1.bf16.msra.mxu0 %v5973
        %8425 = vmatprep.subr.bf16.mxu0 %v5982
        %8426 = vmatpush1.bf16.msra.mxu0 %v5981
        %8427 = vmatprep.subr.bf16.mxu0 %v5990
        %8428 = vmatpush1.bf16.msra.mxu0 %v5989
        %8429 = vmatprep.subr.bf16.mxu0 %v5998
        %8430 = vmatpush1.bf16.msra.mxu0 %v5997
        %8431 = vmatprep.subr.bf16.mxu0 %v6006
        %8432 = vmatpush1.bf16.msra.mxu0 %v6005
        %8433 = vmatprep.subr.bf16.mxu0 %v6014
        %8434 = vmatpush1.bf16.msra.mxu0 %v6013
        %8435 = vmatprep.subr.bf16.mxu0 %v6022
        %8436 = vmatpush1.bf16.msra.mxu0 %v6021
        %8437 = vmatprep.mubr.bf16.mxu0 %v986
        %8438 = vmatmul.mubr.bf16.gmra.mrb[0].mxu0 %v985
        %v8439 = vpop.f32.mrb[0].mxu0
        %v8440 = vadd.f32 %v8399, %v8439
        %v8441 = vpop.f32.mrb[0].mxu0
        %v8442 = vadd.f32 %v8401, %v8441
        %v8443 = vpop.f32.mrb[0].mxu0
        %v8444 = vpop.f32.mrb[0].mxu0
        %8445 = vdwg.mxu0
        %8446 = vmatprep.subr.bf16.mxu0 %v6030
        %8447 = vmatpush1.bf16.msra.mxu0 %v6029
        %8448 = vmatprep.subr.bf16.mxu0 %v6038
        %8449 = vmatpush1.bf16.msra.mxu0 %v6037
        %8450 = vmatprep.subr.bf16.mxu0 %v6046
        %8451 = vmatpush1.bf16.msra.mxu0 %v6045
        %8452 = vmatprep.subr.bf16.mxu0 %v6054
        %8453 = vmatpush1.bf16.msra.mxu0 %v6053
        %8454 = vmatprep.subr.bf16.mxu0 %v6062
        %8455 = vmatpush1.bf16.msra.mxu0 %v6061
        %8456 = vmatprep.subr.bf16.mxu0 %v6070
        %8457 = vmatpush1.bf16.msra.mxu0 %v6069
        %8458 = vmatprep.subr.bf16.mxu0 %v6078
        %8459 = vmatpush1.bf16.msra.mxu0 %v6077
        %8460 = vmatprep.subr.bf16.mxu0 %v6086
        %8461 = vmatpush1.bf16.msra.mxu0 %v6085
        %8462 = vmatprep.subr.bf16.mxu0 %v6094
        %8463 = vmatpush1.bf16.msra.mxu0 %v6093
        %8464 = vmatprep.subr.bf16.mxu0 %v6102
        %8465 = vmatpush1.bf16.msra.mxu0 %v6101
        %8466 = vmatprep.subr.bf16.mxu0 %v6110
        %8467 = vmatpush1.bf16.msra.mxu0 %v6109
        %8468 = vmatprep.subr.bf16.mxu0 %v6118
        %8469 = vmatpush1.bf16.msra.mxu0 %v6117
        %8470 = vmatprep.subr.bf16.mxu0 %v6126
        %8471 = vmatpush1.bf16.msra.mxu0 %v6125
        %8472 = vmatprep.subr.bf16.mxu0 %v6134
        %8473 = vmatpush1.bf16.msra.mxu0 %v6133
        %8474 = vmatprep.subr.bf16.mxu0 %v6142
        %8475 = vmatpush1.bf16.msra.mxu0 %v6141
        %8476 = vmatprep.subr.bf16.mxu0 %v6150
        %8477 = vmatpush1.bf16.msra.mxu0 %v6149
        %8478 = vmatprep.mubr.bf16.mxu0 %v988
        %8479 = vmatmul.mubr.bf16.gmra.mrb[0].mxu0 %v987
        %v8480 = vpop.f32.mrb[0].mxu0
        %v8481 = vadd.f32 %v8440, %v8480
        %v8482 = vpop.f32.mrb[0].mxu0
        %v8483 = vadd.f32 %v8442, %v8482
        %v8484 = vpop.f32.mrb[0].mxu0
        %v8485 = vpop.f32.mrb[0].mxu0
        %8486 = vdwg.mxu0
        %v8487 = vmax.f32 %v7497, 0.0
        %v8488 = vmax.f32 %v7499, 0.0
        %v8489 = vmax.f32 %v7825, 0.0
        %v8490 = vmax.f32 %v7827, 0.0
        %v8491 = vmax.f32 %v8153, 0.0
        %v8492 = vmax.f32 %v8155, 0.0
        %v8493 = vmax.f32 %v8481, 0.0
        %v8494 = vmax.f32 %v8483, 0.0
        %v8495 = vpack.c.bf16 %v8487, %v8487
        %v8496 = vpack.c.bf16 %v8488, %v8488
        %v8497 = vpack.c.bf16 %v8489, %v8489
        %v8498 = vpack.c.bf16 %v8490, %v8490
        %v8499 = vpack.c.bf16 %v8491, %v8491
        %v8500 = vpack.c.bf16 %v8492, %v8492
        %v8501 = vpack.c.bf16 %v8493, %v8493
        %v8502 = vpack.c.bf16 %v8494, %v8494
        %v8503 = vld [vmem:[%s407] sm:$0xf]
        %v8504 = vld [vmem:[%s407 + $0x4] sm:$0xf]
        %v8505 = vld [vmem:[%s407 + $0x8] sm:$0xf]
        %v8506 = vld [vmem:[%s407 + $0xc] sm:$0xf]
        %v8507 = vld [vmem:[%s407 + $0x10] sm:$0xf]
        %v8508 = vld [vmem:[%s407 + $0x14] sm:$0xf]
        %v8509 = vld [vmem:[%s407 + $0x18] sm:$0xf]
        %v8510 = vld [vmem:[%s407 + $0x1c] sm:$0xf]
        %v8511 = vld [vmem:[%s407 + $0x20] sm:$0xf]
        %v8512 = vld [vmem:[%s407 + $0x24] sm:$0xf]
        %v8513 = vld [vmem:[%s407 + $0x28] sm:$0xf]
        %v8514 = vld [vmem:[%s407 + $0x2c] sm:$0xf]
        %v8515 = vld [vmem:[%s407 + $0x30] sm:$0xf]
        %v8516 = vld [vmem:[%s407 + $0x34] sm:$0xf]
        %v8517 = vld [vmem:[%s407 + $0x38] sm:$0xf]
        %v8518 = vld [vmem:[%s407 + $0x3c] sm:$0xf]
        %v8519 = vld [vmem:[%s407 + $0x40] sm:$0xf]
        %v8520 = vld [vmem:[%s407 + $0x44] sm:$0xf]
        %v8521 = vld [vmem:[%s407 + $0x48] sm:$0xf]
        %v8522 = vld [vmem:[%s407 + $0x4c] sm:$0xf]
        %v8523 = vld [vmem:[%s407 + $0x50] sm:$0xf]
        %v8524 = vld [vmem:[%s407 + $0x54] sm:$0xf]
        %v8525 = vld [vmem:[%s407 + $0x58] sm:$0xf]
        %v8526 = vld [vmem:[%s407 + $0x5c] sm:$0xf]
        %v8527 = vld [vmem:[%s407 + $0x60] sm:$0xf]
        %v8528 = vld [vmem:[%s407 + $0x64] sm:$0xf]
        %v8529 = vld [vmem:[%s407 + $0x68] sm:$0xf]
        %v8530 = vld [vmem:[%s407 + $0x6c] sm:$0xf]
        %v8531 = vld [vmem:[%s407 + $0x70] sm:$0xf]
        %v8532 = vld [vmem:[%s407 + $0x74] sm:$0xf]
        %v8533 = vld [vmem:[%s407 + $0x78] sm:$0xf]
        %v8534 = vld [vmem:[%s407 + $0x7c] sm:$0xf]
        %v8535 = vld [vmem:[%s407 + $0x80] sm:$0xf]
        %v8536 = vld [vmem:[%s407 + $0x84] sm:$0xf]
        %v8537 = vld [vmem:[%s407 + $0x88] sm:$0xf]
        %v8538 = vld [vmem:[%s407 + $0x8c] sm:$0xf]
        %v8539 = vld [vmem:[%s407 + $0x90] sm:$0xf]
        %v8540 = vld [vmem:[%s407 + $0x94] sm:$0xf]
        %v8541 = vld [vmem:[%s407 + $0x98] sm:$0xf]
        %v8542 = vld [vmem:[%s407 + $0x9c] sm:$0xf]
        %v8543 = vld [vmem:[%s407 + $0xa0] sm:$0xf]
        %v8544 = vld [vmem:[%s407 + $0xa4] sm:$0xf]
        %v8545 = vld [vmem:[%s407 + $0xa8] sm:$0xf]
        %v8546 = vld [vmem:[%s407 + $0xac] sm:$0xf]
        %v8547 = vld [vmem:[%s407 + $0xb0] sm:$0xf]
        %v8548 = vld [vmem:[%s407 + $0xb4] sm:$0xf]
        %v8549 = vld [vmem:[%s407 + $0xb8] sm:$0xf]
        %v8550 = vld [vmem:[%s407 + $0xbc] sm:$0xf]
        %v8551 = vld [vmem:[%s407 + $0xc0] sm:$0xf]
        %v8552 = vld [vmem:[%s407 + $0xc4] sm:$0xf]
        %v8553 = vld [vmem:[%s407 + $0xc8] sm:$0xf]
        %v8554 = vld [vmem:[%s407 + $0xcc] sm:$0xf]
        %v8555 = vld [vmem:[%s407 + $0xd0] sm:$0xf]
        %v8556 = vld [vmem:[%s407 + $0xd4] sm:$0xf]
        %v8557 = vld [vmem:[%s407 + $0xd8] sm:$0xf]
        %v8558 = vld [vmem:[%s407 + $0xdc] sm:$0xf]
        %v8559 = vld [vmem:[%s407 + $0xe0] sm:$0xf]
        %v8560 = vld [vmem:[%s407 + $0xe4] sm:$0xf]
        %v8561 = vld [vmem:[%s407 + $0xe8] sm:$0xf]
        %v8562 = vld [vmem:[%s407 + $0xec] sm:$0xf]
        %v8563 = vld [vmem:[%s407 + $0xf0] sm:$0xf]
        %v8564 = vld [vmem:[%s407 + $0xf4] sm:$0xf]
        %v8565 = vld [vmem:[%s407 + $0xf8] sm:$0xf]
        %v8566 = vld [vmem:[%s407 + $0xfc] sm:$0xf]
        %v8567 = vld [vmem:[%s407 + $0x100] sm:$0xf]
        %v8568 = vld [vmem:[%s407 + $0x104] sm:$0xf]
        %v8569 = vld [vmem:[%s407 + $0x108] sm:$0xf]
        %v8570 = vld [vmem:[%s407 + $0x10c] sm:$0xf]
        %v8571 = vld [vmem:[%s407 + $0x110] sm:$0xf]
        %v8572 = vld [vmem:[%s407 + $0x114] sm:$0xf]
        %v8573 = vld [vmem:[%s407 + $0x118] sm:$0xf]
        %v8574 = vld [vmem:[%s407 + $0x11c] sm:$0xf]
        %v8575 = vld [vmem:[%s407 + $0x120] sm:$0xf]
        %v8576 = vld [vmem:[%s407 + $0x124] sm:$0xf]
        %v8577 = vld [vmem:[%s407 + $0x128] sm:$0xf]
        %v8578 = vld [vmem:[%s407 + $0x12c] sm:$0xf]
        %v8579 = vld [vmem:[%s407 + $0x130] sm:$0xf]
        %v8580 = vld [vmem:[%s407 + $0x134] sm:$0xf]
        %v8581 = vld [vmem:[%s407 + $0x138] sm:$0xf]
        %v8582 = vld [vmem:[%s407 + $0x13c] sm:$0xf]
        %v8583 = vld [vmem:[%s407 + $0x140] sm:$0xf]
        %v8584 = vld [vmem:[%s407 + $0x144] sm:$0xf]
        %v8585 = vld [vmem:[%s407 + $0x148] sm:$0xf]
        %v8586 = vld [vmem:[%s407 + $0x14c] sm:$0xf]
        %v8587 = vld [vmem:[%s407 + $0x150] sm:$0xf]
        %v8588 = vld [vmem:[%s407 + $0x154] sm:$0xf]
        %v8589 = vld [vmem:[%s407 + $0x158] sm:$0xf]
        %v8590 = vld [vmem:[%s407 + $0x15c] sm:$0xf]
        %v8591 = vld [vmem:[%s407 + $0x160] sm:$0xf]
        %v8592 = vld [vmem:[%s407 + $0x164] sm:$0xf]
        %v8593 = vld [vmem:[%s407 + $0x168] sm:$0xf]
        %v8594 = vld [vmem:[%s407 + $0x16c] sm:$0xf]
        %v8595 = vld [vmem:[%s407 + $0x170] sm:$0xf]
        %v8596 = vld [vmem:[%s407 + $0x174] sm:$0xf]
        %v8597 = vld [vmem:[%s407 + $0x178] sm:$0xf]
        %v8598 = vld [vmem:[%s407 + $0x17c] sm:$0xf]
        %v8599 = vld [vmem:[%s407 + $0x180] sm:$0xf]
        %v8600 = vld [vmem:[%s407 + $0x184] sm:$0xf]
        %v8601 = vld [vmem:[%s407 + $0x188] sm:$0xf]
        %v8602 = vld [vmem:[%s407 + $0x18c] sm:$0xf]
        %v8603 = vld [vmem:[%s407 + $0x190] sm:$0xf]
        %v8604 = vld [vmem:[%s407 + $0x194] sm:$0xf]
        %v8605 = vld [vmem:[%s407 + $0x198] sm:$0xf]
        %v8606 = vld [vmem:[%s407 + $0x19c] sm:$0xf]
        %v8607 = vld [vmem:[%s407 + $0x1a0] sm:$0xf]
        %v8608 = vld [vmem:[%s407 + $0x1a4] sm:$0xf]
        %v8609 = vld [vmem:[%s407 + $0x1a8] sm:$0xf]
        %v8610 = vld [vmem:[%s407 + $0x1ac] sm:$0xf]
        %v8611 = vld [vmem:[%s407 + $0x1b0] sm:$0xf]
        %v8612 = vld [vmem:[%s407 + $0x1b4] sm:$0xf]
        %v8613 = vld [vmem:[%s407 + $0x1b8] sm:$0xf]
        %v8614 = vld [vmem:[%s407 + $0x1bc] sm:$0xf]
        %v8615 = vld [vmem:[%s407 + $0x1c0] sm:$0xf]
        %v8616 = vld [vmem:[%s407 + $0x1c4] sm:$0xf]
        %v8617 = vld [vmem:[%s407 + $0x1c8] sm:$0xf]
        %v8618 = vld [vmem:[%s407 + $0x1cc] sm:$0xf]
        %v8619 = vld [vmem:[%s407 + $0x1d0] sm:$0xf]
        %v8620 = vld [vmem:[%s407 + $0x1d4] sm:$0xf]
        %v8621 = vld [vmem:[%s407 + $0x1d8] sm:$0xf]
        %v8622 = vld [vmem:[%s407 + $0x1dc] sm:$0xf]
        %v8623 = vld [vmem:[%s407 + $0x1e0] sm:$0xf]
        %v8624 = vld [vmem:[%s407 + $0x1e4] sm:$0xf]
        %v8625 = vld [vmem:[%s407 + $0x1e8] sm:$0xf]
        %v8626 = vld [vmem:[%s407 + $0x1ec] sm:$0xf]
        %v8627 = vld [vmem:[%s407 + $0x1f0] sm:$0xf]
        %v8628 = vld [vmem:[%s407 + $0x1f4] sm:$0xf]
        %v8629 = vld [vmem:[%s407 + $0x1f8] sm:$0xf]
        %v8630 = vld [vmem:[%s407 + $0x1fc] sm:$0xf]
        %p8631 = scmp.eq.s32.totalorder %s27, 0
        %s8632 = scalar_select %p8631, 1.0, 0.0
        %v8633 = vld [vmem:[#allocation11] sm:$0x1]
        %v8634 = vstv %s8632
        %v8635 = vmul.f32 %v8633, %v8634
        %v8637 = vlaneseq
        %v8638 = vshrl.u32 %v8637, 7
        %v8639 = vsub.s32 0, %v8638
        %v8640 = vrot.slane %v8635, %v8639
        %v8770 = vunpack.c.l.b16 %v8503
        %v8771 = vunpack.c.l.b16 %v8504
        %v8772 = vunpack.c.l.b16 %v8505
        %v8773 = vunpack.c.l.b16 %v8506
        %v8774 = vunpack.c.l.b16 %v8507
        %v8775 = vunpack.c.l.b16 %v8508
        %v8776 = vunpack.c.l.b16 %v8509
        %v8777 = vunpack.c.l.b16 %v8510
        %v8778 = vunpack.c.l.b16 %v8511
        %v8779 = vunpack.c.l.b16 %v8512
        %v8780 = vunpack.c.l.b16 %v8513
        %v8781 = vunpack.c.l.b16 %v8514
        %v8782 = vunpack.c.l.b16 %v8515
        %v8783 = vunpack.c.l.b16 %v8516
        %v8784 = vunpack.c.l.b16 %v8517
        %v8785 = vunpack.c.l.b16 %v8518
        %v8786 = vunpack.c.l.b16 %v8519
        %v8787 = vunpack.c.l.b16 %v8520
        %v8788 = vunpack.c.l.b16 %v8521
        %v8789 = vunpack.c.l.b16 %v8522
        %v8790 = vunpack.c.l.b16 %v8523
        %v8791 = vunpack.c.l.b16 %v8524
        %v8792 = vunpack.c.l.b16 %v8525
        %v8793 = vunpack.c.l.b16 %v8526
        %v8794 = vunpack.c.l.b16 %v8527
        %v8795 = vunpack.c.l.b16 %v8528
        %v8796 = vunpack.c.l.b16 %v8529
        %v8797 = vunpack.c.l.b16 %v8530
        %v8798 = vunpack.c.l.b16 %v8531
        %v8799 = vunpack.c.l.b16 %v8532
        %v8800 = vunpack.c.l.b16 %v8533
        %v8801 = vunpack.c.l.b16 %v8534
        %v8802 = vunpack.c.l.b16 %v8535
        %v8803 = vunpack.c.l.b16 %v8536
        %v8804 = vunpack.c.l.b16 %v8537
        %v8805 = vunpack.c.l.b16 %v8538
        %v8806 = vunpack.c.l.b16 %v8539
        %v8807 = vunpack.c.l.b16 %v8540
        %v8808 = vunpack.c.l.b16 %v8541
        %v8809 = vunpack.c.l.b16 %v8542
        %v8810 = vunpack.c.l.b16 %v8543
        %v8811 = vunpack.c.l.b16 %v8544
        %v8812 = vunpack.c.l.b16 %v8545
        %v8813 = vunpack.c.l.b16 %v8546
        %v8814 = vunpack.c.l.b16 %v8547
        %v8815 = vunpack.c.l.b16 %v8548
        %v8816 = vunpack.c.l.b16 %v8549
        %v8817 = vunpack.c.l.b16 %v8550
        %v8818 = vunpack.c.l.b16 %v8551
        %v8819 = vunpack.c.l.b16 %v8552
        %v8820 = vunpack.c.l.b16 %v8553
        %v8821 = vunpack.c.l.b16 %v8554
        %v8822 = vunpack.c.l.b16 %v8555
        %v8823 = vunpack.c.l.b16 %v8556
        %v8824 = vunpack.c.l.b16 %v8557
        %v8825 = vunpack.c.l.b16 %v8558
        %v8826 = vunpack.c.l.b16 %v8559
        %v8827 = vunpack.c.l.b16 %v8560
        %v8828 = vunpack.c.l.b16 %v8561
        %v8829 = vunpack.c.l.b16 %v8562
        %v8830 = vunpack.c.l.b16 %v8563
        %v8831 = vunpack.c.l.b16 %v8564
        %v8832 = vunpack.c.l.b16 %v8565
        %v8833 = vunpack.c.l.b16 %v8566
        %v8834 = vunpack.c.l.b16 %v8567
        %v8835 = vunpack.c.l.b16 %v8568
        %v8836 = vunpack.c.l.b16 %v8569
        %v8837 = vunpack.c.l.b16 %v8570
        %v8838 = vunpack.c.l.b16 %v8571
        %v8839 = vunpack.c.l.b16 %v8572
        %v8840 = vunpack.c.l.b16 %v8573
        %v8841 = vunpack.c.l.b16 %v8574
        %v8842 = vunpack.c.l.b16 %v8575
        %v8843 = vunpack.c.l.b16 %v8576
        %v8844 = vunpack.c.l.b16 %v8577
        %v8845 = vunpack.c.l.b16 %v8578
        %v8846 = vunpack.c.l.b16 %v8579
        %v8847 = vunpack.c.l.b16 %v8580
        %v8848 = vunpack.c.l.b16 %v8581
        %v8849 = vunpack.c.l.b16 %v8582
        %v8850 = vunpack.c.l.b16 %v8583
        %v8851 = vunpack.c.l.b16 %v8584
        %v8852 = vunpack.c.l.b16 %v8585
        %v8853 = vunpack.c.l.b16 %v8586
        %v8854 = vunpack.c.l.b16 %v8587
        %v8855 = vunpack.c.l.b16 %v8588
        %v8856 = vunpack.c.l.b16 %v8589
        %v8857 = vunpack.c.l.b16 %v8590
        %v8858 = vunpack.c.l.b16 %v8591
        %v8859 = vunpack.c.l.b16 %v8592
        %v8860 = vunpack.c.l.b16 %v8593
        %v8861 = vunpack.c.l.b16 %v8594
        %v8862 = vunpack.c.l.b16 %v8595
        %v8863 = vunpack.c.l.b16 %v8596
        %v8864 = vunpack.c.l.b16 %v8597
        %v8865 = vunpack.c.l.b16 %v8598
        %v8866 = vunpack.c.l.b16 %v8599
        %v8867 = vunpack.c.l.b16 %v8600
        %v8868 = vunpack.c.l.b16 %v8601
        %v8869 = vunpack.c.l.b16 %v8602
        %v8870 = vunpack.c.l.b16 %v8603
        %v8871 = vunpack.c.l.b16 %v8604
        %v8872 = vunpack.c.l.b16 %v8605
        %v8873 = vunpack.c.l.b16 %v8606
        %v8874 = vunpack.c.l.b16 %v8607
        %v8875 = vunpack.c.l.b16 %v8608
        %v8876 = vunpack.c.l.b16 %v8609
        %v8877 = vunpack.c.l.b16 %v8610
        %v8878 = vunpack.c.l.b16 %v8611
        %v8879 = vunpack.c.l.b16 %v8612
        %v8880 = vunpack.c.l.b16 %v8613
        %v8881 = vunpack.c.l.b16 %v8614
        %v8882 = vunpack.c.l.b16 %v8615
        %v8883 = vunpack.c.l.b16 %v8616
        %v8884 = vunpack.c.l.b16 %v8617
        %v8885 = vunpack.c.l.b16 %v8618
        %v8886 = vunpack.c.l.b16 %v8619
        %v8887 = vunpack.c.l.b16 %v8620
        %v8888 = vunpack.c.l.b16 %v8621
        %v8889 = vunpack.c.l.b16 %v8622
        %v8890 = vunpack.c.l.b16 %v8623
        %v8891 = vunpack.c.l.b16 %v8624
        %v8892 = vunpack.c.l.b16 %v8625
        %v8893 = vunpack.c.l.b16 %v8626
        %v8894 = vunpack.c.l.b16 %v8627
        %v8895 = vunpack.c.l.b16 %v8628
        %v8896 = vunpack.c.l.b16 %v8629
        %v8897 = vunpack.c.l.b16 %v8630
        %v8898 = vpack.c.b16 %v8771, %v8770
        %v8899 = vpack.c.b16 %v8773, %v8772
        %v8900 = vpack.c.b16 %v8775, %v8774
        %v8901 = vpack.c.b16 %v8777, %v8776
        %v8902 = vpack.c.b16 %v8779, %v8778
        %v8903 = vpack.c.b16 %v8781, %v8780
        %v8904 = vpack.c.b16 %v8783, %v8782
        %v8905 = vpack.c.b16 %v8785, %v8784
        %v8906 = vpack.c.b16 %v8787, %v8786
        %v8907 = vpack.c.b16 %v8789, %v8788
        %v8908 = vpack.c.b16 %v8791, %v8790
        %v8909 = vpack.c.b16 %v8793, %v8792
        %v8910 = vpack.c.b16 %v8795, %v8794
        %v8911 = vpack.c.b16 %v8797, %v8796
        %v8912 = vpack.c.b16 %v8799, %v8798
        %v8913 = vpack.c.b16 %v8801, %v8800
        %v8914 = vpack.c.b16 %v8803, %v8802
        %v8915 = vpack.c.b16 %v8805, %v8804
        %v8916 = vpack.c.b16 %v8807, %v8806
        %v8917 = vpack.c.b16 %v8809, %v8808
        %v8918 = vpack.c.b16 %v8811, %v8810
        %v8919 = vpack.c.b16 %v8813, %v8812
        %v8920 = vpack.c.b16 %v8815, %v8814
        %v8921 = vpack.c.b16 %v8817, %v8816
        %v8922 = vpack.c.b16 %v8819, %v8818
        %v8923 = vpack.c.b16 %v8821, %v8820
        %v8924 = vpack.c.b16 %v8823, %v8822
        %v8925 = vpack.c.b16 %v8825, %v8824
        %v8926 = vpack.c.b16 %v8827, %v8826
        %v8927 = vpack.c.b16 %v8829, %v8828
        %v8928 = vpack.c.b16 %v8831, %v8830
        %v8929 = vpack.c.b16 %v8833, %v8832
        %v8930 = vpack.c.b16 %v8835, %v8834
        %v8931 = vpack.c.b16 %v8837, %v8836
        %v8932 = vpack.c.b16 %v8839, %v8838
        %v8933 = vpack.c.b16 %v8841, %v8840
        %v8934 = vpack.c.b16 %v8843, %v8842
        %v8935 = vpack.c.b16 %v8845, %v8844
        %v8936 = vpack.c.b16 %v8847, %v8846
        %v8937 = vpack.c.b16 %v8849, %v8848
        %v8938 = vpack.c.b16 %v8851, %v8850
        %v8939 = vpack.c.b16 %v8853, %v8852
        %v8940 = vpack.c.b16 %v8855, %v8854
        %v8941 = vpack.c.b16 %v8857, %v8856
        %v8942 = vpack.c.b16 %v8859, %v8858
        %v8943 = vpack.c.b16 %v8861, %v8860
        %v8944 = vpack.c.b16 %v8863, %v8862
        %v8945 = vpack.c.b16 %v8865, %v8864
        %v8946 = vpack.c.b16 %v8867, %v8866
        %v8947 = vpack.c.b16 %v8869, %v8868
        %v8948 = vpack.c.b16 %v8871, %v8870
        %v8949 = vpack.c.b16 %v8873, %v8872
        %v8950 = vpack.c.b16 %v8875, %v8874
        %v8951 = vpack.c.b16 %v8877, %v8876
        %v8952 = vpack.c.b16 %v8879, %v8878
        %v8953 = vpack.c.b16 %v8881, %v8880
        %v8954 = vpack.c.b16 %v8883, %v8882
        %v8955 = vpack.c.b16 %v8885, %v8884
        %v8956 = vpack.c.b16 %v8887, %v8886
        %v8957 = vpack.c.b16 %v8889, %v8888
        %v8958 = vpack.c.b16 %v8891, %v8890
        %v8959 = vpack.c.b16 %v8893, %v8892
        %v8960 = vpack.c.b16 %v8895, %v8894
        %v8961 = vpack.c.b16 %v8897, %v8896
        %9026 = vmatprep.subr.bf16.mxu0 0
        %9027 = vmatpush1.bf16.msra.mxu0 %v8898
        %9028 = vmatprep.subr.bf16.mxu0 0
        %9029 = vmatpush1.bf16.msra.mxu0 %v8899
        %9030 = vmatprep.subr.bf16.mxu0 0
        %9031 = vmatpush1.bf16.msra.mxu0 %v8900
        %9032 = vmatprep.subr.bf16.mxu0 0
        %9033 = vmatpush1.bf16.msra.mxu0 %v8901
        %9034 = vmatprep.subr.bf16.mxu0 0
        %9035 = vmatpush1.bf16.msra.mxu0 %v8902
        %9036 = vmatprep.subr.bf16.mxu0 0
        %9037 = vmatpush1.bf16.msra.mxu0 %v8903
        %9038 = vmatprep.subr.bf16.mxu0 0
        %9039 = vmatpush1.bf16.msra.mxu0 %v8904
        %9040 = vmatprep.subr.bf16.mxu0 0
        %9041 = vmatpush1.bf16.msra.mxu0 %v8905
        %9042 = vmatprep.subr.bf16.mxu0 0
        %9043 = vmatpush1.bf16.msra.mxu0 %v8906
        %9044 = vmatprep.subr.bf16.mxu0 0
        %9045 = vmatpush1.bf16.msra.mxu0 %v8907
        %9046 = vmatprep.subr.bf16.mxu0 0
        %9047 = vmatpush1.bf16.msra.mxu0 %v8908
        %9048 = vmatprep.subr.bf16.mxu0 0
        %9049 = vmatpush1.bf16.msra.mxu0 %v8909
        %9050 = vmatprep.subr.bf16.mxu0 0
        %9051 = vmatpush1.bf16.msra.mxu0 %v8910
        %9052 = vmatprep.subr.bf16.mxu0 0
        %9053 = vmatpush1.bf16.msra.mxu0 %v8911
        %9054 = vmatprep.subr.bf16.mxu0 0
        %9055 = vmatpush1.bf16.msra.mxu0 %v8912
        %9056 = vmatprep.subr.bf16.mxu0 0
        %9057 = vmatpush1.bf16.msra.mxu0 %v8913
        %9058 = vmatprep.mubr.bf16.mxu0 %v8496
        %9059 = vmatmul.mubr.bf16.gmra.mrb[0].mxu0 %v8495
        %v9060 = vpop.f32.mrb[0].mxu0
        %v9061 = vadd.f32 %v8640, %v9060
        %v9062 = vpop.f32.mrb[0].mxu0
        %v9063 = vpop.f32.mrb[0].mxu0
        %v9064 = vpop.f32.mrb[0].mxu0
        %9065 = vdwg.mxu0
        %9066 = vmatprep.subr.bf16.mxu0 0
        %9067 = vmatpush1.bf16.msra.mxu0 %v8914
        %9068 = vmatprep.subr.bf16.mxu0 0
        %9069 = vmatpush1.bf16.msra.mxu0 %v8915
        %9070 = vmatprep.subr.bf16.mxu0 0
        %9071 = vmatpush1.bf16.msra.mxu0 %v8916
        %9072 = vmatprep.subr.bf16.mxu0 0
        %9073 = vmatpush1.bf16.msra.mxu0 %v8917
        %9074 = vmatprep.subr.bf16.mxu0 0
        %9075 = vmatpush1.bf16.msra.mxu0 %v8918
        %9076 = vmatprep.subr.bf16.mxu0 0
        %9077 = vmatpush1.bf16.msra.mxu0 %v8919
        %9078 = vmatprep.subr.bf16.mxu0 0
        %9079 = vmatpush1.bf16.msra.mxu0 %v8920
        %9080 = vmatprep.subr.bf16.mxu0 0
        %9081 = vmatpush1.bf16.msra.mxu0 %v8921
        %9082 = vmatprep.subr.bf16.mxu0 0
        %9083 = vmatpush1.bf16.msra.mxu0 %v8922
        %9084 = vmatprep.subr.bf16.mxu0 0
        %9085 = vmatpush1.bf16.msra.mxu0 %v8923
        %9086 = vmatprep.subr.bf16.mxu0 0
        %9087 = vmatpush1.bf16.msra.mxu0 %v8924
        %9088 = vmatprep.subr.bf16.mxu0 0
        %9089 = vmatpush1.bf16.msra.mxu0 %v8925
        %9090 = vmatprep.subr.bf16.mxu0 0
        %9091 = vmatpush1.bf16.msra.mxu0 %v8926
        %9092 = vmatprep.subr.bf16.mxu0 0
        %9093 = vmatpush1.bf16.msra.mxu0 %v8927
        %9094 = vmatprep.subr.bf16.mxu0 0
        %9095 = vmatpush1.bf16.msra.mxu0 %v8928
        %9096 = vmatprep.subr.bf16.mxu0 0
        %9097 = vmatpush1.bf16.msra.mxu0 %v8929
        %9098 = vmatprep.mubr.bf16.mxu0 %v8498
        %9099 = vmatmul.mubr.bf16.gmra.mrb[0].mxu0 %v8497
        %v9100 = vpop.f32.mrb[0].mxu0
        %v9101 = vadd.f32 %v9061, %v9100
        %v9102 = vpop.f32.mrb[0].mxu0
        %v9103 = vpop.f32.mrb[0].mxu0
        %v9104 = vpop.f32.mrb[0].mxu0
        %9105 = vdwg.mxu0
        %9106 = vmatprep.subr.bf16.mxu0 0
        %9107 = vmatpush1.bf16.msra.mxu0 %v8930
        %9108 = vmatprep.subr.bf16.mxu0 0
        %9109 = vmatpush1.bf16.msra.mxu0 %v8931
        %9110 = vmatprep.subr.bf16.mxu0 0
        %9111 = vmatpush1.bf16.msra.mxu0 %v8932
        %9112 = vmatprep.subr.bf16.mxu0 0
        %9113 = vmatpush1.bf16.msra.mxu0 %v8933
        %9114 = vmatprep.subr.bf16.mxu0 0
        %9115 = vmatpush1.bf16.msra.mxu0 %v8934
        %9116 = vmatprep.subr.bf16.mxu0 0
        %9117 = vmatpush1.bf16.msra.mxu0 %v8935
        %9118 = vmatprep.subr.bf16.mxu0 0
        %9119 = vmatpush1.bf16.msra.mxu0 %v8936
        %9120 = vmatprep.subr.bf16.mxu0 0
        %9121 = vmatpush1.bf16.msra.mxu0 %v8937
        %9122 = vmatprep.subr.bf16.mxu0 0
        %9123 = vmatpush1.bf16.msra.mxu0 %v8938
        %9124 = vmatprep.subr.bf16.mxu0 0
        %9125 = vmatpush1.bf16.msra.mxu0 %v8939
        %9126 = vmatprep.subr.bf16.mxu0 0
        %9127 = vmatpush1.bf16.msra.mxu0 %v8940
        %9128 = vmatprep.subr.bf16.mxu0 0
        %9129 = vmatpush1.bf16.msra.mxu0 %v8941
        %9130 = vmatprep.subr.bf16.mxu0 0
        %9131 = vmatpush1.bf16.msra.mxu0 %v8942
        %9132 = vmatprep.subr.bf16.mxu0 0
        %9133 = vmatpush1.bf16.msra.mxu0 %v8943
        %9134 = vmatprep.subr.bf16.mxu0 0
        %9135 = vmatpush1.bf16.msra.mxu0 %v8944
        %9136 = vmatprep.subr.bf16.mxu0 0
        %9137 = vmatpush1.bf16.msra.mxu0 %v8945
        %9138 = vmatprep.mubr.bf16.mxu0 %v8500
        %9139 = vmatmul.mubr.bf16.gmra.mrb[0].mxu0 %v8499
        %v9140 = vpop.f32.mrb[0].mxu0
        %v9141 = vadd.f32 %v9101, %v9140
        %v9142 = vpop.f32.mrb[0].mxu0
        %v9143 = vpop.f32.mrb[0].mxu0
        %v9144 = vpop.f32.mrb[0].mxu0
        %9145 = vdwg.mxu0
        %9146 = vmatprep.subr.bf16.mxu0 0
        %9147 = vmatpush1.bf16.msra.mxu0 %v8946
        %9148 = vmatprep.subr.bf16.mxu0 0
        %9149 = vmatpush1.bf16.msra.mxu0 %v8947
        %9150 = vmatprep.subr.bf16.mxu0 0
        %9151 = vmatpush1.bf16.msra.mxu0 %v8948
        %9152 = vmatprep.subr.bf16.mxu0 0
        %9153 = vmatpush1.bf16.msra.mxu0 %v8949
        %9154 = vmatprep.subr.bf16.mxu0 0
        %9155 = vmatpush1.bf16.msra.mxu0 %v8950
        %9156 = vmatprep.subr.bf16.mxu0 0
        %9157 = vmatpush1.bf16.msra.mxu0 %v8951
        %9158 = vmatprep.subr.bf16.mxu0 0
        %9159 = vmatpush1.bf16.msra.mxu0 %v8952
        %9160 = vmatprep.subr.bf16.mxu0 0
        %9161 = vmatpush1.bf16.msra.mxu0 %v8953
        %9162 = vmatprep.subr.bf16.mxu0 0
        %9163 = vmatpush1.bf16.msra.mxu0 %v8954
        %9164 = vmatprep.subr.bf16.mxu0 0
        %9165 = vmatpush1.bf16.msra.mxu0 %v8955
        %9166 = vmatprep.subr.bf16.mxu0 0
        %9167 = vmatpush1.bf16.msra.mxu0 %v8956
        %9168 = vmatprep.subr.bf16.mxu0 0
        %9169 = vmatpush1.bf16.msra.mxu0 %v8957
        %9170 = vmatprep.subr.bf16.mxu0 0
        %9171 = vmatpush1.bf16.msra.mxu0 %v8958
        %9172 = vmatprep.subr.bf16.mxu0 0
        %9173 = vmatpush1.bf16.msra.mxu0 %v8959
        %9174 = vmatprep.subr.bf16.mxu0 0
        %9175 = vmatpush1.bf16.msra.mxu0 %v8960
        %9176 = vmatprep.subr.bf16.mxu0 0
        %9177 = vmatpush1.bf16.msra.mxu0 %v8961
        %9178 = vmatprep.mubr.bf16.mxu0 %v8502
        %9179 = vmatmul.mubr.bf16.gmra.mrb[0].mxu0 %v8501
        %v9180 = vpop.f32.mrb[0].mxu0
        %v9181 = vadd.f32 %v9141, %v9180
        %v9182 = vpop.f32.mrb[0].mxu0
        %v9183 = vpop.f32.mrb[0].mxu0
        %v9184 = vpop.f32.mrb[0].mxu0
        %9185 = vdwg.mxu0
        %vm9186 = vcmask 72704
        %9187 = vst.msk [vmem:[%s400] sm:$0xff] %vm9186, %v9181
        %s9188 = sand.u32 %s197, 1
        %s9189 = scalar_lea.sflag [#allocation4], %s9188
        %s9190 = sand.u32 %s197, 1
        %s9191 = smul.addr %s9190, 8
        %s9192 = scalar_lea.vmem [#allocation13], %s9191
        // Predicated region
        $region73: #{tpu_custom_call.1} parent=47 // pred_check
          %p9193 = pneg %p207
        $region74: #{tpu_custom_call.1} parent=47 // pred_check_branch
          %9195 = sbr.rel (%p9193) target = $region76
        $region75: #{tpu_custom_call.1} parent=47 // pred_region
          %s9197 = ssub.s32 128, 128
          %9198 = vsyncadd %s9189, %s9197
          %s9199 = smul.addr %s27, 128
          %s9200 = scalar_lea.hbm %s7, %s9199
          %s9202 = sshll.u32 %s9192, 4
          %s9203 = int_to_ptr.vmem [resolvable:$true] %s9202
          %9205 = dma.vmem_to_hbm [thread:$0]  %s9203, 128, %s9200, %s9189
        $region76: #{tpu_custom_call.1} parent=47 // pred_fallthru
          _
      $region48: #{tpu_custom_call.1} parent=5 // pred_fallthru
        _
      %p9206 = scmp.le.s32.totalorder 2, %s22
      // Predicated region
      $region77: #{tpu_custom_call.1} parent=5 // pred_check
        %p9207 = pneg %p9206
      $region78: #{tpu_custom_call.1} parent=5 // pred_check_branch
        %9209 = sbr.rel (%p9207) target = $region80
      $region79: #{tpu_custom_call.1} parent=5 // pred_region
        %s9210 = ssub.s32 %s22, 2
        // Predicated region
        $region81: #{tpu_custom_call.1} parent=79 // pred_check
          %p9211 = pneg %p213
        $region82: #{tpu_custom_call.1} parent=79 // pred_check_branch
          %9213 = sbr.rel (%p9211) target = $region84
        $region83: #{tpu_custom_call.1} parent=79 // pred_region
          %s9214 = sand.u32 %s198, 1
          %s9215 = scalar_lea.sflag [#allocation4], %s9214
          %s9216 = sand.u32 %s198, 1
          %s9217 = smul.addr %s9216, 8
          %s9218 = scalar_lea.vmem [#allocation13], %s9217
          %9219 = dma.done %s9215, 128
        $region84: #{tpu_custom_call.1} parent=79 // pred_fallthru
          _
      $region80: #{tpu_custom_call.1} parent=5 // pred_fallthru
        _
    $region6: #{tpu_custom_call.1} parent=1 // loop_footer
      %s26 = sadd.s32 1, %s22
    $region7: #{tpu_custom_call.1} parent=1 // loop_footer_branch
      %21 = sbr.rel target = $region3
    $region8: #{tpu_custom_call.1} parent=1 // loop_exit
      _
    %9220 = vsyncpa [#allocation3], 1
    %s9221 = scalar_lea.sflag [#allocation3], 1
    %9222 = vsyncpa %s9221, 1
    %9223 = vsyncpa [#allocation6], 1
    %9224 = vsyncpa [#allocation9], 1
    %s9225 = scalar_lea.sflag [#allocation9], 1
    %9226 = vsyncpa %s9225, 1
    %9227 = vsyncpa [#allocation12], 1
    %9228 = vsyncpa [#allocation4], 1
    %s9229 = scalar_lea.sflag [#allocation4], 1
    %9230 = vsyncpa %s9229, 1

</llo_original>
